<compile_context>
chip_gen: v5e
topology: v5e:2x2
jax: 0.10.0
libtpu: 0.0.40
codegen_flags: <defaults>
</compile_context>

<pallas_src>
import functools
import numpy as np
import jax
import jax.numpy as jnp
from jax.experimental import pallas as pl
from jax.experimental.pallas import tpu as pltpu

# ----------------------- small synthetic config -----------------------
B = 2             # batch
LV = 8            # vision token sequence length (per stream)
VIS_DIM = 16      # cfg.vision_embedding
H = 32            # backbone hidden_size
NHEAD = 4         # cfg.nhead
DH = H // NHEAD   # head dim
NUM_LAYERS = 2    # cfg.num_encoder_layers
FF = 64           # TransformerEncoderLayer dim_feedforward (small; torch default 2048)
NUM_CLASSES = 4   # cfg.num_classes
S_TEXT = 8        # text sequence length
L_SEQ = 2 * LV + 1
LN_EPS = 1e-5
FC_PAD = 128      # lane-dense padded fc output width

# NOTE: FF == 2*H in this config, so the width-64 slabs hold both the 2H-wide
# vision_proj pieces and the FF-wide FFN pieces.
SLAB_WIDTH = dict(w32=H, w64=2 * H, w128=FC_PAD, c32=H, c64=2 * H, c128=FC_PAD)


def positional_encoding(length, embed_dim):
    dim = embed_dim // 2
    position = np.arange(length)[:, np.newaxis]
    d = np.arange(dim)[np.newaxis, :] / dim
    angle = 1.0 / 10000.0 ** d
    angle = position * angle
    return np.concatenate([np.sin(angle), np.cos(angle)], axis=-1).astype(np.float32)


def _align8(n):
    return (n + 7) // 8 * 8


def slab_layout():
    """Static row layout of the packed constant slabs (all offsets 8-aligned)."""
    def build(entries):
        offs, n = {}, 0
        for name, rows in entries:
            offs[name] = n
            n += _align8(rows)
        return offs, n

    w32 = [("vp_w2", 2 * H)]                                             # bf16, width H
    w64 = [("vp_w1", VIS_DIM)]                                           # bf16, width 2H
    w128 = [("fc_w", 2 * H)]                                             # bf16, width 128
    c32 = [("vp_b2", 1), ("vp_g2", 1), ("vp_be2", 1), ("pos", L_SEQ)]    # f32,  width H
    c64 = [("vp_b1", 1), ("vp_g1", 1), ("vp_be1", 1)]                    # f32,  width 2H
    c128 = [("fc_b", 1)]                                                 # f32,  width 128
    for l in range(NUM_LAYERS):
        for hh in range(NHEAD):
            w32 += [(f"wq{l}_{hh}", H), (f"wk{l}_{hh}", H), (f"wvo{l}_{hh}", H)]
            c32 += [(f"bq{l}_{hh}", 1), (f"bk{l}_{hh}", 1)]
        w32 += [(f"ffw2_{l}", FF)]
        w64 += [(f"ffw1_{l}", H)]
        c32 += [(f"attnb{l}", 1), (f"n1g{l}", 1), (f"n1b{l}", 1),
                (f"ffb2_{l}", 1), (f"n2g{l}", 1), (f"n2b{l}", 1)]
        c64 += [(f"ffb1_{l}", 1)]
    names = dict(w32=w32, w64=w64, w128=w128, c32=c32, c64=c64, c128=c128)
    return {k: build(v) for k, v in names.items()}


# ----------------------------- fused kernel --------------------------------
def _fused_forward_kernel(vis_ref, text_ref, mask_ref,
                          w32_ref, w64_ref, w128_ref,
                          c32_ref, c64_ref, c128_ref,
                          out_ref, feat_ref,
                          *, bb, nhead, num_layers, eps):
    f32, bf16 = jnp.float32, jnp.bfloat16
    lay = slab_layout()
    O32, O64, O128 = lay["w32"][0], lay["w64"][0], lay["w128"][0]
    C32, C64, C128 = lay["c32"][0], lay["c64"][0], lay["c128"][0]

    def w32(name, rows):
        o = O32[name]
        return w32_ref[o:o + rows, :]

    def w64(name, rows):
        o = O64[name]
        return w64_ref[o:o + rows, :]

    def c32r(name):
        o = C32[name]
        return c32_ref[o:o + 1, :]

    def c64r(name):
        o = C64[name]
        return c64_ref[o:o + 1, :]

    def mm(x, w):
        # activations f32 -> bf16, weights pre-cast bf16, f32 MXU accumulation.
        return jnp.dot(x.astype(bf16), w, preferred_element_type=f32)

    def layer_norm(x, g, b):
        mu = jnp.mean(x, axis=-1, keepdims=True)
        var = jnp.mean((x - mu) ** 2, axis=-1, keepdims=True)   # biased, like torch LN
        return (x - mu) * jax.lax.rsqrt(var + eps) * g + b

    def gelu(x):
        # TODO(synk): tanh approximation of nn.GELU() (erf-exact in PyTorch).
        c = 0.7978845608028654  # sqrt(2/pi)
        return 0.5 * x * (1.0 + jnp.tanh(c * (x + 0.044715 * x * x * x)))

    def softmax_rows(s):
        s = s - jnp.max(s, axis=-1, keepdims=True)
        p = jnp.exp(s)
        return p * pl.reciprocal(jnp.sum(p, axis=-1, keepdims=True), approx=True)

    lv2 = vis_ref.shape[1]                                   # 2*LV
    pos = c32_ref[C32["pos"]:C32["pos"] + L_SEQ, :]          # [L, H], loaded once

    for b in range(bb):
        # ---- vision_proj on both vision streams at once: [2*LV, VIS_DIM] -> [2*LV, H]
        v = vis_ref[b].astype(f32)
        h = gelu(layer_norm(mm(v, w64("vp_w1", VIS_DIM)) + c64r("vp_b1"),
                            c64r("vp_g1"), c64r("vp_be1")))
        h = gelu(layer_norm(mm(h, w32("vp_w2", 2 * H)) + c32r("vp_b2"),
                            c32r("vp_g2"), c32r("vp_be2")))

        # ---- assemble [vis1 | vis2 | sep] with pos folded into the stores.
        # sep_token is the model's zero buffer, so its row is just the pos row.
        feat_ref[0:lv2, :] = h + pos[0:lv2, :]
        feat_ref[lv2:L_SEQ, :] = pos[lv2:L_SEQ, :]
        x = feat_ref[0:L_SEQ, :]                                      # [L, H]

        # ---- transformer encoder layers (norm_first=False, relu FFN, dropout off)
        for l in range(num_layers):
            attn = None
            for hh in range(nhead):
                # per-head Q/K via column-padded [H,H] weights (1/sqrt(dh) folded into Wq)
                q = mm(x, w32(f"wq{l}_{hh}", H)) + c32r(f"bq{l}_{hh}")   # [L, H]
                k = mm(x, w32(f"wk{l}_{hh}", H)) + c32r(f"bk{l}_{hh}")   # [L, H]
                s = jax.lax.dot_general(q.astype(bf16), k.astype(bf16),
                                        (((1,), (1,)), ((), ())),
                                        preferred_element_type=f32)      # [L, L]
                p = softmax_rows(s)
                # V and the output projection are folded: Wvo = Wv_h @ Wo[h rows]
                xvo = mm(x, w32(f"wvo{l}_{hh}", H))                      # [L, H]
                o = jnp.dot(p.astype(bf16), xvo.astype(bf16),
                            preferred_element_type=f32)                  # [L, H]
                attn = o if attn is None else attn + o
            attn = attn + c32r(f"attnb{l}")      # (bv @ Wo + out_bias), precomputed

            x = layer_norm(x + attn, c32r(f"n1g{l}"), c32r(f"n1b{l}"))

            ff = jnp.maximum(mm(x, w64(f"ffw1_{l}", H)) + c64r(f"ffb1_{l}"), 0.0)
            ff = mm(ff, w32(f"ffw2_{l}", FF)) + c32r(f"ffb2_{l}")
            x = layer_norm(x + ff, c32r(f"n2g{l}"), c32r(f"n2b{l}"))

        # ---- token mean-pool + text MeanPooling + fc head (no lane concat)
        feat_mean = jnp.mean(x, axis=0, keepdims=True)                   # [1, H]

        th = text_ref[b].astype(f32)                                     # [S, H]
        tm = mask_ref[b].astype(f32)                                     # [S, 1]
        s_emb = jnp.sum(th * tm, axis=0, keepdims=True)                  # [1, H]
        cnt = jnp.maximum(jnp.sum(tm, axis=0, keepdims=True), 1e-9)      # clamp(min=1e-9)
        text_feat = s_emb / cnt                                          # [1, H]

        fo = O128["fc_w"]
        logits = (mm(feat_mean, w128_ref[fo:fo + H, :])
                  + mm(text_feat, w128_ref[fo + H:fo + 2 * H, :])
                  + c128_ref[C128["fc_b"]:C128["fc_b"] + 1, :])          # [1, 128]
        out_ref[b] = logits.astype(out_ref.dtype)


# --------------------------- wrapper ------------------------------
@functools.partial(jax.jit, static_argnames=("bb",))
def forward(params, vis1, vis2, text_hidden, text_mask, *, bb):
    bsz = vis1.shape[0]
    assert bsz % bb == 0
    vis = jnp.concatenate([vis1, vis2], axis=1)                 # (B, 2*LV, VIS_DIM)
    mask3 = text_mask.astype(jnp.float32)[:, :, None]           # (B, S, 1)

    kernel = functools.partial(_fused_forward_kernel, bb=bb, nhead=NHEAD,
                               num_layers=NUM_LAYERS, eps=LN_EPS)

    def batched_spec(arr):
        shp = (bb,) + tuple(arr.shape[1:])
        nd = arr.ndim
        return pl.BlockSpec(shp, lambda i: (i,) + (0,) * (nd - 1))

    def full_spec(arr):
        nd = arr.ndim
        return pl.BlockSpec(tuple(arr.shape), lambda i: (0,) * nd)

    slabs = [params["w32"], params["w64"], params["w128"],
             params["c32"], params["c64"], params["c128"]]

    out = pl.pallas_call(
        kernel,
        grid=(bsz // bb,),
        out_shape=jax.ShapeDtypeStruct((bsz, 1, FC_PAD), jnp.float32),
        in_specs=([batched_spec(vis), batched_spec(text_hidden), batched_spec(mask3)]
                  + [full_spec(s) for s in slabs]),
        out_specs=pl.BlockSpec((bb, 1, FC_PAD), lambda i: (i, 0, 0)),
        scratch_shapes=[pltpu.VMEM((_align8(L_SEQ), H), jnp.float32)],
        # v7x: bb=1 + "parallel" lets the two TensorCores take one batch element
        # each (switch to pltpu.CORE_PARALLEL if a profile shows one core idle);
        # v5e/v6e: bb=B makes this a single grid step (no extra pipeline step).
        compiler_params=pltpu.CompilerParams(dimension_semantics=("parallel",)),
    )(vis, text_hidden, mask3, *slabs)

    return out[:, 0, :NUM_CLASSES]


# --------------------------- parameter init / packing ----------------------------
def make_params(seed=0):
    rng = np.random.default_rng(seed)
    std = 0.02                                         # initializer_range
    scale = 1.0 / np.sqrt(DH)

    def w(shape):
        return rng.normal(0.0, std, shape).astype(np.float32)

    def bvec(n):
        return rng.normal(0.0, std, (1, n)).astype(np.float32)

    lay = slab_layout()
    bufs = {k: np.zeros((rows, SLAB_WIDTH[k]), np.float32)
            for k, (_, rows) in lay.items()}

    def put(slab, name, arr):
        arr = np.asarray(arr, np.float32)
        if arr.ndim == 1:
            arr = arr[None, :]
        off = lay[slab][0][name]
        r, c = arr.shape
        bufs[slab][off:off + r, :c] = arr              # narrower pieces are zero-padded

    # vision_proj: Linear(16,64) -> LN(64) -> GELU -> Linear(64,32) -> LN(32) -> GELU
    put("w64", "vp_w1", w((VIS_DIM, 2 * H)));  put("c64", "vp_b1", bvec(2 * H))
    put("c64", "vp_g1", np.ones((1, 2 * H)));  put("c64", "vp_be1", np.zeros((1, 2 * H)))
    put("w32", "vp_w2", w((2 * H, H)));        put("c32", "vp_b2", bvec(H))
    put("c32", "vp_g2", np.ones((1, H)));      put("c32", "vp_be2", np.zeros((1, H)))

    # positional rows permuted to the kernel's sequence order [vis1 | vis2 | sep]
    # (PyTorch order is [vis1 | sep | vis2]; full self-attention + mean-pool are
    #  permutation invariant as long as each token keeps its own pos row).
    pe = positional_encoding(256, H)
    put("c32", "pos",
        np.concatenate([pe[:LV], pe[LV + 1:L_SEQ], pe[LV:LV + 1]], axis=0))

    # transformer encoder layers (x @ W convention for all weights)
    for l in range(NUM_LAYERS):
        wq, wk, wv = w((H, H)), w((H, H)), w((H, H))
        bq, bk, bv = bvec(H), bvec(H), bvec(H)
        wo, bo = w((H, H)), bvec(H)
        for hh in range(NHEAD):
            c0, c1 = hh * DH, (hh + 1) * DH
            put("w32", f"wq{l}_{hh}", wq[:, c0:c1] * scale)   # 1/sqrt(dh) folded into Wq
            put("c32", f"bq{l}_{hh}", bq[:, c0:c1] * scale)
            put("w32", f"wk{l}_{hh}", wk[:, c0:c1])
            put("c32", f"bk{l}_{hh}", bk[:, c0:c1])
            put("w32", f"wvo{l}_{hh}", wv[:, c0:c1] @ wo[c0:c1, :])   # V/out-proj folded
        put("c32", f"attnb{l}", bv @ wo + bo)                          # folded attn bias
        put("c32", f"n1g{l}", np.ones((1, H)));  put("c32", f"n1b{l}", np.zeros((1, H)))
        put("w64", f"ffw1_{l}", w((H, FF)));     put("c64", f"ffb1_{l}", bvec(FF))
        put("w32", f"ffw2_{l}", w((FF, H)));     put("c32", f"ffb2_{l}", bvec(H))
        put("c32", f"n2g{l}", np.ones((1, H)));  put("c32", f"n2b{l}", np.zeros((1, H)))

    # fc head: Linear(2H, NUM_CLASSES) with normal(0, initializer_range) weights and
    # zero bias (per _init_weights), zero-padded to a lane-dense 128-wide output.
    put("w128", "fc_w", w((2 * H, NUM_CLASSES)))
    put("c128", "fc_b", np.zeros((1, FC_PAD)))

    return {"w32": jnp.asarray(bufs["w32"], jnp.bfloat16),
            "w64": jnp.asarray(bufs["w64"], jnp.bfloat16),
            "w128": jnp.asarray(bufs["w128"], jnp.bfloat16),
            "c32": jnp.asarray(bufs["c32"], jnp.float32),
            "c64": jnp.asarray(bufs["c64"], jnp.float32),
            "c128": jnp.asarray(bufs["c128"], jnp.float32)}


def pick_batch_block(batch):
    """v7x (2 TensorCores/chip): split the batch across cores (bb=1, grid=(B,)).
       v5e/v6e (1 TC): fold the whole batch into a single grid step (bb=B)."""
    try:
        kind = jax.devices()[0].device_kind.lower()
    except Exception:
        kind = ""
    if "v7" in kind and batch % 2 == 0:
        return 1
    return batch


# ------------------------------- main -----------------------------------
if __name__ == "__main__":
    params = make_params(0)

    root = jax.random.PRNGKey(0)
    k_v1, k_v2, k_txt = jax.random.split(root, 3)
    vis1 = jax.random.normal(k_v1, (B, LV, VIS_DIM), jnp.float32)
    vis2 = jax.random.normal(k_v2, (B, LV, VIS_DIM), jnp.float32)
    # simulated HF-backbone last_hidden_state + attention mask (last 2 tokens padded)
    text_hidden = jax.random.normal(k_txt, (B, S_TEXT, H), jnp.float32)
    text_mask = jnp.ones((B, S_TEXT), jnp.float32).at[:, S_TEXT - 2:].set(0.0)

    bb = pick_batch_block(B)
    out = forward(params, vis1, vis2, text_hidden, text_mask, bb=bb)
    out = jax.block_until_ready(out)

    assert out.shape == (B, NUM_CLASSES), out.shape
    assert bool(jnp.all(jnp.isfinite(out)))
    print("KERNEL_OK")
</pallas_src>

<mosaic_0001>
module attributes {stable_mosaic.version = 11 : i64} {
  func.func @_fused_forward_kernel(%arg0: i32, %arg1: memref<2x16x16xf32, #tpu.memory_space<vmem>>, %arg2: memref<2x8x32xf32, #tpu.memory_space<vmem>>, %arg3: memref<2x8x1xf32, #tpu.memory_space<vmem>>, %arg4: memref<960x32xbf16, #tpu.memory_space<vmem>>, %arg5: memref<80x64xbf16, #tpu.memory_space<vmem>>, %arg6: memref<64x128xbf16, #tpu.memory_space<vmem>>, %arg7: memref<272x32xf32, #tpu.memory_space<vmem>>, %arg8: memref<40x64xf32, #tpu.memory_space<vmem>>, %arg9: memref<8x128xf32, #tpu.memory_space<vmem>>, %arg10: memref<2x1x128xf32, #tpu.memory_space<vmem>>, %arg11: memref<24x32xf32, #tpu.memory_space<vmem>>) attributes {dimension_semantics = [#tpu.dimension_semantics<parallel>], iteration_bounds = array<i64: 1>, scalar_prefetch = 0 : i64, scratch_operands = 1 : i64, tpu.core_type = #tpu.core_type<tc>, window_params = [{transform_indices = @transform_0, window_bounds = array<i64: 2, 16, 16>}, {transform_indices = @transform_1, window_bounds = array<i64: 2, 8, 32>}, {transform_indices = @transform_2, window_bounds = array<i64: 2, 8, 1>}, {pipeline_mode = #tpu.pipeline_mode<synchronous>, transform_indices = @transform_3, window_bounds = array<i64: 960, 32>}, {pipeline_mode = #tpu.pipeline_mode<synchronous>, transform_indices = @transform_4, window_bounds = array<i64: 80, 64>}, {pipeline_mode = #tpu.pipeline_mode<synchronous>, transform_indices = @transform_5, window_bounds = array<i64: 64, 128>}, {pipeline_mode = #tpu.pipeline_mode<synchronous>, transform_indices = @transform_6, window_bounds = array<i64: 272, 32>}, {pipeline_mode = #tpu.pipeline_mode<synchronous>, transform_indices = @transform_7, window_bounds = array<i64: 40, 64>}, {pipeline_mode = #tpu.pipeline_mode<synchronous>, transform_indices = @transform_8, window_bounds = array<i64: 8, 128>}, {transform_indices = @transform_9, window_bounds = array<i64: 2, 1, 128>}]} {
    %c24 = arith.constant 24 : index
    %c0 = arith.constant 0 : index
    %0 = vector.load %arg7[%c24, %c0] : memref<272x32xf32, #tpu.memory_space<vmem>>, vector<17x32xf32>
    %c0_0 = arith.constant 0 : index
    %c0_1 = arith.constant 0 : index
    %c0_2 = arith.constant 0 : index
    %1 = vector.load %arg1[%c0_0, %c0_1, %c0_2] : memref<2x16x16xf32, #tpu.memory_space<vmem>>, vector<1x16x16xf32>
    %2 = vector.shape_cast %1 : vector<1x16x16xf32> to vector<16x16xf32>
    %c0_3 = arith.constant 0 : index
    %c0_4 = arith.constant 0 : index
    %3 = vector.load %arg5[%c0_3, %c0_4] : memref<80x64xbf16, #tpu.memory_space<vmem>>, vector<16x64xbf16>
    %4 = arith.truncf %2 : vector<16x16xf32> to vector<16x16xbf16>
    %cst = arith.constant dense<0.000000e+00> : vector<16x64xf32>
    %5 = tpu.matmul %4, %3, %cst {dimension_numbers = #tpu.dot_dimension_numbers<[1], [0], [0], [1], [0, 0, 1, 1], [], []>} : vector<16x16xbf16>, vector<16x64xbf16>, vector<16x64xf32> -> vector<16x64xf32>
    %c0_5 = arith.constant 0 : index
    %c0_6 = arith.constant 0 : index
    %6 = vector.load %arg8[%c0_5, %c0_6] : memref<40x64xf32, #tpu.memory_space<vmem>>, vector<1x64xf32>
    %7 = vector.broadcast %6 : vector<1x64xf32> to vector<16x64xf32>
    %8 = arith.addf %5, %7 : vector<16x64xf32>
    %c8 = arith.constant 8 : index
    %c0_7 = arith.constant 0 : index
    %9 = vector.load %arg8[%c8, %c0_7] : memref<40x64xf32, #tpu.memory_space<vmem>>, vector<1x64xf32>
    %c16 = arith.constant 16 : index
    %c0_8 = arith.constant 0 : index
    %10 = vector.load %arg8[%c16, %c0_8] : memref<40x64xf32, #tpu.memory_space<vmem>>, vector<1x64xf32>
    %cst_9 = arith.constant dense<0.000000e+00> : vector<16xf32>
    %11 = vector.multi_reduction <add>, %8, %cst_9 [1] : vector<16x64xf32> to vector<16xf32>
    %12 = vector.shape_cast %11 : vector<16xf32> to vector<16x1xf32>
    %cst_10 = arith.constant 6.400000e+01 : f32
    %13 = vector.broadcast %cst_10 : f32 to vector<16x1xf32>
    %14 = arith.divf %12, %13 : vector<16x1xf32>
    %15 = vector.broadcast %14 : vector<16x1xf32> to vector<16x64xf32>
    %16 = arith.subf %8, %15 : vector<16x64xf32>
    %17 = arith.mulf %16, %16 : vector<16x64xf32>
    %cst_11 = arith.constant dense<0.000000e+00> : vector<16xf32>
    %18 = vector.multi_reduction <add>, %17, %cst_11 [1] : vector<16x64xf32> to vector<16xf32>
    %19 = vector.shape_cast %18 : vector<16xf32> to vector<16x1xf32>
    %cst_12 = arith.constant 6.400000e+01 : f32
    %20 = vector.broadcast %cst_12 : f32 to vector<16x1xf32>
    %21 = arith.divf %19, %20 : vector<16x1xf32>
    %22 = vector.broadcast %14 : vector<16x1xf32> to vector<16x64xf32>
    %23 = arith.subf %8, %22 : vector<16x64xf32>
    %cst_13 = arith.constant 9.99999974E-6 : f32
    %24 = vector.broadcast %cst_13 : f32 to vector<16x1xf32>
    %25 = arith.addf %21, %24 : vector<16x1xf32>
    %26 = math.rsqrt %25 : vector<16x1xf32>
    %27 = vector.broadcast %26 : vector<16x1xf32> to vector<16x64xf32>
    %28 = arith.mulf %23, %27 : vector<16x64xf32>
    %29 = vector.broadcast %9 : vector<1x64xf32> to vector<16x64xf32>
    %30 = arith.mulf %28, %29 : vector<16x64xf32>
    %31 = vector.broadcast %10 : vector<1x64xf32> to vector<16x64xf32>
    %32 = arith.addf %30, %31 : vector<16x64xf32>
    %cst_14 = arith.constant 5.000000e-01 : f32
    %33 = vector.broadcast %cst_14 : f32 to vector<16x64xf32>
    %34 = arith.mulf %33, %32 : vector<16x64xf32>
    %cst_15 = arith.constant 4.471500e-02 : f32
    %35 = vector.broadcast %cst_15 : f32 to vector<16x64xf32>
    %36 = arith.mulf %35, %32 : vector<16x64xf32>
    %37 = arith.mulf %36, %32 : vector<16x64xf32>
    %38 = arith.mulf %37, %32 : vector<16x64xf32>
    %39 = arith.addf %32, %38 : vector<16x64xf32>
    %cst_16 = arith.constant 0.797884583 : f32
    %40 = vector.broadcast %cst_16 : f32 to vector<16x64xf32>
    %41 = arith.mulf %40, %39 : vector<16x64xf32>
    %42 = math.tanh %41 : vector<16x64xf32>
    %cst_17 = arith.constant 1.000000e+00 : f32
    %43 = vector.broadcast %cst_17 : f32 to vector<16x64xf32>
    %44 = arith.addf %43, %42 : vector<16x64xf32>
    %45 = arith.mulf %34, %44 : vector<16x64xf32>
    %c0_18 = arith.constant 0 : index
    %c0_19 = arith.constant 0 : index
    %46 = vector.load %arg4[%c0_18, %c0_19] : memref<960x32xbf16, #tpu.memory_space<vmem>>, vector<64x32xbf16>
    %47 = arith.truncf %45 : vector<16x64xf32> to vector<16x64xbf16>
    %cst_20 = arith.constant dense<0.000000e+00> : vector<16x32xf32>
    %48 = tpu.matmul %47, %46, %cst_20 {dimension_numbers = #tpu.dot_dimension_numbers<[1], [0], [0], [1], [0, 0, 1, 1], [], []>} : vector<16x64xbf16>, vector<64x32xbf16>, vector<16x32xf32> -> vector<16x32xf32>
    %c0_21 = arith.constant 0 : index
    %c0_22 = arith.constant 0 : index
    %49 = vector.load %arg7[%c0_21, %c0_22] : memref<272x32xf32, #tpu.memory_space<vmem>>, vector<1x32xf32>
    %50 = vector.broadcast %49 : vector<1x32xf32> to vector<16x32xf32>
    %51 = arith.addf %48, %50 : vector<16x32xf32>
    %c8_23 = arith.constant 8 : index
    %c0_24 = arith.constant 0 : index
    %52 = vector.load %arg7[%c8_23, %c0_24] : memref<272x32xf32, #tpu.memory_space<vmem>>, vector<1x32xf32>
    %c16_25 = arith.constant 16 : index
    %c0_26 = arith.constant 0 : index
    %53 = vector.load %arg7[%c16_25, %c0_26] : memref<272x32xf32, #tpu.memory_space<vmem>>, vector<1x32xf32>
    %cst_27 = arith.constant dense<0.000000e+00> : vector<16xf32>
    %54 = vector.multi_reduction <add>, %51, %cst_27 [1] : vector<16x32xf32> to vector<16xf32>
    %55 = vector.shape_cast %54 : vector<16xf32> to vector<16x1xf32>
    %cst_28 = arith.constant 3.200000e+01 : f32
    %56 = vector.broadcast %cst_28 : f32 to vector<16x1xf32>
    %57 = arith.divf %55, %56 : vector<16x1xf32>
    %58 = vector.broadcast %57 : vector<16x1xf32> to vector<16x32xf32>
    %59 = arith.subf %51, %58 : vector<16x32xf32>
    %60 = arith.mulf %59, %59 : vector<16x32xf32>
    %cst_29 = arith.constant dense<0.000000e+00> : vector<16xf32>
    %61 = vector.multi_reduction <add>, %60, %cst_29 [1] : vector<16x32xf32> to vector<16xf32>
    %62 = vector.shape_cast %61 : vector<16xf32> to vector<16x1xf32>
    %cst_30 = arith.constant 3.200000e+01 : f32
    %63 = vector.broadcast %cst_30 : f32 to vector<16x1xf32>
    %64 = arith.divf %62, %63 : vector<16x1xf32>
    %65 = vector.broadcast %57 : vector<16x1xf32> to vector<16x32xf32>
    %66 = arith.subf %51, %65 : vector<16x32xf32>
    %cst_31 = arith.constant 9.99999974E-6 : f32
    %67 = vector.broadcast %cst_31 : f32 to vector<16x1xf32>
    %68 = arith.addf %64, %67 : vector<16x1xf32>
    %69 = math.rsqrt %68 : vector<16x1xf32>
    %70 = vector.broadcast %69 : vector<16x1xf32> to vector<16x32xf32>
    %71 = arith.mulf %66, %70 : vector<16x32xf32>
    %72 = vector.broadcast %52 : vector<1x32xf32> to vector<16x32xf32>
    %73 = arith.mulf %71, %72 : vector<16x32xf32>
    %74 = vector.broadcast %53 : vector<1x32xf32> to vector<16x32xf32>
    %75 = arith.addf %73, %74 : vector<16x32xf32>
    %cst_32 = arith.constant 5.000000e-01 : f32
    %76 = vector.broadcast %cst_32 : f32 to vector<16x32xf32>
    %77 = arith.mulf %76, %75 : vector<16x32xf32>
    %cst_33 = arith.constant 4.471500e-02 : f32
    %78 = vector.broadcast %cst_33 : f32 to vector<16x32xf32>
    %79 = arith.mulf %78, %75 : vector<16x32xf32>
    %80 = arith.mulf %79, %75 : vector<16x32xf32>
    %81 = arith.mulf %80, %75 : vector<16x32xf32>
    %82 = arith.addf %75, %81 : vector<16x32xf32>
    %cst_34 = arith.constant 0.797884583 : f32
    %83 = vector.broadcast %cst_34 : f32 to vector<16x32xf32>
    %84 = arith.mulf %83, %82 : vector<16x32xf32>
    %85 = math.tanh %84 : vector<16x32xf32>
    %cst_35 = arith.constant 1.000000e+00 : f32
    %86 = vector.broadcast %cst_35 : f32 to vector<16x32xf32>
    %87 = arith.addf %86, %85 : vector<16x32xf32>
    %88 = arith.mulf %77, %87 : vector<16x32xf32>
    %89 = vector.extract_strided_slice %0 {offsets = [0, 0], sizes = [16, 32], strides = [1, 1]} : vector<17x32xf32> to vector<16x32xf32>
    %90 = arith.addf %88, %89 : vector<16x32xf32>
    %c0_36 = arith.constant 0 : index
    %c0_37 = arith.constant 0 : index
    %91 = vector.load %arg11[%c0_36, %c0_37] : memref<24x32xf32, #tpu.memory_space<vmem>>, vector<16x32xf32>
    tpu.vector_store %arg11[%c0_36, %c0_37], %90 {strides = array<i32>} : memref<24x32xf32, #tpu.memory_space<vmem>>, vector<16x32xf32>,
    %92 = vector.extract_strided_slice %0 {offsets = [16, 0], sizes = [1, 32], strides = [1, 1]} : vector<17x32xf32> to vector<1x32xf32>
    %c16_38 = arith.constant 16 : index
    %c0_39 = arith.constant 0 : index
    %93 = vector.load %arg11[%c16_38, %c0_39] : memref<24x32xf32, #tpu.memory_space<vmem>>, vector<1x32xf32>
    tpu.vector_store %arg11[%c16_38, %c0_39], %92 {strides = array<i32>} : memref<24x32xf32, #tpu.memory_space<vmem>>, vector<1x32xf32>,
    %c0_40 = arith.constant 0 : index
    %c0_41 = arith.constant 0 : index
    %94 = vector.load %arg11[%c0_40, %c0_41] : memref<24x32xf32, #tpu.memory_space<vmem>>, vector<17x32xf32>
    %c64 = arith.constant 64 : index
    %c0_42 = arith.constant 0 : index
    %95 = vector.load %arg4[%c64, %c0_42] : memref<960x32xbf16, #tpu.memory_space<vmem>>, vector<32x32xbf16>
    %96 = arith.truncf %94 : vector<17x32xf32> to vector<17x32xbf16>
    %cst_43 = arith.constant dense<0.000000e+00> : vector<17x32xf32>
    %97 = tpu.matmul %96, %95, %cst_43 {dimension_numbers = #tpu.dot_dimension_numbers<[1], [0], [0], [1], [0, 0, 1, 1], [], []>} : vector<17x32xbf16>, vector<32x32xbf16>, vector<17x32xf32> -> vector<17x32xf32>
    %c48 = arith.constant 48 : index
    %c0_44 = arith.constant 0 : index
    %98 = vector.load %arg7[%c48, %c0_44] : memref<272x32xf32, #tpu.memory_space<vmem>>, vector<1x32xf32>
    %99 = vector.broadcast %98 : vector<1x32xf32> to vector<17x32xf32>
    %100 = arith.addf %97, %99 : vector<17x32xf32>
    %c96 = arith.constant 96 : index
    %c0_45 = arith.constant 0 : index
    %101 = vector.load %arg4[%c96, %c0_45] : memref<960x32xbf16, #tpu.memory_space<vmem>>, vector<32x32xbf16>
    %102 = arith.truncf %94 : vector<17x32xf32> to vector<17x32xbf16>
    %cst_46 = arith.constant dense<0.000000e+00> : vector<17x32xf32>
    %103 = tpu.matmul %102, %101, %cst_46 {dimension_numbers = #tpu.dot_dimension_numbers<[1], [0], [0], [1], [0, 0, 1, 1], [], []>} : vector<17x32xbf16>, vector<32x32xbf16>, vector<17x32xf32> -> vector<17x32xf32>
    %c56 = arith.constant 56 : index
    %c0_47 = arith.constant 0 : index
    %104 = vector.load %arg7[%c56, %c0_47] : memref<272x32xf32, #tpu.memory_space<vmem>>, vector<1x32xf32>
    %105 = vector.broadcast %104 : vector<1x32xf32> to vector<17x32xf32>
    %106 = arith.addf %103, %105 : vector<17x32xf32>
    %107 = arith.truncf %100 : vector<17x32xf32> to vector<17x32xbf16>
    %108 = arith.truncf %106 : vector<17x32xf32> to vector<17x32xbf16>
    %cst_48 = arith.constant dense<0.000000e+00> : vector<17x17xf32>
    %109 = tpu.matmul %107, %108, %cst_48 {dimension_numbers = #tpu.dot_dimension_numbers<[1], [1], [0], [0], [0, 0, 1, 0], [], []>} : vector<17x32xbf16>, vector<17x32xbf16>, vector<17x17xf32> -> vector<17x17xf32>
    %cst_49 = arith.constant dense<0xFF800000> : vector<17xf32>
    %110 = vector.multi_reduction <maximumf>, %109, %cst_49 [1] : vector<17x17xf32> to vector<17xf32>
    %111 = vector.shape_cast %110 : vector<17xf32> to vector<17x1xf32>
    %112 = vector.broadcast %111 : vector<17x1xf32> to vector<17x17xf32>
    %113 = arith.subf %109, %112 : vector<17x17xf32>
    %114 = math.exp %113 : vector<17x17xf32>
    %cst_50 = arith.constant dense<0.000000e+00> : vector<17xf32>
    %115 = vector.multi_reduction <add>, %114, %cst_50 [1] : vector<17x17xf32> to vector<17xf32>
    %116 = vector.shape_cast %115 : vector<17xf32> to vector<17x1xf32>
    %117 = tpu.reciprocal %116 {approx = true} : vector<17x1xf32> -> vector<17x1xf32>
    %118 = vector.broadcast %117 : vector<17x1xf32> to vector<17x17xf32>
    %119 = arith.mulf %114, %118 : vector<17x17xf32>
    %c128 = arith.constant 128 : index
    %c0_51 = arith.constant 0 : index
    %120 = vector.load %arg4[%c128, %c0_51] : memref<960x32xbf16, #tpu.memory_space<vmem>>, vector<32x32xbf16>
    %121 = arith.truncf %94 : vector<17x32xf32> to vector<17x32xbf16>
    %cst_52 = arith.constant dense<0.000000e+00> : vector<17x32xf32>
    %122 = tpu.matmul %121, %120, %cst_52 {dimension_numbers = #tpu.dot_dimension_numbers<[1], [0], [0], [1], [0, 0, 1, 1], [], []>} : vector<17x32xbf16>, vector<32x32xbf16>, vector<17x32xf32> -> vector<17x32xf32>
    %123 = arith.truncf %119 : vector<17x17xf32> to vector<17x17xbf16>
    %124 = arith.truncf %122 : vector<17x32xf32> to vector<17x32xbf16>
    %cst_53 = arith.constant dense<0.000000e+00> : vector<17x32xf32>
    %125 = tpu.matmul %123, %124, %cst_53 {dimension_numbers = #tpu.dot_dimension_numbers<[1], [0], [0], [1], [0, 0, 1, 1], [], []>} : vector<17x17xbf16>, vector<17x32xbf16>, vector<17x32xf32> -> vector<17x32xf32>
    %c160 = arith.constant 160 : index
    %c0_54 = arith.constant 0 : index
    %126 = vector.load %arg4[%c160, %c0_54] : memref<960x32xbf16, #tpu.memory_space<vmem>>, vector<32x32xbf16>
    %127 = arith.truncf %94 : vector<17x32xf32> to vector<17x32xbf16>
    %cst_55 = arith.constant dense<0.000000e+00> : vector<17x32xf32>
    %128 = tpu.matmul %127, %126, %cst_55 {dimension_numbers = #tpu.dot_dimension_numbers<[1], [0], [0], [1], [0, 0, 1, 1], [], []>} : vector<17x32xbf16>, vector<32x32xbf16>, vector<17x32xf32> -> vector<17x32xf32>
    %c64_56 = arith.constant 64 : index
    %c0_57 = arith.constant 0 : index
    %129 = vector.load %arg7[%c64_56, %c0_57] : memref<272x32xf32, #tpu.memory_space<vmem>>, vector<1x32xf32>
    %130 = vector.broadcast %129 : vector<1x32xf32> to vector<17x32xf32>
    %131 = arith.addf %128, %130 : vector<17x32xf32>
    %c192 = arith.constant 192 : index
    %c0_58 = arith.constant 0 : index
    %132 = vector.load %arg4[%c192, %c0_58] : memref<960x32xbf16, #tpu.memory_space<vmem>>, vector<32x32xbf16>
    %133 = arith.truncf %94 : vector<17x32xf32> to vector<17x32xbf16>
    %cst_59 = arith.constant dense<0.000000e+00> : vector<17x32xf32>
    %134 = tpu.matmul %133, %132, %cst_59 {dimension_numbers = #tpu.dot_dimension_numbers<[1], [0], [0], [1], [0, 0, 1, 1], [], []>} : vector<17x32xbf16>, vector<32x32xbf16>, vector<17x32xf32> -> vector<17x32xf32>
    %c72 = arith.constant 72 : index
    %c0_60 = arith.constant 0 : index
    %135 = vector.load %arg7[%c72, %c0_60] : memref<272x32xf32, #tpu.memory_space<vmem>>, vector<1x32xf32>
    %136 = vector.broadcast %135 : vector<1x32xf32> to vector<17x32xf32>
    %137 = arith.addf %134, %136 : vector<17x32xf32>
    %138 = arith.truncf %131 : vector<17x32xf32> to vector<17x32xbf16>
    %139 = arith.truncf %137 : vector<17x32xf32> to vector<17x32xbf16>
    %cst_61 = arith.constant dense<0.000000e+00> : vector<17x17xf32>
    %140 = tpu.matmul %138, %139, %cst_61 {dimension_numbers = #tpu.dot_dimension_numbers<[1], [1], [0], [0], [0, 0, 1, 0], [], []>} : vector<17x32xbf16>, vector<17x32xbf16>, vector<17x17xf32> -> vector<17x17xf32>
    %cst_62 = arith.constant dense<0xFF800000> : vector<17xf32>
    %141 = vector.multi_reduction <maximumf>, %140, %cst_62 [1] : vector<17x17xf32> to vector<17xf32>
    %142 = vector.shape_cast %141 : vector<17xf32> to vector<17x1xf32>
    %143 = vector.broadcast %142 : vector<17x1xf32> to vector<17x17xf32>
    %144 = arith.subf %140, %143 : vector<17x17xf32>
    %145 = math.exp %144 : vector<17x17xf32>
    %cst_63 = arith.constant dense<0.000000e+00> : vector<17xf32>
    %146 = vector.multi_reduction <add>, %145, %cst_63 [1] : vector<17x17xf32> to vector<17xf32>
    %147 = vector.shape_cast %146 : vector<17xf32> to vector<17x1xf32>
    %148 = tpu.reciprocal %147 {approx = true} : vector<17x1xf32> -> vector<17x1xf32>
    %149 = vector.broadcast %148 : vector<17x1xf32> to vector<17x17xf32>
    %150 = arith.mulf %145, %149 : vector<17x17xf32>
    %c224 = arith.constant 224 : index
    %c0_64 = arith.constant 0 : index
    %151 = vector.load %arg4[%c224, %c0_64] : memref<960x32xbf16, #tpu.memory_space<vmem>>, vector<32x32xbf16>
    %152 = arith.truncf %94 : vector<17x32xf32> to vector<17x32xbf16>
    %cst_65 = arith.constant dense<0.000000e+00> : vector<17x32xf32>
    %153 = tpu.matmul %152, %151, %cst_65 {dimension_numbers = #tpu.dot_dimension_numbers<[1], [0], [0], [1], [0, 0, 1, 1], [], []>} : vector<17x32xbf16>, vector<32x32xbf16>, vector<17x32xf32> -> vector<17x32xf32>
    %154 = arith.truncf %150 : vector<17x17xf32> to vector<17x17xbf16>
    %155 = arith.truncf %153 : vector<17x32xf32> to vector<17x32xbf16>
    %cst_66 = arith.constant dense<0.000000e+00> : vector<17x32xf32>
    %156 = tpu.matmul %154, %155, %cst_66 {dimension_numbers = #tpu.dot_dimension_numbers<[1], [0], [0], [1], [0, 0, 1, 1], [], []>} : vector<17x17xbf16>, vector<17x32xbf16>, vector<17x32xf32> -> vector<17x32xf32>
    %157 = arith.addf %125, %156 : vector<17x32xf32>
    %c256 = arith.constant 256 : index
    %c0_67 = arith.constant 0 : index
    %158 = vector.load %arg4[%c256, %c0_67] : memref<960x32xbf16, #tpu.memory_space<vmem>>, vector<32x32xbf16>
    %159 = arith.truncf %94 : vector<17x32xf32> to vector<17x32xbf16>
    %cst_68 = arith.constant dense<0.000000e+00> : vector<17x32xf32>
    %160 = tpu.matmul %159, %158, %cst_68 {dimension_numbers = #tpu.dot_dimension_numbers<[1], [0], [0], [1], [0, 0, 1, 1], [], []>} : vector<17x32xbf16>, vector<32x32xbf16>, vector<17x32xf32> -> vector<17x32xf32>
    %c80 = arith.constant 80 : index
    %c0_69 = arith.constant 0 : index
    %161 = vector.load %arg7[%c80, %c0_69] : memref<272x32xf32, #tpu.memory_space<vmem>>, vector<1x32xf32>
    %162 = vector.broadcast %161 : vector<1x32xf32> to vector<17x32xf32>
    %163 = arith.addf %160, %162 : vector<17x32xf32>
    %c288 = arith.constant 288 : index
    %c0_70 = arith.constant 0 : index
    %164 = vector.load %arg4[%c288, %c0_70] : memref<960x32xbf16, #tpu.memory_space<vmem>>, vector<32x32xbf16>
    %165 = arith.truncf %94 : vector<17x32xf32> to vector<17x32xbf16>
    %cst_71 = arith.constant dense<0.000000e+00> : vector<17x32xf32>
    %166 = tpu.matmul %165, %164, %cst_71 {dimension_numbers = #tpu.dot_dimension_numbers<[1], [0], [0], [1], [0, 0, 1, 1], [], []>} : vector<17x32xbf16>, vector<32x32xbf16>, vector<17x32xf32> -> vector<17x32xf32>
    %c88 = arith.constant 88 : index
    %c0_72 = arith.constant 0 : index
    %167 = vector.load %arg7[%c88, %c0_72] : memref<272x32xf32, #tpu.memory_space<vmem>>, vector<1x32xf32>
    %168 = vector.broadcast %167 : vector<1x32xf32> to vector<17x32xf32>
    %169 = arith.addf %166, %168 : vector<17x32xf32>
    %170 = arith.truncf %163 : vector<17x32xf32> to vector<17x32xbf16>
    %171 = arith.truncf %169 : vector<17x32xf32> to vector<17x32xbf16>
    %cst_73 = arith.constant dense<0.000000e+00> : vector<17x17xf32>
    %172 = tpu.matmul %170, %171, %cst_73 {dimension_numbers = #tpu.dot_dimension_numbers<[1], [1], [0], [0], [0, 0, 1, 0], [], []>} : vector<17x32xbf16>, vector<17x32xbf16>, vector<17x17xf32> -> vector<17x17xf32>
    %cst_74 = arith.constant dense<0xFF800000> : vector<17xf32>
    %173 = vector.multi_reduction <maximumf>, %172, %cst_74 [1] : vector<17x17xf32> to vector<17xf32>
    %174 = vector.shape_cast %173 : vector<17xf32> to vector<17x1xf32>
    %175 = vector.broadcast %174 : vector<17x1xf32> to vector<17x17xf32>
    %176 = arith.subf %172, %175 : vector<17x17xf32>
    %177 = math.exp %176 : vector<17x17xf32>
    %cst_75 = arith.constant dense<0.000000e+00> : vector<17xf32>
    %178 = vector.multi_reduction <add>, %177, %cst_75 [1] : vector<17x17xf32> to vector<17xf32>
    %179 = vector.shape_cast %178 : vector<17xf32> to vector<17x1xf32>
    %180 = tpu.reciprocal %179 {approx = true} : vector<17x1xf32> -> vector<17x1xf32>
    %181 = vector.broadcast %180 : vector<17x1xf32> to vector<17x17xf32>
    %182 = arith.mulf %177, %181 : vector<17x17xf32>
    %c320 = arith.constant 320 : index
    %c0_76 = arith.constant 0 : index
    %183 = vector.load %arg4[%c320, %c0_76] : memref<960x32xbf16, #tpu.memory_space<vmem>>, vector<32x32xbf16>
    %184 = arith.truncf %94 : vector<17x32xf32> to vector<17x32xbf16>
    %cst_77 = arith.constant dense<0.000000e+00> : vector<17x32xf32>
    %185 = tpu.matmul %184, %183, %cst_77 {dimension_numbers = #tpu.dot_dimension_numbers<[1], [0], [0], [1], [0, 0, 1, 1], [], []>} : vector<17x32xbf16>, vector<32x32xbf16>, vector<17x32xf32> -> vector<17x32xf32>
    %186 = arith.truncf %182 : vector<17x17xf32> to vector<17x17xbf16>
    %187 = arith.truncf %185 : vector<17x32xf32> to vector<17x32xbf16>
    %cst_78 = arith.constant dense<0.000000e+00> : vector<17x32xf32>
    %188 = tpu.matmul %186, %187, %cst_78 {dimension_numbers = #tpu.dot_dimension_numbers<[1], [0], [0], [1], [0, 0, 1, 1], [], []>} : vector<17x17xbf16>, vector<17x32xbf16>, vector<17x32xf32> -> vector<17x32xf32>
    %189 = arith.addf %157, %188 : vector<17x32xf32>
    %c352 = arith.constant 352 : index
    %c0_79 = arith.constant 0 : index
    %190 = vector.load %arg4[%c352, %c0_79] : memref<960x32xbf16, #tpu.memory_space<vmem>>, vector<32x32xbf16>
    %191 = arith.truncf %94 : vector<17x32xf32> to vector<17x32xbf16>
    %cst_80 = arith.constant dense<0.000000e+00> : vector<17x32xf32>
    %192 = tpu.matmul %191, %190, %cst_80 {dimension_numbers = #tpu.dot_dimension_numbers<[1], [0], [0], [1], [0, 0, 1, 1], [], []>} : vector<17x32xbf16>, vector<32x32xbf16>, vector<17x32xf32> -> vector<17x32xf32>
    %c96_81 = arith.constant 96 : index
    %c0_82 = arith.constant 0 : index
    %193 = vector.load %arg7[%c96_81, %c0_82] : memref<272x32xf32, #tpu.memory_space<vmem>>, vector<1x32xf32>
    %194 = vector.broadcast %193 : vector<1x32xf32> to vector<17x32xf32>
    %195 = arith.addf %192, %194 : vector<17x32xf32>
    %c384 = arith.constant 384 : index
    %c0_83 = arith.constant 0 : index
    %196 = vector.load %arg4[%c384, %c0_83] : memref<960x32xbf16, #tpu.memory_space<vmem>>, vector<32x32xbf16>
    %197 = arith.truncf %94 : vector<17x32xf32> to vector<17x32xbf16>
    %cst_84 = arith.constant dense<0.000000e+00> : vector<17x32xf32>
    %198 = tpu.matmul %197, %196, %cst_84 {dimension_numbers = #tpu.dot_dimension_numbers<[1], [0], [0], [1], [0, 0, 1, 1], [], []>} : vector<17x32xbf16>, vector<32x32xbf16>, vector<17x32xf32> -> vector<17x32xf32>
    %c104 = arith.constant 104 : index
    %c0_85 = arith.constant 0 : index
    %199 = vector.load %arg7[%c104, %c0_85] : memref<272x32xf32, #tpu.memory_space<vmem>>, vector<1x32xf32>
    %200 = vector.broadcast %199 : vector<1x32xf32> to vector<17x32xf32>
    %201 = arith.addf %198, %200 : vector<17x32xf32>
    %202 = arith.truncf %195 : vector<17x32xf32> to vector<17x32xbf16>
    %203 = arith.truncf %201 : vector<17x32xf32> to vector<17x32xbf16>
    %cst_86 = arith.constant dense<0.000000e+00> : vector<17x17xf32>
    %204 = tpu.matmul %202, %203, %cst_86 {dimension_numbers = #tpu.dot_dimension_numbers<[1], [1], [0], [0], [0, 0, 1, 0], [], []>} : vector<17x32xbf16>, vector<17x32xbf16>, vector<17x17xf32> -> vector<17x17xf32>
    %cst_87 = arith.constant dense<0xFF800000> : vector<17xf32>
    %205 = vector.multi_reduction <maximumf>, %204, %cst_87 [1] : vector<17x17xf32> to vector<17xf32>
    %206 = vector.shape_cast %205 : vector<17xf32> to vector<17x1xf32>
    %207 = vector.broadcast %206 : vector<17x1xf32> to vector<17x17xf32>
    %208 = arith.subf %204, %207 : vector<17x17xf32>
    %209 = math.exp %208 : vector<17x17xf32>
    %cst_88 = arith.constant dense<0.000000e+00> : vector<17xf32>
    %210 = vector.multi_reduction <add>, %209, %cst_88 [1] : vector<17x17xf32> to vector<17xf32>
    %211 = vector.shape_cast %210 : vector<17xf32> to vector<17x1xf32>
    %212 = tpu.reciprocal %211 {approx = true} : vector<17x1xf32> -> vector<17x1xf32>
    %213 = vector.broadcast %212 : vector<17x1xf32> to vector<17x17xf32>
    %214 = arith.mulf %209, %213 : vector<17x17xf32>
    %c416 = arith.constant 416 : index
    %c0_89 = arith.constant 0 : index
    %215 = vector.load %arg4[%c416, %c0_89] : memref<960x32xbf16, #tpu.memory_space<vmem>>, vector<32x32xbf16>
    %216 = arith.truncf %94 : vector<17x32xf32> to vector<17x32xbf16>
    %cst_90 = arith.constant dense<0.000000e+00> : vector<17x32xf32>
    %217 = tpu.matmul %216, %215, %cst_90 {dimension_numbers = #tpu.dot_dimension_numbers<[1], [0], [0], [1], [0, 0, 1, 1], [], []>} : vector<17x32xbf16>, vector<32x32xbf16>, vector<17x32xf32> -> vector<17x32xf32>
    %218 = arith.truncf %214 : vector<17x17xf32> to vector<17x17xbf16>
    %219 = arith.truncf %217 : vector<17x32xf32> to vector<17x32xbf16>
    %cst_91 = arith.constant dense<0.000000e+00> : vector<17x32xf32>
    %220 = tpu.matmul %218, %219, %cst_91 {dimension_numbers = #tpu.dot_dimension_numbers<[1], [0], [0], [1], [0, 0, 1, 1], [], []>} : vector<17x17xbf16>, vector<17x32xbf16>, vector<17x32xf32> -> vector<17x32xf32>
    %221 = arith.addf %189, %220 : vector<17x32xf32>
    %c112 = arith.constant 112 : index
    %c0_92 = arith.constant 0 : index
    %222 = vector.load %arg7[%c112, %c0_92] : memref<272x32xf32, #tpu.memory_space<vmem>>, vector<1x32xf32>
    %223 = vector.broadcast %222 : vector<1x32xf32> to vector<17x32xf32>
    %224 = arith.addf %221, %223 : vector<17x32xf32>
    %225 = arith.addf %94, %224 : vector<17x32xf32>
    %c120 = arith.constant 120 : index
    %c0_93 = arith.constant 0 : index
    %226 = vector.load %arg7[%c120, %c0_93] : memref<272x32xf32, #tpu.memory_space<vmem>>, vector<1x32xf32>
    %c128_94 = arith.constant 128 : index
    %c0_95 = arith.constant 0 : index
    %227 = vector.load %arg7[%c128_94, %c0_95] : memref<272x32xf32, #tpu.memory_space<vmem>>, vector<1x32xf32>
    %cst_96 = arith.constant dense<0.000000e+00> : vector<17xf32>
    %228 = vector.multi_reduction <add>, %225, %cst_96 [1] : vector<17x32xf32> to vector<17xf32>
    %229 = vector.shape_cast %228 : vector<17xf32> to vector<17x1xf32>
    %cst_97 = arith.constant 3.200000e+01 : f32
    %230 = vector.broadcast %cst_97 : f32 to vector<17x1xf32>
    %231 = arith.divf %229, %230 : vector<17x1xf32>
    %232 = vector.broadcast %231 : vector<17x1xf32> to vector<17x32xf32>
    %233 = arith.subf %225, %232 : vector<17x32xf32>
    %234 = arith.mulf %233, %233 : vector<17x32xf32>
    %cst_98 = arith.constant dense<0.000000e+00> : vector<17xf32>
    %235 = vector.multi_reduction <add>, %234, %cst_98 [1] : vector<17x32xf32> to vector<17xf32>
    %236 = vector.shape_cast %235 : vector<17xf32> to vector<17x1xf32>
    %cst_99 = arith.constant 3.200000e+01 : f32
    %237 = vector.broadcast %cst_99 : f32 to vector<17x1xf32>
    %238 = arith.divf %236, %237 : vector<17x1xf32>
    %239 = vector.broadcast %231 : vector<17x1xf32> to vector<17x32xf32>
    %240 = arith.subf %225, %239 : vector<17x32xf32>
    %cst_100 = arith.constant 9.99999974E-6 : f32
    %241 = vector.broadcast %cst_100 : f32 to vector<17x1xf32>
    %242 = arith.addf %238, %241 : vector<17x1xf32>
    %243 = math.rsqrt %242 : vector<17x1xf32>
    %244 = vector.broadcast %243 : vector<17x1xf32> to vector<17x32xf32>
    %245 = arith.mulf %240, %244 : vector<17x32xf32>
    %246 = vector.broadcast %226 : vector<1x32xf32> to vector<17x32xf32>
    %247 = arith.mulf %245, %246 : vector<17x32xf32>
    %248 = vector.broadcast %227 : vector<1x32xf32> to vector<17x32xf32>
    %249 = arith.addf %247, %248 : vector<17x32xf32>
    %c16_101 = arith.constant 16 : index
    %c0_102 = arith.constant 0 : index
    %250 = vector.load %arg5[%c16_101, %c0_102] : memref<80x64xbf16, #tpu.memory_space<vmem>>, vector<32x64xbf16>
    %251 = arith.truncf %249 : vector<17x32xf32> to vector<17x32xbf16>
    %cst_103 = arith.constant dense<0.000000e+00> : vector<17x64xf32>
    %252 = tpu.matmul %251, %250, %cst_103 {dimension_numbers = #tpu.dot_dimension_numbers<[1], [0], [0], [1], [0, 0, 1, 1], [], []>} : vector<17x32xbf16>, vector<32x64xbf16>, vector<17x64xf32> -> vector<17x64xf32>
    %c24_104 = arith.constant 24 : index
    %c0_105 = arith.constant 0 : index
    %253 = vector.load %arg8[%c24_104, %c0_105] : memref<40x64xf32, #tpu.memory_space<vmem>>, vector<1x64xf32>
    %254 = vector.broadcast %253 : vector<1x64xf32> to vector<17x64xf32>
    %255 = arith.addf %252, %254 : vector<17x64xf32>
    %cst_106 = arith.constant 0.000000e+00 : f32
    %256 = vector.broadcast %cst_106 : f32 to vector<17x64xf32>
    %257 = arith.maximumf %255, %256 : vector<17x64xf32>
    %c448 = arith.constant 448 : index
    %c0_107 = arith.constant 0 : index
    %258 = vector.load %arg4[%c448, %c0_107] : memref<960x32xbf16, #tpu.memory_space<vmem>>, vector<64x32xbf16>
    %259 = arith.truncf %257 : vector<17x64xf32> to vector<17x64xbf16>
    %cst_108 = arith.constant dense<0.000000e+00> : vector<17x32xf32>
    %260 = tpu.matmul %259, %258, %cst_108 {dimension_numbers = #tpu.dot_dimension_numbers<[1], [0], [0], [1], [0, 0, 1, 1], [], []>} : vector<17x64xbf16>, vector<64x32xbf16>, vector<17x32xf32> -> vector<17x32xf32>
    %c136 = arith.constant 136 : index
    %c0_109 = arith.constant 0 : index
    %261 = vector.load %arg7[%c136, %c0_109] : memref<272x32xf32, #tpu.memory_space<vmem>>, vector<1x32xf32>
    %262 = vector.broadcast %261 : vector<1x32xf32> to vector<17x32xf32>
    %263 = arith.addf %260, %262 : vector<17x32xf32>
    %264 = arith.addf %249, %263 : vector<17x32xf32>
    %c144 = arith.constant 144 : index
    %c0_110 = arith.constant 0 : index
    %265 = vector.load %arg7[%c144, %c0_110] : memref<272x32xf32, #tpu.memory_space<vmem>>, vector<1x32xf32>
    %c152 = arith.constant 152 : index
    %c0_111 = arith.constant 0 : index
    %266 = vector.load %arg7[%c152, %c0_111] : memref<272x32xf32, #tpu.memory_space<vmem>>, vector<1x32xf32>
    %cst_112 = arith.constant dense<0.000000e+00> : vector<17xf32>
    %267 = vector.multi_reduction <add>, %264, %cst_112 [1] : vector<17x32xf32> to vector<17xf32>
    %268 = vector.shape_cast %267 : vector<17xf32> to vector<17x1xf32>
    %cst_113 = arith.constant 3.200000e+01 : f32
    %269 = vector.broadcast %cst_113 : f32 to vector<17x1xf32>
    %270 = arith.divf %268, %269 : vector<17x1xf32>
    %271 = vector.broadcast %270 : vector<17x1xf32> to vector<17x32xf32>
    %272 = arith.subf %264, %271 : vector<17x32xf32>
    %273 = arith.mulf %272, %272 : vector<17x32xf32>
    %cst_114 = arith.constant dense<0.000000e+00> : vector<17xf32>
    %274 = vector.multi_reduction <add>, %273, %cst_114 [1] : vector<17x32xf32> to vector<17xf32>
    %275 = vector.shape_cast %274 : vector<17xf32> to vector<17x1xf32>
    %cst_115 = arith.constant 3.200000e+01 : f32
    %276 = vector.broadcast %cst_115 : f32 to vector<17x1xf32>
    %277 = arith.divf %275, %276 : vector<17x1xf32>
    %278 = vector.broadcast %270 : vector<17x1xf32> to vector<17x32xf32>
    %279 = arith.subf %264, %278 : vector<17x32xf32>
    %cst_116 = arith.constant 9.99999974E-6 : f32
    %280 = vector.broadcast %cst_116 : f32 to vector<17x1xf32>
    %281 = arith.addf %277, %280 : vector<17x1xf32>
    %282 = math.rsqrt %281 : vector<17x1xf32>
    %283 = vector.broadcast %282 : vector<17x1xf32> to vector<17x32xf32>
    %284 = arith.mulf %279, %283 : vector<17x32xf32>
    %285 = vector.broadcast %265 : vector<1x32xf32> to vector<17x32xf32>
    %286 = arith.mulf %284, %285 : vector<17x32xf32>
    %287 = vector.broadcast %266 : vector<1x32xf32> to vector<17x32xf32>
    %288 = arith.addf %286, %287 : vector<17x32xf32>
    %c512 = arith.constant 512 : index
    %c0_117 = arith.constant 0 : index
    %289 = vector.load %arg4[%c512, %c0_117] : memref<960x32xbf16, #tpu.memory_space<vmem>>, vector<32x32xbf16>
    %290 = arith.truncf %288 : vector<17x32xf32> to vector<17x32xbf16>
    %cst_118 = arith.constant dense<0.000000e+00> : vector<17x32xf32>
    %291 = tpu.matmul %290, %289, %cst_118 {dimension_numbers = #tpu.dot_dimension_numbers<[1], [0], [0], [1], [0, 0, 1, 1], [], []>} : vector<17x32xbf16>, vector<32x32xbf16>, vector<17x32xf32> -> vector<17x32xf32>
    %c160_119 = arith.constant 160 : index
    %c0_120 = arith.constant 0 : index
    %292 = vector.load %arg7[%c160_119, %c0_120] : memref<272x32xf32, #tpu.memory_space<vmem>>, vector<1x32xf32>
    %293 = vector.broadcast %292 : vector<1x32xf32> to vector<17x32xf32>
    %294 = arith.addf %291, %293 : vector<17x32xf32>
    %c544 = arith.constant 544 : index
    %c0_121 = arith.constant 0 : index
    %295 = vector.load %arg4[%c544, %c0_121] : memref<960x32xbf16, #tpu.memory_space<vmem>>, vector<32x32xbf16>
    %296 = arith.truncf %288 : vector<17x32xf32> to vector<17x32xbf16>
    %cst_122 = arith.constant dense<0.000000e+00> : vector<17x32xf32>
    %297 = tpu.matmul %296, %295, %cst_122 {dimension_numbers = #tpu.dot_dimension_numbers<[1], [0], [0], [1], [0, 0, 1, 1], [], []>} : vector<17x32xbf16>, vector<32x32xbf16>, vector<17x32xf32> -> vector<17x32xf32>
    %c168 = arith.constant 168 : index
    %c0_123 = arith.constant 0 : index
    %298 = vector.load %arg7[%c168, %c0_123] : memref<272x32xf32, #tpu.memory_space<vmem>>, vector<1x32xf32>
    %299 = vector.broadcast %298 : vector<1x32xf32> to vector<17x32xf32>
    %300 = arith.addf %297, %299 : vector<17x32xf32>
    %301 = arith.truncf %294 : vector<17x32xf32> to vector<17x32xbf16>
    %302 = arith.truncf %300 : vector<17x32xf32> to vector<17x32xbf16>
    %cst_124 = arith.constant dense<0.000000e+00> : vector<17x17xf32>
    %303 = tpu.matmul %301, %302, %cst_124 {dimension_numbers = #tpu.dot_dimension_numbers<[1], [1], [0], [0], [0, 0, 1, 0], [], []>} : vector<17x32xbf16>, vector<17x32xbf16>, vector<17x17xf32> -> vector<17x17xf32>
    %cst_125 = arith.constant dense<0xFF800000> : vector<17xf32>
    %304 = vector.multi_reduction <maximumf>, %303, %cst_125 [1] : vector<17x17xf32> to vector<17xf32>
    %305 = vector.shape_cast %304 : vector<17xf32> to vector<17x1xf32>
    %306 = vector.broadcast %305 : vector<17x1xf32> to vector<17x17xf32>
    %307 = arith.subf %303, %306 : vector<17x17xf32>
    %308 = math.exp %307 : vector<17x17xf32>
    %cst_126 = arith.constant dense<0.000000e+00> : vector<17xf32>
    %309 = vector.multi_reduction <add>, %308, %cst_126 [1] : vector<17x17xf32> to vector<17xf32>
    %310 = vector.shape_cast %309 : vector<17xf32> to vector<17x1xf32>
    %311 = tpu.reciprocal %310 {approx = true} : vector<17x1xf32> -> vector<17x1xf32>
    %312 = vector.broadcast %311 : vector<17x1xf32> to vector<17x17xf32>
    %313 = arith.mulf %308, %312 : vector<17x17xf32>
    %c576 = arith.constant 576 : index
    %c0_127 = arith.constant 0 : index
    %314 = vector.load %arg4[%c576, %c0_127] : memref<960x32xbf16, #tpu.memory_space<vmem>>, vector<32x32xbf16>
    %315 = arith.truncf %288 : vector<17x32xf32> to vector<17x32xbf16>
    %cst_128 = arith.constant dense<0.000000e+00> : vector<17x32xf32>
    %316 = tpu.matmul %315, %314, %cst_128 {dimension_numbers = #tpu.dot_dimension_numbers<[1], [0], [0], [1], [0, 0, 1, 1], [], []>} : vector<17x32xbf16>, vector<32x32xbf16>, vector<17x32xf32> -> vector<17x32xf32>
    %317 = arith.truncf %313 : vector<17x17xf32> to vector<17x17xbf16>
    %318 = arith.truncf %316 : vector<17x32xf32> to vector<17x32xbf16>
    %cst_129 = arith.constant dense<0.000000e+00> : vector<17x32xf32>
    %319 = tpu.matmul %317, %318, %cst_129 {dimension_numbers = #tpu.dot_dimension_numbers<[1], [0], [0], [1], [0, 0, 1, 1], [], []>} : vector<17x17xbf16>, vector<17x32xbf16>, vector<17x32xf32> -> vector<17x32xf32>
    %c608 = arith.constant 608 : index
    %c0_130 = arith.constant 0 : index
    %320 = vector.load %arg4[%c608, %c0_130] : memref<960x32xbf16, #tpu.memory_space<vmem>>, vector<32x32xbf16>
    %321 = arith.truncf %288 : vector<17x32xf32> to vector<17x32xbf16>
    %cst_131 = arith.constant dense<0.000000e+00> : vector<17x32xf32>
    %322 = tpu.matmul %321, %320, %cst_131 {dimension_numbers = #tpu.dot_dimension_numbers<[1], [0], [0], [1], [0, 0, 1, 1], [], []>} : vector<17x32xbf16>, vector<32x32xbf16>, vector<17x32xf32> -> vector<17x32xf32>
    %c176 = arith.constant 176 : index
    %c0_132 = arith.constant 0 : index
    %323 = vector.load %arg7[%c176, %c0_132] : memref<272x32xf32, #tpu.memory_space<vmem>>, vector<1x32xf32>
    %324 = vector.broadcast %323 : vector<1x32xf32> to vector<17x32xf32>
    %325 = arith.addf %322, %324 : vector<17x32xf32>
    %c640 = arith.constant 640 : index
    %c0_133 = arith.constant 0 : index
    %326 = vector.load %arg4[%c640, %c0_133] : memref<960x32xbf16, #tpu.memory_space<vmem>>, vector<32x32xbf16>
    %327 = arith.truncf %288 : vector<17x32xf32> to vector<17x32xbf16>
    %cst_134 = arith.constant dense<0.000000e+00> : vector<17x32xf32>
    %328 = tpu.matmul %327, %326, %cst_134 {dimension_numbers = #tpu.dot_dimension_numbers<[1], [0], [0], [1], [0, 0, 1, 1], [], []>} : vector<17x32xbf16>, vector<32x32xbf16>, vector<17x32xf32> -> vector<17x32xf32>
    %c184 = arith.constant 184 : index
    %c0_135 = arith.constant 0 : index
    %329 = vector.load %arg7[%c184, %c0_135] : memref<272x32xf32, #tpu.memory_space<vmem>>, vector<1x32xf32>
    %330 = vector.broadcast %329 : vector<1x32xf32> to vector<17x32xf32>
    %331 = arith.addf %328, %330 : vector<17x32xf32>
    %332 = arith.truncf %325 : vector<17x32xf32> to vector<17x32xbf16>
    %333 = arith.truncf %331 : vector<17x32xf32> to vector<17x32xbf16>
    %cst_136 = arith.constant dense<0.000000e+00> : vector<17x17xf32>
    %334 = tpu.matmul %332, %333, %cst_136 {dimension_numbers = #tpu.dot_dimension_numbers<[1], [1], [0], [0], [0, 0, 1, 0], [], []>} : vector<17x32xbf16>, vector<17x32xbf16>, vector<17x17xf32> -> vector<17x17xf32>
    %cst_137 = arith.constant dense<0xFF800000> : vector<17xf32>
    %335 = vector.multi_reduction <maximumf>, %334, %cst_137 [1] : vector<17x17xf32> to vector<17xf32>
    %336 = vector.shape_cast %335 : vector<17xf32> to vector<17x1xf32>
    %337 = vector.broadcast %336 : vector<17x1xf32> to vector<17x17xf32>
    %338 = arith.subf %334, %337 : vector<17x17xf32>
    %339 = math.exp %338 : vector<17x17xf32>
    %cst_138 = arith.constant dense<0.000000e+00> : vector<17xf32>
    %340 = vector.multi_reduction <add>, %339, %cst_138 [1] : vector<17x17xf32> to vector<17xf32>
    %341 = vector.shape_cast %340 : vector<17xf32> to vector<17x1xf32>
    %342 = tpu.reciprocal %341 {approx = true} : vector<17x1xf32> -> vector<17x1xf32>
    %343 = vector.broadcast %342 : vector<17x1xf32> to vector<17x17xf32>
    %344 = arith.mulf %339, %343 : vector<17x17xf32>
    %c672 = arith.constant 672 : index
    %c0_139 = arith.constant 0 : index
    %345 = vector.load %arg4[%c672, %c0_139] : memref<960x32xbf16, #tpu.memory_space<vmem>>, vector<32x32xbf16>
    %346 = arith.truncf %288 : vector<17x32xf32> to vector<17x32xbf16>
    %cst_140 = arith.constant dense<0.000000e+00> : vector<17x32xf32>
    %347 = tpu.matmul %346, %345, %cst_140 {dimension_numbers = #tpu.dot_dimension_numbers<[1], [0], [0], [1], [0, 0, 1, 1], [], []>} : vector<17x32xbf16>, vector<32x32xbf16>, vector<17x32xf32> -> vector<17x32xf32>
    %348 = arith.truncf %344 : vector<17x17xf32> to vector<17x17xbf16>
    %349 = arith.truncf %347 : vector<17x32xf32> to vector<17x32xbf16>
    %cst_141 = arith.constant dense<0.000000e+00> : vector<17x32xf32>
    %350 = tpu.matmul %348, %349, %cst_141 {dimension_numbers = #tpu.dot_dimension_numbers<[1], [0], [0], [1], [0, 0, 1, 1], [], []>} : vector<17x17xbf16>, vector<17x32xbf16>, vector<17x32xf32> -> vector<17x32xf32>
    %351 = arith.addf %319, %350 : vector<17x32xf32>
    %c704 = arith.constant 704 : index
    %c0_142 = arith.constant 0 : index
    %352 = vector.load %arg4[%c704, %c0_142] : memref<960x32xbf16, #tpu.memory_space<vmem>>, vector<32x32xbf16>
    %353 = arith.truncf %288 : vector<17x32xf32> to vector<17x32xbf16>
    %cst_143 = arith.constant dense<0.000000e+00> : vector<17x32xf32>
    %354 = tpu.matmul %353, %352, %cst_143 {dimension_numbers = #tpu.dot_dimension_numbers<[1], [0], [0], [1], [0, 0, 1, 1], [], []>} : vector<17x32xbf16>, vector<32x32xbf16>, vector<17x32xf32> -> vector<17x32xf32>
    %c192_144 = arith.constant 192 : index
    %c0_145 = arith.constant 0 : index
    %355 = vector.load %arg7[%c192_144, %c0_145] : memref<272x32xf32, #tpu.memory_space<vmem>>, vector<1x32xf32>
    %356 = vector.broadcast %355 : vector<1x32xf32> to vector<17x32xf32>
    %357 = arith.addf %354, %356 : vector<17x32xf32>
    %c736 = arith.constant 736 : index
    %c0_146 = arith.constant 0 : index
    %358 = vector.load %arg4[%c736, %c0_146] : memref<960x32xbf16, #tpu.memory_space<vmem>>, vector<32x32xbf16>
    %359 = arith.truncf %288 : vector<17x32xf32> to vector<17x32xbf16>
    %cst_147 = arith.constant dense<0.000000e+00> : vector<17x32xf32>
    %360 = tpu.matmul %359, %358, %cst_147 {dimension_numbers = #tpu.dot_dimension_numbers<[1], [0], [0], [1], [0, 0, 1, 1], [], []>} : vector<17x32xbf16>, vector<32x32xbf16>, vector<17x32xf32> -> vector<17x32xf32>
    %c200 = arith.constant 200 : index
    %c0_148 = arith.constant 0 : index
    %361 = vector.load %arg7[%c200, %c0_148] : memref<272x32xf32, #tpu.memory_space<vmem>>, vector<1x32xf32>
    %362 = vector.broadcast %361 : vector<1x32xf32> to vector<17x32xf32>
    %363 = arith.addf %360, %362 : vector<17x32xf32>
    %364 = arith.truncf %357 : vector<17x32xf32> to vector<17x32xbf16>
    %365 = arith.truncf %363 : vector<17x32xf32> to vector<17x32xbf16>
    %cst_149 = arith.constant dense<0.000000e+00> : vector<17x17xf32>
    %366 = tpu.matmul %364, %365, %cst_149 {dimension_numbers = #tpu.dot_dimension_numbers<[1], [1], [0], [0], [0, 0, 1, 0], [], []>} : vector<17x32xbf16>, vector<17x32xbf16>, vector<17x17xf32> -> vector<17x17xf32>
    %cst_150 = arith.constant dense<0xFF800000> : vector<17xf32>
    %367 = vector.multi_reduction <maximumf>, %366, %cst_150 [1] : vector<17x17xf32> to vector<17xf32>
    %368 = vector.shape_cast %367 : vector<17xf32> to vector<17x1xf32>
    %369 = vector.broadcast %368 : vector<17x1xf32> to vector<17x17xf32>
    %370 = arith.subf %366, %369 : vector<17x17xf32>
    %371 = math.exp %370 : vector<17x17xf32>
    %cst_151 = arith.constant dense<0.000000e+00> : vector<17xf32>
    %372 = vector.multi_reduction <add>, %371, %cst_151 [1] : vector<17x17xf32> to vector<17xf32>
    %373 = vector.shape_cast %372 : vector<17xf32> to vector<17x1xf32>
    %374 = tpu.reciprocal %373 {approx = true} : vector<17x1xf32> -> vector<17x1xf32>
    %375 = vector.broadcast %374 : vector<17x1xf32> to vector<17x17xf32>
    %376 = arith.mulf %371, %375 : vector<17x17xf32>
    %c768 = arith.constant 768 : index
    %c0_152 = arith.constant 0 : index
    %377 = vector.load %arg4[%c768, %c0_152] : memref<960x32xbf16, #tpu.memory_space<vmem>>, vector<32x32xbf16>
    %378 = arith.truncf %288 : vector<17x32xf32> to vector<17x32xbf16>
    %cst_153 = arith.constant dense<0.000000e+00> : vector<17x32xf32>
    %379 = tpu.matmul %378, %377, %cst_153 {dimension_numbers = #tpu.dot_dimension_numbers<[1], [0], [0], [1], [0, 0, 1, 1], [], []>} : vector<17x32xbf16>, vector<32x32xbf16>, vector<17x32xf32> -> vector<17x32xf32>
    %380 = arith.truncf %376 : vector<17x17xf32> to vector<17x17xbf16>
    %381 = arith.truncf %379 : vector<17x32xf32> to vector<17x32xbf16>
    %cst_154 = arith.constant dense<0.000000e+00> : vector<17x32xf32>
    %382 = tpu.matmul %380, %381, %cst_154 {dimension_numbers = #tpu.dot_dimension_numbers<[1], [0], [0], [1], [0, 0, 1, 1], [], []>} : vector<17x17xbf16>, vector<17x32xbf16>, vector<17x32xf32> -> vector<17x32xf32>
    %383 = arith.addf %351, %382 : vector<17x32xf32>
    %c800 = arith.constant 800 : index
    %c0_155 = arith.constant 0 : index
    %384 = vector.load %arg4[%c800, %c0_155] : memref<960x32xbf16, #tpu.memory_space<vmem>>, vector<32x32xbf16>
    %385 = arith.truncf %288 : vector<17x32xf32> to vector<17x32xbf16>
    %cst_156 = arith.constant dense<0.000000e+00> : vector<17x32xf32>
    %386 = tpu.matmul %385, %384, %cst_156 {dimension_numbers = #tpu.dot_dimension_numbers<[1], [0], [0], [1], [0, 0, 1, 1], [], []>} : vector<17x32xbf16>, vector<32x32xbf16>, vector<17x32xf32> -> vector<17x32xf32>
    %c208 = arith.constant 208 : index
    %c0_157 = arith.constant 0 : index
    %387 = vector.load %arg7[%c208, %c0_157] : memref<272x32xf32, #tpu.memory_space<vmem>>, vector<1x32xf32>
    %388 = vector.broadcast %387 : vector<1x32xf32> to vector<17x32xf32>
    %389 = arith.addf %386, %388 : vector<17x32xf32>
    %c832 = arith.constant 832 : index
    %c0_158 = arith.constant 0 : index
    %390 = vector.load %arg4[%c832, %c0_158] : memref<960x32xbf16, #tpu.memory_space<vmem>>, vector<32x32xbf16>
    %391 = arith.truncf %288 : vector<17x32xf32> to vector<17x32xbf16>
    %cst_159 = arith.constant dense<0.000000e+00> : vector<17x32xf32>
    %392 = tpu.matmul %391, %390, %cst_159 {dimension_numbers = #tpu.dot_dimension_numbers<[1], [0], [0], [1], [0, 0, 1, 1], [], []>} : vector<17x32xbf16>, vector<32x32xbf16>, vector<17x32xf32> -> vector<17x32xf32>
    %c216 = arith.constant 216 : index
    %c0_160 = arith.constant 0 : index
    %393 = vector.load %arg7[%c216, %c0_160] : memref<272x32xf32, #tpu.memory_space<vmem>>, vector<1x32xf32>
    %394 = vector.broadcast %393 : vector<1x32xf32> to vector<17x32xf32>
    %395 = arith.addf %392, %394 : vector<17x32xf32>
    %396 = arith.truncf %389 : vector<17x32xf32> to vector<17x32xbf16>
    %397 = arith.truncf %395 : vector<17x32xf32> to vector<17x32xbf16>
    %cst_161 = arith.constant dense<0.000000e+00> : vector<17x17xf32>
    %398 = tpu.matmul %396, %397, %cst_161 {dimension_numbers = #tpu.dot_dimension_numbers<[1], [1], [0], [0], [0, 0, 1, 0], [], []>} : vector<17x32xbf16>, vector<17x32xbf16>, vector<17x17xf32> -> vector<17x17xf32>
    %cst_162 = arith.constant dense<0xFF800000> : vector<17xf32>
    %399 = vector.multi_reduction <maximumf>, %398, %cst_162 [1] : vector<17x17xf32> to vector<17xf32>
    %400 = vector.shape_cast %399 : vector<17xf32> to vector<17x1xf32>
    %401 = vector.broadcast %400 : vector<17x1xf32> to vector<17x17xf32>
    %402 = arith.subf %398, %401 : vector<17x17xf32>
    %403 = math.exp %402 : vector<17x17xf32>
    %cst_163 = arith.constant dense<0.000000e+00> : vector<17xf32>
    %404 = vector.multi_reduction <add>, %403, %cst_163 [1] : vector<17x17xf32> to vector<17xf32>
    %405 = vector.shape_cast %404 : vector<17xf32> to vector<17x1xf32>
    %406 = tpu.reciprocal %405 {approx = true} : vector<17x1xf32> -> vector<17x1xf32>
    %407 = vector.broadcast %406 : vector<17x1xf32> to vector<17x17xf32>
    %408 = arith.mulf %403, %407 : vector<17x17xf32>
    %c864 = arith.constant 864 : index
    %c0_164 = arith.constant 0 : index
    %409 = vector.load %arg4[%c864, %c0_164] : memref<960x32xbf16, #tpu.memory_space<vmem>>, vector<32x32xbf16>
    %410 = arith.truncf %288 : vector<17x32xf32> to vector<17x32xbf16>
    %cst_165 = arith.constant dense<0.000000e+00> : vector<17x32xf32>
    %411 = tpu.matmul %410, %409, %cst_165 {dimension_numbers = #tpu.dot_dimension_numbers<[1], [0], [0], [1], [0, 0, 1, 1], [], []>} : vector<17x32xbf16>, vector<32x32xbf16>, vector<17x32xf32> -> vector<17x32xf32>
    %412 = arith.truncf %408 : vector<17x17xf32> to vector<17x17xbf16>
    %413 = arith.truncf %411 : vector<17x32xf32> to vector<17x32xbf16>
    %cst_166 = arith.constant dense<0.000000e+00> : vector<17x32xf32>
    %414 = tpu.matmul %412, %413, %cst_166 {dimension_numbers = #tpu.dot_dimension_numbers<[1], [0], [0], [1], [0, 0, 1, 1], [], []>} : vector<17x17xbf16>, vector<17x32xbf16>, vector<17x32xf32> -> vector<17x32xf32>
    %415 = arith.addf %383, %414 : vector<17x32xf32>
    %c224_167 = arith.constant 224 : index
    %c0_168 = arith.constant 0 : index
    %416 = vector.load %arg7[%c224_167, %c0_168] : memref<272x32xf32, #tpu.memory_space<vmem>>, vector<1x32xf32>
    %417 = vector.broadcast %416 : vector<1x32xf32> to vector<17x32xf32>
    %418 = arith.addf %415, %417 : vector<17x32xf32>
    %419 = arith.addf %288, %418 : vector<17x32xf32>
    %c232 = arith.constant 232 : index
    %c0_169 = arith.constant 0 : index
    %420 = vector.load %arg7[%c232, %c0_169] : memref<272x32xf32, #tpu.memory_space<vmem>>, vector<1x32xf32>
    %c240 = arith.constant 240 : index
    %c0_170 = arith.constant 0 : index
    %421 = vector.load %arg7[%c240, %c0_170] : memref<272x32xf32, #tpu.memory_space<vmem>>, vector<1x32xf32>
    %cst_171 = arith.constant dense<0.000000e+00> : vector<17xf32>
    %422 = vector.multi_reduction <add>, %419, %cst_171 [1] : vector<17x32xf32> to vector<17xf32>
    %423 = vector.shape_cast %422 : vector<17xf32> to vector<17x1xf32>
    %cst_172 = arith.constant 3.200000e+01 : f32
    %424 = vector.broadcast %cst_172 : f32 to vector<17x1xf32>
    %425 = arith.divf %423, %424 : vector<17x1xf32>
    %426 = vector.broadcast %425 : vector<17x1xf32> to vector<17x32xf32>
    %427 = arith.subf %419, %426 : vector<17x32xf32>
    %428 = arith.mulf %427, %427 : vector<17x32xf32>
    %cst_173 = arith.constant dense<0.000000e+00> : vector<17xf32>
    %429 = vector.multi_reduction <add>, %428, %cst_173 [1] : vector<17x32xf32> to vector<17xf32>
    %430 = vector.shape_cast %429 : vector<17xf32> to vector<17x1xf32>
    %cst_174 = arith.constant 3.200000e+01 : f32
    %431 = vector.broadcast %cst_174 : f32 to vector<17x1xf32>
    %432 = arith.divf %430, %431 : vector<17x1xf32>
    %433 = vector.broadcast %425 : vector<17x1xf32> to vector<17x32xf32>
    %434 = arith.subf %419, %433 : vector<17x32xf32>
    %cst_175 = arith.constant 9.99999974E-6 : f32
    %435 = vector.broadcast %cst_175 : f32 to vector<17x1xf32>
    %436 = arith.addf %432, %435 : vector<17x1xf32>
    %437 = math.rsqrt %436 : vector<17x1xf32>
    %438 = vector.broadcast %437 : vector<17x1xf32> to vector<17x32xf32>
    %439 = arith.mulf %434, %438 : vector<17x32xf32>
    %440 = vector.broadcast %420 : vector<1x32xf32> to vector<17x32xf32>
    %441 = arith.mulf %439, %440 : vector<17x32xf32>
    %442 = vector.broadcast %421 : vector<1x32xf32> to vector<17x32xf32>
    %443 = arith.addf %441, %442 : vector<17x32xf32>
    %c48_176 = arith.constant 48 : index
    %c0_177 = arith.constant 0 : index
    %444 = vector.load %arg5[%c48_176, %c0_177] : memref<80x64xbf16, #tpu.memory_space<vmem>>, vector<32x64xbf16>
    %445 = arith.truncf %443 : vector<17x32xf32> to vector<17x32xbf16>
    %cst_178 = arith.constant dense<0.000000e+00> : vector<17x64xf32>
    %446 = tpu.matmul %445, %444, %cst_178 {dimension_numbers = #tpu.dot_dimension_numbers<[1], [0], [0], [1], [0, 0, 1, 1], [], []>} : vector<17x32xbf16>, vector<32x64xbf16>, vector<17x64xf32> -> vector<17x64xf32>
    %c32 = arith.constant 32 : index
    %c0_179 = arith.constant 0 : index
    %447 = vector.load %arg8[%c32, %c0_179] : memref<40x64xf32, #tpu.memory_space<vmem>>, vector<1x64xf32>
    %448 = vector.broadcast %447 : vector<1x64xf32> to vector<17x64xf32>
    %449 = arith.addf %446, %448 : vector<17x64xf32>
    %cst_180 = arith.constant 0.000000e+00 : f32
    %450 = vector.broadcast %cst_180 : f32 to vector<17x64xf32>
    %451 = arith.maximumf %449, %450 : vector<17x64xf32>
    %c896 = arith.constant 896 : index
    %c0_181 = arith.constant 0 : index
    %452 = vector.load %arg4[%c896, %c0_181] : memref<960x32xbf16, #tpu.memory_space<vmem>>, vector<64x32xbf16>
    %453 = arith.truncf %451 : vector<17x64xf32> to vector<17x64xbf16>
    %cst_182 = arith.constant dense<0.000000e+00> : vector<17x32xf32>
    %454 = tpu.matmul %453, %452, %cst_182 {dimension_numbers = #tpu.dot_dimension_numbers<[1], [0], [0], [1], [0, 0, 1, 1], [], []>} : vector<17x64xbf16>, vector<64x32xbf16>, vector<17x32xf32> -> vector<17x32xf32>
    %c248 = arith.constant 248 : index
    %c0_183 = arith.constant 0 : index
    %455 = vector.load %arg7[%c248, %c0_183] : memref<272x32xf32, #tpu.memory_space<vmem>>, vector<1x32xf32>
    %456 = vector.broadcast %455 : vector<1x32xf32> to vector<17x32xf32>
    %457 = arith.addf %454, %456 : vector<17x32xf32>
    %458 = arith.addf %443, %457 : vector<17x32xf32>
    %c256_184 = arith.constant 256 : index
    %c0_185 = arith.constant 0 : index
    %459 = vector.load %arg7[%c256_184, %c0_185] : memref<272x32xf32, #tpu.memory_space<vmem>>, vector<1x32xf32>
    %c264 = arith.constant 264 : index
    %c0_186 = arith.constant 0 : index
    %460 = vector.load %arg7[%c264, %c0_186] : memref<272x32xf32, #tpu.memory_space<vmem>>, vector<1x32xf32>
    %cst_187 = arith.constant dense<0.000000e+00> : vector<17xf32>
    %461 = vector.multi_reduction <add>, %458, %cst_187 [1] : vector<17x32xf32> to vector<17xf32>
    %462 = vector.shape_cast %461 : vector<17xf32> to vector<17x1xf32>
    %cst_188 = arith.constant 3.200000e+01 : f32
    %463 = vector.broadcast %cst_188 : f32 to vector<17x1xf32>
    %464 = arith.divf %462, %463 : vector<17x1xf32>
    %465 = vector.broadcast %464 : vector<17x1xf32> to vector<17x32xf32>
    %466 = arith.subf %458, %465 : vector<17x32xf32>
    %467 = arith.mulf %466, %466 : vector<17x32xf32>
    %cst_189 = arith.constant dense<0.000000e+00> : vector<17xf32>
    %468 = vector.multi_reduction <add>, %467, %cst_189 [1] : vector<17x32xf32> to vector<17xf32>
    %469 = vector.shape_cast %468 : vector<17xf32> to vector<17x1xf32>
    %cst_190 = arith.constant 3.200000e+01 : f32
    %470 = vector.broadcast %cst_190 : f32 to vector<17x1xf32>
    %471 = arith.divf %469, %470 : vector<17x1xf32>
    %472 = vector.broadcast %464 : vector<17x1xf32> to vector<17x32xf32>
    %473 = arith.subf %458, %472 : vector<17x32xf32>
    %cst_191 = arith.constant 9.99999974E-6 : f32
    %474 = vector.broadcast %cst_191 : f32 to vector<17x1xf32>
    %475 = arith.addf %471, %474 : vector<17x1xf32>
    %476 = math.rsqrt %475 : vector<17x1xf32>
    %477 = vector.broadcast %476 : vector<17x1xf32> to vector<17x32xf32>
    %478 = arith.mulf %473, %477 : vector<17x32xf32>
    %479 = vector.broadcast %459 : vector<1x32xf32> to vector<17x32xf32>
    %480 = arith.mulf %478, %479 : vector<17x32xf32>
    %481 = vector.broadcast %460 : vector<1x32xf32> to vector<17x32xf32>
    %482 = arith.addf %480, %481 : vector<17x32xf32>
    %cst_192 = arith.constant dense<0.000000e+00> : vector<32xf32>
    %483 = vector.multi_reduction <add>, %482, %cst_192 [0] : vector<17x32xf32> to vector<32xf32>
    %484 = vector.shape_cast %483 : vector<32xf32> to vector<1x32xf32>
    %cst_193 = arith.constant 1.700000e+01 : f32
    %485 = vector.broadcast %cst_193 : f32 to vector<1x32xf32>
    %486 = arith.divf %484, %485 : vector<1x32xf32>
    %c0_194 = arith.constant 0 : index
    %c0_195 = arith.constant 0 : index
    %c0_196 = arith.constant 0 : index
    %487 = vector.load %arg2[%c0_194, %c0_195, %c0_196] : memref<2x8x32xf32, #tpu.memory_space<vmem>>, vector<1x8x32xf32>
    %488 = vector.shape_cast %487 : vector<1x8x32xf32> to vector<8x32xf32>
    %c0_197 = arith.constant 0 : index
    %c0_198 = arith.constant 0 : index
    %c0_199 = arith.constant 0 : index
    %489 = vector.load %arg3[%c0_197, %c0_198, %c0_199] : memref<2x8x1xf32, #tpu.memory_space<vmem>>, vector<1x8x1xf32>
    %490 = vector.shape_cast %489 : vector<1x8x1xf32> to vector<8x1xf32>
    %491 = vector.broadcast %490 : vector<8x1xf32> to vector<8x32xf32>
    %492 = arith.mulf %488, %491 : vector<8x32xf32>
    %cst_200 = arith.constant dense<0.000000e+00> : vector<32xf32>
    %493 = vector.multi_reduction <add>, %492, %cst_200 [0] : vector<8x32xf32> to vector<32xf32>
    %494 = vector.shape_cast %493 : vector<32xf32> to vector<1x32xf32>
    %cst_201 = arith.constant dense<0.000000e+00> : vector<1xf32>
    %495 = vector.multi_reduction <add>, %490, %cst_201 [0] : vector<8x1xf32> to vector<1xf32>
    %496 = vector.shape_cast %495 : vector<1xf32> to vector<1x1xf32>
    %cst_202 = arith.constant 9.99999971E-10 : f32
    %497 = vector.broadcast %cst_202 : f32 to vector<1x1xf32>
    %498 = arith.maximumf %496, %497 : vector<1x1xf32>
    %499 = vector.broadcast %498 : vector<1x1xf32> to vector<1x32xf32>
    %500 = arith.divf %494, %499 : vector<1x32xf32>
    %c0_203 = arith.constant 0 : index
    %c0_204 = arith.constant 0 : index
    %501 = vector.load %arg6[%c0_203, %c0_204] : memref<64x128xbf16, #tpu.memory_space<vmem>>, vector<32x128xbf16>
    %502 = arith.truncf %486 : vector<1x32xf32> to vector<1x32xbf16>
    %cst_205 = arith.constant dense<0.000000e+00> : vector<1x128xf32>
    %503 = tpu.matmul %502, %501, %cst_205 {dimension_numbers = #tpu.dot_dimension_numbers<[1], [0], [0], [1], [0, 0, 1, 1], [], []>} : vector<1x32xbf16>, vector<32x128xbf16>, vector<1x128xf32> -> vector<1x128xf32>
    %c32_206 = arith.constant 32 : index
    %c0_207 = arith.constant 0 : index
    %504 = vector.load %arg6[%c32_206, %c0_207] : memref<64x128xbf16, #tpu.memory_space<vmem>>, vector<32x128xbf16>
    %505 = arith.truncf %500 : vector<1x32xf32> to vector<1x32xbf16>
    %cst_208 = arith.constant dense<0.000000e+00> : vector<1x128xf32>
    %506 = tpu.matmul %505, %504, %cst_208 {dimension_numbers = #tpu.dot_dimension_numbers<[1], [0], [0], [1], [0, 0, 1, 1], [], []>} : vector<1x32xbf16>, vector<32x128xbf16>, vector<1x128xf32> -> vector<1x128xf32>
    %507 = arith.addf %503, %506 : vector<1x128xf32>
    %c0_209 = arith.constant 0 : index
    %c0_210 = arith.constant 0 : index
    %508 = vector.load %arg9[%c0_209, %c0_210] : memref<8x128xf32, #tpu.memory_space<vmem>>, vector<1x128xf32>
    %509 = arith.addf %507, %508 : vector<1x128xf32>
    %c0_211 = arith.constant 0 : index
    %c0_212 = arith.constant 0 : index
    %c0_213 = arith.constant 0 : index
    %510 = vector.load %arg10[%c0_211, %c0_212, %c0_213] : memref<2x1x128xf32, #tpu.memory_space<vmem>>, vector<1x1x128xf32>
    %511 = vector.shape_cast %510 : vector<1x1x128xf32> to vector<1x128xf32>
    %512 = vector.shape_cast %509 : vector<1x128xf32> to vector<1x1x128xf32>
    tpu.vector_store %arg10[%c0_211, %c0_212, %c0_213], %512 {strides = array<i32>} : memref<2x1x128xf32, #tpu.memory_space<vmem>>, vector<1x1x128xf32>,
    %c1 = arith.constant 1 : index
    %c0_214 = arith.constant 0 : index
    %c0_215 = arith.constant 0 : index
    %513 = vector.load %arg1[%c1, %c0_214, %c0_215] : memref<2x16x16xf32, #tpu.memory_space<vmem>>, vector<1x16x16xf32>
    %514 = vector.shape_cast %513 : vector<1x16x16xf32> to vector<16x16xf32>
    %c0_216 = arith.constant 0 : index
    %c0_217 = arith.constant 0 : index
    %515 = vector.load %arg5[%c0_216, %c0_217] : memref<80x64xbf16, #tpu.memory_space<vmem>>, vector<16x64xbf16>
    %516 = arith.truncf %514 : vector<16x16xf32> to vector<16x16xbf16>
    %cst_218 = arith.constant dense<0.000000e+00> : vector<16x64xf32>
    %517 = tpu.matmul %516, %515, %cst_218 {dimension_numbers = #tpu.dot_dimension_numbers<[1], [0], [0], [1], [0, 0, 1, 1], [], []>} : vector<16x16xbf16>, vector<16x64xbf16>, vector<16x64xf32> -> vector<16x64xf32>
    %c0_219 = arith.constant 0 : index
    %c0_220 = arith.constant 0 : index
    %518 = vector.load %arg8[%c0_219, %c0_220] : memref<40x64xf32, #tpu.memory_space<vmem>>, vector<1x64xf32>
    %519 = vector.broadcast %518 : vector<1x64xf32> to vector<16x64xf32>
    %520 = arith.addf %517, %519 : vector<16x64xf32>
    %c8_221 = arith.constant 8 : index
    %c0_222 = arith.constant 0 : index
    %521 = vector.load %arg8[%c8_221, %c0_222] : memref<40x64xf32, #tpu.memory_space<vmem>>, vector<1x64xf32>
    %c16_223 = arith.constant 16 : index
    %c0_224 = arith.constant 0 : index
    %522 = vector.load %arg8[%c16_223, %c0_224] : memref<40x64xf32, #tpu.memory_space<vmem>>, vector<1x64xf32>
    %cst_225 = arith.constant dense<0.000000e+00> : vector<16xf32>
    %523 = vector.multi_reduction <add>, %520, %cst_225 [1] : vector<16x64xf32> to vector<16xf32>
    %524 = vector.shape_cast %523 : vector<16xf32> to vector<16x1xf32>
    %cst_226 = arith.constant 6.400000e+01 : f32
    %525 = vector.broadcast %cst_226 : f32 to vector<16x1xf32>
    %526 = arith.divf %524, %525 : vector<16x1xf32>
    %527 = vector.broadcast %526 : vector<16x1xf32> to vector<16x64xf32>
    %528 = arith.subf %520, %527 : vector<16x64xf32>
    %529 = arith.mulf %528, %528 : vector<16x64xf32>
    %cst_227 = arith.constant dense<0.000000e+00> : vector<16xf32>
    %530 = vector.multi_reduction <add>, %529, %cst_227 [1] : vector<16x64xf32> to vector<16xf32>
    %531 = vector.shape_cast %530 : vector<16xf32> to vector<16x1xf32>
    %cst_228 = arith.constant 6.400000e+01 : f32
    %532 = vector.broadcast %cst_228 : f32 to vector<16x1xf32>
    %533 = arith.divf %531, %532 : vector<16x1xf32>
    %534 = vector.broadcast %526 : vector<16x1xf32> to vector<16x64xf32>
    %535 = arith.subf %520, %534 : vector<16x64xf32>
    %cst_229 = arith.constant 9.99999974E-6 : f32
    %536 = vector.broadcast %cst_229 : f32 to vector<16x1xf32>
    %537 = arith.addf %533, %536 : vector<16x1xf32>
    %538 = math.rsqrt %537 : vector<16x1xf32>
    %539 = vector.broadcast %538 : vector<16x1xf32> to vector<16x64xf32>
    %540 = arith.mulf %535, %539 : vector<16x64xf32>
    %541 = vector.broadcast %521 : vector<1x64xf32> to vector<16x64xf32>
    %542 = arith.mulf %540, %541 : vector<16x64xf32>
    %543 = vector.broadcast %522 : vector<1x64xf32> to vector<16x64xf32>
    %544 = arith.addf %542, %543 : vector<16x64xf32>
    %cst_230 = arith.constant 5.000000e-01 : f32
    %545 = vector.broadcast %cst_230 : f32 to vector<16x64xf32>
    %546 = arith.mulf %545, %544 : vector<16x64xf32>
    %cst_231 = arith.constant 4.471500e-02 : f32
    %547 = vector.broadcast %cst_231 : f32 to vector<16x64xf32>
    %548 = arith.mulf %547, %544 : vector<16x64xf32>
    %549 = arith.mulf %548, %544 : vector<16x64xf32>
    %550 = arith.mulf %549, %544 : vector<16x64xf32>
    %551 = arith.addf %544, %550 : vector<16x64xf32>
    %cst_232 = arith.constant 0.797884583 : f32
    %552 = vector.broadcast %cst_232 : f32 to vector<16x64xf32>
    %553 = arith.mulf %552, %551 : vector<16x64xf32>
    %554 = math.tanh %553 : vector<16x64xf32>
    %cst_233 = arith.constant 1.000000e+00 : f32
    %555 = vector.broadcast %cst_233 : f32 to vector<16x64xf32>
    %556 = arith.addf %555, %554 : vector<16x64xf32>
    %557 = arith.mulf %546, %556 : vector<16x64xf32>
    %c0_234 = arith.constant 0 : index
    %c0_235 = arith.constant 0 : index
    %558 = vector.load %arg4[%c0_234, %c0_235] : memref<960x32xbf16, #tpu.memory_space<vmem>>, vector<64x32xbf16>
    %559 = arith.truncf %557 : vector<16x64xf32> to vector<16x64xbf16>
    %cst_236 = arith.constant dense<0.000000e+00> : vector<16x32xf32>
    %560 = tpu.matmul %559, %558, %cst_236 {dimension_numbers = #tpu.dot_dimension_numbers<[1], [0], [0], [1], [0, 0, 1, 1], [], []>} : vector<16x64xbf16>, vector<64x32xbf16>, vector<16x32xf32> -> vector<16x32xf32>
    %c0_237 = arith.constant 0 : index
    %c0_238 = arith.constant 0 : index
    %561 = vector.load %arg7[%c0_237, %c0_238] : memref<272x32xf32, #tpu.memory_space<vmem>>, vector<1x32xf32>
    %562 = vector.broadcast %561 : vector<1x32xf32> to vector<16x32xf32>
    %563 = arith.addf %560, %562 : vector<16x32xf32>
    %c8_239 = arith.constant 8 : index
    %c0_240 = arith.constant 0 : index
    %564 = vector.load %arg7[%c8_239, %c0_240] : memref<272x32xf32, #tpu.memory_space<vmem>>, vector<1x32xf32>
    %c16_241 = arith.constant 16 : index
    %c0_242 = arith.constant 0 : index
    %565 = vector.load %arg7[%c16_241, %c0_242] : memref<272x32xf32, #tpu.memory_space<vmem>>, vector<1x32xf32>
    %cst_243 = arith.constant dense<0.000000e+00> : vector<16xf32>
    %566 = vector.multi_reduction <add>, %563, %cst_243 [1] : vector<16x32xf32> to vector<16xf32>
    %567 = vector.shape_cast %566 : vector<16xf32> to vector<16x1xf32>
    %cst_244 = arith.constant 3.200000e+01 : f32
    %568 = vector.broadcast %cst_244 : f32 to vector<16x1xf32>
    %569 = arith.divf %567, %568 : vector<16x1xf32>
    %570 = vector.broadcast %569 : vector<16x1xf32> to vector<16x32xf32>
    %571 = arith.subf %563, %570 : vector<16x32xf32>
    %572 = arith.mulf %571, %571 : vector<16x32xf32>
    %cst_245 = arith.constant dense<0.000000e+00> : vector<16xf32>
    %573 = vector.multi_reduction <add>, %572, %cst_245 [1] : vector<16x32xf32> to vector<16xf32>
    %574 = vector.shape_cast %573 : vector<16xf32> to vector<16x1xf32>
    %cst_246 = arith.constant 3.200000e+01 : f32
    %575 = vector.broadcast %cst_246 : f32 to vector<16x1xf32>
    %576 = arith.divf %574, %575 : vector<16x1xf32>
    %577 = vector.broadcast %569 : vector<16x1xf32> to vector<16x32xf32>
    %578 = arith.subf %563, %577 : vector<16x32xf32>
    %cst_247 = arith.constant 9.99999974E-6 : f32
    %579 = vector.broadcast %cst_247 : f32 to vector<16x1xf32>
    %580 = arith.addf %576, %579 : vector<16x1xf32>
    %581 = math.rsqrt %580 : vector<16x1xf32>
    %582 = vector.broadcast %581 : vector<16x1xf32> to vector<16x32xf32>
    %583 = arith.mulf %578, %582 : vector<16x32xf32>
    %584 = vector.broadcast %564 : vector<1x32xf32> to vector<16x32xf32>
    %585 = arith.mulf %583, %584 : vector<16x32xf32>
    %586 = vector.broadcast %565 : vector<1x32xf32> to vector<16x32xf32>
    %587 = arith.addf %585, %586 : vector<16x32xf32>
    %cst_248 = arith.constant 5.000000e-01 : f32
    %588 = vector.broadcast %cst_248 : f32 to vector<16x32xf32>
    %589 = arith.mulf %588, %587 : vector<16x32xf32>
    %cst_249 = arith.constant 4.471500e-02 : f32
    %590 = vector.broadcast %cst_249 : f32 to vector<16x32xf32>
    %591 = arith.mulf %590, %587 : vector<16x32xf32>
    %592 = arith.mulf %591, %587 : vector<16x32xf32>
    %593 = arith.mulf %592, %587 : vector<16x32xf32>
    %594 = arith.addf %587, %593 : vector<16x32xf32>
    %cst_250 = arith.constant 0.797884583 : f32
    %595 = vector.broadcast %cst_250 : f32 to vector<16x32xf32>
    %596 = arith.mulf %595, %594 : vector<16x32xf32>
    %597 = math.tanh %596 : vector<16x32xf32>
    %cst_251 = arith.constant 1.000000e+00 : f32
    %598 = vector.broadcast %cst_251 : f32 to vector<16x32xf32>
    %599 = arith.addf %598, %597 : vector<16x32xf32>
    %600 = arith.mulf %589, %599 : vector<16x32xf32>
    %601 = vector.extract_strided_slice %0 {offsets = [0, 0], sizes = [16, 32], strides = [1, 1]} : vector<17x32xf32> to vector<16x32xf32>
    %602 = arith.addf %600, %601 : vector<16x32xf32>
    %c0_252 = arith.constant 0 : index
    %c0_253 = arith.constant 0 : index
    %603 = vector.load %arg11[%c0_252, %c0_253] : memref<24x32xf32, #tpu.memory_space<vmem>>, vector<16x32xf32>
    tpu.vector_store %arg11[%c0_252, %c0_253], %602 {strides = array<i32>} : memref<24x32xf32, #tpu.memory_space<vmem>>, vector<16x32xf32>,
    %604 = vector.extract_strided_slice %0 {offsets = [16, 0], sizes = [1, 32], strides = [1, 1]} : vector<17x32xf32> to vector<1x32xf32>
    %c16_254 = arith.constant 16 : index
    %c0_255 = arith.constant 0 : index
    %605 = vector.load %arg11[%c16_254, %c0_255] : memref<24x32xf32, #tpu.memory_space<vmem>>, vector<1x32xf32>
    tpu.vector_store %arg11[%c16_254, %c0_255], %604 {strides = array<i32>} : memref<24x32xf32, #tpu.memory_space<vmem>>, vector<1x32xf32>,
    %c0_256 = arith.constant 0 : index
    %c0_257 = arith.constant 0 : index
    %606 = vector.load %arg11[%c0_256, %c0_257] : memref<24x32xf32, #tpu.memory_space<vmem>>, vector<17x32xf32>
    %c64_258 = arith.constant 64 : index
    %c0_259 = arith.constant 0 : index
    %607 = vector.load %arg4[%c64_258, %c0_259] : memref<960x32xbf16, #tpu.memory_space<vmem>>, vector<32x32xbf16>
    %608 = arith.truncf %606 : vector<17x32xf32> to vector<17x32xbf16>
    %cst_260 = arith.constant dense<0.000000e+00> : vector<17x32xf32>
    %609 = tpu.matmul %608, %607, %cst_260 {dimension_numbers = #tpu.dot_dimension_numbers<[1], [0], [0], [1], [0, 0, 1, 1], [], []>} : vector<17x32xbf16>, vector<32x32xbf16>, vector<17x32xf32> -> vector<17x32xf32>
    %c48_261 = arith.constant 48 : index
    %c0_262 = arith.constant 0 : index
    %610 = vector.load %arg7[%c48_261, %c0_262] : memref<272x32xf32, #tpu.memory_space<vmem>>, vector<1x32xf32>
    %611 = vector.broadcast %610 : vector<1x32xf32> to vector<17x32xf32>
    %612 = arith.addf %609, %611 : vector<17x32xf32>
    %c96_263 = arith.constant 96 : index
    %c0_264 = arith.constant 0 : index
    %613 = vector.load %arg4[%c96_263, %c0_264] : memref<960x32xbf16, #tpu.memory_space<vmem>>, vector<32x32xbf16>
    %614 = arith.truncf %606 : vector<17x32xf32> to vector<17x32xbf16>
    %cst_265 = arith.constant dense<0.000000e+00> : vector<17x32xf32>
    %615 = tpu.matmul %614, %613, %cst_265 {dimension_numbers = #tpu.dot_dimension_numbers<[1], [0], [0], [1], [0, 0, 1, 1], [], []>} : vector<17x32xbf16>, vector<32x32xbf16>, vector<17x32xf32> -> vector<17x32xf32>
    %c56_266 = arith.constant 56 : index
    %c0_267 = arith.constant 0 : index
    %616 = vector.load %arg7[%c56_266, %c0_267] : memref<272x32xf32, #tpu.memory_space<vmem>>, vector<1x32xf32>
    %617 = vector.broadcast %616 : vector<1x32xf32> to vector<17x32xf32>
    %618 = arith.addf %615, %617 : vector<17x32xf32>
    %619 = arith.truncf %612 : vector<17x32xf32> to vector<17x32xbf16>
    %620 = arith.truncf %618 : vector<17x32xf32> to vector<17x32xbf16>
    %cst_268 = arith.constant dense<0.000000e+00> : vector<17x17xf32>
    %621 = tpu.matmul %619, %620, %cst_268 {dimension_numbers = #tpu.dot_dimension_numbers<[1], [1], [0], [0], [0, 0, 1, 0], [], []>} : vector<17x32xbf16>, vector<17x32xbf16>, vector<17x17xf32> -> vector<17x17xf32>
    %cst_269 = arith.constant dense<0xFF800000> : vector<17xf32>
    %622 = vector.multi_reduction <maximumf>, %621, %cst_269 [1] : vector<17x17xf32> to vector<17xf32>
    %623 = vector.shape_cast %622 : vector<17xf32> to vector<17x1xf32>
    %624 = vector.broadcast %623 : vector<17x1xf32> to vector<17x17xf32>
    %625 = arith.subf %621, %624 : vector<17x17xf32>
    %626 = math.exp %625 : vector<17x17xf32>
    %cst_270 = arith.constant dense<0.000000e+00> : vector<17xf32>
    %627 = vector.multi_reduction <add>, %626, %cst_270 [1] : vector<17x17xf32> to vector<17xf32>
    %628 = vector.shape_cast %627 : vector<17xf32> to vector<17x1xf32>
    %629 = tpu.reciprocal %628 {approx = true} : vector<17x1xf32> -> vector<17x1xf32>
    %630 = vector.broadcast %629 : vector<17x1xf32> to vector<17x17xf32>
    %631 = arith.mulf %626, %630 : vector<17x17xf32>
    %c128_271 = arith.constant 128 : index
    %c0_272 = arith.constant 0 : index
    %632 = vector.load %arg4[%c128_271, %c0_272] : memref<960x32xbf16, #tpu.memory_space<vmem>>, vector<32x32xbf16>
    %633 = arith.truncf %606 : vector<17x32xf32> to vector<17x32xbf16>
    %cst_273 = arith.constant dense<0.000000e+00> : vector<17x32xf32>
    %634 = tpu.matmul %633, %632, %cst_273 {dimension_numbers = #tpu.dot_dimension_numbers<[1], [0], [0], [1], [0, 0, 1, 1], [], []>} : vector<17x32xbf16>, vector<32x32xbf16>, vector<17x32xf32> -> vector<17x32xf32>
    %635 = arith.truncf %631 : vector<17x17xf32> to vector<17x17xbf16>
    %636 = arith.truncf %634 : vector<17x32xf32> to vector<17x32xbf16>
    %cst_274 = arith.constant dense<0.000000e+00> : vector<17x32xf32>
    %637 = tpu.matmul %635, %636, %cst_274 {dimension_numbers = #tpu.dot_dimension_numbers<[1], [0], [0], [1], [0, 0, 1, 1], [], []>} : vector<17x17xbf16>, vector<17x32xbf16>, vector<17x32xf32> -> vector<17x32xf32>
    %c160_275 = arith.constant 160 : index
    %c0_276 = arith.constant 0 : index
    %638 = vector.load %arg4[%c160_275, %c0_276] : memref<960x32xbf16, #tpu.memory_space<vmem>>, vector<32x32xbf16>
    %639 = arith.truncf %606 : vector<17x32xf32> to vector<17x32xbf16>
    %cst_277 = arith.constant dense<0.000000e+00> : vector<17x32xf32>
    %640 = tpu.matmul %639, %638, %cst_277 {dimension_numbers = #tpu.dot_dimension_numbers<[1], [0], [0], [1], [0, 0, 1, 1], [], []>} : vector<17x32xbf16>, vector<32x32xbf16>, vector<17x32xf32> -> vector<17x32xf32>
    %c64_278 = arith.constant 64 : index
    %c0_279 = arith.constant 0 : index
    %641 = vector.load %arg7[%c64_278, %c0_279] : memref<272x32xf32, #tpu.memory_space<vmem>>, vector<1x32xf32>
    %642 = vector.broadcast %641 : vector<1x32xf32> to vector<17x32xf32>
    %643 = arith.addf %640, %642 : vector<17x32xf32>
    %c192_280 = arith.constant 192 : index
    %c0_281 = arith.constant 0 : index
    %644 = vector.load %arg4[%c192_280, %c0_281] : memref<960x32xbf16, #tpu.memory_space<vmem>>, vector<32x32xbf16>
    %645 = arith.truncf %606 : vector<17x32xf32> to vector<17x32xbf16>
    %cst_282 = arith.constant dense<0.000000e+00> : vector<17x32xf32>
    %646 = tpu.matmul %645, %644, %cst_282 {dimension_numbers = #tpu.dot_dimension_numbers<[1], [0], [0], [1], [0, 0, 1, 1], [], []>} : vector<17x32xbf16>, vector<32x32xbf16>, vector<17x32xf32> -> vector<17x32xf32>
    %c72_283 = arith.constant 72 : index
    %c0_284 = arith.constant 0 : index
    %647 = vector.load %arg7[%c72_283, %c0_284] : memref<272x32xf32, #tpu.memory_space<vmem>>, vector<1x32xf32>
    %648 = vector.broadcast %647 : vector<1x32xf32> to vector<17x32xf32>
    %649 = arith.addf %646, %648 : vector<17x32xf32>
    %650 = arith.truncf %643 : vector<17x32xf32> to vector<17x32xbf16>
    %651 = arith.truncf %649 : vector<17x32xf32> to vector<17x32xbf16>
    %cst_285 = arith.constant dense<0.000000e+00> : vector<17x17xf32>
    %652 = tpu.matmul %650, %651, %cst_285 {dimension_numbers = #tpu.dot_dimension_numbers<[1], [1], [0], [0], [0, 0, 1, 0], [], []>} : vector<17x32xbf16>, vector<17x32xbf16>, vector<17x17xf32> -> vector<17x17xf32>
    %cst_286 = arith.constant dense<0xFF800000> : vector<17xf32>
    %653 = vector.multi_reduction <maximumf>, %652, %cst_286 [1] : vector<17x17xf32> to vector<17xf32>
    %654 = vector.shape_cast %653 : vector<17xf32> to vector<17x1xf32>
    %655 = vector.broadcast %654 : vector<17x1xf32> to vector<17x17xf32>
    %656 = arith.subf %652, %655 : vector<17x17xf32>
    %657 = math.exp %656 : vector<17x17xf32>
    %cst_287 = arith.constant dense<0.000000e+00> : vector<17xf32>
    %658 = vector.multi_reduction <add>, %657, %cst_287 [1] : vector<17x17xf32> to vector<17xf32>
    %659 = vector.shape_cast %658 : vector<17xf32> to vector<17x1xf32>
    %660 = tpu.reciprocal %659 {approx = true} : vector<17x1xf32> -> vector<17x1xf32>
    %661 = vector.broadcast %660 : vector<17x1xf32> to vector<17x17xf32>
    %662 = arith.mulf %657, %661 : vector<17x17xf32>
    %c224_288 = arith.constant 224 : index
    %c0_289 = arith.constant 0 : index
    %663 = vector.load %arg4[%c224_288, %c0_289] : memref<960x32xbf16, #tpu.memory_space<vmem>>, vector<32x32xbf16>
    %664 = arith.truncf %606 : vector<17x32xf32> to vector<17x32xbf16>
    %cst_290 = arith.constant dense<0.000000e+00> : vector<17x32xf32>
    %665 = tpu.matmul %664, %663, %cst_290 {dimension_numbers = #tpu.dot_dimension_numbers<[1], [0], [0], [1], [0, 0, 1, 1], [], []>} : vector<17x32xbf16>, vector<32x32xbf16>, vector<17x32xf32> -> vector<17x32xf32>
    %666 = arith.truncf %662 : vector<17x17xf32> to vector<17x17xbf16>
    %667 = arith.truncf %665 : vector<17x32xf32> to vector<17x32xbf16>
    %cst_291 = arith.constant dense<0.000000e+00> : vector<17x32xf32>
    %668 = tpu.matmul %666, %667, %cst_291 {dimension_numbers = #tpu.dot_dimension_numbers<[1], [0], [0], [1], [0, 0, 1, 1], [], []>} : vector<17x17xbf16>, vector<17x32xbf16>, vector<17x32xf32> -> vector<17x32xf32>
    %669 = arith.addf %637, %668 : vector<17x32xf32>
    %c256_292 = arith.constant 256 : index
    %c0_293 = arith.constant 0 : index
    %670 = vector.load %arg4[%c256_292, %c0_293] : memref<960x32xbf16, #tpu.memory_space<vmem>>, vector<32x32xbf16>
    %671 = arith.truncf %606 : vector<17x32xf32> to vector<17x32xbf16>
    %cst_294 = arith.constant dense<0.000000e+00> : vector<17x32xf32>
    %672 = tpu.matmul %671, %670, %cst_294 {dimension_numbers = #tpu.dot_dimension_numbers<[1], [0], [0], [1], [0, 0, 1, 1], [], []>} : vector<17x32xbf16>, vector<32x32xbf16>, vector<17x32xf32> -> vector<17x32xf32>
    %c80_295 = arith.constant 80 : index
    %c0_296 = arith.constant 0 : index
    %673 = vector.load %arg7[%c80_295, %c0_296] : memref<272x32xf32, #tpu.memory_space<vmem>>, vector<1x32xf32>
    %674 = vector.broadcast %673 : vector<1x32xf32> to vector<17x32xf32>
    %675 = arith.addf %672, %674 : vector<17x32xf32>
    %c288_297 = arith.constant 288 : index
    %c0_298 = arith.constant 0 : index
    %676 = vector.load %arg4[%c288_297, %c0_298] : memref<960x32xbf16, #tpu.memory_space<vmem>>, vector<32x32xbf16>
    %677 = arith.truncf %606 : vector<17x32xf32> to vector<17x32xbf16>
    %cst_299 = arith.constant dense<0.000000e+00> : vector<17x32xf32>
    %678 = tpu.matmul %677, %676, %cst_299 {dimension_numbers = #tpu.dot_dimension_numbers<[1], [0], [0], [1], [0, 0, 1, 1], [], []>} : vector<17x32xbf16>, vector<32x32xbf16>, vector<17x32xf32> -> vector<17x32xf32>
    %c88_300 = arith.constant 88 : index
    %c0_301 = arith.constant 0 : index
    %679 = vector.load %arg7[%c88_300, %c0_301] : memref<272x32xf32, #tpu.memory_space<vmem>>, vector<1x32xf32>
    %680 = vector.broadcast %679 : vector<1x32xf32> to vector<17x32xf32>
    %681 = arith.addf %678, %680 : vector<17x32xf32>
    %682 = arith.truncf %675 : vector<17x32xf32> to vector<17x32xbf16>
    %683 = arith.truncf %681 : vector<17x32xf32> to vector<17x32xbf16>
    %cst_302 = arith.constant dense<0.000000e+00> : vector<17x17xf32>
    %684 = tpu.matmul %682, %683, %cst_302 {dimension_numbers = #tpu.dot_dimension_numbers<[1], [1], [0], [0], [0, 0, 1, 0], [], []>} : vector<17x32xbf16>, vector<17x32xbf16>, vector<17x17xf32> -> vector<17x17xf32>
    %cst_303 = arith.constant dense<0xFF800000> : vector<17xf32>
    %685 = vector.multi_reduction <maximumf>, %684, %cst_303 [1] : vector<17x17xf32> to vector<17xf32>
    %686 = vector.shape_cast %685 : vector<17xf32> to vector<17x1xf32>
    %687 = vector.broadcast %686 : vector<17x1xf32> to vector<17x17xf32>
    %688 = arith.subf %684, %687 : vector<17x17xf32>
    %689 = math.exp %688 : vector<17x17xf32>
    %cst_304 = arith.constant dense<0.000000e+00> : vector<17xf32>
    %690 = vector.multi_reduction <add>, %689, %cst_304 [1] : vector<17x17xf32> to vector<17xf32>
    %691 = vector.shape_cast %690 : vector<17xf32> to vector<17x1xf32>
    %692 = tpu.reciprocal %691 {approx = true} : vector<17x1xf32> -> vector<17x1xf32>
    %693 = vector.broadcast %692 : vector<17x1xf32> to vector<17x17xf32>
    %694 = arith.mulf %689, %693 : vector<17x17xf32>
    %c320_305 = arith.constant 320 : index
    %c0_306 = arith.constant 0 : index
    %695 = vector.load %arg4[%c320_305, %c0_306] : memref<960x32xbf16, #tpu.memory_space<vmem>>, vector<32x32xbf16>
    %696 = arith.truncf %606 : vector<17x32xf32> to vector<17x32xbf16>
    %cst_307 = arith.constant dense<0.000000e+00> : vector<17x32xf32>
    %697 = tpu.matmul %696, %695, %cst_307 {dimension_numbers = #tpu.dot_dimension_numbers<[1], [0], [0], [1], [0, 0, 1, 1], [], []>} : vector<17x32xbf16>, vector<32x32xbf16>, vector<17x32xf32> -> vector<17x32xf32>
    %698 = arith.truncf %694 : vector<17x17xf32> to vector<17x17xbf16>
    %699 = arith.truncf %697 : vector<17x32xf32> to vector<17x32xbf16>
    %cst_308 = arith.constant dense<0.000000e+00> : vector<17x32xf32>
    %700 = tpu.matmul %698, %699, %cst_308 {dimension_numbers = #tpu.dot_dimension_numbers<[1], [0], [0], [1], [0, 0, 1, 1], [], []>} : vector<17x17xbf16>, vector<17x32xbf16>, vector<17x32xf32> -> vector<17x32xf32>
    %701 = arith.addf %669, %700 : vector<17x32xf32>
    %c352_309 = arith.constant 352 : index
    %c0_310 = arith.constant 0 : index
    %702 = vector.load %arg4[%c352_309, %c0_310] : memref<960x32xbf16, #tpu.memory_space<vmem>>, vector<32x32xbf16>
    %703 = arith.truncf %606 : vector<17x32xf32> to vector<17x32xbf16>
    %cst_311 = arith.constant dense<0.000000e+00> : vector<17x32xf32>
    %704 = tpu.matmul %703, %702, %cst_311 {dimension_numbers = #tpu.dot_dimension_numbers<[1], [0], [0], [1], [0, 0, 1, 1], [], []>} : vector<17x32xbf16>, vector<32x32xbf16>, vector<17x32xf32> -> vector<17x32xf32>
    %c96_312 = arith.constant 96 : index
    %c0_313 = arith.constant 0 : index
    %705 = vector.load %arg7[%c96_312, %c0_313] : memref<272x32xf32, #tpu.memory_space<vmem>>, vector<1x32xf32>
    %706 = vector.broadcast %705 : vector<1x32xf32> to vector<17x32xf32>
    %707 = arith.addf %704, %706 : vector<17x32xf32>
    %c384_314 = arith.constant 384 : index
    %c0_315 = arith.constant 0 : index
    %708 = vector.load %arg4[%c384_314, %c0_315] : memref<960x32xbf16, #tpu.memory_space<vmem>>, vector<32x32xbf16>
    %709 = arith.truncf %606 : vector<17x32xf32> to vector<17x32xbf16>
    %cst_316 = arith.constant dense<0.000000e+00> : vector<17x32xf32>
    %710 = tpu.matmul %709, %708, %cst_316 {dimension_numbers = #tpu.dot_dimension_numbers<[1], [0], [0], [1], [0, 0, 1, 1], [], []>} : vector<17x32xbf16>, vector<32x32xbf16>, vector<17x32xf32> -> vector<17x32xf32>
    %c104_317 = arith.constant 104 : index
    %c0_318 = arith.constant 0 : index
    %711 = vector.load %arg7[%c104_317, %c0_318] : memref<272x32xf32, #tpu.memory_space<vmem>>, vector<1x32xf32>
    %712 = vector.broadcast %711 : vector<1x32xf32> to vector<17x32xf32>
    %713 = arith.addf %710, %712 : vector<17x32xf32>
    %714 = arith.truncf %707 : vector<17x32xf32> to vector<17x32xbf16>
    %715 = arith.truncf %713 : vector<17x32xf32> to vector<17x32xbf16>
    %cst_319 = arith.constant dense<0.000000e+00> : vector<17x17xf32>
    %716 = tpu.matmul %714, %715, %cst_319 {dimension_numbers = #tpu.dot_dimension_numbers<[1], [1], [0], [0], [0, 0, 1, 0], [], []>} : vector<17x32xbf16>, vector<17x32xbf16>, vector<17x17xf32> -> vector<17x17xf32>
    %cst_320 = arith.constant dense<0xFF800000> : vector<17xf32>
    %717 = vector.multi_reduction <maximumf>, %716, %cst_320 [1] : vector<17x17xf32> to vector<17xf32>
    %718 = vector.shape_cast %717 : vector<17xf32> to vector<17x1xf32>
    %719 = vector.broadcast %718 : vector<17x1xf32> to vector<17x17xf32>
    %720 = arith.subf %716, %719 : vector<17x17xf32>
    %721 = math.exp %720 : vector<17x17xf32>
    %cst_321 = arith.constant dense<0.000000e+00> : vector<17xf32>
    %722 = vector.multi_reduction <add>, %721, %cst_321 [1] : vector<17x17xf32> to vector<17xf32>
    %723 = vector.shape_cast %722 : vector<17xf32> to vector<17x1xf32>
    %724 = tpu.reciprocal %723 {approx = true} : vector<17x1xf32> -> vector<17x1xf32>
    %725 = vector.broadcast %724 : vector<17x1xf32> to vector<17x17xf32>
    %726 = arith.mulf %721, %725 : vector<17x17xf32>
    %c416_322 = arith.constant 416 : index
    %c0_323 = arith.constant 0 : index
    %727 = vector.load %arg4[%c416_322, %c0_323] : memref<960x32xbf16, #tpu.memory_space<vmem>>, vector<32x32xbf16>
    %728 = arith.truncf %606 : vector<17x32xf32> to vector<17x32xbf16>
    %cst_324 = arith.constant dense<0.000000e+00> : vector<17x32xf32>
    %729 = tpu.matmul %728, %727, %cst_324 {dimension_numbers = #tpu.dot_dimension_numbers<[1], [0], [0], [1], [0, 0, 1, 1], [], []>} : vector<17x32xbf16>, vector<32x32xbf16>, vector<17x32xf32> -> vector<17x32xf32>
    %730 = arith.truncf %726 : vector<17x17xf32> to vector<17x17xbf16>
    %731 = arith.truncf %729 : vector<17x32xf32> to vector<17x32xbf16>
    %cst_325 = arith.constant dense<0.000000e+00> : vector<17x32xf32>
    %732 = tpu.matmul %730, %731, %cst_325 {dimension_numbers = #tpu.dot_dimension_numbers<[1], [0], [0], [1], [0, 0, 1, 1], [], []>} : vector<17x17xbf16>, vector<17x32xbf16>, vector<17x32xf32> -> vector<17x32xf32>
    %733 = arith.addf %701, %732 : vector<17x32xf32>
    %c112_326 = arith.constant 112 : index
    %c0_327 = arith.constant 0 : index
    %734 = vector.load %arg7[%c112_326, %c0_327] : memref<272x32xf32, #tpu.memory_space<vmem>>, vector<1x32xf32>
    %735 = vector.broadcast %734 : vector<1x32xf32> to vector<17x32xf32>
    %736 = arith.addf %733, %735 : vector<17x32xf32>
    %737 = arith.addf %606, %736 : vector<17x32xf32>
    %c120_328 = arith.constant 120 : index
    %c0_329 = arith.constant 0 : index
    %738 = vector.load %arg7[%c120_328, %c0_329] : memref<272x32xf32, #tpu.memory_space<vmem>>, vector<1x32xf32>
    %c128_330 = arith.constant 128 : index
    %c0_331 = arith.constant 0 : index
    %739 = vector.load %arg7[%c128_330, %c0_331] : memref<272x32xf32, #tpu.memory_space<vmem>>, vector<1x32xf32>
    %cst_332 = arith.constant dense<0.000000e+00> : vector<17xf32>
    %740 = vector.multi_reduction <add>, %737, %cst_332 [1] : vector<17x32xf32> to vector<17xf32>
    %741 = vector.shape_cast %740 : vector<17xf32> to vector<17x1xf32>
    %cst_333 = arith.constant 3.200000e+01 : f32
    %742 = vector.broadcast %cst_333 : f32 to vector<17x1xf32>
    %743 = arith.divf %741, %742 : vector<17x1xf32>
    %744 = vector.broadcast %743 : vector<17x1xf32> to vector<17x32xf32>
    %745 = arith.subf %737, %744 : vector<17x32xf32>
    %746 = arith.mulf %745, %745 : vector<17x32xf32>
    %cst_334 = arith.constant dense<0.000000e+00> : vector<17xf32>
    %747 = vector.multi_reduction <add>, %746, %cst_334 [1] : vector<17x32xf32> to vector<17xf32>
    %748 = vector.shape_cast %747 : vector<17xf32> to vector<17x1xf32>
    %cst_335 = arith.constant 3.200000e+01 : f32
    %749 = vector.broadcast %cst_335 : f32 to vector<17x1xf32>
    %750 = arith.divf %748, %749 : vector<17x1xf32>
    %751 = vector.broadcast %743 : vector<17x1xf32> to vector<17x32xf32>
    %752 = arith.subf %737, %751 : vector<17x32xf32>
    %cst_336 = arith.constant 9.99999974E-6 : f32
    %753 = vector.broadcast %cst_336 : f32 to vector<17x1xf32>
    %754 = arith.addf %750, %753 : vector<17x1xf32>
    %755 = math.rsqrt %754 : vector<17x1xf32>
    %756 = vector.broadcast %755 : vector<17x1xf32> to vector<17x32xf32>
    %757 = arith.mulf %752, %756 : vector<17x32xf32>
    %758 = vector.broadcast %738 : vector<1x32xf32> to vector<17x32xf32>
    %759 = arith.mulf %757, %758 : vector<17x32xf32>
    %760 = vector.broadcast %739 : vector<1x32xf32> to vector<17x32xf32>
    %761 = arith.addf %759, %760 : vector<17x32xf32>
    %c16_337 = arith.constant 16 : index
    %c0_338 = arith.constant 0 : index
    %762 = vector.load %arg5[%c16_337, %c0_338] : memref<80x64xbf16, #tpu.memory_space<vmem>>, vector<32x64xbf16>
    %763 = arith.truncf %761 : vector<17x32xf32> to vector<17x32xbf16>
    %cst_339 = arith.constant dense<0.000000e+00> : vector<17x64xf32>
    %764 = tpu.matmul %763, %762, %cst_339 {dimension_numbers = #tpu.dot_dimension_numbers<[1], [0], [0], [1], [0, 0, 1, 1], [], []>} : vector<17x32xbf16>, vector<32x64xbf16>, vector<17x64xf32> -> vector<17x64xf32>
    %c24_340 = arith.constant 24 : index
    %c0_341 = arith.constant 0 : index
    %765 = vector.load %arg8[%c24_340, %c0_341] : memref<40x64xf32, #tpu.memory_space<vmem>>, vector<1x64xf32>
    %766 = vector.broadcast %765 : vector<1x64xf32> to vector<17x64xf32>
    %767 = arith.addf %764, %766 : vector<17x64xf32>
    %cst_342 = arith.constant 0.000000e+00 : f32
    %768 = vector.broadcast %cst_342 : f32 to vector<17x64xf32>
    %769 = arith.maximumf %767, %768 : vector<17x64xf32>
    %c448_343 = arith.constant 448 : index
    %c0_344 = arith.constant 0 : index
    %770 = vector.load %arg4[%c448_343, %c0_344] : memref<960x32xbf16, #tpu.memory_space<vmem>>, vector<64x32xbf16>
    %771 = arith.truncf %769 : vector<17x64xf32> to vector<17x64xbf16>
    %cst_345 = arith.constant dense<0.000000e+00> : vector<17x32xf32>
    %772 = tpu.matmul %771, %770, %cst_345 {dimension_numbers = #tpu.dot_dimension_numbers<[1], [0], [0], [1], [0, 0, 1, 1], [], []>} : vector<17x64xbf16>, vector<64x32xbf16>, vector<17x32xf32> -> vector<17x32xf32>
    %c136_346 = arith.constant 136 : index
    %c0_347 = arith.constant 0 : index
    %773 = vector.load %arg7[%c136_346, %c0_347] : memref<272x32xf32, #tpu.memory_space<vmem>>, vector<1x32xf32>
    %774 = vector.broadcast %773 : vector<1x32xf32> to vector<17x32xf32>
    %775 = arith.addf %772, %774 : vector<17x32xf32>
    %776 = arith.addf %761, %775 : vector<17x32xf32>
    %c144_348 = arith.constant 144 : index
    %c0_349 = arith.constant 0 : index
    %777 = vector.load %arg7[%c144_348, %c0_349] : memref<272x32xf32, #tpu.memory_space<vmem>>, vector<1x32xf32>
    %c152_350 = arith.constant 152 : index
    %c0_351 = arith.constant 0 : index
    %778 = vector.load %arg7[%c152_350, %c0_351] : memref<272x32xf32, #tpu.memory_space<vmem>>, vector<1x32xf32>
    %cst_352 = arith.constant dense<0.000000e+00> : vector<17xf32>
    %779 = vector.multi_reduction <add>, %776, %cst_352 [1] : vector<17x32xf32> to vector<17xf32>
    %780 = vector.shape_cast %779 : vector<17xf32> to vector<17x1xf32>
    %cst_353 = arith.constant 3.200000e+01 : f32
    %781 = vector.broadcast %cst_353 : f32 to vector<17x1xf32>
    %782 = arith.divf %780, %781 : vector<17x1xf32>
    %783 = vector.broadcast %782 : vector<17x1xf32> to vector<17x32xf32>
    %784 = arith.subf %776, %783 : vector<17x32xf32>
    %785 = arith.mulf %784, %784 : vector<17x32xf32>
    %cst_354 = arith.constant dense<0.000000e+00> : vector<17xf32>
    %786 = vector.multi_reduction <add>, %785, %cst_354 [1] : vector<17x32xf32> to vector<17xf32>
    %787 = vector.shape_cast %786 : vector<17xf32> to vector<17x1xf32>
    %cst_355 = arith.constant 3.200000e+01 : f32
    %788 = vector.broadcast %cst_355 : f32 to vector<17x1xf32>
    %789 = arith.divf %787, %788 : vector<17x1xf32>
    %790 = vector.broadcast %782 : vector<17x1xf32> to vector<17x32xf32>
    %791 = arith.subf %776, %790 : vector<17x32xf32>
    %cst_356 = arith.constant 9.99999974E-6 : f32
    %792 = vector.broadcast %cst_356 : f32 to vector<17x1xf32>
    %793 = arith.addf %789, %792 : vector<17x1xf32>
    %794 = math.rsqrt %793 : vector<17x1xf32>
    %795 = vector.broadcast %794 : vector<17x1xf32> to vector<17x32xf32>
    %796 = arith.mulf %791, %795 : vector<17x32xf32>
    %797 = vector.broadcast %777 : vector<1x32xf32> to vector<17x32xf32>
    %798 = arith.mulf %796, %797 : vector<17x32xf32>
    %799 = vector.broadcast %778 : vector<1x32xf32> to vector<17x32xf32>
    %800 = arith.addf %798, %799 : vector<17x32xf32>
    %c512_357 = arith.constant 512 : index
    %c0_358 = arith.constant 0 : index
    %801 = vector.load %arg4[%c512_357, %c0_358] : memref<960x32xbf16, #tpu.memory_space<vmem>>, vector<32x32xbf16>
    %802 = arith.truncf %800 : vector<17x32xf32> to vector<17x32xbf16>
    %cst_359 = arith.constant dense<0.000000e+00> : vector<17x32xf32>
    %803 = tpu.matmul %802, %801, %cst_359 {dimension_numbers = #tpu.dot_dimension_numbers<[1], [0], [0], [1], [0, 0, 1, 1], [], []>} : vector<17x32xbf16>, vector<32x32xbf16>, vector<17x32xf32> -> vector<17x32xf32>
    %c160_360 = arith.constant 160 : index
    %c0_361 = arith.constant 0 : index
    %804 = vector.load %arg7[%c160_360, %c0_361] : memref<272x32xf32, #tpu.memory_space<vmem>>, vector<1x32xf32>
    %805 = vector.broadcast %804 : vector<1x32xf32> to vector<17x32xf32>
    %806 = arith.addf %803, %805 : vector<17x32xf32>
    %c544_362 = arith.constant 544 : index
    %c0_363 = arith.constant 0 : index
    %807 = vector.load %arg4[%c544_362, %c0_363] : memref<960x32xbf16, #tpu.memory_space<vmem>>, vector<32x32xbf16>
    %808 = arith.truncf %800 : vector<17x32xf32> to vector<17x32xbf16>
    %cst_364 = arith.constant dense<0.000000e+00> : vector<17x32xf32>
    %809 = tpu.matmul %808, %807, %cst_364 {dimension_numbers = #tpu.dot_dimension_numbers<[1], [0], [0], [1], [0, 0, 1, 1], [], []>} : vector<17x32xbf16>, vector<32x32xbf16>, vector<17x32xf32> -> vector<17x32xf32>
    %c168_365 = arith.constant 168 : index
    %c0_366 = arith.constant 0 : index
    %810 = vector.load %arg7[%c168_365, %c0_366] : memref<272x32xf32, #tpu.memory_space<vmem>>, vector<1x32xf32>
    %811 = vector.broadcast %810 : vector<1x32xf32> to vector<17x32xf32>
    %812 = arith.addf %809, %811 : vector<17x32xf32>
    %813 = arith.truncf %806 : vector<17x32xf32> to vector<17x32xbf16>
    %814 = arith.truncf %812 : vector<17x32xf32> to vector<17x32xbf16>
    %cst_367 = arith.constant dense<0.000000e+00> : vector<17x17xf32>
    %815 = tpu.matmul %813, %814, %cst_367 {dimension_numbers = #tpu.dot_dimension_numbers<[1], [1], [0], [0], [0, 0, 1, 0], [], []>} : vector<17x32xbf16>, vector<17x32xbf16>, vector<17x17xf32> -> vector<17x17xf32>
    %cst_368 = arith.constant dense<0xFF800000> : vector<17xf32>
    %816 = vector.multi_reduction <maximumf>, %815, %cst_368 [1] : vector<17x17xf32> to vector<17xf32>
    %817 = vector.shape_cast %816 : vector<17xf32> to vector<17x1xf32>
    %818 = vector.broadcast %817 : vector<17x1xf32> to vector<17x17xf32>
    %819 = arith.subf %815, %818 : vector<17x17xf32>
    %820 = math.exp %819 : vector<17x17xf32>
    %cst_369 = arith.constant dense<0.000000e+00> : vector<17xf32>
    %821 = vector.multi_reduction <add>, %820, %cst_369 [1] : vector<17x17xf32> to vector<17xf32>
    %822 = vector.shape_cast %821 : vector<17xf32> to vector<17x1xf32>
    %823 = tpu.reciprocal %822 {approx = true} : vector<17x1xf32> -> vector<17x1xf32>
    %824 = vector.broadcast %823 : vector<17x1xf32> to vector<17x17xf32>
    %825 = arith.mulf %820, %824 : vector<17x17xf32>
    %c576_370 = arith.constant 576 : index
    %c0_371 = arith.constant 0 : index
    %826 = vector.load %arg4[%c576_370, %c0_371] : memref<960x32xbf16, #tpu.memory_space<vmem>>, vector<32x32xbf16>
    %827 = arith.truncf %800 : vector<17x32xf32> to vector<17x32xbf16>
    %cst_372 = arith.constant dense<0.000000e+00> : vector<17x32xf32>
    %828 = tpu.matmul %827, %826, %cst_372 {dimension_numbers = #tpu.dot_dimension_numbers<[1], [0], [0], [1], [0, 0, 1, 1], [], []>} : vector<17x32xbf16>, vector<32x32xbf16>, vector<17x32xf32> -> vector<17x32xf32>
    %829 = arith.truncf %825 : vector<17x17xf32> to vector<17x17xbf16>
    %830 = arith.truncf %828 : vector<17x32xf32> to vector<17x32xbf16>
    %cst_373 = arith.constant dense<0.000000e+00> : vector<17x32xf32>
    %831 = tpu.matmul %829, %830, %cst_373 {dimension_numbers = #tpu.dot_dimension_numbers<[1], [0], [0], [1], [0, 0, 1, 1], [], []>} : vector<17x17xbf16>, vector<17x32xbf16>, vector<17x32xf32> -> vector<17x32xf32>
    %c608_374 = arith.constant 608 : index
    %c0_375 = arith.constant 0 : index
    %832 = vector.load %arg4[%c608_374, %c0_375] : memref<960x32xbf16, #tpu.memory_space<vmem>>, vector<32x32xbf16>
    %833 = arith.truncf %800 : vector<17x32xf32> to vector<17x32xbf16>
    %cst_376 = arith.constant dense<0.000000e+00> : vector<17x32xf32>
    %834 = tpu.matmul %833, %832, %cst_376 {dimension_numbers = #tpu.dot_dimension_numbers<[1], [0], [0], [1], [0, 0, 1, 1], [], []>} : vector<17x32xbf16>, vector<32x32xbf16>, vector<17x32xf32> -> vector<17x32xf32>
    %c176_377 = arith.constant 176 : index
    %c0_378 = arith.constant 0 : index
    %835 = vector.load %arg7[%c176_377, %c0_378] : memref<272x32xf32, #tpu.memory_space<vmem>>, vector<1x32xf32>
    %836 = vector.broadcast %835 : vector<1x32xf32> to vector<17x32xf32>
    %837 = arith.addf %834, %836 : vector<17x32xf32>
    %c640_379 = arith.constant 640 : index
    %c0_380 = arith.constant 0 : index
    %838 = vector.load %arg4[%c640_379, %c0_380] : memref<960x32xbf16, #tpu.memory_space<vmem>>, vector<32x32xbf16>
    %839 = arith.truncf %800 : vector<17x32xf32> to vector<17x32xbf16>
    %cst_381 = arith.constant dense<0.000000e+00> : vector<17x32xf32>
    %840 = tpu.matmul %839, %838, %cst_381 {dimension_numbers = #tpu.dot_dimension_numbers<[1], [0], [0], [1], [0, 0, 1, 1], [], []>} : vector<17x32xbf16>, vector<32x32xbf16>, vector<17x32xf32> -> vector<17x32xf32>
    %c184_382 = arith.constant 184 : index
    %c0_383 = arith.constant 0 : index
    %841 = vector.load %arg7[%c184_382, %c0_383] : memref<272x32xf32, #tpu.memory_space<vmem>>, vector<1x32xf32>
    %842 = vector.broadcast %841 : vector<1x32xf32> to vector<17x32xf32>
    %843 = arith.addf %840, %842 : vector<17x32xf32>
    %844 = arith.truncf %837 : vector<17x32xf32> to vector<17x32xbf16>
    %845 = arith.truncf %843 : vector<17x32xf32> to vector<17x32xbf16>
    %cst_384 = arith.constant dense<0.000000e+00> : vector<17x17xf32>
    %846 = tpu.matmul %844, %845, %cst_384 {dimension_numbers = #tpu.dot_dimension_numbers<[1], [1], [0], [0], [0, 0, 1, 0], [], []>} : vector<17x32xbf16>, vector<17x32xbf16>, vector<17x17xf32> -> vector<17x17xf32>
    %cst_385 = arith.constant dense<0xFF800000> : vector<17xf32>
    %847 = vector.multi_reduction <maximumf>, %846, %cst_385 [1] : vector<17x17xf32> to vector<17xf32>
    %848 = vector.shape_cast %847 : vector<17xf32> to vector<17x1xf32>
    %849 = vector.broadcast %848 : vector<17x1xf32> to vector<17x17xf32>
    %850 = arith.subf %846, %849 : vector<17x17xf32>
    %851 = math.exp %850 : vector<17x17xf32>
    %cst_386 = arith.constant dense<0.000000e+00> : vector<17xf32>
    %852 = vector.multi_reduction <add>, %851, %cst_386 [1] : vector<17x17xf32> to vector<17xf32>
    %853 = vector.shape_cast %852 : vector<17xf32> to vector<17x1xf32>
    %854 = tpu.reciprocal %853 {approx = true} : vector<17x1xf32> -> vector<17x1xf32>
    %855 = vector.broadcast %854 : vector<17x1xf32> to vector<17x17xf32>
    %856 = arith.mulf %851, %855 : vector<17x17xf32>
    %c672_387 = arith.constant 672 : index
    %c0_388 = arith.constant 0 : index
    %857 = vector.load %arg4[%c672_387, %c0_388] : memref<960x32xbf16, #tpu.memory_space<vmem>>, vector<32x32xbf16>
    %858 = arith.truncf %800 : vector<17x32xf32> to vector<17x32xbf16>
    %cst_389 = arith.constant dense<0.000000e+00> : vector<17x32xf32>
    %859 = tpu.matmul %858, %857, %cst_389 {dimension_numbers = #tpu.dot_dimension_numbers<[1], [0], [0], [1], [0, 0, 1, 1], [], []>} : vector<17x32xbf16>, vector<32x32xbf16>, vector<17x32xf32> -> vector<17x32xf32>
    %860 = arith.truncf %856 : vector<17x17xf32> to vector<17x17xbf16>
    %861 = arith.truncf %859 : vector<17x32xf32> to vector<17x32xbf16>
    %cst_390 = arith.constant dense<0.000000e+00> : vector<17x32xf32>
    %862 = tpu.matmul %860, %861, %cst_390 {dimension_numbers = #tpu.dot_dimension_numbers<[1], [0], [0], [1], [0, 0, 1, 1], [], []>} : vector<17x17xbf16>, vector<17x32xbf16>, vector<17x32xf32> -> vector<17x32xf32>
    %863 = arith.addf %831, %862 : vector<17x32xf32>
    %c704_391 = arith.constant 704 : index
    %c0_392 = arith.constant 0 : index
    %864 = vector.load %arg4[%c704_391, %c0_392] : memref<960x32xbf16, #tpu.memory_space<vmem>>, vector<32x32xbf16>
    %865 = arith.truncf %800 : vector<17x32xf32> to vector<17x32xbf16>
    %cst_393 = arith.constant dense<0.000000e+00> : vector<17x32xf32>
    %866 = tpu.matmul %865, %864, %cst_393 {dimension_numbers = #tpu.dot_dimension_numbers<[1], [0], [0], [1], [0, 0, 1, 1], [], []>} : vector<17x32xbf16>, vector<32x32xbf16>, vector<17x32xf32> -> vector<17x32xf32>
    %c192_394 = arith.constant 192 : index
    %c0_395 = arith.constant 0 : index
    %867 = vector.load %arg7[%c192_394, %c0_395] : memref<272x32xf32, #tpu.memory_space<vmem>>, vector<1x32xf32>
    %868 = vector.broadcast %867 : vector<1x32xf32> to vector<17x32xf32>
    %869 = arith.addf %866, %868 : vector<17x32xf32>
    %c736_396 = arith.constant 736 : index
    %c0_397 = arith.constant 0 : index
    %870 = vector.load %arg4[%c736_396, %c0_397] : memref<960x32xbf16, #tpu.memory_space<vmem>>, vector<32x32xbf16>
    %871 = arith.truncf %800 : vector<17x32xf32> to vector<17x32xbf16>
    %cst_398 = arith.constant dense<0.000000e+00> : vector<17x32xf32>
    %872 = tpu.matmul %871, %870, %cst_398 {dimension_numbers = #tpu.dot_dimension_numbers<[1], [0], [0], [1], [0, 0, 1, 1], [], []>} : vector<17x32xbf16>, vector<32x32xbf16>, vector<17x32xf32> -> vector<17x32xf32>
    %c200_399 = arith.constant 200 : index
    %c0_400 = arith.constant 0 : index
    %873 = vector.load %arg7[%c200_399, %c0_400] : memref<272x32xf32, #tpu.memory_space<vmem>>, vector<1x32xf32>
    %874 = vector.broadcast %873 : vector<1x32xf32> to vector<17x32xf32>
    %875 = arith.addf %872, %874 : vector<17x32xf32>
    %876 = arith.truncf %869 : vector<17x32xf32> to vector<17x32xbf16>
    %877 = arith.truncf %875 : vector<17x32xf32> to vector<17x32xbf16>
    %cst_401 = arith.constant dense<0.000000e+00> : vector<17x17xf32>
    %878 = tpu.matmul %876, %877, %cst_401 {dimension_numbers = #tpu.dot_dimension_numbers<[1], [1], [0], [0], [0, 0, 1, 0], [], []>} : vector<17x32xbf16>, vector<17x32xbf16>, vector<17x17xf32> -> vector<17x17xf32>
    %cst_402 = arith.constant dense<0xFF800000> : vector<17xf32>
    %879 = vector.multi_reduction <maximumf>, %878, %cst_402 [1] : vector<17x17xf32> to vector<17xf32>
    %880 = vector.shape_cast %879 : vector<17xf32> to vector<17x1xf32>
    %881 = vector.broadcast %880 : vector<17x1xf32> to vector<17x17xf32>
    %882 = arith.subf %878, %881 : vector<17x17xf32>
    %883 = math.exp %882 : vector<17x17xf32>
    %cst_403 = arith.constant dense<0.000000e+00> : vector<17xf32>
    %884 = vector.multi_reduction <add>, %883, %cst_403 [1] : vector<17x17xf32> to vector<17xf32>
    %885 = vector.shape_cast %884 : vector<17xf32> to vector<17x1xf32>
    %886 = tpu.reciprocal %885 {approx = true} : vector<17x1xf32> -> vector<17x1xf32>
    %887 = vector.broadcast %886 : vector<17x1xf32> to vector<17x17xf32>
    %888 = arith.mulf %883, %887 : vector<17x17xf32>
    %c768_404 = arith.constant 768 : index
    %c0_405 = arith.constant 0 : index
    %889 = vector.load %arg4[%c768_404, %c0_405] : memref<960x32xbf16, #tpu.memory_space<vmem>>, vector<32x32xbf16>
    %890 = arith.truncf %800 : vector<17x32xf32> to vector<17x32xbf16>
    %cst_406 = arith.constant dense<0.000000e+00> : vector<17x32xf32>
    %891 = tpu.matmul %890, %889, %cst_406 {dimension_numbers = #tpu.dot_dimension_numbers<[1], [0], [0], [1], [0, 0, 1, 1], [], []>} : vector<17x32xbf16>, vector<32x32xbf16>, vector<17x32xf32> -> vector<17x32xf32>
    %892 = arith.truncf %888 : vector<17x17xf32> to vector<17x17xbf16>
    %893 = arith.truncf %891 : vector<17x32xf32> to vector<17x32xbf16>
    %cst_407 = arith.constant dense<0.000000e+00> : vector<17x32xf32>
    %894 = tpu.matmul %892, %893, %cst_407 {dimension_numbers = #tpu.dot_dimension_numbers<[1], [0], [0], [1], [0, 0, 1, 1], [], []>} : vector<17x17xbf16>, vector<17x32xbf16>, vector<17x32xf32> -> vector<17x32xf32>
    %895 = arith.addf %863, %894 : vector<17x32xf32>
    %c800_408 = arith.constant 800 : index
    %c0_409 = arith.constant 0 : index
    %896 = vector.load %arg4[%c800_408, %c0_409] : memref<960x32xbf16, #tpu.memory_space<vmem>>, vector<32x32xbf16>
    %897 = arith.truncf %800 : vector<17x32xf32> to vector<17x32xbf16>
    %cst_410 = arith.constant dense<0.000000e+00> : vector<17x32xf32>
    %898 = tpu.matmul %897, %896, %cst_410 {dimension_numbers = #tpu.dot_dimension_numbers<[1], [0], [0], [1], [0, 0, 1, 1], [], []>} : vector<17x32xbf16>, vector<32x32xbf16>, vector<17x32xf32> -> vector<17x32xf32>
    %c208_411 = arith.constant 208 : index
    %c0_412 = arith.constant 0 : index
    %899 = vector.load %arg7[%c208_411, %c0_412] : memref<272x32xf32, #tpu.memory_space<vmem>>, vector<1x32xf32>
    %900 = vector.broadcast %899 : vector<1x32xf32> to vector<17x32xf32>
    %901 = arith.addf %898, %900 : vector<17x32xf32>
    %c832_413 = arith.constant 832 : index
    %c0_414 = arith.constant 0 : index
    %902 = vector.load %arg4[%c832_413, %c0_414] : memref<960x32xbf16, #tpu.memory_space<vmem>>, vector<32x32xbf16>
    %903 = arith.truncf %800 : vector<17x32xf32> to vector<17x32xbf16>
    %cst_415 = arith.constant dense<0.000000e+00> : vector<17x32xf32>
    %904 = tpu.matmul %903, %902, %cst_415 {dimension_numbers = #tpu.dot_dimension_numbers<[1], [0], [0], [1], [0, 0, 1, 1], [], []>} : vector<17x32xbf16>, vector<32x32xbf16>, vector<17x32xf32> -> vector<17x32xf32>
    %c216_416 = arith.constant 216 : index
    %c0_417 = arith.constant 0 : index
    %905 = vector.load %arg7[%c216_416, %c0_417] : memref<272x32xf32, #tpu.memory_space<vmem>>, vector<1x32xf32>
    %906 = vector.broadcast %905 : vector<1x32xf32> to vector<17x32xf32>
    %907 = arith.addf %904, %906 : vector<17x32xf32>
    %908 = arith.truncf %901 : vector<17x32xf32> to vector<17x32xbf16>
    %909 = arith.truncf %907 : vector<17x32xf32> to vector<17x32xbf16>
    %cst_418 = arith.constant dense<0.000000e+00> : vector<17x17xf32>
    %910 = tpu.matmul %908, %909, %cst_418 {dimension_numbers = #tpu.dot_dimension_numbers<[1], [1], [0], [0], [0, 0, 1, 0], [], []>} : vector<17x32xbf16>, vector<17x32xbf16>, vector<17x17xf32> -> vector<17x17xf32>
    %cst_419 = arith.constant dense<0xFF800000> : vector<17xf32>
    %911 = vector.multi_reduction <maximumf>, %910, %cst_419 [1] : vector<17x17xf32> to vector<17xf32>
    %912 = vector.shape_cast %911 : vector<17xf32> to vector<17x1xf32>
    %913 = vector.broadcast %912 : vector<17x1xf32> to vector<17x17xf32>
    %914 = arith.subf %910, %913 : vector<17x17xf32>
    %915 = math.exp %914 : vector<17x17xf32>
    %cst_420 = arith.constant dense<0.000000e+00> : vector<17xf32>
    %916 = vector.multi_reduction <add>, %915, %cst_420 [1] : vector<17x17xf32> to vector<17xf32>
    %917 = vector.shape_cast %916 : vector<17xf32> to vector<17x1xf32>
    %918 = tpu.reciprocal %917 {approx = true} : vector<17x1xf32> -> vector<17x1xf32>
    %919 = vector.broadcast %918 : vector<17x1xf32> to vector<17x17xf32>
    %920 = arith.mulf %915, %919 : vector<17x17xf32>
    %c864_421 = arith.constant 864 : index
    %c0_422 = arith.constant 0 : index
    %921 = vector.load %arg4[%c864_421, %c0_422] : memref<960x32xbf16, #tpu.memory_space<vmem>>, vector<32x32xbf16>
    %922 = arith.truncf %800 : vector<17x32xf32> to vector<17x32xbf16>
    %cst_423 = arith.constant dense<0.000000e+00> : vector<17x32xf32>
    %923 = tpu.matmul %922, %921, %cst_423 {dimension_numbers = #tpu.dot_dimension_numbers<[1], [0], [0], [1], [0, 0, 1, 1], [], []>} : vector<17x32xbf16>, vector<32x32xbf16>, vector<17x32xf32> -> vector<17x32xf32>
    %924 = arith.truncf %920 : vector<17x17xf32> to vector<17x17xbf16>
    %925 = arith.truncf %923 : vector<17x32xf32> to vector<17x32xbf16>
    %cst_424 = arith.constant dense<0.000000e+00> : vector<17x32xf32>
    %926 = tpu.matmul %924, %925, %cst_424 {dimension_numbers = #tpu.dot_dimension_numbers<[1], [0], [0], [1], [0, 0, 1, 1], [], []>} : vector<17x17xbf16>, vector<17x32xbf16>, vector<17x32xf32> -> vector<17x32xf32>
    %927 = arith.addf %895, %926 : vector<17x32xf32>
    %c224_425 = arith.constant 224 : index
    %c0_426 = arith.constant 0 : index
    %928 = vector.load %arg7[%c224_425, %c0_426] : memref<272x32xf32, #tpu.memory_space<vmem>>, vector<1x32xf32>
    %929 = vector.broadcast %928 : vector<1x32xf32> to vector<17x32xf32>
    %930 = arith.addf %927, %929 : vector<17x32xf32>
    %931 = arith.addf %800, %930 : vector<17x32xf32>
    %c232_427 = arith.constant 232 : index
    %c0_428 = arith.constant 0 : index
    %932 = vector.load %arg7[%c232_427, %c0_428] : memref<272x32xf32, #tpu.memory_space<vmem>>, vector<1x32xf32>
    %c240_429 = arith.constant 240 : index
    %c0_430 = arith.constant 0 : index
    %933 = vector.load %arg7[%c240_429, %c0_430] : memref<272x32xf32, #tpu.memory_space<vmem>>, vector<1x32xf32>
    %cst_431 = arith.constant dense<0.000000e+00> : vector<17xf32>
    %934 = vector.multi_reduction <add>, %931, %cst_431 [1] : vector<17x32xf32> to vector<17xf32>
    %935 = vector.shape_cast %934 : vector<17xf32> to vector<17x1xf32>
    %cst_432 = arith.constant 3.200000e+01 : f32
    %936 = vector.broadcast %cst_432 : f32 to vector<17x1xf32>
    %937 = arith.divf %935, %936 : vector<17x1xf32>
    %938 = vector.broadcast %937 : vector<17x1xf32> to vector<17x32xf32>
    %939 = arith.subf %931, %938 : vector<17x32xf32>
    %940 = arith.mulf %939, %939 : vector<17x32xf32>
    %cst_433 = arith.constant dense<0.000000e+00> : vector<17xf32>
    %941 = vector.multi_reduction <add>, %940, %cst_433 [1] : vector<17x32xf32> to vector<17xf32>
    %942 = vector.shape_cast %941 : vector<17xf32> to vector<17x1xf32>
    %cst_434 = arith.constant 3.200000e+01 : f32
    %943 = vector.broadcast %cst_434 : f32 to vector<17x1xf32>
    %944 = arith.divf %942, %943 : vector<17x1xf32>
    %945 = vector.broadcast %937 : vector<17x1xf32> to vector<17x32xf32>
    %946 = arith.subf %931, %945 : vector<17x32xf32>
    %cst_435 = arith.constant 9.99999974E-6 : f32
    %947 = vector.broadcast %cst_435 : f32 to vector<17x1xf32>
    %948 = arith.addf %944, %947 : vector<17x1xf32>
    %949 = math.rsqrt %948 : vector<17x1xf32>
    %950 = vector.broadcast %949 : vector<17x1xf32> to vector<17x32xf32>
    %951 = arith.mulf %946, %950 : vector<17x32xf32>
    %952 = vector.broadcast %932 : vector<1x32xf32> to vector<17x32xf32>
    %953 = arith.mulf %951, %952 : vector<17x32xf32>
    %954 = vector.broadcast %933 : vector<1x32xf32> to vector<17x32xf32>
    %955 = arith.addf %953, %954 : vector<17x32xf32>
    %c48_436 = arith.constant 48 : index
    %c0_437 = arith.constant 0 : index
    %956 = vector.load %arg5[%c48_436, %c0_437] : memref<80x64xbf16, #tpu.memory_space<vmem>>, vector<32x64xbf16>
    %957 = arith.truncf %955 : vector<17x32xf32> to vector<17x32xbf16>
    %cst_438 = arith.constant dense<0.000000e+00> : vector<17x64xf32>
    %958 = tpu.matmul %957, %956, %cst_438 {dimension_numbers = #tpu.dot_dimension_numbers<[1], [0], [0], [1], [0, 0, 1, 1], [], []>} : vector<17x32xbf16>, vector<32x64xbf16>, vector<17x64xf32> -> vector<17x64xf32>
    %c32_439 = arith.constant 32 : index
    %c0_440 = arith.constant 0 : index
    %959 = vector.load %arg8[%c32_439, %c0_440] : memref<40x64xf32, #tpu.memory_space<vmem>>, vector<1x64xf32>
    %960 = vector.broadcast %959 : vector<1x64xf32> to vector<17x64xf32>
    %961 = arith.addf %958, %960 : vector<17x64xf32>
    %cst_441 = arith.constant 0.000000e+00 : f32
    %962 = vector.broadcast %cst_441 : f32 to vector<17x64xf32>
    %963 = arith.maximumf %961, %962 : vector<17x64xf32>
    %c896_442 = arith.constant 896 : index
    %c0_443 = arith.constant 0 : index
    %964 = vector.load %arg4[%c896_442, %c0_443] : memref<960x32xbf16, #tpu.memory_space<vmem>>, vector<64x32xbf16>
    %965 = arith.truncf %963 : vector<17x64xf32> to vector<17x64xbf16>
    %cst_444 = arith.constant dense<0.000000e+00> : vector<17x32xf32>
    %966 = tpu.matmul %965, %964, %cst_444 {dimension_numbers = #tpu.dot_dimension_numbers<[1], [0], [0], [1], [0, 0, 1, 1], [], []>} : vector<17x64xbf16>, vector<64x32xbf16>, vector<17x32xf32> -> vector<17x32xf32>
    %c248_445 = arith.constant 248 : index
    %c0_446 = arith.constant 0 : index
    %967 = vector.load %arg7[%c248_445, %c0_446] : memref<272x32xf32, #tpu.memory_space<vmem>>, vector<1x32xf32>
    %968 = vector.broadcast %967 : vector<1x32xf32> to vector<17x32xf32>
    %969 = arith.addf %966, %968 : vector<17x32xf32>
    %970 = arith.addf %955, %969 : vector<17x32xf32>
    %c256_447 = arith.constant 256 : index
    %c0_448 = arith.constant 0 : index
    %971 = vector.load %arg7[%c256_447, %c0_448] : memref<272x32xf32, #tpu.memory_space<vmem>>, vector<1x32xf32>
    %c264_449 = arith.constant 264 : index
    %c0_450 = arith.constant 0 : index
    %972 = vector.load %arg7[%c264_449, %c0_450] : memref<272x32xf32, #tpu.memory_space<vmem>>, vector<1x32xf32>
    %cst_451 = arith.constant dense<0.000000e+00> : vector<17xf32>
    %973 = vector.multi_reduction <add>, %970, %cst_451 [1] : vector<17x32xf32> to vector<17xf32>
    %974 = vector.shape_cast %973 : vector<17xf32> to vector<17x1xf32>
    %cst_452 = arith.constant 3.200000e+01 : f32
    %975 = vector.broadcast %cst_452 : f32 to vector<17x1xf32>
    %976 = arith.divf %974, %975 : vector<17x1xf32>
    %977 = vector.broadcast %976 : vector<17x1xf32> to vector<17x32xf32>
    %978 = arith.subf %970, %977 : vector<17x32xf32>
    %979 = arith.mulf %978, %978 : vector<17x32xf32>
    %cst_453 = arith.constant dense<0.000000e+00> : vector<17xf32>
    %980 = vector.multi_reduction <add>, %979, %cst_453 [1] : vector<17x32xf32> to vector<17xf32>
    %981 = vector.shape_cast %980 : vector<17xf32> to vector<17x1xf32>
    %cst_454 = arith.constant 3.200000e+01 : f32
    %982 = vector.broadcast %cst_454 : f32 to vector<17x1xf32>
    %983 = arith.divf %981, %982 : vector<17x1xf32>
    %984 = vector.broadcast %976 : vector<17x1xf32> to vector<17x32xf32>
    %985 = arith.subf %970, %984 : vector<17x32xf32>
    %cst_455 = arith.constant 9.99999974E-6 : f32
    %986 = vector.broadcast %cst_455 : f32 to vector<17x1xf32>
    %987 = arith.addf %983, %986 : vector<17x1xf32>
    %988 = math.rsqrt %987 : vector<17x1xf32>
    %989 = vector.broadcast %988 : vector<17x1xf32> to vector<17x32xf32>
    %990 = arith.mulf %985, %989 : vector<17x32xf32>
    %991 = vector.broadcast %971 : vector<1x32xf32> to vector<17x32xf32>
    %992 = arith.mulf %990, %991 : vector<17x32xf32>
    %993 = vector.broadcast %972 : vector<1x32xf32> to vector<17x32xf32>
    %994 = arith.addf %992, %993 : vector<17x32xf32>
    %cst_456 = arith.constant dense<0.000000e+00> : vector<32xf32>
    %995 = vector.multi_reduction <add>, %994, %cst_456 [0] : vector<17x32xf32> to vector<32xf32>
    %996 = vector.shape_cast %995 : vector<32xf32> to vector<1x32xf32>
    %cst_457 = arith.constant 1.700000e+01 : f32
    %997 = vector.broadcast %cst_457 : f32 to vector<1x32xf32>
    %998 = arith.divf %996, %997 : vector<1x32xf32>
    %c1_458 = arith.constant 1 : index
    %c0_459 = arith.constant 0 : index
    %c0_460 = arith.constant 0 : index
    %999 = vector.load %arg2[%c1_458, %c0_459, %c0_460] : memref<2x8x32xf32, #tpu.memory_space<vmem>>, vector<1x8x32xf32>
    %1000 = vector.shape_cast %999 : vector<1x8x32xf32> to vector<8x32xf32>
    %c1_461 = arith.constant 1 : index
    %c0_462 = arith.constant 0 : index
    %c0_463 = arith.constant 0 : index
    %1001 = vector.load %arg3[%c1_461, %c0_462, %c0_463] : memref<2x8x1xf32, #tpu.memory_space<vmem>>, vector<1x8x1xf32>
    %1002 = vector.shape_cast %1001 : vector<1x8x1xf32> to vector<8x1xf32>
    %1003 = vector.broadcast %1002 : vector<8x1xf32> to vector<8x32xf32>
    %1004 = arith.mulf %1000, %1003 : vector<8x32xf32>
    %cst_464 = arith.constant dense<0.000000e+00> : vector<32xf32>
    %1005 = vector.multi_reduction <add>, %1004, %cst_464 [0] : vector<8x32xf32> to vector<32xf32>
    %1006 = vector.shape_cast %1005 : vector<32xf32> to vector<1x32xf32>
    %cst_465 = arith.constant dense<0.000000e+00> : vector<1xf32>
    %1007 = vector.multi_reduction <add>, %1002, %cst_465 [0] : vector<8x1xf32> to vector<1xf32>
    %1008 = vector.shape_cast %1007 : vector<1xf32> to vector<1x1xf32>
    %cst_466 = arith.constant 9.99999971E-10 : f32
    %1009 = vector.broadcast %cst_466 : f32 to vector<1x1xf32>
    %1010 = arith.maximumf %1008, %1009 : vector<1x1xf32>
    %1011 = vector.broadcast %1010 : vector<1x1xf32> to vector<1x32xf32>
    %1012 = arith.divf %1006, %1011 : vector<1x32xf32>
    %c0_467 = arith.constant 0 : index
    %c0_468 = arith.constant 0 : index
    %1013 = vector.load %arg6[%c0_467, %c0_468] : memref<64x128xbf16, #tpu.memory_space<vmem>>, vector<32x128xbf16>
    %1014 = arith.truncf %998 : vector<1x32xf32> to vector<1x32xbf16>
    %cst_469 = arith.constant dense<0.000000e+00> : vector<1x128xf32>
    %1015 = tpu.matmul %1014, %1013, %cst_469 {dimension_numbers = #tpu.dot_dimension_numbers<[1], [0], [0], [1], [0, 0, 1, 1], [], []>} : vector<1x32xbf16>, vector<32x128xbf16>, vector<1x128xf32> -> vector<1x128xf32>
    %c32_470 = arith.constant 32 : index
    %c0_471 = arith.constant 0 : index
    %1016 = vector.load %arg6[%c32_470, %c0_471] : memref<64x128xbf16, #tpu.memory_space<vmem>>, vector<32x128xbf16>
    %1017 = arith.truncf %1012 : vector<1x32xf32> to vector<1x32xbf16>
    %cst_472 = arith.constant dense<0.000000e+00> : vector<1x128xf32>
    %1018 = tpu.matmul %1017, %1016, %cst_472 {dimension_numbers = #tpu.dot_dimension_numbers<[1], [0], [0], [1], [0, 0, 1, 1], [], []>} : vector<1x32xbf16>, vector<32x128xbf16>, vector<1x128xf32> -> vector<1x128xf32>
    %1019 = arith.addf %1015, %1018 : vector<1x128xf32>
    %c0_473 = arith.constant 0 : index
    %c0_474 = arith.constant 0 : index
    %1020 = vector.load %arg9[%c0_473, %c0_474] : memref<8x128xf32, #tpu.memory_space<vmem>>, vector<1x128xf32>
    %1021 = arith.addf %1019, %1020 : vector<1x128xf32>
    %c1_475 = arith.constant 1 : index
    %c0_476 = arith.constant 0 : index
    %c0_477 = arith.constant 0 : index
    %1022 = vector.load %arg10[%c1_475, %c0_476, %c0_477] : memref<2x1x128xf32, #tpu.memory_space<vmem>>, vector<1x1x128xf32>
    %1023 = vector.shape_cast %1022 : vector<1x1x128xf32> to vector<1x128xf32>
    %1024 = vector.shape_cast %1021 : vector<1x128xf32> to vector<1x1x128xf32>
    tpu.vector_store %arg10[%c1_475, %c0_476, %c0_477], %1024 {strides = array<i32>} : memref<2x1x128xf32, #tpu.memory_space<vmem>>, vector<1x1x128xf32>,
    return
  }
  func.func @transform_0(%arg0: i32) -> (i32, i32, i32) {
    %c0_i32 = arith.constant 0 : i32
    %c0_i32_0 = arith.constant 0 : i32
    %c0_i32_1 = arith.constant 0 : i32
    return %arg0, %c0_i32, %c0_i32_0 : i32, i32, i32
  }
  func.func @transform_1(%arg0: i32) -> (i32, i32, i32) {
    %c0_i32 = arith.constant 0 : i32
    %c0_i32_0 = arith.constant 0 : i32
    %c0_i32_1 = arith.constant 0 : i32
    return %arg0, %c0_i32, %c0_i32_0 : i32, i32, i32
  }
  func.func @transform_2(%arg0: i32) -> (i32, i32, i32) {
    %c0_i32 = arith.constant 0 : i32
    %c0_i32_0 = arith.constant 0 : i32
    %c0_i32_1 = arith.constant 0 : i32
    return %arg0, %c0_i32, %c0_i32_0 : i32, i32, i32
  }
  func.func @transform_3(%arg0: i32) -> (i32, i32) {
    %c0_i32 = arith.constant 0 : i32
    %c0_i32_0 = arith.constant 0 : i32
    %c0_i32_1 = arith.constant 0 : i32
    return %c0_i32, %c0_i32_0 : i32, i32
  }
  func.func @transform_4(%arg0: i32) -> (i32, i32) {
    %c0_i32 = arith.constant 0 : i32
    %c0_i32_0 = arith.constant 0 : i32
    %c0_i32_1 = arith.constant 0 : i32
    return %c0_i32, %c0_i32_0 : i32, i32
  }
  func.func @transform_5(%arg0: i32) -> (i32, i32) {
    %c0_i32 = arith.constant 0 : i32
    %c0_i32_0 = arith.constant 0 : i32
    %c0_i32_1 = arith.constant 0 : i32
    return %c0_i32, %c0_i32_0 : i32, i32
  }
  func.func @transform_6(%arg0: i32) -> (i32, i32) {
    %c0_i32 = arith.constant 0 : i32
    %c0_i32_0 = arith.constant 0 : i32
    %c0_i32_1 = arith.constant 0 : i32
    return %c0_i32, %c0_i32_0 : i32, i32
  }
  func.func @transform_7(%arg0: i32) -> (i32, i32) {
    %c0_i32 = arith.constant 0 : i32
    %c0_i32_0 = arith.constant 0 : i32
    %c0_i32_1 = arith.constant 0 : i32
    return %c0_i32, %c0_i32_0 : i32, i32
  }
  func.func @transform_8(%arg0: i32) -> (i32, i32) {
    %c0_i32 = arith.constant 0 : i32
    %c0_i32_0 = arith.constant 0 : i32
    %c0_i32_1 = arith.constant 0 : i32
    return %c0_i32, %c0_i32_0 : i32, i32
  }
  func.func @transform_9(%arg0: i32) -> (i32, i32, i32) {
    %c0_i32 = arith.constant 0 : i32
    %c0_i32_0 = arith.constant 0 : i32
    %c0_i32_1 = arith.constant 0 : i32
    return %arg0, %c0_i32, %c0_i32_0 : i32, i32, i32
  }
}

</mosaic_0001>

<llo_original>
// kernel: forward.1
$region0: #{forward.1}
  #allocation0 [shape = 'u32[]', space=smem, size = 0x4, offset = 0x4, fixed_abs, tag = 'smem constant byte address 0x4 - core index']
  #allocation1 [shape = 'u32[72,128]{1,0:T(1,128)}', space=vmem, size = 0x9000, scoped, tag = 'internal scratch']
  #allocation2 [shape = 'f32[24,32]{1,0:T(8,128)}', space=vmem, size = 0x3000, scoped, tag = 'scratch operand']
  %s0 = inlined_call_operand.vmem [shape: f32[2,16,16], index: 0, kind: input, shape index: {}]
  %s1 = inlined_call_operand.vmem [shape: f32[2,8,32], index: 1, kind: input, shape index: {}]
  %s2 = inlined_call_operand.vmem [shape: f32[2,8,1], index: 2, kind: input, shape index: {}]
  %s3 = inlined_call_operand.vmem [shape: bf16[960,32], index: 3, kind: input, shape index: {}]
  %s4 = inlined_call_operand.vmem [shape: bf16[80,64], index: 4, kind: input, shape index: {}]
  %s5 = inlined_call_operand.vmem [shape: bf16[64,128], index: 5, kind: input, shape index: {}]
  %s6 = inlined_call_operand.vmem [shape: f32[272,32], index: 6, kind: input, shape index: {}]
  %s7 = inlined_call_operand.vmem [shape: f32[40,64], index: 7, kind: input, shape index: {}]
  %s8 = inlined_call_operand.vmem [shape: f32[8,128], index: 8, kind: input, shape index: {}]
  %s9 = inlined_call_operand.hbm [shape: f32[2,1,128], index: 9, kind: output, shape index: {}]
  %s10 = sld [smem:[#allocation0]]
  $region46: #{forward.1} parent=0
    _
  %s12 = ssub.s32 1, %s10
  %s13 = scalar_select 0, %s12, %s10
  $region1: #{forward.1} parent=0
    #allocation3 [shape = 'u8[1024]{0}', space=vmem, size = 0x400, scoped, tag = 'output window, operand 0, single buffered']
    #allocation4 [shape = 's32[1]{0}', space=sflag, size = 0x4, scoped, tag = 'scoped memory for forward.1']
    %14 = vsyncpa [#allocation4], 0
    // Predicated region
    $region2: #{forward.1} parent=1 // pred_check
      _
    $region3: #{forward.1} parent=1 // pred_check_branch
      %16 = sbr.rel (0) target = $region5
    $region4: #{forward.1} parent=1 // pred_region
      _
    $region5: #{forward.1} parent=1 // pred_fallthru
      _
    // Predicated region
    $region6: #{forward.1} parent=1 // pred_check
      _
    $region7: #{forward.1} parent=1 // pred_check_branch
      %18 = sbr.rel (0) target = $region9
    $region8: #{forward.1} parent=1 // pred_region
      _
    $region9: #{forward.1} parent=1 // pred_fallthru
      _
    // Predicated region
    $region10: #{forward.1} parent=1 // pred_check
      _
    $region11: #{forward.1} parent=1 // pred_check_branch
      %20 = sbr.rel (0) target = $region13
    $region12: #{forward.1} parent=1 // pred_region
      _
    $region13: #{forward.1} parent=1 // pred_fallthru
      _
    // Predicated region
    $region14: #{forward.1} parent=1 // pred_check
      _
    $region15: #{forward.1} parent=1 // pred_check_branch
      %22 = sbr.rel (0) target = $region17
    $region16: #{forward.1} parent=1 // pred_region
      _
    $region17: #{forward.1} parent=1 // pred_fallthru
      _
    // Predicated region
    $region18: #{forward.1} parent=1 // pred_check
      _
    $region19: #{forward.1} parent=1 // pred_check_branch
      %24 = sbr.rel (0) target = $region21
    $region20: #{forward.1} parent=1 // pred_region
      _
    $region21: #{forward.1} parent=1 // pred_fallthru
      _
    // Predicated region
    $region22: #{forward.1} parent=1 // pred_check
      _
    $region23: #{forward.1} parent=1 // pred_check_branch
      %26 = sbr.rel (0) target = $region25
    $region24: #{forward.1} parent=1 // pred_region
      _
    $region25: #{forward.1} parent=1 // pred_fallthru
      _
    // Predicated region
    $region26: #{forward.1} parent=1 // pred_check
      _
    $region27: #{forward.1} parent=1 // pred_check_branch
      %28 = sbr.rel (0) target = $region29
    $region28: #{forward.1} parent=1 // pred_region
      _
    $region29: #{forward.1} parent=1 // pred_fallthru
      _
    // Predicated region
    $region30: #{forward.1} parent=1 // pred_check
      _
    $region31: #{forward.1} parent=1 // pred_check_branch
      %30 = sbr.rel (0) target = $region33
    $region32: #{forward.1} parent=1 // pred_region
      _
    $region33: #{forward.1} parent=1 // pred_fallthru
      _
    // Predicated region
    $region34: #{forward.1} parent=1 // pred_check
      _
    $region35: #{forward.1} parent=1 // pred_check_branch
      %32 = sbr.rel (0) target = $region37
    $region36: #{forward.1} parent=1 // pred_region
      _
    $region37: #{forward.1} parent=1 // pred_fallthru
      _
    %v34 = vld [vmem:[%s6 + $0x18] sm:$0xff]
    %v35 = vld [vmem:[%s6 + $0x20] sm:$0xff]
    %v36 = vld [vmem:[%s6 + $0x28] sm:$0x1]
    %v37 = vld [vmem:[%s0] sm:$0xff]
    %v38 = vld [vmem:[%s0 + $0x8] sm:$0xff]
    %v39 = vld [vmem:[%s4] sm:$0xf]
    %v40 = vld [vmem:[%s4 + $0x4] sm:$0xf]
    %v41 = vpack.c.bf16 %v38, %v37
    %v42 = vld [vmem:[%s7] sm:$0x1]
    %v43 = vperm.slane %v42, 0
    %v46 = vunpack.c.l.b16 %v39
    %v47 = vunpack.c.l.b16 %v40
    %v48 = vpack.c.b16 %v47, %v46
    %vm50 = vcmask 130048
    %v52 = vsel %vm50, %v41, 0
    %54 = vmatpush.bf16.msra.mxu0 0
    %55 = vmatpush.bf16.msra.mxu0 0
    %56 = vmatpush.bf16.msra.mxu0 0
    %57 = vmatpush.bf16.msra.mxu0 0
    %58 = vmatpush.bf16.msra.mxu0 0
    %59 = vmatpush.bf16.msra.mxu0 0
    %60 = vmatpush.bf16.msra.mxu0 0
    %61 = vmatpush.bf16.msra.mxu0 %v48
    %62 = vmatmul.bf16.gmra.mxu0 %v52
    %v63 = vpop.f32.mrf.mxu0
    %v64 = vadd.f32 %v43, %v63
    %v65 = vpop.f32.mrf.mxu0
    %v66 = vadd.f32 %v43, %v65
    %67 = vdwg.mxu0
    %v68 = vld [vmem:[%s7 + $0x8] sm:$0x1]
    %v69 = vld [vmem:[%s7 + $0x10] sm:$0x1]
    %vm70 = vcmask 523264
    %v71 = vsel %vm70, %v64, 0.0
    %72 = vadd.xlane.f32.xlu0 %v71
    %v73 = vpop.xlane.xlu0 %72
    %v74 = vsel %vm70, %v66, 0.0
    %75 = vadd.xlane.f32.xlu0 %v74
    %v76 = vpop.xlane.xlu0 %75
    %v77 = vrcp.pop 64.0
    %v78 = vmul.f32 64.0, %v77
    %v79 = vsub.f32 1.0, %v78
    %v80 = vmul.f32 %v77, %v79
    %v81 = vadd.f32 %v77, %v80
    %vm82 = vweird.f32 %v77
    %v83 = vsel %vm82, %v77, %v81
    %v84 = vmul.f32 %v73, %v83
    %v85 = vmul.f32 %v76, %v83
    %v86 = vsub.f32 %v64, %v84
    %v87 = vsub.f32 %v66, %v85
    %v88 = vmul.f32 %v86, %v86
    %v89 = vmul.f32 %v87, %v87
    %v90 = vsel %vm70, %v88, 0.0
    %91 = vadd.xlane.f32.xlu0 %v90
    %v92 = vpop.xlane.xlu0 %91
    %v93 = vsel %vm70, %v89, 0.0
    %94 = vadd.xlane.f32.xlu0 %v93
    %v95 = vpop.xlane.xlu0 %94
    %v96 = vmul.f32 %v92, %v83
    %v97 = vmul.f32 %v95, %v83
    %v98 = vadd.f32 %v96, 1e-05
    %v99 = vadd.f32 %v97, 1e-05
    %v100 = vrsqrt.pop %v98
    %v101 = vmul.f32 %v100, %v98
    %v102 = vmul.f32 %v101, %v100
    %v103 = vmul.f32 0.5, %v102
    %v104 = vsub.f32 1.5, %v103
    %v105 = vmul.f32 %v100, %v104
    %vm106 = vweird.f32 %v98
    %vm107 = vweird.f32 %v100
    %vm108 = vmor %vm106, %vm107
    %v109 = vsel %vm108, %v100, %v105
    %v110 = vrsqrt.pop %v99
    %v111 = vmul.f32 %v110, %v99
    %v112 = vmul.f32 %v111, %v110
    %v113 = vmul.f32 0.5, %v112
    %v114 = vsub.f32 1.5, %v113
    %v115 = vmul.f32 %v110, %v114
    %vm116 = vweird.f32 %v99
    %vm117 = vweird.f32 %v110
    %vm118 = vmor %vm116, %vm117
    %v119 = vsel %vm118, %v110, %v115
    %v120 = vmul.f32 %v86, %v109
    %v121 = vmul.f32 %v87, %v119
    %v122 = vperm.slane %v68, 0
    %v123 = vmul.f32 %v120, %v122
    %v124 = vmul.f32 %v121, %v122
    %v125 = vperm.slane %v69, 0
    %v126 = vadd.f32 %v123, %v125
    %v127 = vadd.f32 %v124, %v125
    %v128 = vmul.f32 %v126, 0.5
    %v129 = vmul.f32 %v127, 0.5
    %v130 = vmul.f32 %v126, 0.044715
    %v131 = vmul.f32 %v127, 0.044715
    %v132 = vmul.f32 %v130, %v126
    %v133 = vmul.f32 %v131, %v127
    %v134 = vmul.f32 %v132, %v126
    %v135 = vmul.f32 %v133, %v127
    %v136 = vadd.f32 %v126, %v134
    %v137 = vadd.f32 %v127, %v135
    %v138 = vmul.f32 %v136, 0.7978846
    %v139 = vmul.f32 %v137, 0.7978846
    %v140 = vtanh.pop %v138
    %v141 = vtanh.pop %v139
    %v142 = vadd.f32 %v140, 1.0
    %v143 = vadd.f32 %v141, 1.0
    %v144 = vmul.f32 %v128, %v142
    %v145 = vmul.f32 %v129, %v143
    %v146 = vld [vmem:[%s3] sm:$0xf]
    %v147 = vld [vmem:[%s3 + $0x4] sm:$0xf]
    %v148 = vld [vmem:[%s3 + $0x8] sm:$0xf]
    %v149 = vld [vmem:[%s3 + $0xc] sm:$0xf]
    %v150 = vld [vmem:[%s3 + $0x10] sm:$0xf]
    %v151 = vld [vmem:[%s3 + $0x14] sm:$0xf]
    %v152 = vld [vmem:[%s3 + $0x18] sm:$0xf]
    %v153 = vld [vmem:[%s3 + $0x1c] sm:$0xf]
    %v154 = vpack.c.bf16 %v145, %v144
    %v155 = vld [vmem:[%s6] sm:$0x1]
    %v156 = vperm.slane %v155, 0
    %v165 = vunpack.c.l.b16 %v146
    %v166 = vunpack.c.l.b16 %v147
    %v167 = vunpack.c.l.b16 %v148
    %v168 = vunpack.c.l.b16 %v149
    %v169 = vunpack.c.l.b16 %v150
    %v170 = vunpack.c.l.b16 %v151
    %v171 = vunpack.c.l.b16 %v152
    %v172 = vunpack.c.l.b16 %v153
    %v173 = vpack.c.b16 %v166, %v165
    %v174 = vpack.c.b16 %v168, %v167
    %v175 = vpack.c.b16 %v170, %v169
    %v176 = vpack.c.b16 %v172, %v171
    %v182 = vsel %vm70, %v154, 0
    %184 = vmatpush.bf16.msra.mxu0 0
    %185 = vmatpush.bf16.msra.mxu0 0
    %186 = vmatpush.bf16.msra.mxu0 0
    %187 = vmatpush.bf16.msra.mxu0 0
    %188 = vmatpush.bf16.msra.mxu0 %v176
    %189 = vmatpush.bf16.msra.mxu0 %v175
    %190 = vmatpush.bf16.msra.mxu0 %v174
    %191 = vmatpush.bf16.msra.mxu0 %v173
    %192 = vmatmul.bf16.gmra.mxu0 %v182
    %v193 = vpop.f32.mrf.mxu0
    %v194 = vadd.f32 %v156, %v193
    %v195 = vpop.f32.mrf.mxu0
    %v196 = vadd.f32 %v156, %v195
    %197 = vdwg.mxu0
    %v198 = vld [vmem:[%s6 + $0x8] sm:$0x1]
    %v199 = vld [vmem:[%s6 + $0x10] sm:$0x1]
    %vm200 = vcmask 261120
    %v201 = vsel %vm200, %v194, 0.0
    %202 = vadd.xlane.f32.xlu0 %v201
    %v203 = vpop.xlane.xlu0 %202
    %v204 = vsel %vm200, %v196, 0.0
    %205 = vadd.xlane.f32.xlu0 %v204
    %v206 = vpop.xlane.xlu0 %205
    %v207 = vrcp.pop 32.0
    %v208 = vmul.f32 32.0, %v207
    %v209 = vsub.f32 1.0, %v208
    %v210 = vmul.f32 %v207, %v209
    %v211 = vadd.f32 %v207, %v210
    %vm212 = vweird.f32 %v207
    %v213 = vsel %vm212, %v207, %v211
    %v214 = vmul.f32 %v203, %v213
    %v215 = vmul.f32 %v206, %v213
    %v216 = vsub.f32 %v194, %v214
    %v217 = vsub.f32 %v196, %v215
    %v218 = vmul.f32 %v216, %v216
    %v219 = vmul.f32 %v217, %v217
    %v220 = vsel %vm200, %v218, 0.0
    %221 = vadd.xlane.f32.xlu0 %v220
    %v222 = vpop.xlane.xlu0 %221
    %v223 = vsel %vm200, %v219, 0.0
    %224 = vadd.xlane.f32.xlu0 %v223
    %v225 = vpop.xlane.xlu0 %224
    %v226 = vmul.f32 %v222, %v213
    %v227 = vmul.f32 %v225, %v213
    %v228 = vadd.f32 %v226, 1e-05
    %v229 = vadd.f32 %v227, 1e-05
    %v230 = vrsqrt.pop %v228
    %v231 = vmul.f32 %v230, %v228
    %v232 = vmul.f32 %v231, %v230
    %v233 = vmul.f32 0.5, %v232
    %v234 = vsub.f32 1.5, %v233
    %v235 = vmul.f32 %v230, %v234
    %vm236 = vweird.f32 %v228
    %vm237 = vweird.f32 %v230
    %vm238 = vmor %vm236, %vm237
    %v239 = vsel %vm238, %v230, %v235
    %v240 = vrsqrt.pop %v229
    %v241 = vmul.f32 %v240, %v229
    %v242 = vmul.f32 %v241, %v240
    %v243 = vmul.f32 0.5, %v242
    %v244 = vsub.f32 1.5, %v243
    %v245 = vmul.f32 %v240, %v244
    %vm246 = vweird.f32 %v229
    %vm247 = vweird.f32 %v240
    %vm248 = vmor %vm246, %vm247
    %v249 = vsel %vm248, %v240, %v245
    %v250 = vmul.f32 %v216, %v239
    %v251 = vmul.f32 %v217, %v249
    %v252 = vperm.slane %v198, 0
    %v253 = vmul.f32 %v250, %v252
    %v254 = vmul.f32 %v251, %v252
    %v255 = vperm.slane %v199, 0
    %v256 = vadd.f32 %v253, %v255
    %v257 = vadd.f32 %v254, %v255
    %v258 = vmul.f32 %v256, 0.5
    %v259 = vmul.f32 %v257, 0.5
    %v260 = vmul.f32 %v256, 0.044715
    %v261 = vmul.f32 %v257, 0.044715
    %v262 = vmul.f32 %v260, %v256
    %v263 = vmul.f32 %v261, %v257
    %v264 = vmul.f32 %v262, %v256
    %v265 = vmul.f32 %v263, %v257
    %v266 = vadd.f32 %v256, %v264
    %v267 = vadd.f32 %v257, %v265
    %v268 = vmul.f32 %v266, 0.7978846
    %v269 = vmul.f32 %v267, 0.7978846
    %v270 = vtanh.pop %v268
    %v271 = vtanh.pop %v269
    %v272 = vadd.f32 %v270, 1.0
    %v273 = vadd.f32 %v271, 1.0
    %v274 = vmul.f32 %v258, %v272
    %v275 = vmul.f32 %v259, %v273
    %v276 = vadd.f32 %v274, %v34
    %v277 = vadd.f32 %v275, %v35
    %278 = vst.msk [vmem:[#allocation2] sm:$0xff] %vm200, %v276
    %279 = vst.msk [vmem:[#allocation2 + $0x8] sm:$0xff] %vm200, %v277
    %vm280 = vcmask 253952
    %281 = vst.msk [vmem:[#allocation2 + $0x10] sm:$0x1] %vm280, %v36
    %v282 = vld [vmem:[#allocation2] sm:$0xff]
    %v283 = vld [vmem:[#allocation2 + $0x8] sm:$0xff]
    %v284 = vld [vmem:[#allocation2 + $0x10] sm:$0x1]
    %v285 = vld [vmem:[%s3 + $0x20] sm:$0xf]
    %v286 = vld [vmem:[%s3 + $0x24] sm:$0xf]
    %v287 = vld [vmem:[%s3 + $0x28] sm:$0xf]
    %v288 = vld [vmem:[%s3 + $0x2c] sm:$0xf]
    %v289 = vpack.c.bf16 %v283, %v282
    %v290 = vpack.c.bf16 %v284, %v284
    %v291 = vld [vmem:[%s6 + $0x30] sm:$0x1]
    %v292 = vperm.slane %v291, 0
    %v297 = vunpack.c.l.b16 %v285
    %v298 = vunpack.c.l.b16 %v286
    %v299 = vunpack.c.l.b16 %v287
    %v300 = vunpack.c.l.b16 %v288
    %v301 = vpack.c.b16 %v298, %v297
    %v302 = vpack.c.b16 %v300, %v299
    %v306 = vsel %vm200, %v289, 0
    %v309 = vsel %vm200, %v290, 0
    %311 = vmatpush.bf16.msra.mxu0 0
    %312 = vmatpush.bf16.msra.mxu0 0
    %313 = vmatpush.bf16.msra.mxu0 0
    %314 = vmatpush.bf16.msra.mxu0 0
    %315 = vmatpush.bf16.msra.mxu0 0
    %316 = vmatpush.bf16.msra.mxu0 0
    %317 = vmatpush.bf16.msra.mxu0 %v302
    %318 = vmatpush.bf16.msra.mxu0 %v301
    %319 = vmatmul.bf16.gmra.mxu0 %v306
    %v320 = vpop.f32.mrf.mxu0
    %v321 = vadd.f32 %v292, %v320
    %v322 = vpop.f32.mrf.mxu0
    %v323 = vadd.f32 %v292, %v322
    %324 = vmatmul.bf16.gmra.mxu0 %v309
    %v325 = vpop.f32.mrf.mxu0
    %v326 = vadd.f32 %v292, %v325
    %v327 = vpop.f32.mrf.mxu0
    %328 = vdwg.mxu0
    %v329 = vld [vmem:[%s3 + $0x30] sm:$0xf]
    %v330 = vld [vmem:[%s3 + $0x34] sm:$0xf]
    %v331 = vld [vmem:[%s3 + $0x38] sm:$0xf]
    %v332 = vld [vmem:[%s3 + $0x3c] sm:$0xf]
    %v333 = vld [vmem:[%s6 + $0x38] sm:$0x1]
    %v334 = vperm.slane %v333, 0
    %v339 = vunpack.c.l.b16 %v329
    %v340 = vunpack.c.l.b16 %v330
    %v341 = vunpack.c.l.b16 %v331
    %v342 = vunpack.c.l.b16 %v332
    %v343 = vpack.c.b16 %v340, %v339
    %v344 = vpack.c.b16 %v342, %v341
    %347 = vmatpush.bf16.msra.mxu0 0
    %348 = vmatpush.bf16.msra.mxu0 0
    %349 = vmatpush.bf16.msra.mxu0 0
    %350 = vmatpush.bf16.msra.mxu0 0
    %351 = vmatpush.bf16.msra.mxu0 0
    %352 = vmatpush.bf16.msra.mxu0 0
    %353 = vmatpush.bf16.msra.mxu0 %v344
    %354 = vmatpush.bf16.msra.mxu0 %v343
    %355 = vmatmul.bf16.gmra.mxu0 %v306
    %v356 = vpop.f32.mrf.mxu0
    %v357 = vadd.f32 %v334, %v356
    %v358 = vpop.f32.mrf.mxu0
    %v359 = vadd.f32 %v334, %v358
    %360 = vmatmul.bf16.gmra.mxu0 %v309
    %v361 = vpop.f32.mrf.mxu0
    %v362 = vadd.f32 %v334, %v361
    %v363 = vpop.f32.mrf.mxu0
    %364 = vdwg.mxu0
    %v365 = vpack.c.bf16 %v323, %v321
    %v366 = vpack.c.bf16 %v326, %v326
    %v367 = vpack.c.bf16 %v359, %v357
    %v368 = vpack.c.bf16 %v362, %v362
    %v370 = vsel %vm200, %v365, 0
    %v373 = vsel %vm200, %v366, 0
    %v376 = vsel %vm200, %v367, 0
    %v379 = vsel %vm200, %v368, 0
    %381 = vmatpush.bf16.xpose.msra.mxu0 0
    %382 = vmatpush.bf16.xpose.msra.mxu0 0
    %383 = vmatpush.bf16.xpose.msra.mxu0 0
    %384 = vmatpush.bf16.xpose.msra.mxu0 0
    %385 = vmatpush.bf16.xpose.msra.mxu0 0
    %386 = vmatpush.bf16.xpose.msra.mxu0 0
    %387 = vmatpush.bf16.xpose.msra.mxu0 %v379
    %388 = vmatpush.bf16.xpose.msra.mxu0 %v376
    %389 = vmatmul.bf16.gmra.mxu0 %v370
    %v390 = vpop.f32.mrf.mxu0
    %v391 = vadd.f32 0.0, %v390
    %v392 = vpop.f32.mrf.mxu0
    %v393 = vadd.f32 0.0, %v392
    %394 = vmatmul.bf16.gmra.mxu0 %v373
    %v395 = vpop.f32.mrf.mxu0
    %v396 = vadd.f32 0.0, %v395
    %v397 = vpop.f32.mrf.mxu0
    %398 = vdwg.mxu0
    %vm399 = vcmask 138240
    %v400 = vsel %vm399, %v391, -inf
    %401 = vmax.xlane.f32.xlu0 %v400
    %v402 = vpop.xlane.xlu0 %401
    %v403 = vsel %vm399, %v393, -inf
    %404 = vmax.xlane.f32.xlu0 %v403
    %v405 = vpop.xlane.xlu0 %404
    %vm406 = vcmask 131072
    %v407 = vsel %vm406, %v396, -inf
    %408 = vmax.xlane.f32.xlu0 %v407
    %v409 = vpop.xlane.xlu0 %408
    %v410 = vsub.f32 %v391, %v402
    %v411 = vsub.f32 %v393, %v405
    %v412 = vsub.f32 %v396, %v409
    %v413 = vmul.f32 %v410, 1.442695
    %v414 = vpow.pop %v413
    %v415 = vmul.f32 %v411, 1.442695
    %v416 = vpow.pop %v415
    %v417 = vmul.f32 %v412, 1.442695
    %v418 = vpow.pop %v417
    %v419 = vsel %vm399, %v414, 0.0
    %420 = vadd.xlane.f32.xlu0 %v419
    %v421 = vpop.xlane.xlu0 %420
    %v422 = vsel %vm399, %v416, 0.0
    %423 = vadd.xlane.f32.xlu0 %v422
    %v424 = vpop.xlane.xlu0 %423
    %v425 = vsel %vm406, %v418, 0.0
    %426 = vadd.xlane.f32.xlu0 %v425
    %v427 = vpop.xlane.xlu0 %426
    %v428 = vrcp.pop %v421
    %v429 = vrcp.pop %v424
    %v430 = vrcp.pop %v427
    %v431 = vmul.f32 %v414, %v428
    %v432 = vmul.f32 %v416, %v429
    %v433 = vmul.f32 %v418, %v430
    %v434 = vld [vmem:[%s3 + $0x40] sm:$0xf]
    %v435 = vld [vmem:[%s3 + $0x44] sm:$0xf]
    %v436 = vld [vmem:[%s3 + $0x48] sm:$0xf]
    %v437 = vld [vmem:[%s3 + $0x4c] sm:$0xf]
    %v442 = vunpack.c.l.b16 %v434
    %v443 = vunpack.c.l.b16 %v435
    %v444 = vunpack.c.l.b16 %v436
    %v445 = vunpack.c.l.b16 %v437
    %v446 = vpack.c.b16 %v443, %v442
    %v447 = vpack.c.b16 %v445, %v444
    %450 = vmatpush.bf16.msra.mxu0 0
    %451 = vmatpush.bf16.msra.mxu0 0
    %452 = vmatpush.bf16.msra.mxu0 0
    %453 = vmatpush.bf16.msra.mxu0 0
    %454 = vmatpush.bf16.msra.mxu0 0
    %455 = vmatpush.bf16.msra.mxu0 0
    %456 = vmatpush.bf16.msra.mxu0 %v447
    %457 = vmatpush.bf16.msra.mxu0 %v446
    %458 = vmatmul.bf16.gmra.mxu0 %v306
    %v459 = vpop.f32.mrf.mxu0
    %v460 = vadd.f32 0.0, %v459
    %v461 = vpop.f32.mrf.mxu0
    %v462 = vadd.f32 0.0, %v461
    %463 = vmatmul.bf16.gmra.mxu0 %v309
    %v464 = vpop.f32.mrf.mxu0
    %v465 = vadd.f32 0.0, %v464
    %v466 = vpop.f32.mrf.mxu0
    %467 = vdwg.mxu0
    %v468 = vpack.c.bf16 %v432, %v431
    %v469 = vpack.c.bf16 %v433, %v433
    %v470 = vpack.c.bf16 %v462, %v460
    %v471 = vpack.c.bf16 %v465, %v465
    %v472 = vld [vmem:[%s3 + $0x50] sm:$0xf]
    %v473 = vld [vmem:[%s3 + $0x54] sm:$0xf]
    %v474 = vld [vmem:[%s3 + $0x58] sm:$0xf]
    %v475 = vld [vmem:[%s3 + $0x5c] sm:$0xf]
    %v476 = vld [vmem:[%s6 + $0x40] sm:$0x1]
    %v477 = vperm.slane %v476, 0
    %v482 = vunpack.c.l.b16 %v472
    %v483 = vunpack.c.l.b16 %v473
    %v484 = vunpack.c.l.b16 %v474
    %v485 = vunpack.c.l.b16 %v475
    %v486 = vpack.c.b16 %v483, %v482
    %v487 = vpack.c.b16 %v485, %v484
    %490 = vmatpush.bf16.msra.mxu0 0
    %491 = vmatpush.bf16.msra.mxu0 0
    %492 = vmatpush.bf16.msra.mxu0 0
    %493 = vmatpush.bf16.msra.mxu0 0
    %494 = vmatpush.bf16.msra.mxu0 0
    %495 = vmatpush.bf16.msra.mxu0 0
    %496 = vmatpush.bf16.msra.mxu0 %v487
    %497 = vmatpush.bf16.msra.mxu0 %v486
    %498 = vmatmul.bf16.gmra.mxu0 %v306
    %v499 = vpop.f32.mrf.mxu0
    %v500 = vadd.f32 %v477, %v499
    %v501 = vpop.f32.mrf.mxu0
    %v502 = vadd.f32 %v477, %v501
    %503 = vmatmul.bf16.gmra.mxu0 %v309
    %v504 = vpop.f32.mrf.mxu0
    %v505 = vadd.f32 %v477, %v504
    %v506 = vpop.f32.mrf.mxu0
    %507 = vdwg.mxu0
    %v508 = vld [vmem:[%s3 + $0x60] sm:$0xf]
    %v509 = vld [vmem:[%s3 + $0x64] sm:$0xf]
    %v510 = vld [vmem:[%s3 + $0x68] sm:$0xf]
    %v511 = vld [vmem:[%s3 + $0x6c] sm:$0xf]
    %v512 = vld [vmem:[%s6 + $0x48] sm:$0x1]
    %v513 = vperm.slane %v512, 0
    %v518 = vunpack.c.l.b16 %v508
    %v519 = vunpack.c.l.b16 %v509
    %v520 = vunpack.c.l.b16 %v510
    %v521 = vunpack.c.l.b16 %v511
    %v522 = vpack.c.b16 %v519, %v518
    %v523 = vpack.c.b16 %v521, %v520
    %526 = vmatpush.bf16.msra.mxu0 0
    %527 = vmatpush.bf16.msra.mxu0 0
    %528 = vmatpush.bf16.msra.mxu0 0
    %529 = vmatpush.bf16.msra.mxu0 0
    %530 = vmatpush.bf16.msra.mxu0 0
    %531 = vmatpush.bf16.msra.mxu0 0
    %532 = vmatpush.bf16.msra.mxu0 %v523
    %533 = vmatpush.bf16.msra.mxu0 %v522
    %534 = vmatmul.bf16.gmra.mxu0 %v306
    %v535 = vpop.f32.mrf.mxu0
    %v536 = vadd.f32 %v513, %v535
    %v537 = vpop.f32.mrf.mxu0
    %v538 = vadd.f32 %v513, %v537
    %539 = vmatmul.bf16.gmra.mxu0 %v309
    %v540 = vpop.f32.mrf.mxu0
    %v541 = vadd.f32 %v513, %v540
    %v542 = vpop.f32.mrf.mxu0
    %543 = vdwg.mxu0
    %v544 = vpack.c.bf16 %v502, %v500
    %v545 = vpack.c.bf16 %v505, %v505
    %v546 = vpack.c.bf16 %v538, %v536
    %v547 = vpack.c.bf16 %v541, %v541
    %v549 = vsel %vm200, %v544, 0
    %v552 = vsel %vm200, %v545, 0
    %v555 = vsel %vm200, %v546, 0
    %v558 = vsel %vm200, %v547, 0
    %560 = vmatpush.bf16.xpose.msra.mxu0 0
    %561 = vmatpush.bf16.xpose.msra.mxu0 0
    %562 = vmatpush.bf16.xpose.msra.mxu0 0
    %563 = vmatpush.bf16.xpose.msra.mxu0 0
    %564 = vmatpush.bf16.xpose.msra.mxu0 0
    %565 = vmatpush.bf16.xpose.msra.mxu0 0
    %566 = vmatpush.bf16.xpose.msra.mxu0 %v558
    %567 = vmatpush.bf16.xpose.msra.mxu0 %v555
    %568 = vmatmul.bf16.gmra.mxu0 %v549
    %v569 = vpop.f32.mrf.mxu0
    %v570 = vadd.f32 0.0, %v569
    %v571 = vpop.f32.mrf.mxu0
    %v572 = vadd.f32 0.0, %v571
    %573 = vmatmul.bf16.gmra.mxu0 %v552
    %v574 = vpop.f32.mrf.mxu0
    %v575 = vadd.f32 0.0, %v574
    %v576 = vpop.f32.mrf.mxu0
    %577 = vdwg.mxu0
    %v578 = vsel %vm399, %v570, -inf
    %579 = vmax.xlane.f32.xlu0 %v578
    %v580 = vpop.xlane.xlu0 %579
    %v581 = vsel %vm399, %v572, -inf
    %582 = vmax.xlane.f32.xlu0 %v581
    %v583 = vpop.xlane.xlu0 %582
    %v584 = vsel %vm406, %v575, -inf
    %585 = vmax.xlane.f32.xlu0 %v584
    %v586 = vpop.xlane.xlu0 %585
    %v587 = vsub.f32 %v570, %v580
    %v588 = vsub.f32 %v572, %v583
    %v589 = vsub.f32 %v575, %v586
    %v590 = vmul.f32 %v587, 1.442695
    %v591 = vpow.pop %v590
    %v592 = vmul.f32 %v588, 1.442695
    %v593 = vpow.pop %v592
    %v594 = vmul.f32 %v589, 1.442695
    %v595 = vpow.pop %v594
    %v596 = vsel %vm399, %v591, 0.0
    %597 = vadd.xlane.f32.xlu0 %v596
    %v598 = vpop.xlane.xlu0 %597
    %v599 = vsel %vm399, %v593, 0.0
    %600 = vadd.xlane.f32.xlu0 %v599
    %v601 = vpop.xlane.xlu0 %600
    %v602 = vsel %vm406, %v595, 0.0
    %603 = vadd.xlane.f32.xlu0 %v602
    %v604 = vpop.xlane.xlu0 %603
    %v605 = vrcp.pop %v598
    %v606 = vrcp.pop %v601
    %v607 = vrcp.pop %v604
    %v608 = vmul.f32 %v591, %v605
    %v609 = vmul.f32 %v593, %v606
    %v610 = vmul.f32 %v595, %v607
    %v611 = vld [vmem:[%s3 + $0x70] sm:$0xf]
    %v612 = vld [vmem:[%s3 + $0x74] sm:$0xf]
    %v613 = vld [vmem:[%s3 + $0x78] sm:$0xf]
    %v614 = vld [vmem:[%s3 + $0x7c] sm:$0xf]
    %v619 = vunpack.c.l.b16 %v611
    %v620 = vunpack.c.l.b16 %v612
    %v621 = vunpack.c.l.b16 %v613
    %v622 = vunpack.c.l.b16 %v614
    %v623 = vpack.c.b16 %v620, %v619
    %v624 = vpack.c.b16 %v622, %v621
    %627 = vmatpush.bf16.msra.mxu0 0
    %628 = vmatpush.bf16.msra.mxu0 0
    %629 = vmatpush.bf16.msra.mxu0 0
    %630 = vmatpush.bf16.msra.mxu0 0
    %631 = vmatpush.bf16.msra.mxu0 0
    %632 = vmatpush.bf16.msra.mxu0 0
    %633 = vmatpush.bf16.msra.mxu0 %v624
    %634 = vmatpush.bf16.msra.mxu0 %v623
    %635 = vmatmul.bf16.gmra.mxu0 %v306
    %v636 = vpop.f32.mrf.mxu0
    %v637 = vadd.f32 0.0, %v636
    %v638 = vpop.f32.mrf.mxu0
    %v639 = vadd.f32 0.0, %v638
    %640 = vmatmul.bf16.gmra.mxu0 %v309
    %v641 = vpop.f32.mrf.mxu0
    %v642 = vadd.f32 0.0, %v641
    %v643 = vpop.f32.mrf.mxu0
    %644 = vdwg.mxu0
    %v645 = vpack.c.bf16 %v609, %v608
    %v646 = vpack.c.bf16 %v610, %v610
    %v647 = vpack.c.bf16 %v639, %v637
    %v648 = vpack.c.bf16 %v642, %v642
    %v650 = vsel %vm399, %v645, 0
    %v653 = vsel %vm399, %v646, 0
    %vm655 = vcmask 1040384
    %v656 = vsel 0, 4294967295, 65535
    %v657 = vsel %vm655, %v656, 0
    %v659 = vand.u32 %v648, %v657
    %661 = vmatpush.bf16.msra.mxu0 0
    %662 = vmatpush.bf16.msra.mxu0 0
    %663 = vmatpush.bf16.msra.mxu0 0
    %664 = vmatpush.bf16.msra.mxu0 0
    %665 = vmatpush.bf16.msra.mxu0 0
    %666 = vmatpush.bf16.msra.mxu0 0
    %667 = vmatpush.bf16.msra.mxu0 %v659
    %668 = vmatpush.bf16.msra.mxu0 %v647
    %669 = vmatmul.bf16.gmra.mxu0 %v650
    %v670 = vpop.f32.mrf.mxu0
    %v671 = vadd.f32 0.0, %v670
    %v672 = vpop.f32.mrf.mxu0
    %v673 = vadd.f32 0.0, %v672
    %674 = vmatmul.bf16.gmra.mxu0 %v653
    %v675 = vpop.f32.mrf.mxu0
    %v676 = vadd.f32 0.0, %v675
    %v677 = vpop.f32.mrf.mxu0
    %678 = vdwg.mxu0
    %v680 = vsel %vm399, %v468, 0
    %v683 = vsel %vm399, %v469, 0
    %v686 = vand.u32 %v471, %v657
    %688 = vmatpush.bf16.msra.mxu0 0
    %689 = vmatpush.bf16.msra.mxu0 0
    %690 = vmatpush.bf16.msra.mxu0 0
    %691 = vmatpush.bf16.msra.mxu0 0
    %692 = vmatpush.bf16.msra.mxu0 0
    %693 = vmatpush.bf16.msra.mxu0 0
    %694 = vmatpush.bf16.msra.mxu0 %v686
    %695 = vmatpush.bf16.msra.mxu0 %v470
    %696 = vmatmul.bf16.gmra.mxu0 %v680
    %v697 = vpop.f32.mrf.mxu0
    %v698 = vadd.f32 %v671, %v697
    %v699 = vpop.f32.mrf.mxu0
    %v700 = vadd.f32 %v673, %v699
    %701 = vmatmul.bf16.gmra.mxu0 %v683
    %v702 = vpop.f32.mrf.mxu0
    %v703 = vadd.f32 %v676, %v702
    %v704 = vpop.f32.mrf.mxu0
    %705 = vdwg.mxu0
    %v706 = vld [vmem:[%s3 + $0x80] sm:$0xf]
    %v707 = vld [vmem:[%s3 + $0x84] sm:$0xf]
    %v708 = vld [vmem:[%s3 + $0x88] sm:$0xf]
    %v709 = vld [vmem:[%s3 + $0x8c] sm:$0xf]
    %v710 = vld [vmem:[%s6 + $0x50] sm:$0x1]
    %v711 = vperm.slane %v710, 0
    %v716 = vunpack.c.l.b16 %v706
    %v717 = vunpack.c.l.b16 %v707
    %v718 = vunpack.c.l.b16 %v708
    %v719 = vunpack.c.l.b16 %v709
    %v720 = vpack.c.b16 %v717, %v716
    %v721 = vpack.c.b16 %v719, %v718
    %724 = vmatpush.bf16.msra.mxu0 0
    %725 = vmatpush.bf16.msra.mxu0 0
    %726 = vmatpush.bf16.msra.mxu0 0
    %727 = vmatpush.bf16.msra.mxu0 0
    %728 = vmatpush.bf16.msra.mxu0 0
    %729 = vmatpush.bf16.msra.mxu0 0
    %730 = vmatpush.bf16.msra.mxu0 %v721
    %731 = vmatpush.bf16.msra.mxu0 %v720
    %732 = vmatmul.bf16.gmra.mxu0 %v306
    %v733 = vpop.f32.mrf.mxu0
    %v734 = vadd.f32 %v711, %v733
    %v735 = vpop.f32.mrf.mxu0
    %v736 = vadd.f32 %v711, %v735
    %737 = vmatmul.bf16.gmra.mxu0 %v309
    %v738 = vpop.f32.mrf.mxu0
    %v739 = vadd.f32 %v711, %v738
    %v740 = vpop.f32.mrf.mxu0
    %741 = vdwg.mxu0
    %v742 = vld [vmem:[%s3 + $0x90] sm:$0xf]
    %v743 = vld [vmem:[%s3 + $0x94] sm:$0xf]
    %v744 = vld [vmem:[%s3 + $0x98] sm:$0xf]
    %v745 = vld [vmem:[%s3 + $0x9c] sm:$0xf]
    %v746 = vld [vmem:[%s6 + $0x58] sm:$0x1]
    %v747 = vperm.slane %v746, 0
    %v752 = vunpack.c.l.b16 %v742
    %v753 = vunpack.c.l.b16 %v743
    %v754 = vunpack.c.l.b16 %v744
    %v755 = vunpack.c.l.b16 %v745
    %v756 = vpack.c.b16 %v753, %v752
    %v757 = vpack.c.b16 %v755, %v754
    %760 = vmatpush.bf16.msra.mxu0 0
    %761 = vmatpush.bf16.msra.mxu0 0
    %762 = vmatpush.bf16.msra.mxu0 0
    %763 = vmatpush.bf16.msra.mxu0 0
    %764 = vmatpush.bf16.msra.mxu0 0
    %765 = vmatpush.bf16.msra.mxu0 0
    %766 = vmatpush.bf16.msra.mxu0 %v757
    %767 = vmatpush.bf16.msra.mxu0 %v756
    %768 = vmatmul.bf16.gmra.mxu0 %v306
    %v769 = vpop.f32.mrf.mxu0
    %v770 = vadd.f32 %v747, %v769
    %v771 = vpop.f32.mrf.mxu0
    %v772 = vadd.f32 %v747, %v771
    %773 = vmatmul.bf16.gmra.mxu0 %v309
    %v774 = vpop.f32.mrf.mxu0
    %v775 = vadd.f32 %v747, %v774
    %v776 = vpop.f32.mrf.mxu0
    %777 = vdwg.mxu0
    %v778 = vpack.c.bf16 %v736, %v734
    %v779 = vpack.c.bf16 %v739, %v739
    %v780 = vpack.c.bf16 %v772, %v770
    %v781 = vpack.c.bf16 %v775, %v775
    %v783 = vsel %vm200, %v778, 0
    %v786 = vsel %vm200, %v779, 0
    %v789 = vsel %vm200, %v780, 0
    %v792 = vsel %vm200, %v781, 0
    %794 = vmatpush.bf16.xpose.msra.mxu0 0
    %795 = vmatpush.bf16.xpose.msra.mxu0 0
    %796 = vmatpush.bf16.xpose.msra.mxu0 0
    %797 = vmatpush.bf16.xpose.msra.mxu0 0
    %798 = vmatpush.bf16.xpose.msra.mxu0 0
    %799 = vmatpush.bf16.xpose.msra.mxu0 0
    %800 = vmatpush.bf16.xpose.msra.mxu0 %v792
    %801 = vmatpush.bf16.xpose.msra.mxu0 %v789
    %802 = vmatmul.bf16.gmra.mxu0 %v783
    %v803 = vpop.f32.mrf.mxu0
    %v804 = vadd.f32 0.0, %v803
    %v805 = vpop.f32.mrf.mxu0
    %v806 = vadd.f32 0.0, %v805
    %807 = vmatmul.bf16.gmra.mxu0 %v786
    %v808 = vpop.f32.mrf.mxu0
    %v809 = vadd.f32 0.0, %v808
    %v810 = vpop.f32.mrf.mxu0
    %811 = vdwg.mxu0
    %v812 = vsel %vm399, %v804, -inf
    %813 = vmax.xlane.f32.xlu0 %v812
    %v814 = vpop.xlane.xlu0 %813
    %v815 = vsel %vm399, %v806, -inf
    %816 = vmax.xlane.f32.xlu0 %v815
    %v817 = vpop.xlane.xlu0 %816
    %v818 = vsel %vm406, %v809, -inf
    %819 = vmax.xlane.f32.xlu0 %v818
    %v820 = vpop.xlane.xlu0 %819
    %v821 = vsub.f32 %v804, %v814
    %v822 = vsub.f32 %v806, %v817
    %v823 = vsub.f32 %v809, %v820
    %v824 = vmul.f32 %v821, 1.442695
    %v825 = vpow.pop %v824
    %v826 = vmul.f32 %v822, 1.442695
    %v827 = vpow.pop %v826
    %v828 = vmul.f32 %v823, 1.442695
    %v829 = vpow.pop %v828
    %v830 = vsel %vm399, %v825, 0.0
    %831 = vadd.xlane.f32.xlu0 %v830
    %v832 = vpop.xlane.xlu0 %831
    %v833 = vsel %vm399, %v827, 0.0
    %834 = vadd.xlane.f32.xlu0 %v833
    %v835 = vpop.xlane.xlu0 %834
    %v836 = vsel %vm406, %v829, 0.0
    %837 = vadd.xlane.f32.xlu0 %v836
    %v838 = vpop.xlane.xlu0 %837
    %v839 = vrcp.pop %v832
    %v840 = vrcp.pop %v835
    %v841 = vrcp.pop %v838
    %v842 = vmul.f32 %v825, %v839
    %v843 = vmul.f32 %v827, %v840
    %v844 = vmul.f32 %v829, %v841
    %v845 = vld [vmem:[%s3 + $0xa0] sm:$0xf]
    %v846 = vld [vmem:[%s3 + $0xa4] sm:$0xf]
    %v847 = vld [vmem:[%s3 + $0xa8] sm:$0xf]
    %v848 = vld [vmem:[%s3 + $0xac] sm:$0xf]
    %v853 = vunpack.c.l.b16 %v845
    %v854 = vunpack.c.l.b16 %v846
    %v855 = vunpack.c.l.b16 %v847
    %v856 = vunpack.c.l.b16 %v848
    %v857 = vpack.c.b16 %v854, %v853
    %v858 = vpack.c.b16 %v856, %v855
    %861 = vmatpush.bf16.msra.mxu0 0
    %862 = vmatpush.bf16.msra.mxu0 0
    %863 = vmatpush.bf16.msra.mxu0 0
    %864 = vmatpush.bf16.msra.mxu0 0
    %865 = vmatpush.bf16.msra.mxu0 0
    %866 = vmatpush.bf16.msra.mxu0 0
    %867 = vmatpush.bf16.msra.mxu0 %v858
    %868 = vmatpush.bf16.msra.mxu0 %v857
    %869 = vmatmul.bf16.gmra.mxu0 %v306
    %v870 = vpop.f32.mrf.mxu0
    %v871 = vadd.f32 0.0, %v870
    %v872 = vpop.f32.mrf.mxu0
    %v873 = vadd.f32 0.0, %v872
    %874 = vmatmul.bf16.gmra.mxu0 %v309
    %v875 = vpop.f32.mrf.mxu0
    %v876 = vadd.f32 0.0, %v875
    %v877 = vpop.f32.mrf.mxu0
    %878 = vdwg.mxu0
    %v879 = vpack.c.bf16 %v843, %v842
    %v880 = vpack.c.bf16 %v844, %v844
    %v881 = vpack.c.bf16 %v873, %v871
    %v882 = vpack.c.bf16 %v876, %v876
    %v884 = vsel %vm399, %v879, 0
    %v887 = vsel %vm399, %v880, 0
    %v890 = vand.u32 %v882, %v657
    %892 = vmatpush.bf16.msra.mxu0 0
    %893 = vmatpush.bf16.msra.mxu0 0
    %894 = vmatpush.bf16.msra.mxu0 0
    %895 = vmatpush.bf16.msra.mxu0 0
    %896 = vmatpush.bf16.msra.mxu0 0
    %897 = vmatpush.bf16.msra.mxu0 0
    %898 = vmatpush.bf16.msra.mxu0 %v890
    %899 = vmatpush.bf16.msra.mxu0 %v881
    %900 = vmatmul.bf16.gmra.mxu0 %v884
    %v901 = vpop.f32.mrf.mxu0
    %v902 = vadd.f32 0.0, %v901
    %v903 = vpop.f32.mrf.mxu0
    %v904 = vadd.f32 0.0, %v903
    %905 = vmatmul.bf16.gmra.mxu0 %v887
    %v906 = vpop.f32.mrf.mxu0
    %v907 = vadd.f32 0.0, %v906
    %v908 = vpop.f32.mrf.mxu0
    %909 = vdwg.mxu0
    %v910 = vadd.f32 %v698, %v902
    %v911 = vadd.f32 %v700, %v904
    %v912 = vadd.f32 %v703, %v907
    %v913 = vld [vmem:[%s3 + $0xb0] sm:$0xf]
    %v914 = vld [vmem:[%s3 + $0xb4] sm:$0xf]
    %v915 = vld [vmem:[%s3 + $0xb8] sm:$0xf]
    %v916 = vld [vmem:[%s3 + $0xbc] sm:$0xf]
    %v917 = vld [vmem:[%s6 + $0x60] sm:$0x1]
    %v918 = vperm.slane %v917, 0
    %v923 = vunpack.c.l.b16 %v913
    %v924 = vunpack.c.l.b16 %v914
    %v925 = vunpack.c.l.b16 %v915
    %v926 = vunpack.c.l.b16 %v916
    %v927 = vpack.c.b16 %v924, %v923
    %v928 = vpack.c.b16 %v926, %v925
    %931 = vmatpush.bf16.msra.mxu0 0
    %932 = vmatpush.bf16.msra.mxu0 0
    %933 = vmatpush.bf16.msra.mxu0 0
    %934 = vmatpush.bf16.msra.mxu0 0
    %935 = vmatpush.bf16.msra.mxu0 0
    %936 = vmatpush.bf16.msra.mxu0 0
    %937 = vmatpush.bf16.msra.mxu0 %v928
    %938 = vmatpush.bf16.msra.mxu0 %v927
    %939 = vmatmul.bf16.gmra.mxu0 %v306
    %v940 = vpop.f32.mrf.mxu0
    %v941 = vadd.f32 %v918, %v940
    %v942 = vpop.f32.mrf.mxu0
    %v943 = vadd.f32 %v918, %v942
    %944 = vmatmul.bf16.gmra.mxu0 %v309
    %v945 = vpop.f32.mrf.mxu0
    %v946 = vadd.f32 %v918, %v945
    %v947 = vpop.f32.mrf.mxu0
    %948 = vdwg.mxu0
    %v949 = vld [vmem:[%s3 + $0xc0] sm:$0xf]
    %v950 = vld [vmem:[%s3 + $0xc4] sm:$0xf]
    %v951 = vld [vmem:[%s3 + $0xc8] sm:$0xf]
    %v952 = vld [vmem:[%s3 + $0xcc] sm:$0xf]
    %v953 = vld [vmem:[%s6 + $0x68] sm:$0x1]
    %v954 = vperm.slane %v953, 0
    %v959 = vunpack.c.l.b16 %v949
    %v960 = vunpack.c.l.b16 %v950
    %v961 = vunpack.c.l.b16 %v951
    %v962 = vunpack.c.l.b16 %v952
    %v963 = vpack.c.b16 %v960, %v959
    %v964 = vpack.c.b16 %v962, %v961
    %967 = vmatpush.bf16.msra.mxu0 0
    %968 = vmatpush.bf16.msra.mxu0 0
    %969 = vmatpush.bf16.msra.mxu0 0
    %970 = vmatpush.bf16.msra.mxu0 0
    %971 = vmatpush.bf16.msra.mxu0 0
    %972 = vmatpush.bf16.msra.mxu0 0
    %973 = vmatpush.bf16.msra.mxu0 %v964
    %974 = vmatpush.bf16.msra.mxu0 %v963
    %975 = vmatmul.bf16.gmra.mxu0 %v306
    %v976 = vpop.f32.mrf.mxu0
    %v977 = vadd.f32 %v954, %v976
    %v978 = vpop.f32.mrf.mxu0
    %v979 = vadd.f32 %v954, %v978
    %980 = vmatmul.bf16.gmra.mxu0 %v309
    %v981 = vpop.f32.mrf.mxu0
    %v982 = vadd.f32 %v954, %v981
    %v983 = vpop.f32.mrf.mxu0
    %984 = vdwg.mxu0
    %v985 = vpack.c.bf16 %v943, %v941
    %v986 = vpack.c.bf16 %v946, %v946
    %v987 = vpack.c.bf16 %v979, %v977
    %v988 = vpack.c.bf16 %v982, %v982
    %v990 = vsel %vm200, %v985, 0
    %v993 = vsel %vm200, %v986, 0
    %v996 = vsel %vm200, %v987, 0
    %v999 = vsel %vm200, %v988, 0
    %1001 = vmatpush.bf16.xpose.msra.mxu0 0
    %1002 = vmatpush.bf16.xpose.msra.mxu0 0
    %1003 = vmatpush.bf16.xpose.msra.mxu0 0
    %1004 = vmatpush.bf16.xpose.msra.mxu0 0
    %1005 = vmatpush.bf16.xpose.msra.mxu0 0
    %1006 = vmatpush.bf16.xpose.msra.mxu0 0
    %1007 = vmatpush.bf16.xpose.msra.mxu0 %v999
    %1008 = vmatpush.bf16.xpose.msra.mxu0 %v996
    %1009 = vmatmul.bf16.gmra.mxu0 %v990
    %v1010 = vpop.f32.mrf.mxu0
    %v1011 = vadd.f32 0.0, %v1010
    %v1012 = vpop.f32.mrf.mxu0
    %v1013 = vadd.f32 0.0, %v1012
    %1014 = vmatmul.bf16.gmra.mxu0 %v993
    %v1015 = vpop.f32.mrf.mxu0
    %v1016 = vadd.f32 0.0, %v1015
    %v1017 = vpop.f32.mrf.mxu0
    %1018 = vdwg.mxu0
    %v1019 = vsel %vm399, %v1011, -inf
    %1020 = vmax.xlane.f32.xlu0 %v1019
    %v1021 = vpop.xlane.xlu0 %1020
    %v1022 = vsel %vm399, %v1013, -inf
    %1023 = vmax.xlane.f32.xlu0 %v1022
    %v1024 = vpop.xlane.xlu0 %1023
    %v1025 = vsel %vm406, %v1016, -inf
    %1026 = vmax.xlane.f32.xlu0 %v1025
    %v1027 = vpop.xlane.xlu0 %1026
    %v1028 = vsub.f32 %v1011, %v1021
    %v1029 = vsub.f32 %v1013, %v1024
    %v1030 = vsub.f32 %v1016, %v1027
    %v1031 = vmul.f32 %v1028, 1.442695
    %v1032 = vpow.pop %v1031
    %v1033 = vmul.f32 %v1029, 1.442695
    %v1034 = vpow.pop %v1033
    %v1035 = vmul.f32 %v1030, 1.442695
    %v1036 = vpow.pop %v1035
    %v1037 = vsel %vm399, %v1032, 0.0
    %1038 = vadd.xlane.f32.xlu0 %v1037
    %v1039 = vpop.xlane.xlu0 %1038
    %v1040 = vsel %vm399, %v1034, 0.0
    %1041 = vadd.xlane.f32.xlu0 %v1040
    %v1042 = vpop.xlane.xlu0 %1041
    %v1043 = vsel %vm406, %v1036, 0.0
    %1044 = vadd.xlane.f32.xlu0 %v1043
    %v1045 = vpop.xlane.xlu0 %1044
    %v1046 = vrcp.pop %v1039
    %v1047 = vrcp.pop %v1042
    %v1048 = vrcp.pop %v1045
    %v1049 = vmul.f32 %v1032, %v1046
    %v1050 = vmul.f32 %v1034, %v1047
    %v1051 = vmul.f32 %v1036, %v1048
    %v1052 = vld [vmem:[%s3 + $0xd0] sm:$0xf]
    %v1053 = vld [vmem:[%s3 + $0xd4] sm:$0xf]
    %v1054 = vld [vmem:[%s3 + $0xd8] sm:$0xf]
    %v1055 = vld [vmem:[%s3 + $0xdc] sm:$0xf]
    %v1060 = vunpack.c.l.b16 %v1052
    %v1061 = vunpack.c.l.b16 %v1053
    %v1062 = vunpack.c.l.b16 %v1054
    %v1063 = vunpack.c.l.b16 %v1055
    %v1064 = vpack.c.b16 %v1061, %v1060
    %v1065 = vpack.c.b16 %v1063, %v1062
    %1068 = vmatpush.bf16.msra.mxu0 0
    %1069 = vmatpush.bf16.msra.mxu0 0
    %1070 = vmatpush.bf16.msra.mxu0 0
    %1071 = vmatpush.bf16.msra.mxu0 0
    %1072 = vmatpush.bf16.msra.mxu0 0
    %1073 = vmatpush.bf16.msra.mxu0 0
    %1074 = vmatpush.bf16.msra.mxu0 %v1065
    %1075 = vmatpush.bf16.msra.mxu0 %v1064
    %1076 = vmatmul.bf16.gmra.mxu0 %v306
    %v1077 = vpop.f32.mrf.mxu0
    %v1078 = vadd.f32 0.0, %v1077
    %v1079 = vpop.f32.mrf.mxu0
    %v1080 = vadd.f32 0.0, %v1079
    %1081 = vmatmul.bf16.gmra.mxu0 %v309
    %v1082 = vpop.f32.mrf.mxu0
    %v1083 = vadd.f32 0.0, %v1082
    %v1084 = vpop.f32.mrf.mxu0
    %1085 = vdwg.mxu0
    %v1086 = vpack.c.bf16 %v1050, %v1049
    %v1087 = vpack.c.bf16 %v1051, %v1051
    %v1088 = vpack.c.bf16 %v1080, %v1078
    %v1089 = vpack.c.bf16 %v1083, %v1083
    %v1091 = vsel %vm399, %v1086, 0
    %v1094 = vsel %vm399, %v1087, 0
    %v1097 = vand.u32 %v1089, %v657
    %1099 = vmatpush.bf16.msra.mxu0 0
    %1100 = vmatpush.bf16.msra.mxu0 0
    %1101 = vmatpush.bf16.msra.mxu0 0
    %1102 = vmatpush.bf16.msra.mxu0 0
    %1103 = vmatpush.bf16.msra.mxu0 0
    %1104 = vmatpush.bf16.msra.mxu0 0
    %1105 = vmatpush.bf16.msra.mxu0 %v1097
    %1106 = vmatpush.bf16.msra.mxu0 %v1088
    %1107 = vmatmul.bf16.gmra.mxu0 %v1091
    %v1108 = vpop.f32.mrf.mxu0
    %v1109 = vadd.f32 0.0, %v1108
    %v1110 = vpop.f32.mrf.mxu0
    %v1111 = vadd.f32 0.0, %v1110
    %1112 = vmatmul.bf16.gmra.mxu0 %v1094
    %v1113 = vpop.f32.mrf.mxu0
    %v1114 = vadd.f32 0.0, %v1113
    %v1115 = vpop.f32.mrf.mxu0
    %1116 = vdwg.mxu0
    %v1117 = vadd.f32 %v910, %v1109
    %v1118 = vadd.f32 %v911, %v1111
    %v1119 = vadd.f32 %v912, %v1114
    %v1120 = vld [vmem:[%s6 + $0x70] sm:$0x1]
    %v1121 = vperm.slane %v1120, 0
    %v1122 = vadd.f32 %v1117, %v1121
    %v1123 = vadd.f32 %v1118, %v1121
    %v1124 = vadd.f32 %v1119, %v1121
    %v1125 = vadd.f32 %v282, %v1122
    %v1126 = vadd.f32 %v283, %v1123
    %v1127 = vadd.f32 %v284, %v1124
    %v1128 = vld [vmem:[%s6 + $0x78] sm:$0x1]
    %v1129 = vld [vmem:[%s6 + $0x80] sm:$0x1]
    %v1130 = vsel %vm200, %v1125, 0.0
    %1131 = vadd.xlane.f32.xlu0 %v1130
    %v1132 = vpop.xlane.xlu0 %1131
    %v1133 = vsel %vm200, %v1126, 0.0
    %1134 = vadd.xlane.f32.xlu0 %v1133
    %v1135 = vpop.xlane.xlu0 %1134
    %v1136 = vsel %vm280, %v1127, 0.0
    %1137 = vadd.xlane.f32.xlu0 %v1136
    %v1138 = vpop.xlane.xlu0 %1137
    %v1139 = vmul.f32 %v1132, %v213
    %v1140 = vmul.f32 %v1135, %v213
    %v1141 = vmul.f32 %v1138, %v213
    %v1142 = vsub.f32 %v1125, %v1139
    %v1143 = vsub.f32 %v1126, %v1140
    %v1144 = vsub.f32 %v1127, %v1141
    %v1145 = vmul.f32 %v1142, %v1142
    %v1146 = vmul.f32 %v1143, %v1143
    %v1147 = vmul.f32 %v1144, %v1144
    %v1148 = vsel %vm200, %v1145, 0.0
    %1149 = vadd.xlane.f32.xlu0 %v1148
    %v1150 = vpop.xlane.xlu0 %1149
    %v1151 = vsel %vm200, %v1146, 0.0
    %1152 = vadd.xlane.f32.xlu0 %v1151
    %v1153 = vpop.xlane.xlu0 %1152
    %v1154 = vsel %vm280, %v1147, 0.0
    %1155 = vadd.xlane.f32.xlu0 %v1154
    %v1156 = vpop.xlane.xlu0 %1155
    %v1157 = vmul.f32 %v1150, %v213
    %v1158 = vmul.f32 %v1153, %v213
    %v1159 = vmul.f32 %v1156, %v213
    %v1160 = vadd.f32 %v1157, 1e-05
    %v1161 = vadd.f32 %v1158, 1e-05
    %v1162 = vadd.f32 %v1159, 1e-05
    %v1163 = vrsqrt.pop %v1160
    %v1164 = vmul.f32 %v1163, %v1160
    %v1165 = vmul.f32 %v1164, %v1163
    %v1166 = vmul.f32 0.5, %v1165
    %v1167 = vsub.f32 1.5, %v1166
    %v1168 = vmul.f32 %v1163, %v1167
    %vm1169 = vweird.f32 %v1160
    %vm1170 = vweird.f32 %v1163
    %vm1171 = vmor %vm1169, %vm1170
    %v1172 = vsel %vm1171, %v1163, %v1168
    %v1173 = vrsqrt.pop %v1161
    %v1174 = vmul.f32 %v1173, %v1161
    %v1175 = vmul.f32 %v1174, %v1173
    %v1176 = vmul.f32 0.5, %v1175
    %v1177 = vsub.f32 1.5, %v1176
    %v1178 = vmul.f32 %v1173, %v1177
    %vm1179 = vweird.f32 %v1161
    %vm1180 = vweird.f32 %v1173
    %vm1181 = vmor %vm1179, %vm1180
    %v1182 = vsel %vm1181, %v1173, %v1178
    %v1183 = vrsqrt.pop %v1162
    %v1184 = vmul.f32 %v1183, %v1162
    %v1185 = vmul.f32 %v1184, %v1183
    %v1186 = vmul.f32 0.5, %v1185
    %v1187 = vsub.f32 1.5, %v1186
    %v1188 = vmul.f32 %v1183, %v1187
    %vm1189 = vweird.f32 %v1162
    %vm1190 = vweird.f32 %v1183
    %vm1191 = vmor %vm1189, %vm1190
    %v1192 = vsel %vm1191, %v1183, %v1188
    %v1193 = vmul.f32 %v1142, %v1172
    %v1194 = vmul.f32 %v1143, %v1182
    %v1195 = vmul.f32 %v1144, %v1192
    %v1196 = vperm.slane %v1128, 0
    %v1197 = vmul.f32 %v1193, %v1196
    %v1198 = vmul.f32 %v1194, %v1196
    %v1199 = vmul.f32 %v1195, %v1196
    %v1200 = vperm.slane %v1129, 0
    %v1201 = vadd.f32 %v1197, %v1200
    %v1202 = vadd.f32 %v1198, %v1200
    %v1203 = vadd.f32 %v1199, %v1200
    %v1204 = vld [vmem:[%s4 + $0x8] sm:$0xf]
    %v1205 = vld [vmem:[%s4 + $0xc] sm:$0xf]
    %v1206 = vld [vmem:[%s4 + $0x10] sm:$0xf]
    %v1207 = vld [vmem:[%s4 + $0x14] sm:$0xf]
    %v1208 = vpack.c.bf16 %v1202, %v1201
    %v1209 = vpack.c.bf16 %v1203, %v1203
    %v1210 = vld [vmem:[%s7 + $0x18] sm:$0x1]
    %v1211 = vperm.slane %v1210, 0
    %v1216 = vunpack.c.l.b16 %v1204
    %v1217 = vunpack.c.l.b16 %v1205
    %v1218 = vunpack.c.l.b16 %v1206
    %v1219 = vunpack.c.l.b16 %v1207
    %v1220 = vpack.c.b16 %v1217, %v1216
    %v1221 = vpack.c.b16 %v1219, %v1218
    %v1225 = vsel %vm200, %v1208, 0
    %v1228 = vsel %vm200, %v1209, 0
    %1230 = vmatpush.bf16.msra.mxu0 0
    %1231 = vmatpush.bf16.msra.mxu0 0
    %1232 = vmatpush.bf16.msra.mxu0 0
    %1233 = vmatpush.bf16.msra.mxu0 0
    %1234 = vmatpush.bf16.msra.mxu0 0
    %1235 = vmatpush.bf16.msra.mxu0 0
    %1236 = vmatpush.bf16.msra.mxu0 %v1221
    %1237 = vmatpush.bf16.msra.mxu0 %v1220
    %1238 = vmatmul.bf16.gmra.mxu0 %v1225
    %v1239 = vpop.f32.mrf.mxu0
    %v1240 = vadd.f32 %v1211, %v1239
    %v1241 = vpop.f32.mrf.mxu0
    %v1242 = vadd.f32 %v1211, %v1241
    %1243 = vmatmul.bf16.gmra.mxu0 %v1228
    %v1244 = vpop.f32.mrf.mxu0
    %v1245 = vadd.f32 %v1211, %v1244
    %v1246 = vpop.f32.mrf.mxu0
    %1247 = vdwg.mxu0
    %v1248 = vmax.f32 %v1240, 0.0
    %v1249 = vmax.f32 %v1242, 0.0
    %v1250 = vmax.f32 %v1245, 0.0
    %v1251 = vld [vmem:[%s3 + $0xe0] sm:$0xf]
    %v1252 = vld [vmem:[%s3 + $0xe4] sm:$0xf]
    %v1253 = vld [vmem:[%s3 + $0xe8] sm:$0xf]
    %v1254 = vld [vmem:[%s3 + $0xec] sm:$0xf]
    %v1255 = vld [vmem:[%s3 + $0xf0] sm:$0xf]
    %v1256 = vld [vmem:[%s3 + $0xf4] sm:$0xf]
    %v1257 = vld [vmem:[%s3 + $0xf8] sm:$0xf]
    %v1258 = vld [vmem:[%s3 + $0xfc] sm:$0xf]
    %v1259 = vpack.c.bf16 %v1249, %v1248
    %v1260 = vpack.c.bf16 %v1250, %v1250
    %v1261 = vld [vmem:[%s6 + $0x88] sm:$0x1]
    %v1262 = vperm.slane %v1261, 0
    %v1271 = vunpack.c.l.b16 %v1251
    %v1272 = vunpack.c.l.b16 %v1252
    %v1273 = vunpack.c.l.b16 %v1253
    %v1274 = vunpack.c.l.b16 %v1254
    %v1275 = vunpack.c.l.b16 %v1255
    %v1276 = vunpack.c.l.b16 %v1256
    %v1277 = vunpack.c.l.b16 %v1257
    %v1278 = vunpack.c.l.b16 %v1258
    %v1279 = vpack.c.b16 %v1272, %v1271
    %v1280 = vpack.c.b16 %v1274, %v1273
    %v1281 = vpack.c.b16 %v1276, %v1275
    %v1282 = vpack.c.b16 %v1278, %v1277
    %v1288 = vsel %vm70, %v1259, 0
    %v1291 = vsel %vm70, %v1260, 0
    %1293 = vmatpush.bf16.msra.mxu0 0
    %1294 = vmatpush.bf16.msra.mxu0 0
    %1295 = vmatpush.bf16.msra.mxu0 0
    %1296 = vmatpush.bf16.msra.mxu0 0
    %1297 = vmatpush.bf16.msra.mxu0 %v1282
    %1298 = vmatpush.bf16.msra.mxu0 %v1281
    %1299 = vmatpush.bf16.msra.mxu0 %v1280
    %1300 = vmatpush.bf16.msra.mxu0 %v1279
    %1301 = vmatmul.bf16.gmra.mxu0 %v1288
    %v1302 = vpop.f32.mrf.mxu0
    %v1303 = vadd.f32 %v1262, %v1302
    %v1304 = vpop.f32.mrf.mxu0
    %v1305 = vadd.f32 %v1262, %v1304
    %1306 = vmatmul.bf16.gmra.mxu0 %v1291
    %v1307 = vpop.f32.mrf.mxu0
    %v1308 = vadd.f32 %v1262, %v1307
    %v1309 = vpop.f32.mrf.mxu0
    %1310 = vdwg.mxu0
    %v1311 = vadd.f32 %v1201, %v1303
    %v1312 = vadd.f32 %v1202, %v1305
    %v1313 = vadd.f32 %v1203, %v1308
    %v1314 = vld [vmem:[%s6 + $0x90] sm:$0x1]
    %v1315 = vld [vmem:[%s6 + $0x98] sm:$0x1]
    %v1316 = vsel %vm200, %v1311, 0.0
    %1317 = vadd.xlane.f32.xlu0 %v1316
    %v1318 = vpop.xlane.xlu0 %1317
    %v1319 = vsel %vm200, %v1312, 0.0
    %1320 = vadd.xlane.f32.xlu0 %v1319
    %v1321 = vpop.xlane.xlu0 %1320
    %v1322 = vsel %vm280, %v1313, 0.0
    %1323 = vadd.xlane.f32.xlu0 %v1322
    %v1324 = vpop.xlane.xlu0 %1323
    %v1325 = vmul.f32 %v1318, %v213
    %v1326 = vmul.f32 %v1321, %v213
    %v1327 = vmul.f32 %v1324, %v213
    %v1328 = vsub.f32 %v1311, %v1325
    %v1329 = vsub.f32 %v1312, %v1326
    %v1330 = vsub.f32 %v1313, %v1327
    %v1331 = vmul.f32 %v1328, %v1328
    %v1332 = vmul.f32 %v1329, %v1329
    %v1333 = vmul.f32 %v1330, %v1330
    %v1334 = vsel %vm200, %v1331, 0.0
    %1335 = vadd.xlane.f32.xlu0 %v1334
    %v1336 = vpop.xlane.xlu0 %1335
    %v1337 = vsel %vm200, %v1332, 0.0
    %1338 = vadd.xlane.f32.xlu0 %v1337
    %v1339 = vpop.xlane.xlu0 %1338
    %v1340 = vsel %vm280, %v1333, 0.0
    %1341 = vadd.xlane.f32.xlu0 %v1340
    %v1342 = vpop.xlane.xlu0 %1341
    %v1343 = vmul.f32 %v1336, %v213
    %v1344 = vmul.f32 %v1339, %v213
    %v1345 = vmul.f32 %v1342, %v213
    %v1346 = vadd.f32 %v1343, 1e-05
    %v1347 = vadd.f32 %v1344, 1e-05
    %v1348 = vadd.f32 %v1345, 1e-05
    %v1349 = vrsqrt.pop %v1346
    %v1350 = vmul.f32 %v1349, %v1346
    %v1351 = vmul.f32 %v1350, %v1349
    %v1352 = vmul.f32 0.5, %v1351
    %v1353 = vsub.f32 1.5, %v1352
    %v1354 = vmul.f32 %v1349, %v1353
    %vm1355 = vweird.f32 %v1346
    %vm1356 = vweird.f32 %v1349
    %vm1357 = vmor %vm1355, %vm1356
    %v1358 = vsel %vm1357, %v1349, %v1354
    %v1359 = vrsqrt.pop %v1347
    %v1360 = vmul.f32 %v1359, %v1347
    %v1361 = vmul.f32 %v1360, %v1359
    %v1362 = vmul.f32 0.5, %v1361
    %v1363 = vsub.f32 1.5, %v1362
    %v1364 = vmul.f32 %v1359, %v1363
    %vm1365 = vweird.f32 %v1347
    %vm1366 = vweird.f32 %v1359
    %vm1367 = vmor %vm1365, %vm1366
    %v1368 = vsel %vm1367, %v1359, %v1364
    %v1369 = vrsqrt.pop %v1348
    %v1370 = vmul.f32 %v1369, %v1348
    %v1371 = vmul.f32 %v1370, %v1369
    %v1372 = vmul.f32 0.5, %v1371
    %v1373 = vsub.f32 1.5, %v1372
    %v1374 = vmul.f32 %v1369, %v1373
    %vm1375 = vweird.f32 %v1348
    %vm1376 = vweird.f32 %v1369
    %vm1377 = vmor %vm1375, %vm1376
    %v1378 = vsel %vm1377, %v1369, %v1374
    %v1379 = vmul.f32 %v1328, %v1358
    %v1380 = vmul.f32 %v1329, %v1368
    %v1381 = vmul.f32 %v1330, %v1378
    %v1382 = vperm.slane %v1314, 0
    %v1383 = vmul.f32 %v1379, %v1382
    %v1384 = vmul.f32 %v1380, %v1382
    %v1385 = vmul.f32 %v1381, %v1382
    %v1386 = vperm.slane %v1315, 0
    %v1387 = vadd.f32 %v1383, %v1386
    %v1388 = vadd.f32 %v1384, %v1386
    %v1389 = vadd.f32 %v1385, %v1386
    %v1390 = vld [vmem:[%s3 + $0x100] sm:$0xf]
    %v1391 = vld [vmem:[%s3 + $0x104] sm:$0xf]
    %v1392 = vld [vmem:[%s3 + $0x108] sm:$0xf]
    %v1393 = vld [vmem:[%s3 + $0x10c] sm:$0xf]
    %v1394 = vpack.c.bf16 %v1388, %v1387
    %v1395 = vpack.c.bf16 %v1389, %v1389
    %v1396 = vld [vmem:[%s6 + $0xa0] sm:$0x1]
    %v1397 = vperm.slane %v1396, 0
    %v1402 = vunpack.c.l.b16 %v1390
    %v1403 = vunpack.c.l.b16 %v1391
    %v1404 = vunpack.c.l.b16 %v1392
    %v1405 = vunpack.c.l.b16 %v1393
    %v1406 = vpack.c.b16 %v1403, %v1402
    %v1407 = vpack.c.b16 %v1405, %v1404
    %v1411 = vsel %vm200, %v1394, 0
    %v1414 = vsel %vm200, %v1395, 0
    %1416 = vmatpush.bf16.msra.mxu0 0
    %1417 = vmatpush.bf16.msra.mxu0 0
    %1418 = vmatpush.bf16.msra.mxu0 0
    %1419 = vmatpush.bf16.msra.mxu0 0
    %1420 = vmatpush.bf16.msra.mxu0 0
    %1421 = vmatpush.bf16.msra.mxu0 0
    %1422 = vmatpush.bf16.msra.mxu0 %v1407
    %1423 = vmatpush.bf16.msra.mxu0 %v1406
    %1424 = vmatmul.bf16.gmra.mxu0 %v1411
    %v1425 = vpop.f32.mrf.mxu0
    %v1426 = vadd.f32 %v1397, %v1425
    %v1427 = vpop.f32.mrf.mxu0
    %v1428 = vadd.f32 %v1397, %v1427
    %1429 = vmatmul.bf16.gmra.mxu0 %v1414
    %v1430 = vpop.f32.mrf.mxu0
    %v1431 = vadd.f32 %v1397, %v1430
    %v1432 = vpop.f32.mrf.mxu0
    %1433 = vdwg.mxu0
    %v1434 = vld [vmem:[%s3 + $0x110] sm:$0xf]
    %v1435 = vld [vmem:[%s3 + $0x114] sm:$0xf]
    %v1436 = vld [vmem:[%s3 + $0x118] sm:$0xf]
    %v1437 = vld [vmem:[%s3 + $0x11c] sm:$0xf]
    %v1438 = vld [vmem:[%s6 + $0xa8] sm:$0x1]
    %v1439 = vperm.slane %v1438, 0
    %v1444 = vunpack.c.l.b16 %v1434
    %v1445 = vunpack.c.l.b16 %v1435
    %v1446 = vunpack.c.l.b16 %v1436
    %v1447 = vunpack.c.l.b16 %v1437
    %v1448 = vpack.c.b16 %v1445, %v1444
    %v1449 = vpack.c.b16 %v1447, %v1446
    %1452 = vmatpush.bf16.msra.mxu0 0
    %1453 = vmatpush.bf16.msra.mxu0 0
    %1454 = vmatpush.bf16.msra.mxu0 0
    %1455 = vmatpush.bf16.msra.mxu0 0
    %1456 = vmatpush.bf16.msra.mxu0 0
    %1457 = vmatpush.bf16.msra.mxu0 0
    %1458 = vmatpush.bf16.msra.mxu0 %v1449
    %1459 = vmatpush.bf16.msra.mxu0 %v1448
    %1460 = vmatmul.bf16.gmra.mxu0 %v1411
    %v1461 = vpop.f32.mrf.mxu0
    %v1462 = vadd.f32 %v1439, %v1461
    %v1463 = vpop.f32.mrf.mxu0
    %v1464 = vadd.f32 %v1439, %v1463
    %1465 = vmatmul.bf16.gmra.mxu0 %v1414
    %v1466 = vpop.f32.mrf.mxu0
    %v1467 = vadd.f32 %v1439, %v1466
    %v1468 = vpop.f32.mrf.mxu0
    %1469 = vdwg.mxu0
    %v1470 = vpack.c.bf16 %v1428, %v1426
    %v1471 = vpack.c.bf16 %v1431, %v1431
    %v1472 = vpack.c.bf16 %v1464, %v1462
    %v1473 = vpack.c.bf16 %v1467, %v1467
    %v1475 = vsel %vm200, %v1470, 0
    %v1478 = vsel %vm200, %v1471, 0
    %v1481 = vsel %vm200, %v1472, 0
    %v1484 = vsel %vm200, %v1473, 0
    %1486 = vmatpush.bf16.xpose.msra.mxu0 0
    %1487 = vmatpush.bf16.xpose.msra.mxu0 0
    %1488 = vmatpush.bf16.xpose.msra.mxu0 0
    %1489 = vmatpush.bf16.xpose.msra.mxu0 0
    %1490 = vmatpush.bf16.xpose.msra.mxu0 0
    %1491 = vmatpush.bf16.xpose.msra.mxu0 0
    %1492 = vmatpush.bf16.xpose.msra.mxu0 %v1484
    %1493 = vmatpush.bf16.xpose.msra.mxu0 %v1481
    %1494 = vmatmul.bf16.gmra.mxu0 %v1475
    %v1495 = vpop.f32.mrf.mxu0
    %v1496 = vadd.f32 0.0, %v1495
    %v1497 = vpop.f32.mrf.mxu0
    %v1498 = vadd.f32 0.0, %v1497
    %1499 = vmatmul.bf16.gmra.mxu0 %v1478
    %v1500 = vpop.f32.mrf.mxu0
    %v1501 = vadd.f32 0.0, %v1500
    %v1502 = vpop.f32.mrf.mxu0
    %1503 = vdwg.mxu0
    %v1504 = vsel %vm399, %v1496, -inf
    %1505 = vmax.xlane.f32.xlu0 %v1504
    %v1506 = vpop.xlane.xlu0 %1505
    %v1507 = vsel %vm399, %v1498, -inf
    %1508 = vmax.xlane.f32.xlu0 %v1507
    %v1509 = vpop.xlane.xlu0 %1508
    %v1510 = vsel %vm406, %v1501, -inf
    %1511 = vmax.xlane.f32.xlu0 %v1510
    %v1512 = vpop.xlane.xlu0 %1511
    %v1513 = vsub.f32 %v1496, %v1506
    %v1514 = vsub.f32 %v1498, %v1509
    %v1515 = vsub.f32 %v1501, %v1512
    %v1516 = vmul.f32 %v1513, 1.442695
    %v1517 = vpow.pop %v1516
    %v1518 = vmul.f32 %v1514, 1.442695
    %v1519 = vpow.pop %v1518
    %v1520 = vmul.f32 %v1515, 1.442695
    %v1521 = vpow.pop %v1520
    %v1522 = vsel %vm399, %v1517, 0.0
    %1523 = vadd.xlane.f32.xlu0 %v1522
    %v1524 = vpop.xlane.xlu0 %1523
    %v1525 = vsel %vm399, %v1519, 0.0
    %1526 = vadd.xlane.f32.xlu0 %v1525
    %v1527 = vpop.xlane.xlu0 %1526
    %v1528 = vsel %vm406, %v1521, 0.0
    %1529 = vadd.xlane.f32.xlu0 %v1528
    %v1530 = vpop.xlane.xlu0 %1529
    %v1531 = vrcp.pop %v1524
    %v1532 = vrcp.pop %v1527
    %v1533 = vrcp.pop %v1530
    %v1534 = vmul.f32 %v1517, %v1531
    %v1535 = vmul.f32 %v1519, %v1532
    %v1536 = vmul.f32 %v1521, %v1533
    %v1537 = vld [vmem:[%s3 + $0x120] sm:$0xf]
    %v1538 = vld [vmem:[%s3 + $0x124] sm:$0xf]
    %v1539 = vld [vmem:[%s3 + $0x128] sm:$0xf]
    %v1540 = vld [vmem:[%s3 + $0x12c] sm:$0xf]
    %v1545 = vunpack.c.l.b16 %v1537
    %v1546 = vunpack.c.l.b16 %v1538
    %v1547 = vunpack.c.l.b16 %v1539
    %v1548 = vunpack.c.l.b16 %v1540
    %v1549 = vpack.c.b16 %v1546, %v1545
    %v1550 = vpack.c.b16 %v1548, %v1547
    %1553 = vmatpush.bf16.msra.mxu0 0
    %1554 = vmatpush.bf16.msra.mxu0 0
    %1555 = vmatpush.bf16.msra.mxu0 0
    %1556 = vmatpush.bf16.msra.mxu0 0
    %1557 = vmatpush.bf16.msra.mxu0 0
    %1558 = vmatpush.bf16.msra.mxu0 0
    %1559 = vmatpush.bf16.msra.mxu0 %v1550
    %1560 = vmatpush.bf16.msra.mxu0 %v1549
    %1561 = vmatmul.bf16.gmra.mxu0 %v1411
    %v1562 = vpop.f32.mrf.mxu0
    %v1563 = vadd.f32 0.0, %v1562
    %v1564 = vpop.f32.mrf.mxu0
    %v1565 = vadd.f32 0.0, %v1564
    %1566 = vmatmul.bf16.gmra.mxu0 %v1414
    %v1567 = vpop.f32.mrf.mxu0
    %v1568 = vadd.f32 0.0, %v1567
    %v1569 = vpop.f32.mrf.mxu0
    %1570 = vdwg.mxu0
    %v1571 = vpack.c.bf16 %v1535, %v1534
    %v1572 = vpack.c.bf16 %v1536, %v1536
    %v1573 = vpack.c.bf16 %v1565, %v1563
    %v1574 = vpack.c.bf16 %v1568, %v1568
    %v1575 = vld [vmem:[%s3 + $0x130] sm:$0xf]
    %v1576 = vld [vmem:[%s3 + $0x134] sm:$0xf]
    %v1577 = vld [vmem:[%s3 + $0x138] sm:$0xf]
    %v1578 = vld [vmem:[%s3 + $0x13c] sm:$0xf]
    %v1579 = vld [vmem:[%s6 + $0xb0] sm:$0x1]
    %v1580 = vperm.slane %v1579, 0
    %v1585 = vunpack.c.l.b16 %v1575
    %v1586 = vunpack.c.l.b16 %v1576
    %v1587 = vunpack.c.l.b16 %v1577
    %v1588 = vunpack.c.l.b16 %v1578
    %v1589 = vpack.c.b16 %v1586, %v1585
    %v1590 = vpack.c.b16 %v1588, %v1587
    %1593 = vmatpush.bf16.msra.mxu0 0
    %1594 = vmatpush.bf16.msra.mxu0 0
    %1595 = vmatpush.bf16.msra.mxu0 0
    %1596 = vmatpush.bf16.msra.mxu0 0
    %1597 = vmatpush.bf16.msra.mxu0 0
    %1598 = vmatpush.bf16.msra.mxu0 0
    %1599 = vmatpush.bf16.msra.mxu0 %v1590
    %1600 = vmatpush.bf16.msra.mxu0 %v1589
    %1601 = vmatmul.bf16.gmra.mxu0 %v1411
    %v1602 = vpop.f32.mrf.mxu0
    %v1603 = vadd.f32 %v1580, %v1602
    %v1604 = vpop.f32.mrf.mxu0
    %v1605 = vadd.f32 %v1580, %v1604
    %1606 = vmatmul.bf16.gmra.mxu0 %v1414
    %v1607 = vpop.f32.mrf.mxu0
    %v1608 = vadd.f32 %v1580, %v1607
    %v1609 = vpop.f32.mrf.mxu0
    %1610 = vdwg.mxu0
    %v1611 = vld [vmem:[%s3 + $0x140] sm:$0xf]
    %v1612 = vld [vmem:[%s3 + $0x144] sm:$0xf]
    %v1613 = vld [vmem:[%s3 + $0x148] sm:$0xf]
    %v1614 = vld [vmem:[%s3 + $0x14c] sm:$0xf]
    %v1615 = vld [vmem:[%s6 + $0xb8] sm:$0x1]
    %v1616 = vperm.slane %v1615, 0
    %v1621 = vunpack.c.l.b16 %v1611
    %v1622 = vunpack.c.l.b16 %v1612
    %v1623 = vunpack.c.l.b16 %v1613
    %v1624 = vunpack.c.l.b16 %v1614
    %v1625 = vpack.c.b16 %v1622, %v1621
    %v1626 = vpack.c.b16 %v1624, %v1623
    %1629 = vmatpush.bf16.msra.mxu0 0
    %1630 = vmatpush.bf16.msra.mxu0 0
    %1631 = vmatpush.bf16.msra.mxu0 0
    %1632 = vmatpush.bf16.msra.mxu0 0
    %1633 = vmatpush.bf16.msra.mxu0 0
    %1634 = vmatpush.bf16.msra.mxu0 0
    %1635 = vmatpush.bf16.msra.mxu0 %v1626
    %1636 = vmatpush.bf16.msra.mxu0 %v1625
    %1637 = vmatmul.bf16.gmra.mxu0 %v1411
    %v1638 = vpop.f32.mrf.mxu0
    %v1639 = vadd.f32 %v1616, %v1638
    %v1640 = vpop.f32.mrf.mxu0
    %v1641 = vadd.f32 %v1616, %v1640
    %1642 = vmatmul.bf16.gmra.mxu0 %v1414
    %v1643 = vpop.f32.mrf.mxu0
    %v1644 = vadd.f32 %v1616, %v1643
    %v1645 = vpop.f32.mrf.mxu0
    %1646 = vdwg.mxu0
    %v1647 = vpack.c.bf16 %v1605, %v1603
    %v1648 = vpack.c.bf16 %v1608, %v1608
    %v1649 = vpack.c.bf16 %v1641, %v1639
    %v1650 = vpack.c.bf16 %v1644, %v1644
    %v1652 = vsel %vm200, %v1647, 0
    %v1655 = vsel %vm200, %v1648, 0
    %v1658 = vsel %vm200, %v1649, 0
    %v1661 = vsel %vm200, %v1650, 0
    %1663 = vmatpush.bf16.xpose.msra.mxu0 0
    %1664 = vmatpush.bf16.xpose.msra.mxu0 0
    %1665 = vmatpush.bf16.xpose.msra.mxu0 0
    %1666 = vmatpush.bf16.xpose.msra.mxu0 0
    %1667 = vmatpush.bf16.xpose.msra.mxu0 0
    %1668 = vmatpush.bf16.xpose.msra.mxu0 0
    %1669 = vmatpush.bf16.xpose.msra.mxu0 %v1661
    %1670 = vmatpush.bf16.xpose.msra.mxu0 %v1658
    %1671 = vmatmul.bf16.gmra.mxu0 %v1652
    %v1672 = vpop.f32.mrf.mxu0
    %v1673 = vadd.f32 0.0, %v1672
    %v1674 = vpop.f32.mrf.mxu0
    %v1675 = vadd.f32 0.0, %v1674
    %1676 = vmatmul.bf16.gmra.mxu0 %v1655
    %v1677 = vpop.f32.mrf.mxu0
    %v1678 = vadd.f32 0.0, %v1677
    %v1679 = vpop.f32.mrf.mxu0
    %1680 = vdwg.mxu0
    %v1681 = vsel %vm399, %v1673, -inf
    %1682 = vmax.xlane.f32.xlu0 %v1681
    %v1683 = vpop.xlane.xlu0 %1682
    %v1684 = vsel %vm399, %v1675, -inf
    %1685 = vmax.xlane.f32.xlu0 %v1684
    %v1686 = vpop.xlane.xlu0 %1685
    %v1687 = vsel %vm406, %v1678, -inf
    %1688 = vmax.xlane.f32.xlu0 %v1687
    %v1689 = vpop.xlane.xlu0 %1688
    %v1690 = vsub.f32 %v1673, %v1683
    %v1691 = vsub.f32 %v1675, %v1686
    %v1692 = vsub.f32 %v1678, %v1689
    %v1693 = vmul.f32 %v1690, 1.442695
    %v1694 = vpow.pop %v1693
    %v1695 = vmul.f32 %v1691, 1.442695
    %v1696 = vpow.pop %v1695
    %v1697 = vmul.f32 %v1692, 1.442695
    %v1698 = vpow.pop %v1697
    %v1699 = vsel %vm399, %v1694, 0.0
    %1700 = vadd.xlane.f32.xlu0 %v1699
    %v1701 = vpop.xlane.xlu0 %1700
    %v1702 = vsel %vm399, %v1696, 0.0
    %1703 = vadd.xlane.f32.xlu0 %v1702
    %v1704 = vpop.xlane.xlu0 %1703
    %v1705 = vsel %vm406, %v1698, 0.0
    %1706 = vadd.xlane.f32.xlu0 %v1705
    %v1707 = vpop.xlane.xlu0 %1706
    %v1708 = vrcp.pop %v1701
    %v1709 = vrcp.pop %v1704
    %v1710 = vrcp.pop %v1707
    %v1711 = vmul.f32 %v1694, %v1708
    %v1712 = vmul.f32 %v1696, %v1709
    %v1713 = vmul.f32 %v1698, %v1710
    %v1714 = vld [vmem:[%s3 + $0x150] sm:$0xf]
    %v1715 = vld [vmem:[%s3 + $0x154] sm:$0xf]
    %v1716 = vld [vmem:[%s3 + $0x158] sm:$0xf]
    %v1717 = vld [vmem:[%s3 + $0x15c] sm:$0xf]
    %v1722 = vunpack.c.l.b16 %v1714
    %v1723 = vunpack.c.l.b16 %v1715
    %v1724 = vunpack.c.l.b16 %v1716
    %v1725 = vunpack.c.l.b16 %v1717
    %v1726 = vpack.c.b16 %v1723, %v1722
    %v1727 = vpack.c.b16 %v1725, %v1724
    %1730 = vmatpush.bf16.msra.mxu0 0
    %1731 = vmatpush.bf16.msra.mxu0 0
    %1732 = vmatpush.bf16.msra.mxu0 0
    %1733 = vmatpush.bf16.msra.mxu0 0
    %1734 = vmatpush.bf16.msra.mxu0 0
    %1735 = vmatpush.bf16.msra.mxu0 0
    %1736 = vmatpush.bf16.msra.mxu0 %v1727
    %1737 = vmatpush.bf16.msra.mxu0 %v1726
    %1738 = vmatmul.bf16.gmra.mxu0 %v1411
    %v1739 = vpop.f32.mrf.mxu0
    %v1740 = vadd.f32 0.0, %v1739
    %v1741 = vpop.f32.mrf.mxu0
    %v1742 = vadd.f32 0.0, %v1741
    %1743 = vmatmul.bf16.gmra.mxu0 %v1414
    %v1744 = vpop.f32.mrf.mxu0
    %v1745 = vadd.f32 0.0, %v1744
    %v1746 = vpop.f32.mrf.mxu0
    %1747 = vdwg.mxu0
    %v1748 = vpack.c.bf16 %v1712, %v1711
    %v1749 = vpack.c.bf16 %v1713, %v1713
    %v1750 = vpack.c.bf16 %v1742, %v1740
    %v1751 = vpack.c.bf16 %v1745, %v1745
    %v1753 = vsel %vm399, %v1748, 0
    %v1756 = vsel %vm399, %v1749, 0
    %v1759 = vand.u32 %v1751, %v657
    %1761 = vmatpush.bf16.msra.mxu0 0
    %1762 = vmatpush.bf16.msra.mxu0 0
    %1763 = vmatpush.bf16.msra.mxu0 0
    %1764 = vmatpush.bf16.msra.mxu0 0
    %1765 = vmatpush.bf16.msra.mxu0 0
    %1766 = vmatpush.bf16.msra.mxu0 0
    %1767 = vmatpush.bf16.msra.mxu0 %v1759
    %1768 = vmatpush.bf16.msra.mxu0 %v1750
    %1769 = vmatmul.bf16.gmra.mxu0 %v1753
    %v1770 = vpop.f32.mrf.mxu0
    %v1771 = vadd.f32 0.0, %v1770
    %v1772 = vpop.f32.mrf.mxu0
    %v1773 = vadd.f32 0.0, %v1772
    %1774 = vmatmul.bf16.gmra.mxu0 %v1756
    %v1775 = vpop.f32.mrf.mxu0
    %v1776 = vadd.f32 0.0, %v1775
    %v1777 = vpop.f32.mrf.mxu0
    %1778 = vdwg.mxu0
    %v1780 = vsel %vm399, %v1571, 0
    %v1783 = vsel %vm399, %v1572, 0
    %v1786 = vand.u32 %v1574, %v657
    %1788 = vmatpush.bf16.msra.mxu0 0
    %1789 = vmatpush.bf16.msra.mxu0 0
    %1790 = vmatpush.bf16.msra.mxu0 0
    %1791 = vmatpush.bf16.msra.mxu0 0
    %1792 = vmatpush.bf16.msra.mxu0 0
    %1793 = vmatpush.bf16.msra.mxu0 0
    %1794 = vmatpush.bf16.msra.mxu0 %v1786
    %1795 = vmatpush.bf16.msra.mxu0 %v1573
    %1796 = vmatmul.bf16.gmra.mxu0 %v1780
    %v1797 = vpop.f32.mrf.mxu0
    %v1798 = vadd.f32 %v1771, %v1797
    %v1799 = vpop.f32.mrf.mxu0
    %v1800 = vadd.f32 %v1773, %v1799
    %1801 = vmatmul.bf16.gmra.mxu0 %v1783
    %v1802 = vpop.f32.mrf.mxu0
    %v1803 = vadd.f32 %v1776, %v1802
    %v1804 = vpop.f32.mrf.mxu0
    %1805 = vdwg.mxu0
    %v1806 = vld [vmem:[%s3 + $0x160] sm:$0xf]
    %v1807 = vld [vmem:[%s3 + $0x164] sm:$0xf]
    %v1808 = vld [vmem:[%s3 + $0x168] sm:$0xf]
    %v1809 = vld [vmem:[%s3 + $0x16c] sm:$0xf]
    %v1810 = vld [vmem:[%s6 + $0xc0] sm:$0x1]
    %v1811 = vperm.slane %v1810, 0
    %v1816 = vunpack.c.l.b16 %v1806
    %v1817 = vunpack.c.l.b16 %v1807
    %v1818 = vunpack.c.l.b16 %v1808
    %v1819 = vunpack.c.l.b16 %v1809
    %v1820 = vpack.c.b16 %v1817, %v1816
    %v1821 = vpack.c.b16 %v1819, %v1818
    %1824 = vmatpush.bf16.msra.mxu0 0
    %1825 = vmatpush.bf16.msra.mxu0 0
    %1826 = vmatpush.bf16.msra.mxu0 0
    %1827 = vmatpush.bf16.msra.mxu0 0
    %1828 = vmatpush.bf16.msra.mxu0 0
    %1829 = vmatpush.bf16.msra.mxu0 0
    %1830 = vmatpush.bf16.msra.mxu0 %v1821
    %1831 = vmatpush.bf16.msra.mxu0 %v1820
    %1832 = vmatmul.bf16.gmra.mxu0 %v1411
    %v1833 = vpop.f32.mrf.mxu0
    %v1834 = vadd.f32 %v1811, %v1833
    %v1835 = vpop.f32.mrf.mxu0
    %v1836 = vadd.f32 %v1811, %v1835
    %1837 = vmatmul.bf16.gmra.mxu0 %v1414
    %v1838 = vpop.f32.mrf.mxu0
    %v1839 = vadd.f32 %v1811, %v1838
    %v1840 = vpop.f32.mrf.mxu0
    %1841 = vdwg.mxu0
    %v1842 = vld [vmem:[%s3 + $0x170] sm:$0xf]
    %v1843 = vld [vmem:[%s3 + $0x174] sm:$0xf]
    %v1844 = vld [vmem:[%s3 + $0x178] sm:$0xf]
    %v1845 = vld [vmem:[%s3 + $0x17c] sm:$0xf]
    %v1846 = vld [vmem:[%s6 + $0xc8] sm:$0x1]
    %v1847 = vperm.slane %v1846, 0
    %v1852 = vunpack.c.l.b16 %v1842
    %v1853 = vunpack.c.l.b16 %v1843
    %v1854 = vunpack.c.l.b16 %v1844
    %v1855 = vunpack.c.l.b16 %v1845
    %v1856 = vpack.c.b16 %v1853, %v1852
    %v1857 = vpack.c.b16 %v1855, %v1854
    %1860 = vmatpush.bf16.msra.mxu0 0
    %1861 = vmatpush.bf16.msra.mxu0 0
    %1862 = vmatpush.bf16.msra.mxu0 0
    %1863 = vmatpush.bf16.msra.mxu0 0
    %1864 = vmatpush.bf16.msra.mxu0 0
    %1865 = vmatpush.bf16.msra.mxu0 0
    %1866 = vmatpush.bf16.msra.mxu0 %v1857
    %1867 = vmatpush.bf16.msra.mxu0 %v1856
    %1868 = vmatmul.bf16.gmra.mxu0 %v1411
    %v1869 = vpop.f32.mrf.mxu0
    %v1870 = vadd.f32 %v1847, %v1869
    %v1871 = vpop.f32.mrf.mxu0
    %v1872 = vadd.f32 %v1847, %v1871
    %1873 = vmatmul.bf16.gmra.mxu0 %v1414
    %v1874 = vpop.f32.mrf.mxu0
    %v1875 = vadd.f32 %v1847, %v1874
    %v1876 = vpop.f32.mrf.mxu0
    %1877 = vdwg.mxu0
    %v1878 = vpack.c.bf16 %v1836, %v1834
    %v1879 = vpack.c.bf16 %v1839, %v1839
    %v1880 = vpack.c.bf16 %v1872, %v1870
    %v1881 = vpack.c.bf16 %v1875, %v1875
    %v1883 = vsel %vm200, %v1878, 0
    %v1886 = vsel %vm200, %v1879, 0
    %v1889 = vsel %vm200, %v1880, 0
    %v1892 = vsel %vm200, %v1881, 0
    %1894 = vmatpush.bf16.xpose.msra.mxu0 0
    %1895 = vmatpush.bf16.xpose.msra.mxu0 0
    %1896 = vmatpush.bf16.xpose.msra.mxu0 0
    %1897 = vmatpush.bf16.xpose.msra.mxu0 0
    %1898 = vmatpush.bf16.xpose.msra.mxu0 0
    %1899 = vmatpush.bf16.xpose.msra.mxu0 0
    %1900 = vmatpush.bf16.xpose.msra.mxu0 %v1892
    %1901 = vmatpush.bf16.xpose.msra.mxu0 %v1889
    %1902 = vmatmul.bf16.gmra.mxu0 %v1883
    %v1903 = vpop.f32.mrf.mxu0
    %v1904 = vadd.f32 0.0, %v1903
    %v1905 = vpop.f32.mrf.mxu0
    %v1906 = vadd.f32 0.0, %v1905
    %1907 = vmatmul.bf16.gmra.mxu0 %v1886
    %v1908 = vpop.f32.mrf.mxu0
    %v1909 = vadd.f32 0.0, %v1908
    %v1910 = vpop.f32.mrf.mxu0
    %1911 = vdwg.mxu0
    %v1912 = vsel %vm399, %v1904, -inf
    %1913 = vmax.xlane.f32.xlu0 %v1912
    %v1914 = vpop.xlane.xlu0 %1913
    %v1915 = vsel %vm399, %v1906, -inf
    %1916 = vmax.xlane.f32.xlu0 %v1915
    %v1917 = vpop.xlane.xlu0 %1916
    %v1918 = vsel %vm406, %v1909, -inf
    %1919 = vmax.xlane.f32.xlu0 %v1918
    %v1920 = vpop.xlane.xlu0 %1919
    %v1921 = vsub.f32 %v1904, %v1914
    %v1922 = vsub.f32 %v1906, %v1917
    %v1923 = vsub.f32 %v1909, %v1920
    %v1924 = vmul.f32 %v1921, 1.442695
    %v1925 = vpow.pop %v1924
    %v1926 = vmul.f32 %v1922, 1.442695
    %v1927 = vpow.pop %v1926
    %v1928 = vmul.f32 %v1923, 1.442695
    %v1929 = vpow.pop %v1928
    %v1930 = vsel %vm399, %v1925, 0.0
    %1931 = vadd.xlane.f32.xlu0 %v1930
    %v1932 = vpop.xlane.xlu0 %1931
    %v1933 = vsel %vm399, %v1927, 0.0
    %1934 = vadd.xlane.f32.xlu0 %v1933
    %v1935 = vpop.xlane.xlu0 %1934
    %v1936 = vsel %vm406, %v1929, 0.0
    %1937 = vadd.xlane.f32.xlu0 %v1936
    %v1938 = vpop.xlane.xlu0 %1937
    %v1939 = vrcp.pop %v1932
    %v1940 = vrcp.pop %v1935
    %v1941 = vrcp.pop %v1938
    %v1942 = vmul.f32 %v1925, %v1939
    %v1943 = vmul.f32 %v1927, %v1940
    %v1944 = vmul.f32 %v1929, %v1941
    %v1945 = vld [vmem:[%s3 + $0x180] sm:$0xf]
    %v1946 = vld [vmem:[%s3 + $0x184] sm:$0xf]
    %v1947 = vld [vmem:[%s3 + $0x188] sm:$0xf]
    %v1948 = vld [vmem:[%s3 + $0x18c] sm:$0xf]
    %v1953 = vunpack.c.l.b16 %v1945
    %v1954 = vunpack.c.l.b16 %v1946
    %v1955 = vunpack.c.l.b16 %v1947
    %v1956 = vunpack.c.l.b16 %v1948
    %v1957 = vpack.c.b16 %v1954, %v1953
    %v1958 = vpack.c.b16 %v1956, %v1955
    %1961 = vmatpush.bf16.msra.mxu0 0
    %1962 = vmatpush.bf16.msra.mxu0 0
    %1963 = vmatpush.bf16.msra.mxu0 0
    %1964 = vmatpush.bf16.msra.mxu0 0
    %1965 = vmatpush.bf16.msra.mxu0 0
    %1966 = vmatpush.bf16.msra.mxu0 0
    %1967 = vmatpush.bf16.msra.mxu0 %v1958
    %1968 = vmatpush.bf16.msra.mxu0 %v1957
    %1969 = vmatmul.bf16.gmra.mxu0 %v1411
    %v1970 = vpop.f32.mrf.mxu0
    %v1971 = vadd.f32 0.0, %v1970
    %v1972 = vpop.f32.mrf.mxu0
    %v1973 = vadd.f32 0.0, %v1972
    %1974 = vmatmul.bf16.gmra.mxu0 %v1414
    %v1975 = vpop.f32.mrf.mxu0
    %v1976 = vadd.f32 0.0, %v1975
    %v1977 = vpop.f32.mrf.mxu0
    %1978 = vdwg.mxu0
    %v1979 = vpack.c.bf16 %v1943, %v1942
    %v1980 = vpack.c.bf16 %v1944, %v1944
    %v1981 = vpack.c.bf16 %v1973, %v1971
    %v1982 = vpack.c.bf16 %v1976, %v1976
    %v1984 = vsel %vm399, %v1979, 0
    %v1987 = vsel %vm399, %v1980, 0
    %v1990 = vand.u32 %v1982, %v657
    %1992 = vmatpush.bf16.msra.mxu0 0
    %1993 = vmatpush.bf16.msra.mxu0 0
    %1994 = vmatpush.bf16.msra.mxu0 0
    %1995 = vmatpush.bf16.msra.mxu0 0
    %1996 = vmatpush.bf16.msra.mxu0 0
    %1997 = vmatpush.bf16.msra.mxu0 0
    %1998 = vmatpush.bf16.msra.mxu0 %v1990
    %1999 = vmatpush.bf16.msra.mxu0 %v1981
    %2000 = vmatmul.bf16.gmra.mxu0 %v1984
    %v2001 = vpop.f32.mrf.mxu0
    %v2002 = vadd.f32 0.0, %v2001
    %v2003 = vpop.f32.mrf.mxu0
    %v2004 = vadd.f32 0.0, %v2003
    %2005 = vmatmul.bf16.gmra.mxu0 %v1987
    %v2006 = vpop.f32.mrf.mxu0
    %v2007 = vadd.f32 0.0, %v2006
    %v2008 = vpop.f32.mrf.mxu0
    %2009 = vdwg.mxu0
    %v2010 = vadd.f32 %v1798, %v2002
    %v2011 = vadd.f32 %v1800, %v2004
    %v2012 = vadd.f32 %v1803, %v2007
    %v2013 = vld [vmem:[%s3 + $0x190] sm:$0xf]
    %v2014 = vld [vmem:[%s3 + $0x194] sm:$0xf]
    %v2015 = vld [vmem:[%s3 + $0x198] sm:$0xf]
    %v2016 = vld [vmem:[%s3 + $0x19c] sm:$0xf]
    %v2017 = vld [vmem:[%s6 + $0xd0] sm:$0x1]
    %v2018 = vperm.slane %v2017, 0
    %v2023 = vunpack.c.l.b16 %v2013
    %v2024 = vunpack.c.l.b16 %v2014
    %v2025 = vunpack.c.l.b16 %v2015
    %v2026 = vunpack.c.l.b16 %v2016
    %v2027 = vpack.c.b16 %v2024, %v2023
    %v2028 = vpack.c.b16 %v2026, %v2025
    %2031 = vmatpush.bf16.msra.mxu0 0
    %2032 = vmatpush.bf16.msra.mxu0 0
    %2033 = vmatpush.bf16.msra.mxu0 0
    %2034 = vmatpush.bf16.msra.mxu0 0
    %2035 = vmatpush.bf16.msra.mxu0 0
    %2036 = vmatpush.bf16.msra.mxu0 0
    %2037 = vmatpush.bf16.msra.mxu0 %v2028
    %2038 = vmatpush.bf16.msra.mxu0 %v2027
    %2039 = vmatmul.bf16.gmra.mxu0 %v1411
    %v2040 = vpop.f32.mrf.mxu0
    %v2041 = vadd.f32 %v2018, %v2040
    %v2042 = vpop.f32.mrf.mxu0
    %v2043 = vadd.f32 %v2018, %v2042
    %2044 = vmatmul.bf16.gmra.mxu0 %v1414
    %v2045 = vpop.f32.mrf.mxu0
    %v2046 = vadd.f32 %v2018, %v2045
    %v2047 = vpop.f32.mrf.mxu0
    %2048 = vdwg.mxu0
    %v2049 = vld [vmem:[%s3 + $0x1a0] sm:$0xf]
    %v2050 = vld [vmem:[%s3 + $0x1a4] sm:$0xf]
    %v2051 = vld [vmem:[%s3 + $0x1a8] sm:$0xf]
    %v2052 = vld [vmem:[%s3 + $0x1ac] sm:$0xf]
    %v2053 = vld [vmem:[%s6 + $0xd8] sm:$0x1]
    %v2054 = vperm.slane %v2053, 0
    %v2059 = vunpack.c.l.b16 %v2049
    %v2060 = vunpack.c.l.b16 %v2050
    %v2061 = vunpack.c.l.b16 %v2051
    %v2062 = vunpack.c.l.b16 %v2052
    %v2063 = vpack.c.b16 %v2060, %v2059
    %v2064 = vpack.c.b16 %v2062, %v2061
    %2067 = vmatpush.bf16.msra.mxu0 0
    %2068 = vmatpush.bf16.msra.mxu0 0
    %2069 = vmatpush.bf16.msra.mxu0 0
    %2070 = vmatpush.bf16.msra.mxu0 0
    %2071 = vmatpush.bf16.msra.mxu0 0
    %2072 = vmatpush.bf16.msra.mxu0 0
    %2073 = vmatpush.bf16.msra.mxu0 %v2064
    %2074 = vmatpush.bf16.msra.mxu0 %v2063
    %2075 = vmatmul.bf16.gmra.mxu0 %v1411
    %v2076 = vpop.f32.mrf.mxu0
    %v2077 = vadd.f32 %v2054, %v2076
    %v2078 = vpop.f32.mrf.mxu0
    %v2079 = vadd.f32 %v2054, %v2078
    %2080 = vmatmul.bf16.gmra.mxu0 %v1414
    %v2081 = vpop.f32.mrf.mxu0
    %v2082 = vadd.f32 %v2054, %v2081
    %v2083 = vpop.f32.mrf.mxu0
    %2084 = vdwg.mxu0
    %v2085 = vpack.c.bf16 %v2043, %v2041
    %v2086 = vpack.c.bf16 %v2046, %v2046
    %v2087 = vpack.c.bf16 %v2079, %v2077
    %v2088 = vpack.c.bf16 %v2082, %v2082
    %v2090 = vsel %vm200, %v2085, 0
    %v2093 = vsel %vm200, %v2086, 0
    %v2096 = vsel %vm200, %v2087, 0
    %v2099 = vsel %vm200, %v2088, 0
    %2101 = vmatpush.bf16.xpose.msra.mxu0 0
    %2102 = vmatpush.bf16.xpose.msra.mxu0 0
    %2103 = vmatpush.bf16.xpose.msra.mxu0 0
    %2104 = vmatpush.bf16.xpose.msra.mxu0 0
    %2105 = vmatpush.bf16.xpose.msra.mxu0 0
    %2106 = vmatpush.bf16.xpose.msra.mxu0 0
    %2107 = vmatpush.bf16.xpose.msra.mxu0 %v2099
    %2108 = vmatpush.bf16.xpose.msra.mxu0 %v2096
    %2109 = vmatmul.bf16.gmra.mxu0 %v2090
    %v2110 = vpop.f32.mrf.mxu0
    %v2111 = vadd.f32 0.0, %v2110
    %v2112 = vpop.f32.mrf.mxu0
    %v2113 = vadd.f32 0.0, %v2112
    %2114 = vmatmul.bf16.gmra.mxu0 %v2093
    %v2115 = vpop.f32.mrf.mxu0
    %v2116 = vadd.f32 0.0, %v2115
    %v2117 = vpop.f32.mrf.mxu0
    %2118 = vdwg.mxu0
    %v2119 = vsel %vm399, %v2111, -inf
    %2120 = vmax.xlane.f32.xlu0 %v2119
    %v2121 = vpop.xlane.xlu0 %2120
    %v2122 = vsel %vm399, %v2113, -inf
    %2123 = vmax.xlane.f32.xlu0 %v2122
    %v2124 = vpop.xlane.xlu0 %2123
    %v2125 = vsel %vm406, %v2116, -inf
    %2126 = vmax.xlane.f32.xlu0 %v2125
    %v2127 = vpop.xlane.xlu0 %2126
    %v2128 = vsub.f32 %v2111, %v2121
    %v2129 = vsub.f32 %v2113, %v2124
    %v2130 = vsub.f32 %v2116, %v2127
    %v2131 = vmul.f32 %v2128, 1.442695
    %v2132 = vpow.pop %v2131
    %v2133 = vmul.f32 %v2129, 1.442695
    %v2134 = vpow.pop %v2133
    %v2135 = vmul.f32 %v2130, 1.442695
    %v2136 = vpow.pop %v2135
    %v2137 = vsel %vm399, %v2132, 0.0
    %2138 = vadd.xlane.f32.xlu0 %v2137
    %v2139 = vpop.xlane.xlu0 %2138
    %v2140 = vsel %vm399, %v2134, 0.0
    %2141 = vadd.xlane.f32.xlu0 %v2140
    %v2142 = vpop.xlane.xlu0 %2141
    %v2143 = vsel %vm406, %v2136, 0.0
    %2144 = vadd.xlane.f32.xlu0 %v2143
    %v2145 = vpop.xlane.xlu0 %2144
    %v2146 = vrcp.pop %v2139
    %v2147 = vrcp.pop %v2142
    %v2148 = vrcp.pop %v2145
    %v2149 = vmul.f32 %v2132, %v2146
    %v2150 = vmul.f32 %v2134, %v2147
    %v2151 = vmul.f32 %v2136, %v2148
    %v2152 = vld [vmem:[%s3 + $0x1b0] sm:$0xf]
    %v2153 = vld [vmem:[%s3 + $0x1b4] sm:$0xf]
    %v2154 = vld [vmem:[%s3 + $0x1b8] sm:$0xf]
    %v2155 = vld [vmem:[%s3 + $0x1bc] sm:$0xf]
    %v2160 = vunpack.c.l.b16 %v2152
    %v2161 = vunpack.c.l.b16 %v2153
    %v2162 = vunpack.c.l.b16 %v2154
    %v2163 = vunpack.c.l.b16 %v2155
    %v2164 = vpack.c.b16 %v2161, %v2160
    %v2165 = vpack.c.b16 %v2163, %v2162
    %2168 = vmatpush.bf16.msra.mxu0 0
    %2169 = vmatpush.bf16.msra.mxu0 0
    %2170 = vmatpush.bf16.msra.mxu0 0
    %2171 = vmatpush.bf16.msra.mxu0 0
    %2172 = vmatpush.bf16.msra.mxu0 0
    %2173 = vmatpush.bf16.msra.mxu0 0
    %2174 = vmatpush.bf16.msra.mxu0 %v2165
    %2175 = vmatpush.bf16.msra.mxu0 %v2164
    %2176 = vmatmul.bf16.gmra.mxu0 %v1411
    %v2177 = vpop.f32.mrf.mxu0
    %v2178 = vadd.f32 0.0, %v2177
    %v2179 = vpop.f32.mrf.mxu0
    %v2180 = vadd.f32 0.0, %v2179
    %2181 = vmatmul.bf16.gmra.mxu0 %v1414
    %v2182 = vpop.f32.mrf.mxu0
    %v2183 = vadd.f32 0.0, %v2182
    %v2184 = vpop.f32.mrf.mxu0
    %2185 = vdwg.mxu0
    %v2186 = vpack.c.bf16 %v2150, %v2149
    %v2187 = vpack.c.bf16 %v2151, %v2151
    %v2188 = vpack.c.bf16 %v2180, %v2178
    %v2189 = vpack.c.bf16 %v2183, %v2183
    %v2191 = vsel %vm399, %v2186, 0
    %v2194 = vsel %vm399, %v2187, 0
    %v2197 = vand.u32 %v2189, %v657
    %2199 = vmatpush.bf16.msra.mxu0 0
    %2200 = vmatpush.bf16.msra.mxu0 0
    %2201 = vmatpush.bf16.msra.mxu0 0
    %2202 = vmatpush.bf16.msra.mxu0 0
    %2203 = vmatpush.bf16.msra.mxu0 0
    %2204 = vmatpush.bf16.msra.mxu0 0
    %2205 = vmatpush.bf16.msra.mxu0 %v2197
    %2206 = vmatpush.bf16.msra.mxu0 %v2188
    %2207 = vmatmul.bf16.gmra.mxu0 %v2191
    %v2208 = vpop.f32.mrf.mxu0
    %v2209 = vadd.f32 0.0, %v2208
    %v2210 = vpop.f32.mrf.mxu0
    %v2211 = vadd.f32 0.0, %v2210
    %2212 = vmatmul.bf16.gmra.mxu0 %v2194
    %v2213 = vpop.f32.mrf.mxu0
    %v2214 = vadd.f32 0.0, %v2213
    %v2215 = vpop.f32.mrf.mxu0
    %2216 = vdwg.mxu0
    %v2217 = vadd.f32 %v2010, %v2209
    %v2218 = vadd.f32 %v2011, %v2211
    %v2219 = vadd.f32 %v2012, %v2214
    %v2220 = vld [vmem:[%s6 + $0xe0] sm:$0x1]
    %v2221 = vperm.slane %v2220, 0
    %v2222 = vadd.f32 %v2217, %v2221
    %v2223 = vadd.f32 %v2218, %v2221
    %v2224 = vadd.f32 %v2219, %v2221
    %v2225 = vadd.f32 %v1387, %v2222
    %v2226 = vadd.f32 %v1388, %v2223
    %v2227 = vadd.f32 %v1389, %v2224
    %v2228 = vld [vmem:[%s6 + $0xe8] sm:$0x1]
    %v2229 = vld [vmem:[%s6 + $0xf0] sm:$0x1]
    %v2230 = vsel %vm200, %v2225, 0.0
    %2231 = vadd.xlane.f32.xlu0 %v2230
    %v2232 = vpop.xlane.xlu0 %2231
    %v2233 = vsel %vm200, %v2226, 0.0
    %2234 = vadd.xlane.f32.xlu0 %v2233
    %v2235 = vpop.xlane.xlu0 %2234
    %v2236 = vsel %vm280, %v2227, 0.0
    %2237 = vadd.xlane.f32.xlu0 %v2236
    %v2238 = vpop.xlane.xlu0 %2237
    %v2239 = vmul.f32 %v2232, %v213
    %v2240 = vmul.f32 %v2235, %v213
    %v2241 = vmul.f32 %v2238, %v213
    %v2242 = vsub.f32 %v2225, %v2239
    %v2243 = vsub.f32 %v2226, %v2240
    %v2244 = vsub.f32 %v2227, %v2241
    %v2245 = vmul.f32 %v2242, %v2242
    %v2246 = vmul.f32 %v2243, %v2243
    %v2247 = vmul.f32 %v2244, %v2244
    %v2248 = vsel %vm200, %v2245, 0.0
    %2249 = vadd.xlane.f32.xlu0 %v2248
    %v2250 = vpop.xlane.xlu0 %2249
    %v2251 = vsel %vm200, %v2246, 0.0
    %2252 = vadd.xlane.f32.xlu0 %v2251
    %v2253 = vpop.xlane.xlu0 %2252
    %v2254 = vsel %vm280, %v2247, 0.0
    %2255 = vadd.xlane.f32.xlu0 %v2254
    %v2256 = vpop.xlane.xlu0 %2255
    %v2257 = vmul.f32 %v2250, %v213
    %v2258 = vmul.f32 %v2253, %v213
    %v2259 = vmul.f32 %v2256, %v213
    %v2260 = vadd.f32 %v2257, 1e-05
    %v2261 = vadd.f32 %v2258, 1e-05
    %v2262 = vadd.f32 %v2259, 1e-05
    %v2263 = vrsqrt.pop %v2260
    %v2264 = vmul.f32 %v2263, %v2260
    %v2265 = vmul.f32 %v2264, %v2263
    %v2266 = vmul.f32 0.5, %v2265
    %v2267 = vsub.f32 1.5, %v2266
    %v2268 = vmul.f32 %v2263, %v2267
    %vm2269 = vweird.f32 %v2260
    %vm2270 = vweird.f32 %v2263
    %vm2271 = vmor %vm2269, %vm2270
    %v2272 = vsel %vm2271, %v2263, %v2268
    %v2273 = vrsqrt.pop %v2261
    %v2274 = vmul.f32 %v2273, %v2261
    %v2275 = vmul.f32 %v2274, %v2273
    %v2276 = vmul.f32 0.5, %v2275
    %v2277 = vsub.f32 1.5, %v2276
    %v2278 = vmul.f32 %v2273, %v2277
    %vm2279 = vweird.f32 %v2261
    %vm2280 = vweird.f32 %v2273
    %vm2281 = vmor %vm2279, %vm2280
    %v2282 = vsel %vm2281, %v2273, %v2278
    %v2283 = vrsqrt.pop %v2262
    %v2284 = vmul.f32 %v2283, %v2262
    %v2285 = vmul.f32 %v2284, %v2283
    %v2286 = vmul.f32 0.5, %v2285
    %v2287 = vsub.f32 1.5, %v2286
    %v2288 = vmul.f32 %v2283, %v2287
    %vm2289 = vweird.f32 %v2262
    %vm2290 = vweird.f32 %v2283
    %vm2291 = vmor %vm2289, %vm2290
    %v2292 = vsel %vm2291, %v2283, %v2288
    %v2293 = vmul.f32 %v2242, %v2272
    %v2294 = vmul.f32 %v2243, %v2282
    %v2295 = vmul.f32 %v2244, %v2292
    %v2296 = vperm.slane %v2228, 0
    %v2297 = vmul.f32 %v2293, %v2296
    %v2298 = vmul.f32 %v2294, %v2296
    %v2299 = vmul.f32 %v2295, %v2296
    %v2300 = vperm.slane %v2229, 0
    %v2301 = vadd.f32 %v2297, %v2300
    %v2302 = vadd.f32 %v2298, %v2300
    %v2303 = vadd.f32 %v2299, %v2300
    %v2304 = vld [vmem:[%s4 + $0x18] sm:$0xf]
    %v2305 = vld [vmem:[%s4 + $0x1c] sm:$0xf]
    %v2306 = vld [vmem:[%s4 + $0x20] sm:$0xf]
    %v2307 = vld [vmem:[%s4 + $0x24] sm:$0xf]
    %v2308 = vpack.c.bf16 %v2302, %v2301
    %v2309 = vpack.c.bf16 %v2303, %v2303
    %v2310 = vld [vmem:[%s7 + $0x20] sm:$0x1]
    %v2311 = vperm.slane %v2310, 0
    %v2316 = vunpack.c.l.b16 %v2304
    %v2317 = vunpack.c.l.b16 %v2305
    %v2318 = vunpack.c.l.b16 %v2306
    %v2319 = vunpack.c.l.b16 %v2307
    %v2320 = vpack.c.b16 %v2317, %v2316
    %v2321 = vpack.c.b16 %v2319, %v2318
    %v2325 = vsel %vm200, %v2308, 0
    %v2328 = vsel %vm200, %v2309, 0
    %2330 = vmatpush.bf16.msra.mxu0 0
    %2331 = vmatpush.bf16.msra.mxu0 0
    %2332 = vmatpush.bf16.msra.mxu0 0
    %2333 = vmatpush.bf16.msra.mxu0 0
    %2334 = vmatpush.bf16.msra.mxu0 0
    %2335 = vmatpush.bf16.msra.mxu0 0
    %2336 = vmatpush.bf16.msra.mxu0 %v2321
    %2337 = vmatpush.bf16.msra.mxu0 %v2320
    %2338 = vmatmul.bf16.gmra.mxu0 %v2325
    %v2339 = vpop.f32.mrf.mxu0
    %v2340 = vadd.f32 %v2311, %v2339
    %v2341 = vpop.f32.mrf.mxu0
    %v2342 = vadd.f32 %v2311, %v2341
    %2343 = vmatmul.bf16.gmra.mxu0 %v2328
    %v2344 = vpop.f32.mrf.mxu0
    %v2345 = vadd.f32 %v2311, %v2344
    %v2346 = vpop.f32.mrf.mxu0
    %2347 = vdwg.mxu0
    %v2348 = vmax.f32 %v2340, 0.0
    %v2349 = vmax.f32 %v2342, 0.0
    %v2350 = vmax.f32 %v2345, 0.0
    %v2351 = vld [vmem:[%s3 + $0x1c0] sm:$0xf]
    %v2352 = vld [vmem:[%s3 + $0x1c4] sm:$0xf]
    %v2353 = vld [vmem:[%s3 + $0x1c8] sm:$0xf]
    %v2354 = vld [vmem:[%s3 + $0x1cc] sm:$0xf]
    %v2355 = vld [vmem:[%s3 + $0x1d0] sm:$0xf]
    %v2356 = vld [vmem:[%s3 + $0x1d4] sm:$0xf]
    %v2357 = vld [vmem:[%s3 + $0x1d8] sm:$0xf]
    %v2358 = vld [vmem:[%s3 + $0x1dc] sm:$0xf]
    %v2359 = vpack.c.bf16 %v2349, %v2348
    %v2360 = vpack.c.bf16 %v2350, %v2350
    %v2361 = vld [vmem:[%s6 + $0xf8] sm:$0x1]
    %v2362 = vperm.slane %v2361, 0
    %v2371 = vunpack.c.l.b16 %v2351
    %v2372 = vunpack.c.l.b16 %v2352
    %v2373 = vunpack.c.l.b16 %v2353
    %v2374 = vunpack.c.l.b16 %v2354
    %v2375 = vunpack.c.l.b16 %v2355
    %v2376 = vunpack.c.l.b16 %v2356
    %v2377 = vunpack.c.l.b16 %v2357
    %v2378 = vunpack.c.l.b16 %v2358
    %v2379 = vpack.c.b16 %v2372, %v2371
    %v2380 = vpack.c.b16 %v2374, %v2373
    %v2381 = vpack.c.b16 %v2376, %v2375
    %v2382 = vpack.c.b16 %v2378, %v2377
    %v2388 = vsel %vm70, %v2359, 0
    %v2391 = vsel %vm70, %v2360, 0
    %2393 = vmatpush.bf16.msra.mxu0 0
    %2394 = vmatpush.bf16.msra.mxu0 0
    %2395 = vmatpush.bf16.msra.mxu0 0
    %2396 = vmatpush.bf16.msra.mxu0 0
    %2397 = vmatpush.bf16.msra.mxu0 %v2382
    %2398 = vmatpush.bf16.msra.mxu0 %v2381
    %2399 = vmatpush.bf16.msra.mxu0 %v2380
    %2400 = vmatpush.bf16.msra.mxu0 %v2379
    %2401 = vmatmul.bf16.gmra.mxu0 %v2388
    %v2402 = vpop.f32.mrf.mxu0
    %v2403 = vadd.f32 %v2362, %v2402
    %v2404 = vpop.f32.mrf.mxu0
    %v2405 = vadd.f32 %v2362, %v2404
    %2406 = vmatmul.bf16.gmra.mxu0 %v2391
    %v2407 = vpop.f32.mrf.mxu0
    %v2408 = vadd.f32 %v2362, %v2407
    %v2409 = vpop.f32.mrf.mxu0
    %2410 = vdwg.mxu0
    %v2411 = vadd.f32 %v2301, %v2403
    %v2412 = vadd.f32 %v2302, %v2405
    %v2413 = vadd.f32 %v2303, %v2408
    %v2414 = vld [vmem:[%s6 + $0x100] sm:$0x1]
    %v2415 = vld [vmem:[%s6 + $0x108] sm:$0x1]
    %v2416 = vsel %vm200, %v2411, 0.0
    %2417 = vadd.xlane.f32.xlu0 %v2416
    %v2418 = vpop.xlane.xlu0 %2417
    %v2419 = vsel %vm200, %v2412, 0.0
    %2420 = vadd.xlane.f32.xlu0 %v2419
    %v2421 = vpop.xlane.xlu0 %2420
    %v2422 = vsel %vm280, %v2413, 0.0
    %2423 = vadd.xlane.f32.xlu0 %v2422
    %v2424 = vpop.xlane.xlu0 %2423
    %v2425 = vmul.f32 %v2418, %v213
    %v2426 = vmul.f32 %v2421, %v213
    %v2427 = vmul.f32 %v2424, %v213
    %v2428 = vsub.f32 %v2411, %v2425
    %v2429 = vsub.f32 %v2412, %v2426
    %v2430 = vsub.f32 %v2413, %v2427
    %v2431 = vmul.f32 %v2428, %v2428
    %v2432 = vmul.f32 %v2429, %v2429
    %v2433 = vmul.f32 %v2430, %v2430
    %v2434 = vsel %vm200, %v2431, 0.0
    %2435 = vadd.xlane.f32.xlu0 %v2434
    %v2436 = vpop.xlane.xlu0 %2435
    %v2437 = vsel %vm200, %v2432, 0.0
    %2438 = vadd.xlane.f32.xlu0 %v2437
    %v2439 = vpop.xlane.xlu0 %2438
    %v2440 = vsel %vm280, %v2433, 0.0
    %2441 = vadd.xlane.f32.xlu0 %v2440
    %v2442 = vpop.xlane.xlu0 %2441
    %v2443 = vmul.f32 %v2436, %v213
    %v2444 = vmul.f32 %v2439, %v213
    %v2445 = vmul.f32 %v2442, %v213
    %v2446 = vadd.f32 %v2443, 1e-05
    %v2447 = vadd.f32 %v2444, 1e-05
    %v2448 = vadd.f32 %v2445, 1e-05
    %v2449 = vrsqrt.pop %v2446
    %v2450 = vmul.f32 %v2449, %v2446
    %v2451 = vmul.f32 %v2450, %v2449
    %v2452 = vmul.f32 0.5, %v2451
    %v2453 = vsub.f32 1.5, %v2452
    %v2454 = vmul.f32 %v2449, %v2453
    %vm2455 = vweird.f32 %v2446
    %vm2456 = vweird.f32 %v2449
    %vm2457 = vmor %vm2455, %vm2456
    %v2458 = vsel %vm2457, %v2449, %v2454
    %v2459 = vrsqrt.pop %v2447
    %v2460 = vmul.f32 %v2459, %v2447
    %v2461 = vmul.f32 %v2460, %v2459
    %v2462 = vmul.f32 0.5, %v2461
    %v2463 = vsub.f32 1.5, %v2462
    %v2464 = vmul.f32 %v2459, %v2463
    %vm2465 = vweird.f32 %v2447
    %vm2466 = vweird.f32 %v2459
    %vm2467 = vmor %vm2465, %vm2466
    %v2468 = vsel %vm2467, %v2459, %v2464
    %v2469 = vrsqrt.pop %v2448
    %v2470 = vmul.f32 %v2469, %v2448
    %v2471 = vmul.f32 %v2470, %v2469
    %v2472 = vmul.f32 0.5, %v2471
    %v2473 = vsub.f32 1.5, %v2472
    %v2474 = vmul.f32 %v2469, %v2473
    %vm2475 = vweird.f32 %v2448
    %vm2476 = vweird.f32 %v2469
    %vm2477 = vmor %vm2475, %vm2476
    %v2478 = vsel %vm2477, %v2469, %v2474
    %v2479 = vmul.f32 %v2428, %v2458
    %v2480 = vmul.f32 %v2429, %v2468
    %v2481 = vmul.f32 %v2430, %v2478
    %v2482 = vperm.slane %v2414, 0
    %v2483 = vmul.f32 %v2479, %v2482
    %v2484 = vmul.f32 %v2480, %v2482
    %v2485 = vmul.f32 %v2481, %v2482
    %v2486 = vperm.slane %v2415, 0
    %v2487 = vadd.f32 %v2483, %v2486
    %v2488 = vadd.f32 %v2484, %v2486
    %v2489 = vadd.f32 %v2485, %v2486
    %v2490 = vsel %vm200, %v2487, 0.0
    %v2491 = vsel %vm200, %v2488, 0.0
    %v2492 = vadd.f32 %v2490, %v2491
    %v2493 = vsel %vm280, %v2489, 0.0
    %v2494 = vadd.f32 %v2492, %v2493
    %v2495 = vrot.slane %v2494, 4
    %v2496 = vadd.f32 %v2494, %v2495
    %v2497 = vrot.slane %v2496, 2
    %v2498 = vadd.f32 %v2496, %v2497
    %v2499 = vrot.slane %v2498, 1
    %v2500 = vadd.f32 %v2498, %v2499
    %v2501 = vrcp.pop 17.0
    %v2502 = vmul.f32 17.0, %v2501
    %v2503 = vsub.f32 1.0, %v2502
    %v2504 = vmul.f32 %v2501, %v2503
    %v2505 = vadd.f32 %v2501, %v2504
    %vm2506 = vweird.f32 %v2501
    %v2507 = vsel %vm2506, %v2501, %v2505
    %v2508 = vmul.f32 %v2500, %v2507
    %v2509 = vld [vmem:[%s1] sm:$0xff]
    %v2510 = vld [vmem:[%s2] sm:$0xff]
    %2512 = vset.pattern.permute.xlu0 0
    %2513 = vperm.xlu0 %2512, %v2510
    %v2514 = vpop.permute.xlu0 %2513
    %v2516 = vmul.f32 %v2509, %v2514
    %v2517 = vsel %vm200, %v2516, 0.0
    %v2518 = vrot.slane %v2517, 4
    %v2519 = vadd.f32 %v2517, %v2518
    %v2520 = vrot.slane %v2519, 2
    %v2521 = vadd.f32 %v2519, %v2520
    %v2522 = vrot.slane %v2521, 1
    %v2523 = vadd.f32 %v2521, %v2522
    %vm2524 = vcmask 7168
    %v2525 = vsel %vm2524, %v2510, 0.0
    %v2526 = vrot.slane %v2525, 4
    %v2527 = vadd.f32 %v2525, %v2526
    %v2528 = vrot.slane %v2527, 2
    %v2529 = vadd.f32 %v2527, %v2528
    %v2530 = vrot.slane %v2529, 1
    %v2531 = vadd.f32 %v2529, %v2530
    %v2532 = vmax.f32 %v2531, 1e-09
    %2534 = vset.pattern.permute.xlu0 0
    %2535 = vperm.xlu0 %2534, %v2532
    %v2536 = vpop.permute.xlu0 %2535
    %v2538 = vrcp.pop %v2536
    %v2539 = vmul.f32 %v2536, %v2538
    %v2540 = vsub.f32 1.0, %v2539
    %v2541 = vmul.f32 %v2538, %v2540
    %v2542 = vadd.f32 %v2538, %v2541
    %vm2543 = vweird.f32 %v2536
    %vm2544 = vweird.f32 %v2538
    %vm2545 = vmor %vm2543, %vm2544
    %v2546 = vsel %vm2545, %v2538, %v2542
    %v2547 = vand.u32 2147483647, %v2536
    %vm2548 = vcmp.eq.f32.partialorder %v2547, 8.507059e+37
    %v2549 = vand.u32 %v2536, 2147483648
    %v2550 = vor.u32 1.1754944e-38, %v2549
    %v2551 = vsel %vm2548, %v2550, %v2546
    %v2552 = vmul.f32 %v2523, %v2551
    %v2553 = vld [vmem:[%s5] sm:$0xf]
    %v2554 = vld [vmem:[%s5 + $0x4] sm:$0xf]
    %v2555 = vld [vmem:[%s5 + $0x8] sm:$0xf]
    %v2556 = vld [vmem:[%s5 + $0xc] sm:$0xf]
    %v2557 = vpack.c.bf16 %v2508, %v2508
    %v2558 = vld [vmem:[%s5 + $0x10] sm:$0xf]
    %v2559 = vld [vmem:[%s5 + $0x14] sm:$0xf]
    %v2560 = vld [vmem:[%s5 + $0x18] sm:$0xf]
    %v2561 = vld [vmem:[%s5 + $0x1c] sm:$0xf]
    %v2562 = vpack.c.bf16 %v2552, %v2552
    %v2567 = vunpack.c.l.b16 %v2558
    %v2568 = vunpack.c.l.b16 %v2559
    %v2569 = vunpack.c.l.b16 %v2560
    %v2570 = vunpack.c.l.b16 %v2561
    %v2571 = vpack.c.b16 %v2568, %v2567
    %v2572 = vpack.c.b16 %v2570, %v2569
    %v2576 = vsel %vm200, %v2562, 0
    %2578 = vmatpush.bf16.msra.mxu0 0
    %2579 = vmatpush.bf16.msra.mxu0 0
    %2580 = vmatpush.bf16.msra.mxu0 0
    %2581 = vmatpush.bf16.msra.mxu0 0
    %2582 = vmatpush.bf16.msra.mxu0 0
    %2583 = vmatpush.bf16.msra.mxu0 0
    %2584 = vmatpush.bf16.msra.mxu0 %v2572
    %2585 = vmatpush.bf16.msra.mxu0 %v2571
    %2586 = vmatmul.bf16.gmra.mxu0 %v2576
    %v2587 = vpop.f32.mrf.mxu0
    %v2588 = vadd.f32 0.0, %v2587
    %v2589 = vpop.f32.mrf.mxu0
    %2590 = vdwg.mxu0
    %v2595 = vunpack.c.l.b16 %v2553
    %v2596 = vunpack.c.l.b16 %v2554
    %v2597 = vunpack.c.l.b16 %v2555
    %v2598 = vunpack.c.l.b16 %v2556
    %v2599 = vpack.c.b16 %v2596, %v2595
    %v2600 = vpack.c.b16 %v2598, %v2597
    %v2604 = vsel %vm200, %v2557, 0
    %2606 = vmatpush.bf16.msra.mxu0 0
    %2607 = vmatpush.bf16.msra.mxu0 0
    %2608 = vmatpush.bf16.msra.mxu0 0
    %2609 = vmatpush.bf16.msra.mxu0 0
    %2610 = vmatpush.bf16.msra.mxu0 0
    %2611 = vmatpush.bf16.msra.mxu0 0
    %2612 = vmatpush.bf16.msra.mxu0 %v2600
    %2613 = vmatpush.bf16.msra.mxu0 %v2599
    %2614 = vmatmul.bf16.gmra.mxu0 %v2604
    %v2615 = vpop.f32.mrf.mxu0
    %v2616 = vadd.f32 %v2588, %v2615
    %v2617 = vpop.f32.mrf.mxu0
    %2618 = vdwg.mxu0
    %v2619 = vld [vmem:[%s8] sm:$0x1]
    %v2620 = vadd.f32 %v2616, %v2619
    %2621 = vst [vmem:[#allocation3] sm:$0x1] %v2620
    %s2622 = scalar_lea.vmem %s0, 16
    %v2623 = vld [vmem:[%s2622] sm:$0xff]
    %v2624 = vld [vmem:[%s2622 + $0x8] sm:$0xff]
    %v2625 = vld [vmem:[%s4] sm:$0xf]
    %v2626 = vld [vmem:[%s4 + $0x4] sm:$0xf]
    %v2627 = vpack.c.bf16 %v2624, %v2623
    %v2628 = vld [vmem:[%s7] sm:$0x1]
    %v2629 = vperm.slane %v2628, 0
    %v2632 = vunpack.c.l.b16 %v2625
    %v2633 = vunpack.c.l.b16 %v2626
    %v2634 = vpack.c.b16 %v2633, %v2632
    %v2637 = vsel %vm50, %v2627, 0
    %2639 = vmatpush.bf16.msra.mxu0 0
    %2640 = vmatpush.bf16.msra.mxu0 0
    %2641 = vmatpush.bf16.msra.mxu0 0
    %2642 = vmatpush.bf16.msra.mxu0 0
    %2643 = vmatpush.bf16.msra.mxu0 0
    %2644 = vmatpush.bf16.msra.mxu0 0
    %2645 = vmatpush.bf16.msra.mxu0 0
    %2646 = vmatpush.bf16.msra.mxu0 %v2634
    %2647 = vmatmul.bf16.gmra.mxu0 %v2637
    %v2648 = vpop.f32.mrf.mxu0
    %v2649 = vadd.f32 %v2629, %v2648
    %v2650 = vpop.f32.mrf.mxu0
    %v2651 = vadd.f32 %v2629, %v2650
    %2652 = vdwg.mxu0
    %v2653 = vld [vmem:[%s7 + $0x8] sm:$0x1]
    %v2654 = vld [vmem:[%s7 + $0x10] sm:$0x1]
    %v2655 = vsel %vm70, %v2649, 0.0
    %2656 = vadd.xlane.f32.xlu0 %v2655
    %v2657 = vpop.xlane.xlu0 %2656
    %v2658 = vsel %vm70, %v2651, 0.0
    %2659 = vadd.xlane.f32.xlu0 %v2658
    %v2660 = vpop.xlane.xlu0 %2659
    %v2661 = vmul.f32 %v2657, %v83
    %v2662 = vmul.f32 %v2660, %v83
    %v2663 = vsub.f32 %v2649, %v2661
    %v2664 = vsub.f32 %v2651, %v2662
    %v2665 = vmul.f32 %v2663, %v2663
    %v2666 = vmul.f32 %v2664, %v2664
    %v2667 = vsel %vm70, %v2665, 0.0
    %2668 = vadd.xlane.f32.xlu0 %v2667
    %v2669 = vpop.xlane.xlu0 %2668
    %v2670 = vsel %vm70, %v2666, 0.0
    %2671 = vadd.xlane.f32.xlu0 %v2670
    %v2672 = vpop.xlane.xlu0 %2671
    %v2673 = vmul.f32 %v2669, %v83
    %v2674 = vmul.f32 %v2672, %v83
    %v2675 = vadd.f32 %v2673, 1e-05
    %v2676 = vadd.f32 %v2674, 1e-05
    %v2677 = vrsqrt.pop %v2675
    %v2678 = vmul.f32 %v2677, %v2675
    %v2679 = vmul.f32 %v2678, %v2677
    %v2680 = vmul.f32 0.5, %v2679
    %v2681 = vsub.f32 1.5, %v2680
    %v2682 = vmul.f32 %v2677, %v2681
    %vm2683 = vweird.f32 %v2675
    %vm2684 = vweird.f32 %v2677
    %vm2685 = vmor %vm2683, %vm2684
    %v2686 = vsel %vm2685, %v2677, %v2682
    %v2687 = vrsqrt.pop %v2676
    %v2688 = vmul.f32 %v2687, %v2676
    %v2689 = vmul.f32 %v2688, %v2687
    %v2690 = vmul.f32 0.5, %v2689
    %v2691 = vsub.f32 1.5, %v2690
    %v2692 = vmul.f32 %v2687, %v2691
    %vm2693 = vweird.f32 %v2676
    %vm2694 = vweird.f32 %v2687
    %vm2695 = vmor %vm2693, %vm2694
    %v2696 = vsel %vm2695, %v2687, %v2692
    %v2697 = vmul.f32 %v2663, %v2686
    %v2698 = vmul.f32 %v2664, %v2696
    %v2699 = vperm.slane %v2653, 0
    %v2700 = vmul.f32 %v2697, %v2699
    %v2701 = vmul.f32 %v2698, %v2699
    %v2702 = vperm.slane %v2654, 0
    %v2703 = vadd.f32 %v2700, %v2702
    %v2704 = vadd.f32 %v2701, %v2702
    %v2705 = vmul.f32 %v2703, 0.5
    %v2706 = vmul.f32 %v2704, 0.5
    %v2707 = vmul.f32 %v2703, 0.044715
    %v2708 = vmul.f32 %v2704, 0.044715
    %v2709 = vmul.f32 %v2707, %v2703
    %v2710 = vmul.f32 %v2708, %v2704
    %v2711 = vmul.f32 %v2709, %v2703
    %v2712 = vmul.f32 %v2710, %v2704
    %v2713 = vadd.f32 %v2703, %v2711
    %v2714 = vadd.f32 %v2704, %v2712
    %v2715 = vmul.f32 %v2713, 0.7978846
    %v2716 = vmul.f32 %v2714, 0.7978846
    %v2717 = vtanh.pop %v2715
    %v2718 = vtanh.pop %v2716
    %v2719 = vadd.f32 %v2717, 1.0
    %v2720 = vadd.f32 %v2718, 1.0
    %v2721 = vmul.f32 %v2705, %v2719
    %v2722 = vmul.f32 %v2706, %v2720
    %v2723 = vld [vmem:[%s3] sm:$0xf]
    %v2724 = vld [vmem:[%s3 + $0x4] sm:$0xf]
    %v2725 = vld [vmem:[%s3 + $0x8] sm:$0xf]
    %v2726 = vld [vmem:[%s3 + $0xc] sm:$0xf]
    %v2727 = vld [vmem:[%s3 + $0x10] sm:$0xf]
    %v2728 = vld [vmem:[%s3 + $0x14] sm:$0xf]
    %v2729 = vld [vmem:[%s3 + $0x18] sm:$0xf]
    %v2730 = vld [vmem:[%s3 + $0x1c] sm:$0xf]
    %v2731 = vpack.c.bf16 %v2722, %v2721
    %v2732 = vld [vmem:[%s6] sm:$0x1]
    %v2733 = vperm.slane %v2732, 0
    %v2742 = vunpack.c.l.b16 %v2723
    %v2743 = vunpack.c.l.b16 %v2724
    %v2744 = vunpack.c.l.b16 %v2725
    %v2745 = vunpack.c.l.b16 %v2726
    %v2746 = vunpack.c.l.b16 %v2727
    %v2747 = vunpack.c.l.b16 %v2728
    %v2748 = vunpack.c.l.b16 %v2729
    %v2749 = vunpack.c.l.b16 %v2730
    %v2750 = vpack.c.b16 %v2743, %v2742
    %v2751 = vpack.c.b16 %v2745, %v2744
    %v2752 = vpack.c.b16 %v2747, %v2746
    %v2753 = vpack.c.b16 %v2749, %v2748
    %v2759 = vsel %vm70, %v2731, 0
    %2761 = vmatpush.bf16.msra.mxu0 0
    %2762 = vmatpush.bf16.msra.mxu0 0
    %2763 = vmatpush.bf16.msra.mxu0 0
    %2764 = vmatpush.bf16.msra.mxu0 0
    %2765 = vmatpush.bf16.msra.mxu0 %v2753
    %2766 = vmatpush.bf16.msra.mxu0 %v2752
    %2767 = vmatpush.bf16.msra.mxu0 %v2751
    %2768 = vmatpush.bf16.msra.mxu0 %v2750
    %2769 = vmatmul.bf16.gmra.mxu0 %v2759
    %v2770 = vpop.f32.mrf.mxu0
    %v2771 = vadd.f32 %v2733, %v2770
    %v2772 = vpop.f32.mrf.mxu0
    %v2773 = vadd.f32 %v2733, %v2772
    %2774 = vdwg.mxu0
    %v2775 = vld [vmem:[%s6 + $0x8] sm:$0x1]
    %v2776 = vld [vmem:[%s6 + $0x10] sm:$0x1]
    %v2777 = vsel %vm200, %v2771, 0.0
    %2778 = vadd.xlane.f32.xlu0 %v2777
    %v2779 = vpop.xlane.xlu0 %2778
    %v2780 = vsel %vm200, %v2773, 0.0
    %2781 = vadd.xlane.f32.xlu0 %v2780
    %v2782 = vpop.xlane.xlu0 %2781
    %v2783 = vmul.f32 %v2779, %v213
    %v2784 = vmul.f32 %v2782, %v213
    %v2785 = vsub.f32 %v2771, %v2783
    %v2786 = vsub.f32 %v2773, %v2784
    %v2787 = vmul.f32 %v2785, %v2785
    %v2788 = vmul.f32 %v2786, %v2786
    %v2789 = vsel %vm200, %v2787, 0.0
    %2790 = vadd.xlane.f32.xlu0 %v2789
    %v2791 = vpop.xlane.xlu0 %2790
    %v2792 = vsel %vm200, %v2788, 0.0
    %2793 = vadd.xlane.f32.xlu0 %v2792
    %v2794 = vpop.xlane.xlu0 %2793
    %v2795 = vmul.f32 %v2791, %v213
    %v2796 = vmul.f32 %v2794, %v213
    %v2797 = vadd.f32 %v2795, 1e-05
    %v2798 = vadd.f32 %v2796, 1e-05
    %v2799 = vrsqrt.pop %v2797
    %v2800 = vmul.f32 %v2799, %v2797
    %v2801 = vmul.f32 %v2800, %v2799
    %v2802 = vmul.f32 0.5, %v2801
    %v2803 = vsub.f32 1.5, %v2802
    %v2804 = vmul.f32 %v2799, %v2803
    %vm2805 = vweird.f32 %v2797
    %vm2806 = vweird.f32 %v2799
    %vm2807 = vmor %vm2805, %vm2806
    %v2808 = vsel %vm2807, %v2799, %v2804
    %v2809 = vrsqrt.pop %v2798
    %v2810 = vmul.f32 %v2809, %v2798
    %v2811 = vmul.f32 %v2810, %v2809
    %v2812 = vmul.f32 0.5, %v2811
    %v2813 = vsub.f32 1.5, %v2812
    %v2814 = vmul.f32 %v2809, %v2813
    %vm2815 = vweird.f32 %v2798
    %vm2816 = vweird.f32 %v2809
    %vm2817 = vmor %vm2815, %vm2816
    %v2818 = vsel %vm2817, %v2809, %v2814
    %v2819 = vmul.f32 %v2785, %v2808
    %v2820 = vmul.f32 %v2786, %v2818
    %v2821 = vperm.slane %v2775, 0
    %v2822 = vmul.f32 %v2819, %v2821
    %v2823 = vmul.f32 %v2820, %v2821
    %v2824 = vperm.slane %v2776, 0
    %v2825 = vadd.f32 %v2822, %v2824
    %v2826 = vadd.f32 %v2823, %v2824
    %v2827 = vmul.f32 %v2825, 0.5
    %v2828 = vmul.f32 %v2826, 0.5
    %v2829 = vmul.f32 %v2825, 0.044715
    %v2830 = vmul.f32 %v2826, 0.044715
    %v2831 = vmul.f32 %v2829, %v2825
    %v2832 = vmul.f32 %v2830, %v2826
    %v2833 = vmul.f32 %v2831, %v2825
    %v2834 = vmul.f32 %v2832, %v2826
    %v2835 = vadd.f32 %v2825, %v2833
    %v2836 = vadd.f32 %v2826, %v2834
    %v2837 = vmul.f32 %v2835, 0.7978846
    %v2838 = vmul.f32 %v2836, 0.7978846
    %v2839 = vtanh.pop %v2837
    %v2840 = vtanh.pop %v2838
    %v2841 = vadd.f32 %v2839, 1.0
    %v2842 = vadd.f32 %v2840, 1.0
    %v2843 = vmul.f32 %v2827, %v2841
    %v2844 = vmul.f32 %v2828, %v2842
    %v2845 = vadd.f32 %v2843, %v34
    %v2846 = vadd.f32 %v2844, %v35
    %2847 = vst.msk [vmem:[#allocation2] sm:$0xff] %vm200, %v2845
    %2848 = vst.msk [vmem:[#allocation2 + $0x8] sm:$0xff] %vm200, %v2846
    %2849 = vst.msk [vmem:[#allocation2 + $0x10] sm:$0x1] %vm280, %v36
    %v2850 = vld [vmem:[#allocation2] sm:$0xff]
    %v2851 = vld [vmem:[#allocation2 + $0x8] sm:$0xff]
    %v2852 = vld [vmem:[#allocation2 + $0x10] sm:$0x1]
    %v2853 = vld [vmem:[%s3 + $0x20] sm:$0xf]
    %v2854 = vld [vmem:[%s3 + $0x24] sm:$0xf]
    %v2855 = vld [vmem:[%s3 + $0x28] sm:$0xf]
    %v2856 = vld [vmem:[%s3 + $0x2c] sm:$0xf]
    %v2857 = vpack.c.bf16 %v2851, %v2850
    %v2858 = vpack.c.bf16 %v2852, %v2852
    %v2859 = vld [vmem:[%s6 + $0x30] sm:$0x1]
    %v2860 = vperm.slane %v2859, 0
    %v2865 = vunpack.c.l.b16 %v2853
    %v2866 = vunpack.c.l.b16 %v2854
    %v2867 = vunpack.c.l.b16 %v2855
    %v2868 = vunpack.c.l.b16 %v2856
    %v2869 = vpack.c.b16 %v2866, %v2865
    %v2870 = vpack.c.b16 %v2868, %v2867
    %v2874 = vsel %vm200, %v2857, 0
    %v2877 = vsel %vm200, %v2858, 0
    %2879 = vmatpush.bf16.msra.mxu0 0
    %2880 = vmatpush.bf16.msra.mxu0 0
    %2881 = vmatpush.bf16.msra.mxu0 0
    %2882 = vmatpush.bf16.msra.mxu0 0
    %2883 = vmatpush.bf16.msra.mxu0 0
    %2884 = vmatpush.bf16.msra.mxu0 0
    %2885 = vmatpush.bf16.msra.mxu0 %v2870
    %2886 = vmatpush.bf16.msra.mxu0 %v2869
    %2887 = vmatmul.bf16.gmra.mxu0 %v2874
    %v2888 = vpop.f32.mrf.mxu0
    %v2889 = vadd.f32 %v2860, %v2888
    %v2890 = vpop.f32.mrf.mxu0
    %v2891 = vadd.f32 %v2860, %v2890
    %2892 = vmatmul.bf16.gmra.mxu0 %v2877
    %v2893 = vpop.f32.mrf.mxu0
    %v2894 = vadd.f32 %v2860, %v2893
    %v2895 = vpop.f32.mrf.mxu0
    %2896 = vdwg.mxu0
    %v2897 = vld [vmem:[%s3 + $0x30] sm:$0xf]
    %v2898 = vld [vmem:[%s3 + $0x34] sm:$0xf]
    %v2899 = vld [vmem:[%s3 + $0x38] sm:$0xf]
    %v2900 = vld [vmem:[%s3 + $0x3c] sm:$0xf]
    %v2901 = vld [vmem:[%s6 + $0x38] sm:$0x1]
    %v2902 = vperm.slane %v2901, 0
    %v2907 = vunpack.c.l.b16 %v2897
    %v2908 = vunpack.c.l.b16 %v2898
    %v2909 = vunpack.c.l.b16 %v2899
    %v2910 = vunpack.c.l.b16 %v2900
    %v2911 = vpack.c.b16 %v2908, %v2907
    %v2912 = vpack.c.b16 %v2910, %v2909
    %2915 = vmatpush.bf16.msra.mxu0 0
    %2916 = vmatpush.bf16.msra.mxu0 0
    %2917 = vmatpush.bf16.msra.mxu0 0
    %2918 = vmatpush.bf16.msra.mxu0 0
    %2919 = vmatpush.bf16.msra.mxu0 0
    %2920 = vmatpush.bf16.msra.mxu0 0
    %2921 = vmatpush.bf16.msra.mxu0 %v2912
    %2922 = vmatpush.bf16.msra.mxu0 %v2911
    %2923 = vmatmul.bf16.gmra.mxu0 %v2874
    %v2924 = vpop.f32.mrf.mxu0
    %v2925 = vadd.f32 %v2902, %v2924
    %v2926 = vpop.f32.mrf.mxu0
    %v2927 = vadd.f32 %v2902, %v2926
    %2928 = vmatmul.bf16.gmra.mxu0 %v2877
    %v2929 = vpop.f32.mrf.mxu0
    %v2930 = vadd.f32 %v2902, %v2929
    %v2931 = vpop.f32.mrf.mxu0
    %2932 = vdwg.mxu0
    %v2933 = vpack.c.bf16 %v2891, %v2889
    %v2934 = vpack.c.bf16 %v2894, %v2894
    %v2935 = vpack.c.bf16 %v2927, %v2925
    %v2936 = vpack.c.bf16 %v2930, %v2930
    %v2938 = vsel %vm200, %v2933, 0
    %v2941 = vsel %vm200, %v2934, 0
    %v2944 = vsel %vm200, %v2935, 0
    %v2947 = vsel %vm200, %v2936, 0
    %2949 = vmatpush.bf16.xpose.msra.mxu0 0
    %2950 = vmatpush.bf16.xpose.msra.mxu0 0
    %2951 = vmatpush.bf16.xpose.msra.mxu0 0
    %2952 = vmatpush.bf16.xpose.msra.mxu0 0
    %2953 = vmatpush.bf16.xpose.msra.mxu0 0
    %2954 = vmatpush.bf16.xpose.msra.mxu0 0
    %2955 = vmatpush.bf16.xpose.msra.mxu0 %v2947
    %2956 = vmatpush.bf16.xpose.msra.mxu0 %v2944
    %2957 = vmatmul.bf16.gmra.mxu0 %v2938
    %v2958 = vpop.f32.mrf.mxu0
    %v2959 = vadd.f32 0.0, %v2958
    %v2960 = vpop.f32.mrf.mxu0
    %v2961 = vadd.f32 0.0, %v2960
    %2962 = vmatmul.bf16.gmra.mxu0 %v2941
    %v2963 = vpop.f32.mrf.mxu0
    %v2964 = vadd.f32 0.0, %v2963
    %v2965 = vpop.f32.mrf.mxu0
    %2966 = vdwg.mxu0
    %v2967 = vsel %vm399, %v2959, -inf
    %2968 = vmax.xlane.f32.xlu0 %v2967
    %v2969 = vpop.xlane.xlu0 %2968
    %v2970 = vsel %vm399, %v2961, -inf
    %2971 = vmax.xlane.f32.xlu0 %v2970
    %v2972 = vpop.xlane.xlu0 %2971
    %v2973 = vsel %vm406, %v2964, -inf
    %2974 = vmax.xlane.f32.xlu0 %v2973
    %v2975 = vpop.xlane.xlu0 %2974
    %v2976 = vsub.f32 %v2959, %v2969
    %v2977 = vsub.f32 %v2961, %v2972
    %v2978 = vsub.f32 %v2964, %v2975
    %v2979 = vmul.f32 %v2976, 1.442695
    %v2980 = vpow.pop %v2979
    %v2981 = vmul.f32 %v2977, 1.442695
    %v2982 = vpow.pop %v2981
    %v2983 = vmul.f32 %v2978, 1.442695
    %v2984 = vpow.pop %v2983
    %v2985 = vsel %vm399, %v2980, 0.0
    %2986 = vadd.xlane.f32.xlu0 %v2985
    %v2987 = vpop.xlane.xlu0 %2986
    %v2988 = vsel %vm399, %v2982, 0.0
    %2989 = vadd.xlane.f32.xlu0 %v2988
    %v2990 = vpop.xlane.xlu0 %2989
    %v2991 = vsel %vm406, %v2984, 0.0
    %2992 = vadd.xlane.f32.xlu0 %v2991
    %v2993 = vpop.xlane.xlu0 %2992
    %v2994 = vrcp.pop %v2987
    %v2995 = vrcp.pop %v2990
    %v2996 = vrcp.pop %v2993
    %v2997 = vmul.f32 %v2980, %v2994
    %v2998 = vmul.f32 %v2982, %v2995
    %v2999 = vmul.f32 %v2984, %v2996
    %v3000 = vld [vmem:[%s3 + $0x40] sm:$0xf]
    %v3001 = vld [vmem:[%s3 + $0x44] sm:$0xf]
    %v3002 = vld [vmem:[%s3 + $0x48] sm:$0xf]
    %v3003 = vld [vmem:[%s3 + $0x4c] sm:$0xf]
    %v3008 = vunpack.c.l.b16 %v3000
    %v3009 = vunpack.c.l.b16 %v3001
    %v3010 = vunpack.c.l.b16 %v3002
    %v3011 = vunpack.c.l.b16 %v3003
    %v3012 = vpack.c.b16 %v3009, %v3008
    %v3013 = vpack.c.b16 %v3011, %v3010
    %3016 = vmatpush.bf16.msra.mxu0 0
    %3017 = vmatpush.bf16.msra.mxu0 0
    %3018 = vmatpush.bf16.msra.mxu0 0
    %3019 = vmatpush.bf16.msra.mxu0 0
    %3020 = vmatpush.bf16.msra.mxu0 0
    %3021 = vmatpush.bf16.msra.mxu0 0
    %3022 = vmatpush.bf16.msra.mxu0 %v3013
    %3023 = vmatpush.bf16.msra.mxu0 %v3012
    %3024 = vmatmul.bf16.gmra.mxu0 %v2874
    %v3025 = vpop.f32.mrf.mxu0
    %v3026 = vadd.f32 0.0, %v3025
    %v3027 = vpop.f32.mrf.mxu0
    %v3028 = vadd.f32 0.0, %v3027
    %3029 = vmatmul.bf16.gmra.mxu0 %v2877
    %v3030 = vpop.f32.mrf.mxu0
    %v3031 = vadd.f32 0.0, %v3030
    %v3032 = vpop.f32.mrf.mxu0
    %3033 = vdwg.mxu0
    %v3034 = vpack.c.bf16 %v2998, %v2997
    %v3035 = vpack.c.bf16 %v2999, %v2999
    %v3036 = vpack.c.bf16 %v3028, %v3026
    %v3037 = vpack.c.bf16 %v3031, %v3031
    %v3038 = vld [vmem:[%s3 + $0x50] sm:$0xf]
    %v3039 = vld [vmem:[%s3 + $0x54] sm:$0xf]
    %v3040 = vld [vmem:[%s3 + $0x58] sm:$0xf]
    %v3041 = vld [vmem:[%s3 + $0x5c] sm:$0xf]
    %v3042 = vld [vmem:[%s6 + $0x40] sm:$0x1]
    %v3043 = vperm.slane %v3042, 0
    %v3048 = vunpack.c.l.b16 %v3038
    %v3049 = vunpack.c.l.b16 %v3039
    %v3050 = vunpack.c.l.b16 %v3040
    %v3051 = vunpack.c.l.b16 %v3041
    %v3052 = vpack.c.b16 %v3049, %v3048
    %v3053 = vpack.c.b16 %v3051, %v3050
    %3056 = vmatpush.bf16.msra.mxu0 0
    %3057 = vmatpush.bf16.msra.mxu0 0
    %3058 = vmatpush.bf16.msra.mxu0 0
    %3059 = vmatpush.bf16.msra.mxu0 0
    %3060 = vmatpush.bf16.msra.mxu0 0
    %3061 = vmatpush.bf16.msra.mxu0 0
    %3062 = vmatpush.bf16.msra.mxu0 %v3053
    %3063 = vmatpush.bf16.msra.mxu0 %v3052
    %3064 = vmatmul.bf16.gmra.mxu0 %v2874
    %v3065 = vpop.f32.mrf.mxu0
    %v3066 = vadd.f32 %v3043, %v3065
    %v3067 = vpop.f32.mrf.mxu0
    %v3068 = vadd.f32 %v3043, %v3067
    %3069 = vmatmul.bf16.gmra.mxu0 %v2877
    %v3070 = vpop.f32.mrf.mxu0
    %v3071 = vadd.f32 %v3043, %v3070
    %v3072 = vpop.f32.mrf.mxu0
    %3073 = vdwg.mxu0
    %v3074 = vld [vmem:[%s3 + $0x60] sm:$0xf]
    %v3075 = vld [vmem:[%s3 + $0x64] sm:$0xf]
    %v3076 = vld [vmem:[%s3 + $0x68] sm:$0xf]
    %v3077 = vld [vmem:[%s3 + $0x6c] sm:$0xf]
    %v3078 = vld [vmem:[%s6 + $0x48] sm:$0x1]
    %v3079 = vperm.slane %v3078, 0
    %v3084 = vunpack.c.l.b16 %v3074
    %v3085 = vunpack.c.l.b16 %v3075
    %v3086 = vunpack.c.l.b16 %v3076
    %v3087 = vunpack.c.l.b16 %v3077
    %v3088 = vpack.c.b16 %v3085, %v3084
    %v3089 = vpack.c.b16 %v3087, %v3086
    %3092 = vmatpush.bf16.msra.mxu0 0
    %3093 = vmatpush.bf16.msra.mxu0 0
    %3094 = vmatpush.bf16.msra.mxu0 0
    %3095 = vmatpush.bf16.msra.mxu0 0
    %3096 = vmatpush.bf16.msra.mxu0 0
    %3097 = vmatpush.bf16.msra.mxu0 0
    %3098 = vmatpush.bf16.msra.mxu0 %v3089
    %3099 = vmatpush.bf16.msra.mxu0 %v3088
    %3100 = vmatmul.bf16.gmra.mxu0 %v2874
    %v3101 = vpop.f32.mrf.mxu0
    %v3102 = vadd.f32 %v3079, %v3101
    %v3103 = vpop.f32.mrf.mxu0
    %v3104 = vadd.f32 %v3079, %v3103
    %3105 = vmatmul.bf16.gmra.mxu0 %v2877
    %v3106 = vpop.f32.mrf.mxu0
    %v3107 = vadd.f32 %v3079, %v3106
    %v3108 = vpop.f32.mrf.mxu0
    %3109 = vdwg.mxu0
    %v3110 = vpack.c.bf16 %v3068, %v3066
    %v3111 = vpack.c.bf16 %v3071, %v3071
    %v3112 = vpack.c.bf16 %v3104, %v3102
    %v3113 = vpack.c.bf16 %v3107, %v3107
    %v3115 = vsel %vm200, %v3110, 0
    %v3118 = vsel %vm200, %v3111, 0
    %v3121 = vsel %vm200, %v3112, 0
    %v3124 = vsel %vm200, %v3113, 0
    %3126 = vmatpush.bf16.xpose.msra.mxu0 0
    %3127 = vmatpush.bf16.xpose.msra.mxu0 0
    %3128 = vmatpush.bf16.xpose.msra.mxu0 0
    %3129 = vmatpush.bf16.xpose.msra.mxu0 0
    %3130 = vmatpush.bf16.xpose.msra.mxu0 0
    %3131 = vmatpush.bf16.xpose.msra.mxu0 0
    %3132 = vmatpush.bf16.xpose.msra.mxu0 %v3124
    %3133 = vmatpush.bf16.xpose.msra.mxu0 %v3121
    %3134 = vmatmul.bf16.gmra.mxu0 %v3115
    %v3135 = vpop.f32.mrf.mxu0
    %v3136 = vadd.f32 0.0, %v3135
    %v3137 = vpop.f32.mrf.mxu0
    %v3138 = vadd.f32 0.0, %v3137
    %3139 = vmatmul.bf16.gmra.mxu0 %v3118
    %v3140 = vpop.f32.mrf.mxu0
    %v3141 = vadd.f32 0.0, %v3140
    %v3142 = vpop.f32.mrf.mxu0
    %3143 = vdwg.mxu0
    %v3144 = vsel %vm399, %v3136, -inf
    %3145 = vmax.xlane.f32.xlu0 %v3144
    %v3146 = vpop.xlane.xlu0 %3145
    %v3147 = vsel %vm399, %v3138, -inf
    %3148 = vmax.xlane.f32.xlu0 %v3147
    %v3149 = vpop.xlane.xlu0 %3148
    %v3150 = vsel %vm406, %v3141, -inf
    %3151 = vmax.xlane.f32.xlu0 %v3150
    %v3152 = vpop.xlane.xlu0 %3151
    %v3153 = vsub.f32 %v3136, %v3146
    %v3154 = vsub.f32 %v3138, %v3149
    %v3155 = vsub.f32 %v3141, %v3152
    %v3156 = vmul.f32 %v3153, 1.442695
    %v3157 = vpow.pop %v3156
    %v3158 = vmul.f32 %v3154, 1.442695
    %v3159 = vpow.pop %v3158
    %v3160 = vmul.f32 %v3155, 1.442695
    %v3161 = vpow.pop %v3160
    %v3162 = vsel %vm399, %v3157, 0.0
    %3163 = vadd.xlane.f32.xlu0 %v3162
    %v3164 = vpop.xlane.xlu0 %3163
    %v3165 = vsel %vm399, %v3159, 0.0
    %3166 = vadd.xlane.f32.xlu0 %v3165
    %v3167 = vpop.xlane.xlu0 %3166
    %v3168 = vsel %vm406, %v3161, 0.0
    %3169 = vadd.xlane.f32.xlu0 %v3168
    %v3170 = vpop.xlane.xlu0 %3169
    %v3171 = vrcp.pop %v3164
    %v3172 = vrcp.pop %v3167
    %v3173 = vrcp.pop %v3170
    %v3174 = vmul.f32 %v3157, %v3171
    %v3175 = vmul.f32 %v3159, %v3172
    %v3176 = vmul.f32 %v3161, %v3173
    %v3177 = vld [vmem:[%s3 + $0x70] sm:$0xf]
    %v3178 = vld [vmem:[%s3 + $0x74] sm:$0xf]
    %v3179 = vld [vmem:[%s3 + $0x78] sm:$0xf]
    %v3180 = vld [vmem:[%s3 + $0x7c] sm:$0xf]
    %v3185 = vunpack.c.l.b16 %v3177
    %v3186 = vunpack.c.l.b16 %v3178
    %v3187 = vunpack.c.l.b16 %v3179
    %v3188 = vunpack.c.l.b16 %v3180
    %v3189 = vpack.c.b16 %v3186, %v3185
    %v3190 = vpack.c.b16 %v3188, %v3187
    %3193 = vmatpush.bf16.msra.mxu0 0
    %3194 = vmatpush.bf16.msra.mxu0 0
    %3195 = vmatpush.bf16.msra.mxu0 0
    %3196 = vmatpush.bf16.msra.mxu0 0
    %3197 = vmatpush.bf16.msra.mxu0 0
    %3198 = vmatpush.bf16.msra.mxu0 0
    %3199 = vmatpush.bf16.msra.mxu0 %v3190
    %3200 = vmatpush.bf16.msra.mxu0 %v3189
    %3201 = vmatmul.bf16.gmra.mxu0 %v2874
    %v3202 = vpop.f32.mrf.mxu0
    %v3203 = vadd.f32 0.0, %v3202
    %v3204 = vpop.f32.mrf.mxu0
    %v3205 = vadd.f32 0.0, %v3204
    %3206 = vmatmul.bf16.gmra.mxu0 %v2877
    %v3207 = vpop.f32.mrf.mxu0
    %v3208 = vadd.f32 0.0, %v3207
    %v3209 = vpop.f32.mrf.mxu0
    %3210 = vdwg.mxu0
    %v3211 = vpack.c.bf16 %v3175, %v3174
    %v3212 = vpack.c.bf16 %v3176, %v3176
    %v3213 = vpack.c.bf16 %v3205, %v3203
    %v3214 = vpack.c.bf16 %v3208, %v3208
    %v3216 = vsel %vm399, %v3211, 0
    %v3219 = vsel %vm399, %v3212, 0
    %v3222 = vand.u32 %v3214, %v657
    %3224 = vmatpush.bf16.msra.mxu0 0
    %3225 = vmatpush.bf16.msra.mxu0 0
    %3226 = vmatpush.bf16.msra.mxu0 0
    %3227 = vmatpush.bf16.msra.mxu0 0
    %3228 = vmatpush.bf16.msra.mxu0 0
    %3229 = vmatpush.bf16.msra.mxu0 0
    %3230 = vmatpush.bf16.msra.mxu0 %v3222
    %3231 = vmatpush.bf16.msra.mxu0 %v3213
    %3232 = vmatmul.bf16.gmra.mxu0 %v3216
    %v3233 = vpop.f32.mrf.mxu0
    %v3234 = vadd.f32 0.0, %v3233
    %v3235 = vpop.f32.mrf.mxu0
    %v3236 = vadd.f32 0.0, %v3235
    %3237 = vmatmul.bf16.gmra.mxu0 %v3219
    %v3238 = vpop.f32.mrf.mxu0
    %v3239 = vadd.f32 0.0, %v3238
    %v3240 = vpop.f32.mrf.mxu0
    %3241 = vdwg.mxu0
    %v3243 = vsel %vm399, %v3034, 0
    %v3246 = vsel %vm399, %v3035, 0
    %v3249 = vand.u32 %v3037, %v657
    %3251 = vmatpush.bf16.msra.mxu0 0
    %3252 = vmatpush.bf16.msra.mxu0 0
    %3253 = vmatpush.bf16.msra.mxu0 0
    %3254 = vmatpush.bf16.msra.mxu0 0
    %3255 = vmatpush.bf16.msra.mxu0 0
    %3256 = vmatpush.bf16.msra.mxu0 0
    %3257 = vmatpush.bf16.msra.mxu0 %v3249
    %3258 = vmatpush.bf16.msra.mxu0 %v3036
    %3259 = vmatmul.bf16.gmra.mxu0 %v3243
    %v3260 = vpop.f32.mrf.mxu0
    %v3261 = vadd.f32 %v3234, %v3260
    %v3262 = vpop.f32.mrf.mxu0
    %v3263 = vadd.f32 %v3236, %v3262
    %3264 = vmatmul.bf16.gmra.mxu0 %v3246
    %v3265 = vpop.f32.mrf.mxu0
    %v3266 = vadd.f32 %v3239, %v3265
    %v3267 = vpop.f32.mrf.mxu0
    %3268 = vdwg.mxu0
    %v3269 = vld [vmem:[%s3 + $0x80] sm:$0xf]
    %v3270 = vld [vmem:[%s3 + $0x84] sm:$0xf]
    %v3271 = vld [vmem:[%s3 + $0x88] sm:$0xf]
    %v3272 = vld [vmem:[%s3 + $0x8c] sm:$0xf]
    %v3273 = vld [vmem:[%s6 + $0x50] sm:$0x1]
    %v3274 = vperm.slane %v3273, 0
    %v3279 = vunpack.c.l.b16 %v3269
    %v3280 = vunpack.c.l.b16 %v3270
    %v3281 = vunpack.c.l.b16 %v3271
    %v3282 = vunpack.c.l.b16 %v3272
    %v3283 = vpack.c.b16 %v3280, %v3279
    %v3284 = vpack.c.b16 %v3282, %v3281
    %3287 = vmatpush.bf16.msra.mxu0 0
    %3288 = vmatpush.bf16.msra.mxu0 0
    %3289 = vmatpush.bf16.msra.mxu0 0
    %3290 = vmatpush.bf16.msra.mxu0 0
    %3291 = vmatpush.bf16.msra.mxu0 0
    %3292 = vmatpush.bf16.msra.mxu0 0
    %3293 = vmatpush.bf16.msra.mxu0 %v3284
    %3294 = vmatpush.bf16.msra.mxu0 %v3283
    %3295 = vmatmul.bf16.gmra.mxu0 %v2874
    %v3296 = vpop.f32.mrf.mxu0
    %v3297 = vadd.f32 %v3274, %v3296
    %v3298 = vpop.f32.mrf.mxu0
    %v3299 = vadd.f32 %v3274, %v3298
    %3300 = vmatmul.bf16.gmra.mxu0 %v2877
    %v3301 = vpop.f32.mrf.mxu0
    %v3302 = vadd.f32 %v3274, %v3301
    %v3303 = vpop.f32.mrf.mxu0
    %3304 = vdwg.mxu0
    %v3305 = vld [vmem:[%s3 + $0x90] sm:$0xf]
    %v3306 = vld [vmem:[%s3 + $0x94] sm:$0xf]
    %v3307 = vld [vmem:[%s3 + $0x98] sm:$0xf]
    %v3308 = vld [vmem:[%s3 + $0x9c] sm:$0xf]
    %v3309 = vld [vmem:[%s6 + $0x58] sm:$0x1]
    %v3310 = vperm.slane %v3309, 0
    %v3315 = vunpack.c.l.b16 %v3305
    %v3316 = vunpack.c.l.b16 %v3306
    %v3317 = vunpack.c.l.b16 %v3307
    %v3318 = vunpack.c.l.b16 %v3308
    %v3319 = vpack.c.b16 %v3316, %v3315
    %v3320 = vpack.c.b16 %v3318, %v3317
    %3323 = vmatpush.bf16.msra.mxu0 0
    %3324 = vmatpush.bf16.msra.mxu0 0
    %3325 = vmatpush.bf16.msra.mxu0 0
    %3326 = vmatpush.bf16.msra.mxu0 0
    %3327 = vmatpush.bf16.msra.mxu0 0
    %3328 = vmatpush.bf16.msra.mxu0 0
    %3329 = vmatpush.bf16.msra.mxu0 %v3320
    %3330 = vmatpush.bf16.msra.mxu0 %v3319
    %3331 = vmatmul.bf16.gmra.mxu0 %v2874
    %v3332 = vpop.f32.mrf.mxu0
    %v3333 = vadd.f32 %v3310, %v3332
    %v3334 = vpop.f32.mrf.mxu0
    %v3335 = vadd.f32 %v3310, %v3334
    %3336 = vmatmul.bf16.gmra.mxu0 %v2877
    %v3337 = vpop.f32.mrf.mxu0
    %v3338 = vadd.f32 %v3310, %v3337
    %v3339 = vpop.f32.mrf.mxu0
    %3340 = vdwg.mxu0
    %v3341 = vpack.c.bf16 %v3299, %v3297
    %v3342 = vpack.c.bf16 %v3302, %v3302
    %v3343 = vpack.c.bf16 %v3335, %v3333
    %v3344 = vpack.c.bf16 %v3338, %v3338
    %v3346 = vsel %vm200, %v3341, 0
    %v3349 = vsel %vm200, %v3342, 0
    %v3352 = vsel %vm200, %v3343, 0
    %v3355 = vsel %vm200, %v3344, 0
    %3357 = vmatpush.bf16.xpose.msra.mxu0 0
    %3358 = vmatpush.bf16.xpose.msra.mxu0 0
    %3359 = vmatpush.bf16.xpose.msra.mxu0 0
    %3360 = vmatpush.bf16.xpose.msra.mxu0 0
    %3361 = vmatpush.bf16.xpose.msra.mxu0 0
    %3362 = vmatpush.bf16.xpose.msra.mxu0 0
    %3363 = vmatpush.bf16.xpose.msra.mxu0 %v3355
    %3364 = vmatpush.bf16.xpose.msra.mxu0 %v3352
    %3365 = vmatmul.bf16.gmra.mxu0 %v3346
    %v3366 = vpop.f32.mrf.mxu0
    %v3367 = vadd.f32 0.0, %v3366
    %v3368 = vpop.f32.mrf.mxu0
    %v3369 = vadd.f32 0.0, %v3368
    %3370 = vmatmul.bf16.gmra.mxu0 %v3349
    %v3371 = vpop.f32.mrf.mxu0
    %v3372 = vadd.f32 0.0, %v3371
    %v3373 = vpop.f32.mrf.mxu0
    %3374 = vdwg.mxu0
    %v3375 = vsel %vm399, %v3367, -inf
    %3376 = vmax.xlane.f32.xlu0 %v3375
    %v3377 = vpop.xlane.xlu0 %3376
    %v3378 = vsel %vm399, %v3369, -inf
    %3379 = vmax.xlane.f32.xlu0 %v3378
    %v3380 = vpop.xlane.xlu0 %3379
    %v3381 = vsel %vm406, %v3372, -inf
    %3382 = vmax.xlane.f32.xlu0 %v3381
    %v3383 = vpop.xlane.xlu0 %3382
    %v3384 = vsub.f32 %v3367, %v3377
    %v3385 = vsub.f32 %v3369, %v3380
    %v3386 = vsub.f32 %v3372, %v3383
    %v3387 = vmul.f32 %v3384, 1.442695
    %v3388 = vpow.pop %v3387
    %v3389 = vmul.f32 %v3385, 1.442695
    %v3390 = vpow.pop %v3389
    %v3391 = vmul.f32 %v3386, 1.442695
    %v3392 = vpow.pop %v3391
    %v3393 = vsel %vm399, %v3388, 0.0
    %3394 = vadd.xlane.f32.xlu0 %v3393
    %v3395 = vpop.xlane.xlu0 %3394
    %v3396 = vsel %vm399, %v3390, 0.0
    %3397 = vadd.xlane.f32.xlu0 %v3396
    %v3398 = vpop.xlane.xlu0 %3397
    %v3399 = vsel %vm406, %v3392, 0.0
    %3400 = vadd.xlane.f32.xlu0 %v3399
    %v3401 = vpop.xlane.xlu0 %3400
    %v3402 = vrcp.pop %v3395
    %v3403 = vrcp.pop %v3398
    %v3404 = vrcp.pop %v3401
    %v3405 = vmul.f32 %v3388, %v3402
    %v3406 = vmul.f32 %v3390, %v3403
    %v3407 = vmul.f32 %v3392, %v3404
    %v3408 = vld [vmem:[%s3 + $0xa0] sm:$0xf]
    %v3409 = vld [vmem:[%s3 + $0xa4] sm:$0xf]
    %v3410 = vld [vmem:[%s3 + $0xa8] sm:$0xf]
    %v3411 = vld [vmem:[%s3 + $0xac] sm:$0xf]
    %v3416 = vunpack.c.l.b16 %v3408
    %v3417 = vunpack.c.l.b16 %v3409
    %v3418 = vunpack.c.l.b16 %v3410
    %v3419 = vunpack.c.l.b16 %v3411
    %v3420 = vpack.c.b16 %v3417, %v3416
    %v3421 = vpack.c.b16 %v3419, %v3418
    %3424 = vmatpush.bf16.msra.mxu0 0
    %3425 = vmatpush.bf16.msra.mxu0 0
    %3426 = vmatpush.bf16.msra.mxu0 0
    %3427 = vmatpush.bf16.msra.mxu0 0
    %3428 = vmatpush.bf16.msra.mxu0 0
    %3429 = vmatpush.bf16.msra.mxu0 0
    %3430 = vmatpush.bf16.msra.mxu0 %v3421
    %3431 = vmatpush.bf16.msra.mxu0 %v3420
    %3432 = vmatmul.bf16.gmra.mxu0 %v2874
    %v3433 = vpop.f32.mrf.mxu0
    %v3434 = vadd.f32 0.0, %v3433
    %v3435 = vpop.f32.mrf.mxu0
    %v3436 = vadd.f32 0.0, %v3435
    %3437 = vmatmul.bf16.gmra.mxu0 %v2877
    %v3438 = vpop.f32.mrf.mxu0
    %v3439 = vadd.f32 0.0, %v3438
    %v3440 = vpop.f32.mrf.mxu0
    %3441 = vdwg.mxu0
    %v3442 = vpack.c.bf16 %v3406, %v3405
    %v3443 = vpack.c.bf16 %v3407, %v3407
    %v3444 = vpack.c.bf16 %v3436, %v3434
    %v3445 = vpack.c.bf16 %v3439, %v3439
    %v3447 = vsel %vm399, %v3442, 0
    %v3450 = vsel %vm399, %v3443, 0
    %v3453 = vand.u32 %v3445, %v657
    %3455 = vmatpush.bf16.msra.mxu0 0
    %3456 = vmatpush.bf16.msra.mxu0 0
    %3457 = vmatpush.bf16.msra.mxu0 0
    %3458 = vmatpush.bf16.msra.mxu0 0
    %3459 = vmatpush.bf16.msra.mxu0 0
    %3460 = vmatpush.bf16.msra.mxu0 0
    %3461 = vmatpush.bf16.msra.mxu0 %v3453
    %3462 = vmatpush.bf16.msra.mxu0 %v3444
    %3463 = vmatmul.bf16.gmra.mxu0 %v3447
    %v3464 = vpop.f32.mrf.mxu0
    %v3465 = vadd.f32 0.0, %v3464
    %v3466 = vpop.f32.mrf.mxu0
    %v3467 = vadd.f32 0.0, %v3466
    %3468 = vmatmul.bf16.gmra.mxu0 %v3450
    %v3469 = vpop.f32.mrf.mxu0
    %v3470 = vadd.f32 0.0, %v3469
    %v3471 = vpop.f32.mrf.mxu0
    %3472 = vdwg.mxu0
    %v3473 = vadd.f32 %v3261, %v3465
    %v3474 = vadd.f32 %v3263, %v3467
    %v3475 = vadd.f32 %v3266, %v3470
    %v3476 = vld [vmem:[%s3 + $0xb0] sm:$0xf]
    %v3477 = vld [vmem:[%s3 + $0xb4] sm:$0xf]
    %v3478 = vld [vmem:[%s3 + $0xb8] sm:$0xf]
    %v3479 = vld [vmem:[%s3 + $0xbc] sm:$0xf]
    %v3480 = vld [vmem:[%s6 + $0x60] sm:$0x1]
    %v3481 = vperm.slane %v3480, 0
    %v3486 = vunpack.c.l.b16 %v3476
    %v3487 = vunpack.c.l.b16 %v3477
    %v3488 = vunpack.c.l.b16 %v3478
    %v3489 = vunpack.c.l.b16 %v3479
    %v3490 = vpack.c.b16 %v3487, %v3486
    %v3491 = vpack.c.b16 %v3489, %v3488
    %3494 = vmatpush.bf16.msra.mxu0 0
    %3495 = vmatpush.bf16.msra.mxu0 0
    %3496 = vmatpush.bf16.msra.mxu0 0
    %3497 = vmatpush.bf16.msra.mxu0 0
    %3498 = vmatpush.bf16.msra.mxu0 0
    %3499 = vmatpush.bf16.msra.mxu0 0
    %3500 = vmatpush.bf16.msra.mxu0 %v3491
    %3501 = vmatpush.bf16.msra.mxu0 %v3490
    %3502 = vmatmul.bf16.gmra.mxu0 %v2874
    %v3503 = vpop.f32.mrf.mxu0
    %v3504 = vadd.f32 %v3481, %v3503
    %v3505 = vpop.f32.mrf.mxu0
    %v3506 = vadd.f32 %v3481, %v3505
    %3507 = vmatmul.bf16.gmra.mxu0 %v2877
    %v3508 = vpop.f32.mrf.mxu0
    %v3509 = vadd.f32 %v3481, %v3508
    %v3510 = vpop.f32.mrf.mxu0
    %3511 = vdwg.mxu0
    %v3512 = vld [vmem:[%s3 + $0xc0] sm:$0xf]
    %v3513 = vld [vmem:[%s3 + $0xc4] sm:$0xf]
    %v3514 = vld [vmem:[%s3 + $0xc8] sm:$0xf]
    %v3515 = vld [vmem:[%s3 + $0xcc] sm:$0xf]
    %v3516 = vld [vmem:[%s6 + $0x68] sm:$0x1]
    %v3517 = vperm.slane %v3516, 0
    %v3522 = vunpack.c.l.b16 %v3512
    %v3523 = vunpack.c.l.b16 %v3513
    %v3524 = vunpack.c.l.b16 %v3514
    %v3525 = vunpack.c.l.b16 %v3515
    %v3526 = vpack.c.b16 %v3523, %v3522
    %v3527 = vpack.c.b16 %v3525, %v3524
    %3530 = vmatpush.bf16.msra.mxu0 0
    %3531 = vmatpush.bf16.msra.mxu0 0
    %3532 = vmatpush.bf16.msra.mxu0 0
    %3533 = vmatpush.bf16.msra.mxu0 0
    %3534 = vmatpush.bf16.msra.mxu0 0
    %3535 = vmatpush.bf16.msra.mxu0 0
    %3536 = vmatpush.bf16.msra.mxu0 %v3527
    %3537 = vmatpush.bf16.msra.mxu0 %v3526
    %3538 = vmatmul.bf16.gmra.mxu0 %v2874
    %v3539 = vpop.f32.mrf.mxu0
    %v3540 = vadd.f32 %v3517, %v3539
    %v3541 = vpop.f32.mrf.mxu0
    %v3542 = vadd.f32 %v3517, %v3541
    %3543 = vmatmul.bf16.gmra.mxu0 %v2877
    %v3544 = vpop.f32.mrf.mxu0
    %v3545 = vadd.f32 %v3517, %v3544
    %v3546 = vpop.f32.mrf.mxu0
    %3547 = vdwg.mxu0
    %v3548 = vpack.c.bf16 %v3506, %v3504
    %v3549 = vpack.c.bf16 %v3509, %v3509
    %v3550 = vpack.c.bf16 %v3542, %v3540
    %v3551 = vpack.c.bf16 %v3545, %v3545
    %v3553 = vsel %vm200, %v3548, 0
    %v3556 = vsel %vm200, %v3549, 0
    %v3559 = vsel %vm200, %v3550, 0
    %v3562 = vsel %vm200, %v3551, 0
    %3564 = vmatpush.bf16.xpose.msra.mxu0 0
    %3565 = vmatpush.bf16.xpose.msra.mxu0 0
    %3566 = vmatpush.bf16.xpose.msra.mxu0 0
    %3567 = vmatpush.bf16.xpose.msra.mxu0 0
    %3568 = vmatpush.bf16.xpose.msra.mxu0 0
    %3569 = vmatpush.bf16.xpose.msra.mxu0 0
    %3570 = vmatpush.bf16.xpose.msra.mxu0 %v3562
    %3571 = vmatpush.bf16.xpose.msra.mxu0 %v3559
    %3572 = vmatmul.bf16.gmra.mxu0 %v3553
    %v3573 = vpop.f32.mrf.mxu0
    %v3574 = vadd.f32 0.0, %v3573
    %v3575 = vpop.f32.mrf.mxu0
    %v3576 = vadd.f32 0.0, %v3575
    %3577 = vmatmul.bf16.gmra.mxu0 %v3556
    %v3578 = vpop.f32.mrf.mxu0
    %v3579 = vadd.f32 0.0, %v3578
    %v3580 = vpop.f32.mrf.mxu0
    %3581 = vdwg.mxu0
    %v3582 = vsel %vm399, %v3574, -inf
    %3583 = vmax.xlane.f32.xlu0 %v3582
    %v3584 = vpop.xlane.xlu0 %3583
    %v3585 = vsel %vm399, %v3576, -inf
    %3586 = vmax.xlane.f32.xlu0 %v3585
    %v3587 = vpop.xlane.xlu0 %3586
    %v3588 = vsel %vm406, %v3579, -inf
    %3589 = vmax.xlane.f32.xlu0 %v3588
    %v3590 = vpop.xlane.xlu0 %3589
    %v3591 = vsub.f32 %v3574, %v3584
    %v3592 = vsub.f32 %v3576, %v3587
    %v3593 = vsub.f32 %v3579, %v3590
    %v3594 = vmul.f32 %v3591, 1.442695
    %v3595 = vpow.pop %v3594
    %v3596 = vmul.f32 %v3592, 1.442695
    %v3597 = vpow.pop %v3596
    %v3598 = vmul.f32 %v3593, 1.442695
    %v3599 = vpow.pop %v3598
    %v3600 = vsel %vm399, %v3595, 0.0
    %3601 = vadd.xlane.f32.xlu0 %v3600
    %v3602 = vpop.xlane.xlu0 %3601
    %v3603 = vsel %vm399, %v3597, 0.0
    %3604 = vadd.xlane.f32.xlu0 %v3603
    %v3605 = vpop.xlane.xlu0 %3604
    %v3606 = vsel %vm406, %v3599, 0.0
    %3607 = vadd.xlane.f32.xlu0 %v3606
    %v3608 = vpop.xlane.xlu0 %3607
    %v3609 = vrcp.pop %v3602
    %v3610 = vrcp.pop %v3605
    %v3611 = vrcp.pop %v3608
    %v3612 = vmul.f32 %v3595, %v3609
    %v3613 = vmul.f32 %v3597, %v3610
    %v3614 = vmul.f32 %v3599, %v3611
    %v3615 = vld [vmem:[%s3 + $0xd0] sm:$0xf]
    %v3616 = vld [vmem:[%s3 + $0xd4] sm:$0xf]
    %v3617 = vld [vmem:[%s3 + $0xd8] sm:$0xf]
    %v3618 = vld [vmem:[%s3 + $0xdc] sm:$0xf]
    %v3623 = vunpack.c.l.b16 %v3615
    %v3624 = vunpack.c.l.b16 %v3616
    %v3625 = vunpack.c.l.b16 %v3617
    %v3626 = vunpack.c.l.b16 %v3618
    %v3627 = vpack.c.b16 %v3624, %v3623
    %v3628 = vpack.c.b16 %v3626, %v3625
    %3631 = vmatpush.bf16.msra.mxu0 0
    %3632 = vmatpush.bf16.msra.mxu0 0
    %3633 = vmatpush.bf16.msra.mxu0 0
    %3634 = vmatpush.bf16.msra.mxu0 0
    %3635 = vmatpush.bf16.msra.mxu0 0
    %3636 = vmatpush.bf16.msra.mxu0 0
    %3637 = vmatpush.bf16.msra.mxu0 %v3628
    %3638 = vmatpush.bf16.msra.mxu0 %v3627
    %3639 = vmatmul.bf16.gmra.mxu0 %v2874
    %v3640 = vpop.f32.mrf.mxu0
    %v3641 = vadd.f32 0.0, %v3640
    %v3642 = vpop.f32.mrf.mxu0
    %v3643 = vadd.f32 0.0, %v3642
    %3644 = vmatmul.bf16.gmra.mxu0 %v2877
    %v3645 = vpop.f32.mrf.mxu0
    %v3646 = vadd.f32 0.0, %v3645
    %v3647 = vpop.f32.mrf.mxu0
    %3648 = vdwg.mxu0
    %v3649 = vpack.c.bf16 %v3613, %v3612
    %v3650 = vpack.c.bf16 %v3614, %v3614
    %v3651 = vpack.c.bf16 %v3643, %v3641
    %v3652 = vpack.c.bf16 %v3646, %v3646
    %v3654 = vsel %vm399, %v3649, 0
    %v3657 = vsel %vm399, %v3650, 0
    %v3660 = vand.u32 %v3652, %v657
    %3662 = vmatpush.bf16.msra.mxu0 0
    %3663 = vmatpush.bf16.msra.mxu0 0
    %3664 = vmatpush.bf16.msra.mxu0 0
    %3665 = vmatpush.bf16.msra.mxu0 0
    %3666 = vmatpush.bf16.msra.mxu0 0
    %3667 = vmatpush.bf16.msra.mxu0 0
    %3668 = vmatpush.bf16.msra.mxu0 %v3660
    %3669 = vmatpush.bf16.msra.mxu0 %v3651
    %3670 = vmatmul.bf16.gmra.mxu0 %v3654
    %v3671 = vpop.f32.mrf.mxu0
    %v3672 = vadd.f32 0.0, %v3671
    %v3673 = vpop.f32.mrf.mxu0
    %v3674 = vadd.f32 0.0, %v3673
    %3675 = vmatmul.bf16.gmra.mxu0 %v3657
    %v3676 = vpop.f32.mrf.mxu0
    %v3677 = vadd.f32 0.0, %v3676
    %v3678 = vpop.f32.mrf.mxu0
    %3679 = vdwg.mxu0
    %v3680 = vadd.f32 %v3473, %v3672
    %v3681 = vadd.f32 %v3474, %v3674
    %v3682 = vadd.f32 %v3475, %v3677
    %v3683 = vld [vmem:[%s6 + $0x70] sm:$0x1]
    %v3684 = vperm.slane %v3683, 0
    %v3685 = vadd.f32 %v3680, %v3684
    %v3686 = vadd.f32 %v3681, %v3684
    %v3687 = vadd.f32 %v3682, %v3684
    %v3688 = vadd.f32 %v2850, %v3685
    %v3689 = vadd.f32 %v2851, %v3686
    %v3690 = vadd.f32 %v2852, %v3687
    %v3691 = vld [vmem:[%s6 + $0x78] sm:$0x1]
    %v3692 = vld [vmem:[%s6 + $0x80] sm:$0x1]
    %v3693 = vsel %vm200, %v3688, 0.0
    %3694 = vadd.xlane.f32.xlu0 %v3693
    %v3695 = vpop.xlane.xlu0 %3694
    %v3696 = vsel %vm200, %v3689, 0.0
    %3697 = vadd.xlane.f32.xlu0 %v3696
    %v3698 = vpop.xlane.xlu0 %3697
    %v3699 = vsel %vm280, %v3690, 0.0
    %3700 = vadd.xlane.f32.xlu0 %v3699
    %v3701 = vpop.xlane.xlu0 %3700
    %v3702 = vmul.f32 %v3695, %v213
    %v3703 = vmul.f32 %v3698, %v213
    %v3704 = vmul.f32 %v3701, %v213
    %v3705 = vsub.f32 %v3688, %v3702
    %v3706 = vsub.f32 %v3689, %v3703
    %v3707 = vsub.f32 %v3690, %v3704
    %v3708 = vmul.f32 %v3705, %v3705
    %v3709 = vmul.f32 %v3706, %v3706
    %v3710 = vmul.f32 %v3707, %v3707
    %v3711 = vsel %vm200, %v3708, 0.0
    %3712 = vadd.xlane.f32.xlu0 %v3711
    %v3713 = vpop.xlane.xlu0 %3712
    %v3714 = vsel %vm200, %v3709, 0.0
    %3715 = vadd.xlane.f32.xlu0 %v3714
    %v3716 = vpop.xlane.xlu0 %3715
    %v3717 = vsel %vm280, %v3710, 0.0
    %3718 = vadd.xlane.f32.xlu0 %v3717
    %v3719 = vpop.xlane.xlu0 %3718
    %v3720 = vmul.f32 %v3713, %v213
    %v3721 = vmul.f32 %v3716, %v213
    %v3722 = vmul.f32 %v3719, %v213
    %v3723 = vadd.f32 %v3720, 1e-05
    %v3724 = vadd.f32 %v3721, 1e-05
    %v3725 = vadd.f32 %v3722, 1e-05
    %v3726 = vrsqrt.pop %v3723
    %v3727 = vmul.f32 %v3726, %v3723
    %v3728 = vmul.f32 %v3727, %v3726
    %v3729 = vmul.f32 0.5, %v3728
    %v3730 = vsub.f32 1.5, %v3729
    %v3731 = vmul.f32 %v3726, %v3730
    %vm3732 = vweird.f32 %v3723
    %vm3733 = vweird.f32 %v3726
    %vm3734 = vmor %vm3732, %vm3733
    %v3735 = vsel %vm3734, %v3726, %v3731
    %v3736 = vrsqrt.pop %v3724
    %v3737 = vmul.f32 %v3736, %v3724
    %v3738 = vmul.f32 %v3737, %v3736
    %v3739 = vmul.f32 0.5, %v3738
    %v3740 = vsub.f32 1.5, %v3739
    %v3741 = vmul.f32 %v3736, %v3740
    %vm3742 = vweird.f32 %v3724
    %vm3743 = vweird.f32 %v3736
    %vm3744 = vmor %vm3742, %vm3743
    %v3745 = vsel %vm3744, %v3736, %v3741
    %v3746 = vrsqrt.pop %v3725
    %v3747 = vmul.f32 %v3746, %v3725
    %v3748 = vmul.f32 %v3747, %v3746
    %v3749 = vmul.f32 0.5, %v3748
    %v3750 = vsub.f32 1.5, %v3749
    %v3751 = vmul.f32 %v3746, %v3750
    %vm3752 = vweird.f32 %v3725
    %vm3753 = vweird.f32 %v3746
    %vm3754 = vmor %vm3752, %vm3753
    %v3755 = vsel %vm3754, %v3746, %v3751
    %v3756 = vmul.f32 %v3705, %v3735
    %v3757 = vmul.f32 %v3706, %v3745
    %v3758 = vmul.f32 %v3707, %v3755
    %v3759 = vperm.slane %v3691, 0
    %v3760 = vmul.f32 %v3756, %v3759
    %v3761 = vmul.f32 %v3757, %v3759
    %v3762 = vmul.f32 %v3758, %v3759
    %v3763 = vperm.slane %v3692, 0
    %v3764 = vadd.f32 %v3760, %v3763
    %v3765 = vadd.f32 %v3761, %v3763
    %v3766 = vadd.f32 %v3762, %v3763
    %v3767 = vld [vmem:[%s4 + $0x8] sm:$0xf]
    %v3768 = vld [vmem:[%s4 + $0xc] sm:$0xf]
    %v3769 = vld [vmem:[%s4 + $0x10] sm:$0xf]
    %v3770 = vld [vmem:[%s4 + $0x14] sm:$0xf]
    %v3771 = vpack.c.bf16 %v3765, %v3764
    %v3772 = vpack.c.bf16 %v3766, %v3766
    %v3773 = vld [vmem:[%s7 + $0x18] sm:$0x1]
    %v3774 = vperm.slane %v3773, 0
    %v3779 = vunpack.c.l.b16 %v3767
    %v3780 = vunpack.c.l.b16 %v3768
    %v3781 = vunpack.c.l.b16 %v3769
    %v3782 = vunpack.c.l.b16 %v3770
    %v3783 = vpack.c.b16 %v3780, %v3779
    %v3784 = vpack.c.b16 %v3782, %v3781
    %v3788 = vsel %vm200, %v3771, 0
    %v3791 = vsel %vm200, %v3772, 0
    %3793 = vmatpush.bf16.msra.mxu0 0
    %3794 = vmatpush.bf16.msra.mxu0 0
    %3795 = vmatpush.bf16.msra.mxu0 0
    %3796 = vmatpush.bf16.msra.mxu0 0
    %3797 = vmatpush.bf16.msra.mxu0 0
    %3798 = vmatpush.bf16.msra.mxu0 0
    %3799 = vmatpush.bf16.msra.mxu0 %v3784
    %3800 = vmatpush.bf16.msra.mxu0 %v3783
    %3801 = vmatmul.bf16.gmra.mxu0 %v3788
    %v3802 = vpop.f32.mrf.mxu0
    %v3803 = vadd.f32 %v3774, %v3802
    %v3804 = vpop.f32.mrf.mxu0
    %v3805 = vadd.f32 %v3774, %v3804
    %3806 = vmatmul.bf16.gmra.mxu0 %v3791
    %v3807 = vpop.f32.mrf.mxu0
    %v3808 = vadd.f32 %v3774, %v3807
    %v3809 = vpop.f32.mrf.mxu0
    %3810 = vdwg.mxu0
    %v3811 = vmax.f32 %v3803, 0.0
    %v3812 = vmax.f32 %v3805, 0.0
    %v3813 = vmax.f32 %v3808, 0.0
    %v3814 = vld [vmem:[%s3 + $0xe0] sm:$0xf]
    %v3815 = vld [vmem:[%s3 + $0xe4] sm:$0xf]
    %v3816 = vld [vmem:[%s3 + $0xe8] sm:$0xf]
    %v3817 = vld [vmem:[%s3 + $0xec] sm:$0xf]
    %v3818 = vld [vmem:[%s3 + $0xf0] sm:$0xf]
    %v3819 = vld [vmem:[%s3 + $0xf4] sm:$0xf]
    %v3820 = vld [vmem:[%s3 + $0xf8] sm:$0xf]
    %v3821 = vld [vmem:[%s3 + $0xfc] sm:$0xf]
    %v3822 = vpack.c.bf16 %v3812, %v3811
    %v3823 = vpack.c.bf16 %v3813, %v3813
    %v3824 = vld [vmem:[%s6 + $0x88] sm:$0x1]
    %v3825 = vperm.slane %v3824, 0
    %v3834 = vunpack.c.l.b16 %v3814
    %v3835 = vunpack.c.l.b16 %v3815
    %v3836 = vunpack.c.l.b16 %v3816
    %v3837 = vunpack.c.l.b16 %v3817
    %v3838 = vunpack.c.l.b16 %v3818
    %v3839 = vunpack.c.l.b16 %v3819
    %v3840 = vunpack.c.l.b16 %v3820
    %v3841 = vunpack.c.l.b16 %v3821
    %v3842 = vpack.c.b16 %v3835, %v3834
    %v3843 = vpack.c.b16 %v3837, %v3836
    %v3844 = vpack.c.b16 %v3839, %v3838
    %v3845 = vpack.c.b16 %v3841, %v3840
    %v3851 = vsel %vm70, %v3822, 0
    %v3854 = vsel %vm70, %v3823, 0
    %3856 = vmatpush.bf16.msra.mxu0 0
    %3857 = vmatpush.bf16.msra.mxu0 0
    %3858 = vmatpush.bf16.msra.mxu0 0
    %3859 = vmatpush.bf16.msra.mxu0 0
    %3860 = vmatpush.bf16.msra.mxu0 %v3845
    %3861 = vmatpush.bf16.msra.mxu0 %v3844
    %3862 = vmatpush.bf16.msra.mxu0 %v3843
    %3863 = vmatpush.bf16.msra.mxu0 %v3842
    %3864 = vmatmul.bf16.gmra.mxu0 %v3851
    %v3865 = vpop.f32.mrf.mxu0
    %v3866 = vadd.f32 %v3825, %v3865
    %v3867 = vpop.f32.mrf.mxu0
    %v3868 = vadd.f32 %v3825, %v3867
    %3869 = vmatmul.bf16.gmra.mxu0 %v3854
    %v3870 = vpop.f32.mrf.mxu0
    %v3871 = vadd.f32 %v3825, %v3870
    %v3872 = vpop.f32.mrf.mxu0
    %3873 = vdwg.mxu0
    %v3874 = vadd.f32 %v3764, %v3866
    %v3875 = vadd.f32 %v3765, %v3868
    %v3876 = vadd.f32 %v3766, %v3871
    %v3877 = vld [vmem:[%s6 + $0x90] sm:$0x1]
    %v3878 = vld [vmem:[%s6 + $0x98] sm:$0x1]
    %v3879 = vsel %vm200, %v3874, 0.0
    %3880 = vadd.xlane.f32.xlu0 %v3879
    %v3881 = vpop.xlane.xlu0 %3880
    %v3882 = vsel %vm200, %v3875, 0.0
    %3883 = vadd.xlane.f32.xlu0 %v3882
    %v3884 = vpop.xlane.xlu0 %3883
    %v3885 = vsel %vm280, %v3876, 0.0
    %3886 = vadd.xlane.f32.xlu0 %v3885
    %v3887 = vpop.xlane.xlu0 %3886
    %v3888 = vmul.f32 %v3881, %v213
    %v3889 = vmul.f32 %v3884, %v213
    %v3890 = vmul.f32 %v3887, %v213
    %v3891 = vsub.f32 %v3874, %v3888
    %v3892 = vsub.f32 %v3875, %v3889
    %v3893 = vsub.f32 %v3876, %v3890
    %v3894 = vmul.f32 %v3891, %v3891
    %v3895 = vmul.f32 %v3892, %v3892
    %v3896 = vmul.f32 %v3893, %v3893
    %v3897 = vsel %vm200, %v3894, 0.0
    %3898 = vadd.xlane.f32.xlu0 %v3897
    %v3899 = vpop.xlane.xlu0 %3898
    %v3900 = vsel %vm200, %v3895, 0.0
    %3901 = vadd.xlane.f32.xlu0 %v3900
    %v3902 = vpop.xlane.xlu0 %3901
    %v3903 = vsel %vm280, %v3896, 0.0
    %3904 = vadd.xlane.f32.xlu0 %v3903
    %v3905 = vpop.xlane.xlu0 %3904
    %v3906 = vmul.f32 %v3899, %v213
    %v3907 = vmul.f32 %v3902, %v213
    %v3908 = vmul.f32 %v3905, %v213
    %v3909 = vadd.f32 %v3906, 1e-05
    %v3910 = vadd.f32 %v3907, 1e-05
    %v3911 = vadd.f32 %v3908, 1e-05
    %v3912 = vrsqrt.pop %v3909
    %v3913 = vmul.f32 %v3912, %v3909
    %v3914 = vmul.f32 %v3913, %v3912
    %v3915 = vmul.f32 0.5, %v3914
    %v3916 = vsub.f32 1.5, %v3915
    %v3917 = vmul.f32 %v3912, %v3916
    %vm3918 = vweird.f32 %v3909
    %vm3919 = vweird.f32 %v3912
    %vm3920 = vmor %vm3918, %vm3919
    %v3921 = vsel %vm3920, %v3912, %v3917
    %v3922 = vrsqrt.pop %v3910
    %v3923 = vmul.f32 %v3922, %v3910
    %v3924 = vmul.f32 %v3923, %v3922
    %v3925 = vmul.f32 0.5, %v3924
    %v3926 = vsub.f32 1.5, %v3925
    %v3927 = vmul.f32 %v3922, %v3926
    %vm3928 = vweird.f32 %v3910
    %vm3929 = vweird.f32 %v3922
    %vm3930 = vmor %vm3928, %vm3929
    %v3931 = vsel %vm3930, %v3922, %v3927
    %v3932 = vrsqrt.pop %v3911
    %v3933 = vmul.f32 %v3932, %v3911
    %v3934 = vmul.f32 %v3933, %v3932
    %v3935 = vmul.f32 0.5, %v3934
    %v3936 = vsub.f32 1.5, %v3935
    %v3937 = vmul.f32 %v3932, %v3936
    %vm3938 = vweird.f32 %v3911
    %vm3939 = vweird.f32 %v3932
    %vm3940 = vmor %vm3938, %vm3939
    %v3941 = vsel %vm3940, %v3932, %v3937
    %v3942 = vmul.f32 %v3891, %v3921
    %v3943 = vmul.f32 %v3892, %v3931
    %v3944 = vmul.f32 %v3893, %v3941
    %v3945 = vperm.slane %v3877, 0
    %v3946 = vmul.f32 %v3942, %v3945
    %v3947 = vmul.f32 %v3943, %v3945
    %v3948 = vmul.f32 %v3944, %v3945
    %v3949 = vperm.slane %v3878, 0
    %v3950 = vadd.f32 %v3946, %v3949
    %v3951 = vadd.f32 %v3947, %v3949
    %v3952 = vadd.f32 %v3948, %v3949
    %v3953 = vld [vmem:[%s3 + $0x100] sm:$0xf]
    %v3954 = vld [vmem:[%s3 + $0x104] sm:$0xf]
    %v3955 = vld [vmem:[%s3 + $0x108] sm:$0xf]
    %v3956 = vld [vmem:[%s3 + $0x10c] sm:$0xf]
    %v3957 = vpack.c.bf16 %v3951, %v3950
    %v3958 = vpack.c.bf16 %v3952, %v3952
    %v3959 = vld [vmem:[%s6 + $0xa0] sm:$0x1]
    %v3960 = vperm.slane %v3959, 0
    %v3965 = vunpack.c.l.b16 %v3953
    %v3966 = vunpack.c.l.b16 %v3954
    %v3967 = vunpack.c.l.b16 %v3955
    %v3968 = vunpack.c.l.b16 %v3956
    %v3969 = vpack.c.b16 %v3966, %v3965
    %v3970 = vpack.c.b16 %v3968, %v3967
    %v3974 = vsel %vm200, %v3957, 0
    %v3977 = vsel %vm200, %v3958, 0
    %3979 = vmatpush.bf16.msra.mxu0 0
    %3980 = vmatpush.bf16.msra.mxu0 0
    %3981 = vmatpush.bf16.msra.mxu0 0
    %3982 = vmatpush.bf16.msra.mxu0 0
    %3983 = vmatpush.bf16.msra.mxu0 0
    %3984 = vmatpush.bf16.msra.mxu0 0
    %3985 = vmatpush.bf16.msra.mxu0 %v3970
    %3986 = vmatpush.bf16.msra.mxu0 %v3969
    %3987 = vmatmul.bf16.gmra.mxu0 %v3974
    %v3988 = vpop.f32.mrf.mxu0
    %v3989 = vadd.f32 %v3960, %v3988
    %v3990 = vpop.f32.mrf.mxu0
    %v3991 = vadd.f32 %v3960, %v3990
    %3992 = vmatmul.bf16.gmra.mxu0 %v3977
    %v3993 = vpop.f32.mrf.mxu0
    %v3994 = vadd.f32 %v3960, %v3993
    %v3995 = vpop.f32.mrf.mxu0
    %3996 = vdwg.mxu0
    %v3997 = vld [vmem:[%s3 + $0x110] sm:$0xf]
    %v3998 = vld [vmem:[%s3 + $0x114] sm:$0xf]
    %v3999 = vld [vmem:[%s3 + $0x118] sm:$0xf]
    %v4000 = vld [vmem:[%s3 + $0x11c] sm:$0xf]
    %v4001 = vld [vmem:[%s6 + $0xa8] sm:$0x1]
    %v4002 = vperm.slane %v4001, 0
    %v4007 = vunpack.c.l.b16 %v3997
    %v4008 = vunpack.c.l.b16 %v3998
    %v4009 = vunpack.c.l.b16 %v3999
    %v4010 = vunpack.c.l.b16 %v4000
    %v4011 = vpack.c.b16 %v4008, %v4007
    %v4012 = vpack.c.b16 %v4010, %v4009
    %4015 = vmatpush.bf16.msra.mxu0 0
    %4016 = vmatpush.bf16.msra.mxu0 0
    %4017 = vmatpush.bf16.msra.mxu0 0
    %4018 = vmatpush.bf16.msra.mxu0 0
    %4019 = vmatpush.bf16.msra.mxu0 0
    %4020 = vmatpush.bf16.msra.mxu0 0
    %4021 = vmatpush.bf16.msra.mxu0 %v4012
    %4022 = vmatpush.bf16.msra.mxu0 %v4011
    %4023 = vmatmul.bf16.gmra.mxu0 %v3974
    %v4024 = vpop.f32.mrf.mxu0
    %v4025 = vadd.f32 %v4002, %v4024
    %v4026 = vpop.f32.mrf.mxu0
    %v4027 = vadd.f32 %v4002, %v4026
    %4028 = vmatmul.bf16.gmra.mxu0 %v3977
    %v4029 = vpop.f32.mrf.mxu0
    %v4030 = vadd.f32 %v4002, %v4029
    %v4031 = vpop.f32.mrf.mxu0
    %4032 = vdwg.mxu0
    %v4033 = vpack.c.bf16 %v3991, %v3989
    %v4034 = vpack.c.bf16 %v3994, %v3994
    %v4035 = vpack.c.bf16 %v4027, %v4025
    %v4036 = vpack.c.bf16 %v4030, %v4030
    %v4038 = vsel %vm200, %v4033, 0
    %v4041 = vsel %vm200, %v4034, 0
    %v4044 = vsel %vm200, %v4035, 0
    %v4047 = vsel %vm200, %v4036, 0
    %4049 = vmatpush.bf16.xpose.msra.mxu0 0
    %4050 = vmatpush.bf16.xpose.msra.mxu0 0
    %4051 = vmatpush.bf16.xpose.msra.mxu0 0
    %4052 = vmatpush.bf16.xpose.msra.mxu0 0
    %4053 = vmatpush.bf16.xpose.msra.mxu0 0
    %4054 = vmatpush.bf16.xpose.msra.mxu0 0
    %4055 = vmatpush.bf16.xpose.msra.mxu0 %v4047
    %4056 = vmatpush.bf16.xpose.msra.mxu0 %v4044
    %4057 = vmatmul.bf16.gmra.mxu0 %v4038
    %v4058 = vpop.f32.mrf.mxu0
    %v4059 = vadd.f32 0.0, %v4058
    %v4060 = vpop.f32.mrf.mxu0
    %v4061 = vadd.f32 0.0, %v4060
    %4062 = vmatmul.bf16.gmra.mxu0 %v4041
    %v4063 = vpop.f32.mrf.mxu0
    %v4064 = vadd.f32 0.0, %v4063
    %v4065 = vpop.f32.mrf.mxu0
    %4066 = vdwg.mxu0
    %v4067 = vsel %vm399, %v4059, -inf
    %4068 = vmax.xlane.f32.xlu0 %v4067
    %v4069 = vpop.xlane.xlu0 %4068
    %v4070 = vsel %vm399, %v4061, -inf
    %4071 = vmax.xlane.f32.xlu0 %v4070
    %v4072 = vpop.xlane.xlu0 %4071
    %v4073 = vsel %vm406, %v4064, -inf
    %4074 = vmax.xlane.f32.xlu0 %v4073
    %v4075 = vpop.xlane.xlu0 %4074
    %v4076 = vsub.f32 %v4059, %v4069
    %v4077 = vsub.f32 %v4061, %v4072
    %v4078 = vsub.f32 %v4064, %v4075
    %v4079 = vmul.f32 %v4076, 1.442695
    %v4080 = vpow.pop %v4079
    %v4081 = vmul.f32 %v4077, 1.442695
    %v4082 = vpow.pop %v4081
    %v4083 = vmul.f32 %v4078, 1.442695
    %v4084 = vpow.pop %v4083
    %v4085 = vsel %vm399, %v4080, 0.0
    %4086 = vadd.xlane.f32.xlu0 %v4085
    %v4087 = vpop.xlane.xlu0 %4086
    %v4088 = vsel %vm399, %v4082, 0.0
    %4089 = vadd.xlane.f32.xlu0 %v4088
    %v4090 = vpop.xlane.xlu0 %4089
    %v4091 = vsel %vm406, %v4084, 0.0
    %4092 = vadd.xlane.f32.xlu0 %v4091
    %v4093 = vpop.xlane.xlu0 %4092
    %v4094 = vrcp.pop %v4087
    %v4095 = vrcp.pop %v4090
    %v4096 = vrcp.pop %v4093
    %v4097 = vmul.f32 %v4080, %v4094
    %v4098 = vmul.f32 %v4082, %v4095
    %v4099 = vmul.f32 %v4084, %v4096
    %v4100 = vld [vmem:[%s3 + $0x120] sm:$0xf]
    %v4101 = vld [vmem:[%s3 + $0x124] sm:$0xf]
    %v4102 = vld [vmem:[%s3 + $0x128] sm:$0xf]
    %v4103 = vld [vmem:[%s3 + $0x12c] sm:$0xf]
    %v4108 = vunpack.c.l.b16 %v4100
    %v4109 = vunpack.c.l.b16 %v4101
    %v4110 = vunpack.c.l.b16 %v4102
    %v4111 = vunpack.c.l.b16 %v4103
    %v4112 = vpack.c.b16 %v4109, %v4108
    %v4113 = vpack.c.b16 %v4111, %v4110
    %4116 = vmatpush.bf16.msra.mxu0 0
    %4117 = vmatpush.bf16.msra.mxu0 0
    %4118 = vmatpush.bf16.msra.mxu0 0
    %4119 = vmatpush.bf16.msra.mxu0 0
    %4120 = vmatpush.bf16.msra.mxu0 0
    %4121 = vmatpush.bf16.msra.mxu0 0
    %4122 = vmatpush.bf16.msra.mxu0 %v4113
    %4123 = vmatpush.bf16.msra.mxu0 %v4112
    %4124 = vmatmul.bf16.gmra.mxu0 %v3974
    %v4125 = vpop.f32.mrf.mxu0
    %v4126 = vadd.f32 0.0, %v4125
    %v4127 = vpop.f32.mrf.mxu0
    %v4128 = vadd.f32 0.0, %v4127
    %4129 = vmatmul.bf16.gmra.mxu0 %v3977
    %v4130 = vpop.f32.mrf.mxu0
    %v4131 = vadd.f32 0.0, %v4130
    %v4132 = vpop.f32.mrf.mxu0
    %4133 = vdwg.mxu0
    %v4134 = vpack.c.bf16 %v4098, %v4097
    %v4135 = vpack.c.bf16 %v4099, %v4099
    %v4136 = vpack.c.bf16 %v4128, %v4126
    %v4137 = vpack.c.bf16 %v4131, %v4131
    %v4138 = vld [vmem:[%s3 + $0x130] sm:$0xf]
    %v4139 = vld [vmem:[%s3 + $0x134] sm:$0xf]
    %v4140 = vld [vmem:[%s3 + $0x138] sm:$0xf]
    %v4141 = vld [vmem:[%s3 + $0x13c] sm:$0xf]
    %v4142 = vld [vmem:[%s6 + $0xb0] sm:$0x1]
    %v4143 = vperm.slane %v4142, 0
    %v4148 = vunpack.c.l.b16 %v4138
    %v4149 = vunpack.c.l.b16 %v4139
    %v4150 = vunpack.c.l.b16 %v4140
    %v4151 = vunpack.c.l.b16 %v4141
    %v4152 = vpack.c.b16 %v4149, %v4148
    %v4153 = vpack.c.b16 %v4151, %v4150
    %4156 = vmatpush.bf16.msra.mxu0 0
    %4157 = vmatpush.bf16.msra.mxu0 0
    %4158 = vmatpush.bf16.msra.mxu0 0
    %4159 = vmatpush.bf16.msra.mxu0 0
    %4160 = vmatpush.bf16.msra.mxu0 0
    %4161 = vmatpush.bf16.msra.mxu0 0
    %4162 = vmatpush.bf16.msra.mxu0 %v4153
    %4163 = vmatpush.bf16.msra.mxu0 %v4152
    %4164 = vmatmul.bf16.gmra.mxu0 %v3974
    %v4165 = vpop.f32.mrf.mxu0
    %v4166 = vadd.f32 %v4143, %v4165
    %v4167 = vpop.f32.mrf.mxu0
    %v4168 = vadd.f32 %v4143, %v4167
    %4169 = vmatmul.bf16.gmra.mxu0 %v3977
    %v4170 = vpop.f32.mrf.mxu0
    %v4171 = vadd.f32 %v4143, %v4170
    %v4172 = vpop.f32.mrf.mxu0
    %4173 = vdwg.mxu0
    %v4174 = vld [vmem:[%s3 + $0x140] sm:$0xf]
    %v4175 = vld [vmem:[%s3 + $0x144] sm:$0xf]
    %v4176 = vld [vmem:[%s3 + $0x148] sm:$0xf]
    %v4177 = vld [vmem:[%s3 + $0x14c] sm:$0xf]
    %v4178 = vld [vmem:[%s6 + $0xb8] sm:$0x1]
    %v4179 = vperm.slane %v4178, 0
    %v4184 = vunpack.c.l.b16 %v4174
    %v4185 = vunpack.c.l.b16 %v4175
    %v4186 = vunpack.c.l.b16 %v4176
    %v4187 = vunpack.c.l.b16 %v4177
    %v4188 = vpack.c.b16 %v4185, %v4184
    %v4189 = vpack.c.b16 %v4187, %v4186
    %4192 = vmatpush.bf16.msra.mxu0 0
    %4193 = vmatpush.bf16.msra.mxu0 0
    %4194 = vmatpush.bf16.msra.mxu0 0
    %4195 = vmatpush.bf16.msra.mxu0 0
    %4196 = vmatpush.bf16.msra.mxu0 0
    %4197 = vmatpush.bf16.msra.mxu0 0
    %4198 = vmatpush.bf16.msra.mxu0 %v4189
    %4199 = vmatpush.bf16.msra.mxu0 %v4188
    %4200 = vmatmul.bf16.gmra.mxu0 %v3974
    %v4201 = vpop.f32.mrf.mxu0
    %v4202 = vadd.f32 %v4179, %v4201
    %v4203 = vpop.f32.mrf.mxu0
    %v4204 = vadd.f32 %v4179, %v4203
    %4205 = vmatmul.bf16.gmra.mxu0 %v3977
    %v4206 = vpop.f32.mrf.mxu0
    %v4207 = vadd.f32 %v4179, %v4206
    %v4208 = vpop.f32.mrf.mxu0
    %4209 = vdwg.mxu0
    %v4210 = vpack.c.bf16 %v4168, %v4166
    %v4211 = vpack.c.bf16 %v4171, %v4171
    %v4212 = vpack.c.bf16 %v4204, %v4202
    %v4213 = vpack.c.bf16 %v4207, %v4207
    %v4215 = vsel %vm200, %v4210, 0
    %v4218 = vsel %vm200, %v4211, 0
    %v4221 = vsel %vm200, %v4212, 0
    %v4224 = vsel %vm200, %v4213, 0
    %4226 = vmatpush.bf16.xpose.msra.mxu0 0
    %4227 = vmatpush.bf16.xpose.msra.mxu0 0
    %4228 = vmatpush.bf16.xpose.msra.mxu0 0
    %4229 = vmatpush.bf16.xpose.msra.mxu0 0
    %4230 = vmatpush.bf16.xpose.msra.mxu0 0
    %4231 = vmatpush.bf16.xpose.msra.mxu0 0
    %4232 = vmatpush.bf16.xpose.msra.mxu0 %v4224
    %4233 = vmatpush.bf16.xpose.msra.mxu0 %v4221
    %4234 = vmatmul.bf16.gmra.mxu0 %v4215
    %v4235 = vpop.f32.mrf.mxu0
    %v4236 = vadd.f32 0.0, %v4235
    %v4237 = vpop.f32.mrf.mxu0
    %v4238 = vadd.f32 0.0, %v4237
    %4239 = vmatmul.bf16.gmra.mxu0 %v4218
    %v4240 = vpop.f32.mrf.mxu0
    %v4241 = vadd.f32 0.0, %v4240
    %v4242 = vpop.f32.mrf.mxu0
    %4243 = vdwg.mxu0
    %v4244 = vsel %vm399, %v4236, -inf
    %4245 = vmax.xlane.f32.xlu0 %v4244
    %v4246 = vpop.xlane.xlu0 %4245
    %v4247 = vsel %vm399, %v4238, -inf
    %4248 = vmax.xlane.f32.xlu0 %v4247
    %v4249 = vpop.xlane.xlu0 %4248
    %v4250 = vsel %vm406, %v4241, -inf
    %4251 = vmax.xlane.f32.xlu0 %v4250
    %v4252 = vpop.xlane.xlu0 %4251
    %v4253 = vsub.f32 %v4236, %v4246
    %v4254 = vsub.f32 %v4238, %v4249
    %v4255 = vsub.f32 %v4241, %v4252
    %v4256 = vmul.f32 %v4253, 1.442695
    %v4257 = vpow.pop %v4256
    %v4258 = vmul.f32 %v4254, 1.442695
    %v4259 = vpow.pop %v4258
    %v4260 = vmul.f32 %v4255, 1.442695
    %v4261 = vpow.pop %v4260
    %v4262 = vsel %vm399, %v4257, 0.0
    %4263 = vadd.xlane.f32.xlu0 %v4262
    %v4264 = vpop.xlane.xlu0 %4263
    %v4265 = vsel %vm399, %v4259, 0.0
    %4266 = vadd.xlane.f32.xlu0 %v4265
    %v4267 = vpop.xlane.xlu0 %4266
    %v4268 = vsel %vm406, %v4261, 0.0
    %4269 = vadd.xlane.f32.xlu0 %v4268
    %v4270 = vpop.xlane.xlu0 %4269
    %v4271 = vrcp.pop %v4264
    %v4272 = vrcp.pop %v4267
    %v4273 = vrcp.pop %v4270
    %v4274 = vmul.f32 %v4257, %v4271
    %v4275 = vmul.f32 %v4259, %v4272
    %v4276 = vmul.f32 %v4261, %v4273
    %v4277 = vld [vmem:[%s3 + $0x150] sm:$0xf]
    %v4278 = vld [vmem:[%s3 + $0x154] sm:$0xf]
    %v4279 = vld [vmem:[%s3 + $0x158] sm:$0xf]
    %v4280 = vld [vmem:[%s3 + $0x15c] sm:$0xf]
    %v4285 = vunpack.c.l.b16 %v4277
    %v4286 = vunpack.c.l.b16 %v4278
    %v4287 = vunpack.c.l.b16 %v4279
    %v4288 = vunpack.c.l.b16 %v4280
    %v4289 = vpack.c.b16 %v4286, %v4285
    %v4290 = vpack.c.b16 %v4288, %v4287
    %4293 = vmatpush.bf16.msra.mxu0 0
    %4294 = vmatpush.bf16.msra.mxu0 0
    %4295 = vmatpush.bf16.msra.mxu0 0
    %4296 = vmatpush.bf16.msra.mxu0 0
    %4297 = vmatpush.bf16.msra.mxu0 0
    %4298 = vmatpush.bf16.msra.mxu0 0
    %4299 = vmatpush.bf16.msra.mxu0 %v4290
    %4300 = vmatpush.bf16.msra.mxu0 %v4289
    %4301 = vmatmul.bf16.gmra.mxu0 %v3974
    %v4302 = vpop.f32.mrf.mxu0
    %v4303 = vadd.f32 0.0, %v4302
    %v4304 = vpop.f32.mrf.mxu0
    %v4305 = vadd.f32 0.0, %v4304
    %4306 = vmatmul.bf16.gmra.mxu0 %v3977
    %v4307 = vpop.f32.mrf.mxu0
    %v4308 = vadd.f32 0.0, %v4307
    %v4309 = vpop.f32.mrf.mxu0
    %4310 = vdwg.mxu0
    %v4311 = vpack.c.bf16 %v4275, %v4274
    %v4312 = vpack.c.bf16 %v4276, %v4276
    %v4313 = vpack.c.bf16 %v4305, %v4303
    %v4314 = vpack.c.bf16 %v4308, %v4308
    %v4316 = vsel %vm399, %v4311, 0
    %v4319 = vsel %vm399, %v4312, 0
    %v4322 = vand.u32 %v4314, %v657
    %4324 = vmatpush.bf16.msra.mxu0 0
    %4325 = vmatpush.bf16.msra.mxu0 0
    %4326 = vmatpush.bf16.msra.mxu0 0
    %4327 = vmatpush.bf16.msra.mxu0 0
    %4328 = vmatpush.bf16.msra.mxu0 0
    %4329 = vmatpush.bf16.msra.mxu0 0
    %4330 = vmatpush.bf16.msra.mxu0 %v4322
    %4331 = vmatpush.bf16.msra.mxu0 %v4313
    %4332 = vmatmul.bf16.gmra.mxu0 %v4316
    %v4333 = vpop.f32.mrf.mxu0
    %v4334 = vadd.f32 0.0, %v4333
    %v4335 = vpop.f32.mrf.mxu0
    %v4336 = vadd.f32 0.0, %v4335
    %4337 = vmatmul.bf16.gmra.mxu0 %v4319
    %v4338 = vpop.f32.mrf.mxu0
    %v4339 = vadd.f32 0.0, %v4338
    %v4340 = vpop.f32.mrf.mxu0
    %4341 = vdwg.mxu0
    %v4343 = vsel %vm399, %v4134, 0
    %v4346 = vsel %vm399, %v4135, 0
    %v4349 = vand.u32 %v4137, %v657
    %4351 = vmatpush.bf16.msra.mxu0 0
    %4352 = vmatpush.bf16.msra.mxu0 0
    %4353 = vmatpush.bf16.msra.mxu0 0
    %4354 = vmatpush.bf16.msra.mxu0 0
    %4355 = vmatpush.bf16.msra.mxu0 0
    %4356 = vmatpush.bf16.msra.mxu0 0
    %4357 = vmatpush.bf16.msra.mxu0 %v4349
    %4358 = vmatpush.bf16.msra.mxu0 %v4136
    %4359 = vmatmul.bf16.gmra.mxu0 %v4343
    %v4360 = vpop.f32.mrf.mxu0
    %v4361 = vadd.f32 %v4334, %v4360
    %v4362 = vpop.f32.mrf.mxu0
    %v4363 = vadd.f32 %v4336, %v4362
    %4364 = vmatmul.bf16.gmra.mxu0 %v4346
    %v4365 = vpop.f32.mrf.mxu0
    %v4366 = vadd.f32 %v4339, %v4365
    %v4367 = vpop.f32.mrf.mxu0
    %4368 = vdwg.mxu0
    %v4369 = vld [vmem:[%s3 + $0x160] sm:$0xf]
    %v4370 = vld [vmem:[%s3 + $0x164] sm:$0xf]
    %v4371 = vld [vmem:[%s3 + $0x168] sm:$0xf]
    %v4372 = vld [vmem:[%s3 + $0x16c] sm:$0xf]
    %v4373 = vld [vmem:[%s6 + $0xc0] sm:$0x1]
    %v4374 = vperm.slane %v4373, 0
    %v4379 = vunpack.c.l.b16 %v4369
    %v4380 = vunpack.c.l.b16 %v4370
    %v4381 = vunpack.c.l.b16 %v4371
    %v4382 = vunpack.c.l.b16 %v4372
    %v4383 = vpack.c.b16 %v4380, %v4379
    %v4384 = vpack.c.b16 %v4382, %v4381
    %4387 = vmatpush.bf16.msra.mxu0 0
    %4388 = vmatpush.bf16.msra.mxu0 0
    %4389 = vmatpush.bf16.msra.mxu0 0
    %4390 = vmatpush.bf16.msra.mxu0 0
    %4391 = vmatpush.bf16.msra.mxu0 0
    %4392 = vmatpush.bf16.msra.mxu0 0
    %4393 = vmatpush.bf16.msra.mxu0 %v4384
    %4394 = vmatpush.bf16.msra.mxu0 %v4383
    %4395 = vmatmul.bf16.gmra.mxu0 %v3974
    %v4396 = vpop.f32.mrf.mxu0
    %v4397 = vadd.f32 %v4374, %v4396
    %v4398 = vpop.f32.mrf.mxu0
    %v4399 = vadd.f32 %v4374, %v4398
    %4400 = vmatmul.bf16.gmra.mxu0 %v3977
    %v4401 = vpop.f32.mrf.mxu0
    %v4402 = vadd.f32 %v4374, %v4401
    %v4403 = vpop.f32.mrf.mxu0
    %4404 = vdwg.mxu0
    %v4405 = vld [vmem:[%s3 + $0x170] sm:$0xf]
    %v4406 = vld [vmem:[%s3 + $0x174] sm:$0xf]
    %v4407 = vld [vmem:[%s3 + $0x178] sm:$0xf]
    %v4408 = vld [vmem:[%s3 + $0x17c] sm:$0xf]
    %v4409 = vld [vmem:[%s6 + $0xc8] sm:$0x1]
    %v4410 = vperm.slane %v4409, 0
    %v4415 = vunpack.c.l.b16 %v4405
    %v4416 = vunpack.c.l.b16 %v4406
    %v4417 = vunpack.c.l.b16 %v4407
    %v4418 = vunpack.c.l.b16 %v4408
    %v4419 = vpack.c.b16 %v4416, %v4415
    %v4420 = vpack.c.b16 %v4418, %v4417
    %4423 = vmatpush.bf16.msra.mxu0 0
    %4424 = vmatpush.bf16.msra.mxu0 0
    %4425 = vmatpush.bf16.msra.mxu0 0
    %4426 = vmatpush.bf16.msra.mxu0 0
    %4427 = vmatpush.bf16.msra.mxu0 0
    %4428 = vmatpush.bf16.msra.mxu0 0
    %4429 = vmatpush.bf16.msra.mxu0 %v4420
    %4430 = vmatpush.bf16.msra.mxu0 %v4419
    %4431 = vmatmul.bf16.gmra.mxu0 %v3974
    %v4432 = vpop.f32.mrf.mxu0
    %v4433 = vadd.f32 %v4410, %v4432
    %v4434 = vpop.f32.mrf.mxu0
    %v4435 = vadd.f32 %v4410, %v4434
    %4436 = vmatmul.bf16.gmra.mxu0 %v3977
    %v4437 = vpop.f32.mrf.mxu0
    %v4438 = vadd.f32 %v4410, %v4437
    %v4439 = vpop.f32.mrf.mxu0
    %4440 = vdwg.mxu0
    %v4441 = vpack.c.bf16 %v4399, %v4397
    %v4442 = vpack.c.bf16 %v4402, %v4402
    %v4443 = vpack.c.bf16 %v4435, %v4433
    %v4444 = vpack.c.bf16 %v4438, %v4438
    %v4446 = vsel %vm200, %v4441, 0
    %v4449 = vsel %vm200, %v4442, 0
    %v4452 = vsel %vm200, %v4443, 0
    %v4455 = vsel %vm200, %v4444, 0
    %4457 = vmatpush.bf16.xpose.msra.mxu0 0
    %4458 = vmatpush.bf16.xpose.msra.mxu0 0
    %4459 = vmatpush.bf16.xpose.msra.mxu0 0
    %4460 = vmatpush.bf16.xpose.msra.mxu0 0
    %4461 = vmatpush.bf16.xpose.msra.mxu0 0
    %4462 = vmatpush.bf16.xpose.msra.mxu0 0
    %4463 = vmatpush.bf16.xpose.msra.mxu0 %v4455
    %4464 = vmatpush.bf16.xpose.msra.mxu0 %v4452
    %4465 = vmatmul.bf16.gmra.mxu0 %v4446
    %v4466 = vpop.f32.mrf.mxu0
    %v4467 = vadd.f32 0.0, %v4466
    %v4468 = vpop.f32.mrf.mxu0
    %v4469 = vadd.f32 0.0, %v4468
    %4470 = vmatmul.bf16.gmra.mxu0 %v4449
    %v4471 = vpop.f32.mrf.mxu0
    %v4472 = vadd.f32 0.0, %v4471
    %v4473 = vpop.f32.mrf.mxu0
    %4474 = vdwg.mxu0
    %v4475 = vsel %vm399, %v4467, -inf
    %4476 = vmax.xlane.f32.xlu0 %v4475
    %v4477 = vpop.xlane.xlu0 %4476
    %v4478 = vsel %vm399, %v4469, -inf
    %4479 = vmax.xlane.f32.xlu0 %v4478
    %v4480 = vpop.xlane.xlu0 %4479
    %v4481 = vsel %vm406, %v4472, -inf
    %4482 = vmax.xlane.f32.xlu0 %v4481
    %v4483 = vpop.xlane.xlu0 %4482
    %v4484 = vsub.f32 %v4467, %v4477
    %v4485 = vsub.f32 %v4469, %v4480
    %v4486 = vsub.f32 %v4472, %v4483
    %v4487 = vmul.f32 %v4484, 1.442695
    %v4488 = vpow.pop %v4487
    %v4489 = vmul.f32 %v4485, 1.442695
    %v4490 = vpow.pop %v4489
    %v4491 = vmul.f32 %v4486, 1.442695
    %v4492 = vpow.pop %v4491
    %v4493 = vsel %vm399, %v4488, 0.0
    %4494 = vadd.xlane.f32.xlu0 %v4493
    %v4495 = vpop.xlane.xlu0 %4494
    %v4496 = vsel %vm399, %v4490, 0.0
    %4497 = vadd.xlane.f32.xlu0 %v4496
    %v4498 = vpop.xlane.xlu0 %4497
    %v4499 = vsel %vm406, %v4492, 0.0
    %4500 = vadd.xlane.f32.xlu0 %v4499
    %v4501 = vpop.xlane.xlu0 %4500
    %v4502 = vrcp.pop %v4495
    %v4503 = vrcp.pop %v4498
    %v4504 = vrcp.pop %v4501
    %v4505 = vmul.f32 %v4488, %v4502
    %v4506 = vmul.f32 %v4490, %v4503
    %v4507 = vmul.f32 %v4492, %v4504
    %v4508 = vld [vmem:[%s3 + $0x180] sm:$0xf]
    %v4509 = vld [vmem:[%s3 + $0x184] sm:$0xf]
    %v4510 = vld [vmem:[%s3 + $0x188] sm:$0xf]
    %v4511 = vld [vmem:[%s3 + $0x18c] sm:$0xf]
    %v4516 = vunpack.c.l.b16 %v4508
    %v4517 = vunpack.c.l.b16 %v4509
    %v4518 = vunpack.c.l.b16 %v4510
    %v4519 = vunpack.c.l.b16 %v4511
    %v4520 = vpack.c.b16 %v4517, %v4516
    %v4521 = vpack.c.b16 %v4519, %v4518
    %4524 = vmatpush.bf16.msra.mxu0 0
    %4525 = vmatpush.bf16.msra.mxu0 0
    %4526 = vmatpush.bf16.msra.mxu0 0
    %4527 = vmatpush.bf16.msra.mxu0 0
    %4528 = vmatpush.bf16.msra.mxu0 0
    %4529 = vmatpush.bf16.msra.mxu0 0
    %4530 = vmatpush.bf16.msra.mxu0 %v4521
    %4531 = vmatpush.bf16.msra.mxu0 %v4520
    %4532 = vmatmul.bf16.gmra.mxu0 %v3974
    %v4533 = vpop.f32.mrf.mxu0
    %v4534 = vadd.f32 0.0, %v4533
    %v4535 = vpop.f32.mrf.mxu0
    %v4536 = vadd.f32 0.0, %v4535
    %4537 = vmatmul.bf16.gmra.mxu0 %v3977
    %v4538 = vpop.f32.mrf.mxu0
    %v4539 = vadd.f32 0.0, %v4538
    %v4540 = vpop.f32.mrf.mxu0
    %4541 = vdwg.mxu0
    %v4542 = vpack.c.bf16 %v4506, %v4505
    %v4543 = vpack.c.bf16 %v4507, %v4507
    %v4544 = vpack.c.bf16 %v4536, %v4534
    %v4545 = vpack.c.bf16 %v4539, %v4539
    %v4547 = vsel %vm399, %v4542, 0
    %v4550 = vsel %vm399, %v4543, 0
    %v4553 = vand.u32 %v4545, %v657
    %4555 = vmatpush.bf16.msra.mxu0 0
    %4556 = vmatpush.bf16.msra.mxu0 0
    %4557 = vmatpush.bf16.msra.mxu0 0
    %4558 = vmatpush.bf16.msra.mxu0 0
    %4559 = vmatpush.bf16.msra.mxu0 0
    %4560 = vmatpush.bf16.msra.mxu0 0
    %4561 = vmatpush.bf16.msra.mxu0 %v4553
    %4562 = vmatpush.bf16.msra.mxu0 %v4544
    %4563 = vmatmul.bf16.gmra.mxu0 %v4547
    %v4564 = vpop.f32.mrf.mxu0
    %v4565 = vadd.f32 0.0, %v4564
    %v4566 = vpop.f32.mrf.mxu0
    %v4567 = vadd.f32 0.0, %v4566
    %4568 = vmatmul.bf16.gmra.mxu0 %v4550
    %v4569 = vpop.f32.mrf.mxu0
    %v4570 = vadd.f32 0.0, %v4569
    %v4571 = vpop.f32.mrf.mxu0
    %4572 = vdwg.mxu0
    %v4573 = vadd.f32 %v4361, %v4565
    %v4574 = vadd.f32 %v4363, %v4567
    %v4575 = vadd.f32 %v4366, %v4570
    %v4576 = vld [vmem:[%s3 + $0x190] sm:$0xf]
    %v4577 = vld [vmem:[%s3 + $0x194] sm:$0xf]
    %v4578 = vld [vmem:[%s3 + $0x198] sm:$0xf]
    %v4579 = vld [vmem:[%s3 + $0x19c] sm:$0xf]
    %v4580 = vld [vmem:[%s6 + $0xd0] sm:$0x1]
    %v4581 = vperm.slane %v4580, 0
    %v4586 = vunpack.c.l.b16 %v4576
    %v4587 = vunpack.c.l.b16 %v4577
    %v4588 = vunpack.c.l.b16 %v4578
    %v4589 = vunpack.c.l.b16 %v4579
    %v4590 = vpack.c.b16 %v4587, %v4586
    %v4591 = vpack.c.b16 %v4589, %v4588
    %4594 = vmatpush.bf16.msra.mxu0 0
    %4595 = vmatpush.bf16.msra.mxu0 0
    %4596 = vmatpush.bf16.msra.mxu0 0
    %4597 = vmatpush.bf16.msra.mxu0 0
    %4598 = vmatpush.bf16.msra.mxu0 0
    %4599 = vmatpush.bf16.msra.mxu0 0
    %4600 = vmatpush.bf16.msra.mxu0 %v4591
    %4601 = vmatpush.bf16.msra.mxu0 %v4590
    %4602 = vmatmul.bf16.gmra.mxu0 %v3974
    %v4603 = vpop.f32.mrf.mxu0
    %v4604 = vadd.f32 %v4581, %v4603
    %v4605 = vpop.f32.mrf.mxu0
    %v4606 = vadd.f32 %v4581, %v4605
    %4607 = vmatmul.bf16.gmra.mxu0 %v3977
    %v4608 = vpop.f32.mrf.mxu0
    %v4609 = vadd.f32 %v4581, %v4608
    %v4610 = vpop.f32.mrf.mxu0
    %4611 = vdwg.mxu0
    %v4612 = vld [vmem:[%s3 + $0x1a0] sm:$0xf]
    %v4613 = vld [vmem:[%s3 + $0x1a4] sm:$0xf]
    %v4614 = vld [vmem:[%s3 + $0x1a8] sm:$0xf]
    %v4615 = vld [vmem:[%s3 + $0x1ac] sm:$0xf]
    %v4616 = vld [vmem:[%s6 + $0xd8] sm:$0x1]
    %v4617 = vperm.slane %v4616, 0
    %v4622 = vunpack.c.l.b16 %v4612
    %v4623 = vunpack.c.l.b16 %v4613
    %v4624 = vunpack.c.l.b16 %v4614
    %v4625 = vunpack.c.l.b16 %v4615
    %v4626 = vpack.c.b16 %v4623, %v4622
    %v4627 = vpack.c.b16 %v4625, %v4624
    %4630 = vmatpush.bf16.msra.mxu0 0
    %4631 = vmatpush.bf16.msra.mxu0 0
    %4632 = vmatpush.bf16.msra.mxu0 0
    %4633 = vmatpush.bf16.msra.mxu0 0
    %4634 = vmatpush.bf16.msra.mxu0 0
    %4635 = vmatpush.bf16.msra.mxu0 0
    %4636 = vmatpush.bf16.msra.mxu0 %v4627
    %4637 = vmatpush.bf16.msra.mxu0 %v4626
    %4638 = vmatmul.bf16.gmra.mxu0 %v3974
    %v4639 = vpop.f32.mrf.mxu0
    %v4640 = vadd.f32 %v4617, %v4639
    %v4641 = vpop.f32.mrf.mxu0
    %v4642 = vadd.f32 %v4617, %v4641
    %4643 = vmatmul.bf16.gmra.mxu0 %v3977
    %v4644 = vpop.f32.mrf.mxu0
    %v4645 = vadd.f32 %v4617, %v4644
    %v4646 = vpop.f32.mrf.mxu0
    %4647 = vdwg.mxu0
    %v4648 = vpack.c.bf16 %v4606, %v4604
    %v4649 = vpack.c.bf16 %v4609, %v4609
    %v4650 = vpack.c.bf16 %v4642, %v4640
    %v4651 = vpack.c.bf16 %v4645, %v4645
    %v4653 = vsel %vm200, %v4648, 0
    %v4656 = vsel %vm200, %v4649, 0
    %v4659 = vsel %vm200, %v4650, 0
    %v4662 = vsel %vm200, %v4651, 0
    %4664 = vmatpush.bf16.xpose.msra.mxu0 0
    %4665 = vmatpush.bf16.xpose.msra.mxu0 0
    %4666 = vmatpush.bf16.xpose.msra.mxu0 0
    %4667 = vmatpush.bf16.xpose.msra.mxu0 0
    %4668 = vmatpush.bf16.xpose.msra.mxu0 0
    %4669 = vmatpush.bf16.xpose.msra.mxu0 0
    %4670 = vmatpush.bf16.xpose.msra.mxu0 %v4662
    %4671 = vmatpush.bf16.xpose.msra.mxu0 %v4659
    %4672 = vmatmul.bf16.gmra.mxu0 %v4653
    %v4673 = vpop.f32.mrf.mxu0
    %v4674 = vadd.f32 0.0, %v4673
    %v4675 = vpop.f32.mrf.mxu0
    %v4676 = vadd.f32 0.0, %v4675
    %4677 = vmatmul.bf16.gmra.mxu0 %v4656
    %v4678 = vpop.f32.mrf.mxu0
    %v4679 = vadd.f32 0.0, %v4678
    %v4680 = vpop.f32.mrf.mxu0
    %4681 = vdwg.mxu0
    %v4682 = vsel %vm399, %v4674, -inf
    %4683 = vmax.xlane.f32.xlu0 %v4682
    %v4684 = vpop.xlane.xlu0 %4683
    %v4685 = vsel %vm399, %v4676, -inf
    %4686 = vmax.xlane.f32.xlu0 %v4685
    %v4687 = vpop.xlane.xlu0 %4686
    %v4688 = vsel %vm406, %v4679, -inf
    %4689 = vmax.xlane.f32.xlu0 %v4688
    %v4690 = vpop.xlane.xlu0 %4689
    %v4691 = vsub.f32 %v4674, %v4684
    %v4692 = vsub.f32 %v4676, %v4687
    %v4693 = vsub.f32 %v4679, %v4690
    %v4694 = vmul.f32 %v4691, 1.442695
    %v4695 = vpow.pop %v4694
    %v4696 = vmul.f32 %v4692, 1.442695
    %v4697 = vpow.pop %v4696
    %v4698 = vmul.f32 %v4693, 1.442695
    %v4699 = vpow.pop %v4698
    %v4700 = vsel %vm399, %v4695, 0.0
    %4701 = vadd.xlane.f32.xlu0 %v4700
    %v4702 = vpop.xlane.xlu0 %4701
    %v4703 = vsel %vm399, %v4697, 0.0
    %4704 = vadd.xlane.f32.xlu0 %v4703
    %v4705 = vpop.xlane.xlu0 %4704
    %v4706 = vsel %vm406, %v4699, 0.0
    %4707 = vadd.xlane.f32.xlu0 %v4706
    %v4708 = vpop.xlane.xlu0 %4707
    %v4709 = vrcp.pop %v4702
    %v4710 = vrcp.pop %v4705
    %v4711 = vrcp.pop %v4708
    %v4712 = vmul.f32 %v4695, %v4709
    %v4713 = vmul.f32 %v4697, %v4710
    %v4714 = vmul.f32 %v4699, %v4711
    %v4715 = vld [vmem:[%s3 + $0x1b0] sm:$0xf]
    %v4716 = vld [vmem:[%s3 + $0x1b4] sm:$0xf]
    %v4717 = vld [vmem:[%s3 + $0x1b8] sm:$0xf]
    %v4718 = vld [vmem:[%s3 + $0x1bc] sm:$0xf]
    %v4723 = vunpack.c.l.b16 %v4715
    %v4724 = vunpack.c.l.b16 %v4716
    %v4725 = vunpack.c.l.b16 %v4717
    %v4726 = vunpack.c.l.b16 %v4718
    %v4727 = vpack.c.b16 %v4724, %v4723
    %v4728 = vpack.c.b16 %v4726, %v4725
    %4731 = vmatpush.bf16.msra.mxu0 0
    %4732 = vmatpush.bf16.msra.mxu0 0
    %4733 = vmatpush.bf16.msra.mxu0 0
    %4734 = vmatpush.bf16.msra.mxu0 0
    %4735 = vmatpush.bf16.msra.mxu0 0
    %4736 = vmatpush.bf16.msra.mxu0 0
    %4737 = vmatpush.bf16.msra.mxu0 %v4728
    %4738 = vmatpush.bf16.msra.mxu0 %v4727
    %4739 = vmatmul.bf16.gmra.mxu0 %v3974
    %v4740 = vpop.f32.mrf.mxu0
    %v4741 = vadd.f32 0.0, %v4740
    %v4742 = vpop.f32.mrf.mxu0
    %v4743 = vadd.f32 0.0, %v4742
    %4744 = vmatmul.bf16.gmra.mxu0 %v3977
    %v4745 = vpop.f32.mrf.mxu0
    %v4746 = vadd.f32 0.0, %v4745
    %v4747 = vpop.f32.mrf.mxu0
    %4748 = vdwg.mxu0
    %v4749 = vpack.c.bf16 %v4713, %v4712
    %v4750 = vpack.c.bf16 %v4714, %v4714
    %v4751 = vpack.c.bf16 %v4743, %v4741
    %v4752 = vpack.c.bf16 %v4746, %v4746
    %v4754 = vsel %vm399, %v4749, 0
    %v4757 = vsel %vm399, %v4750, 0
    %v4760 = vand.u32 %v4752, %v657
    %4762 = vmatpush.bf16.msra.mxu0 0
    %4763 = vmatpush.bf16.msra.mxu0 0
    %4764 = vmatpush.bf16.msra.mxu0 0
    %4765 = vmatpush.bf16.msra.mxu0 0
    %4766 = vmatpush.bf16.msra.mxu0 0
    %4767 = vmatpush.bf16.msra.mxu0 0
    %4768 = vmatpush.bf16.msra.mxu0 %v4760
    %4769 = vmatpush.bf16.msra.mxu0 %v4751
    %4770 = vmatmul.bf16.gmra.mxu0 %v4754
    %v4771 = vpop.f32.mrf.mxu0
    %v4772 = vadd.f32 0.0, %v4771
    %v4773 = vpop.f32.mrf.mxu0
    %v4774 = vadd.f32 0.0, %v4773
    %4775 = vmatmul.bf16.gmra.mxu0 %v4757
    %v4776 = vpop.f32.mrf.mxu0
    %v4777 = vadd.f32 0.0, %v4776
    %v4778 = vpop.f32.mrf.mxu0
    %4779 = vdwg.mxu0
    %v4780 = vadd.f32 %v4573, %v4772
    %v4781 = vadd.f32 %v4574, %v4774
    %v4782 = vadd.f32 %v4575, %v4777
    %v4783 = vld [vmem:[%s6 + $0xe0] sm:$0x1]
    %v4784 = vperm.slane %v4783, 0
    %v4785 = vadd.f32 %v4780, %v4784
    %v4786 = vadd.f32 %v4781, %v4784
    %v4787 = vadd.f32 %v4782, %v4784
    %v4788 = vadd.f32 %v3950, %v4785
    %v4789 = vadd.f32 %v3951, %v4786
    %v4790 = vadd.f32 %v3952, %v4787
    %v4791 = vld [vmem:[%s6 + $0xe8] sm:$0x1]
    %v4792 = vld [vmem:[%s6 + $0xf0] sm:$0x1]
    %v4793 = vsel %vm200, %v4788, 0.0
    %4794 = vadd.xlane.f32.xlu0 %v4793
    %v4795 = vpop.xlane.xlu0 %4794
    %v4796 = vsel %vm200, %v4789, 0.0
    %4797 = vadd.xlane.f32.xlu0 %v4796
    %v4798 = vpop.xlane.xlu0 %4797
    %v4799 = vsel %vm280, %v4790, 0.0
    %4800 = vadd.xlane.f32.xlu0 %v4799
    %v4801 = vpop.xlane.xlu0 %4800
    %v4802 = vmul.f32 %v4795, %v213
    %v4803 = vmul.f32 %v4798, %v213
    %v4804 = vmul.f32 %v4801, %v213
    %v4805 = vsub.f32 %v4788, %v4802
    %v4806 = vsub.f32 %v4789, %v4803
    %v4807 = vsub.f32 %v4790, %v4804
    %v4808 = vmul.f32 %v4805, %v4805
    %v4809 = vmul.f32 %v4806, %v4806
    %v4810 = vmul.f32 %v4807, %v4807
    %v4811 = vsel %vm200, %v4808, 0.0
    %4812 = vadd.xlane.f32.xlu0 %v4811
    %v4813 = vpop.xlane.xlu0 %4812
    %v4814 = vsel %vm200, %v4809, 0.0
    %4815 = vadd.xlane.f32.xlu0 %v4814
    %v4816 = vpop.xlane.xlu0 %4815
    %v4817 = vsel %vm280, %v4810, 0.0
    %4818 = vadd.xlane.f32.xlu0 %v4817
    %v4819 = vpop.xlane.xlu0 %4818
    %v4820 = vmul.f32 %v4813, %v213
    %v4821 = vmul.f32 %v4816, %v213
    %v4822 = vmul.f32 %v4819, %v213
    %v4823 = vadd.f32 %v4820, 1e-05
    %v4824 = vadd.f32 %v4821, 1e-05
    %v4825 = vadd.f32 %v4822, 1e-05
    %v4826 = vrsqrt.pop %v4823
    %v4827 = vmul.f32 %v4826, %v4823
    %v4828 = vmul.f32 %v4827, %v4826
    %v4829 = vmul.f32 0.5, %v4828
    %v4830 = vsub.f32 1.5, %v4829
    %v4831 = vmul.f32 %v4826, %v4830
    %vm4832 = vweird.f32 %v4823
    %vm4833 = vweird.f32 %v4826
    %vm4834 = vmor %vm4832, %vm4833
    %v4835 = vsel %vm4834, %v4826, %v4831
    %v4836 = vrsqrt.pop %v4824
    %v4837 = vmul.f32 %v4836, %v4824
    %v4838 = vmul.f32 %v4837, %v4836
    %v4839 = vmul.f32 0.5, %v4838
    %v4840 = vsub.f32 1.5, %v4839
    %v4841 = vmul.f32 %v4836, %v4840
    %vm4842 = vweird.f32 %v4824
    %vm4843 = vweird.f32 %v4836
    %vm4844 = vmor %vm4842, %vm4843
    %v4845 = vsel %vm4844, %v4836, %v4841
    %v4846 = vrsqrt.pop %v4825
    %v4847 = vmul.f32 %v4846, %v4825
    %v4848 = vmul.f32 %v4847, %v4846
    %v4849 = vmul.f32 0.5, %v4848
    %v4850 = vsub.f32 1.5, %v4849
    %v4851 = vmul.f32 %v4846, %v4850
    %vm4852 = vweird.f32 %v4825
    %vm4853 = vweird.f32 %v4846
    %vm4854 = vmor %vm4852, %vm4853
    %v4855 = vsel %vm4854, %v4846, %v4851
    %v4856 = vmul.f32 %v4805, %v4835
    %v4857 = vmul.f32 %v4806, %v4845
    %v4858 = vmul.f32 %v4807, %v4855
    %v4859 = vperm.slane %v4791, 0
    %v4860 = vmul.f32 %v4856, %v4859
    %v4861 = vmul.f32 %v4857, %v4859
    %v4862 = vmul.f32 %v4858, %v4859
    %v4863 = vperm.slane %v4792, 0
    %v4864 = vadd.f32 %v4860, %v4863
    %v4865 = vadd.f32 %v4861, %v4863
    %v4866 = vadd.f32 %v4862, %v4863
    %v4867 = vld [vmem:[%s4 + $0x18] sm:$0xf]
    %v4868 = vld [vmem:[%s4 + $0x1c] sm:$0xf]
    %v4869 = vld [vmem:[%s4 + $0x20] sm:$0xf]
    %v4870 = vld [vmem:[%s4 + $0x24] sm:$0xf]
    %v4871 = vpack.c.bf16 %v4865, %v4864
    %v4872 = vpack.c.bf16 %v4866, %v4866
    %v4873 = vld [vmem:[%s7 + $0x20] sm:$0x1]
    %v4874 = vperm.slane %v4873, 0
    %v4879 = vunpack.c.l.b16 %v4867
    %v4880 = vunpack.c.l.b16 %v4868
    %v4881 = vunpack.c.l.b16 %v4869
    %v4882 = vunpack.c.l.b16 %v4870
    %v4883 = vpack.c.b16 %v4880, %v4879
    %v4884 = vpack.c.b16 %v4882, %v4881
    %v4888 = vsel %vm200, %v4871, 0
    %v4891 = vsel %vm200, %v4872, 0
    %4893 = vmatpush.bf16.msra.mxu0 0
    %4894 = vmatpush.bf16.msra.mxu0 0
    %4895 = vmatpush.bf16.msra.mxu0 0
    %4896 = vmatpush.bf16.msra.mxu0 0
    %4897 = vmatpush.bf16.msra.mxu0 0
    %4898 = vmatpush.bf16.msra.mxu0 0
    %4899 = vmatpush.bf16.msra.mxu0 %v4884
    %4900 = vmatpush.bf16.msra.mxu0 %v4883
    %4901 = vmatmul.bf16.gmra.mxu0 %v4888
    %v4902 = vpop.f32.mrf.mxu0
    %v4903 = vadd.f32 %v4874, %v4902
    %v4904 = vpop.f32.mrf.mxu0
    %v4905 = vadd.f32 %v4874, %v4904
    %4906 = vmatmul.bf16.gmra.mxu0 %v4891
    %v4907 = vpop.f32.mrf.mxu0
    %v4908 = vadd.f32 %v4874, %v4907
    %v4909 = vpop.f32.mrf.mxu0
    %4910 = vdwg.mxu0
    %v4911 = vmax.f32 %v4903, 0.0
    %v4912 = vmax.f32 %v4905, 0.0
    %v4913 = vmax.f32 %v4908, 0.0
    %v4914 = vld [vmem:[%s3 + $0x1c0] sm:$0xf]
    %v4915 = vld [vmem:[%s3 + $0x1c4] sm:$0xf]
    %v4916 = vld [vmem:[%s3 + $0x1c8] sm:$0xf]
    %v4917 = vld [vmem:[%s3 + $0x1cc] sm:$0xf]
    %v4918 = vld [vmem:[%s3 + $0x1d0] sm:$0xf]
    %v4919 = vld [vmem:[%s3 + $0x1d4] sm:$0xf]
    %v4920 = vld [vmem:[%s3 + $0x1d8] sm:$0xf]
    %v4921 = vld [vmem:[%s3 + $0x1dc] sm:$0xf]
    %v4922 = vpack.c.bf16 %v4912, %v4911
    %v4923 = vpack.c.bf16 %v4913, %v4913
    %v4924 = vld [vmem:[%s6 + $0xf8] sm:$0x1]
    %v4925 = vperm.slane %v4924, 0
    %v4934 = vunpack.c.l.b16 %v4914
    %v4935 = vunpack.c.l.b16 %v4915
    %v4936 = vunpack.c.l.b16 %v4916
    %v4937 = vunpack.c.l.b16 %v4917
    %v4938 = vunpack.c.l.b16 %v4918
    %v4939 = vunpack.c.l.b16 %v4919
    %v4940 = vunpack.c.l.b16 %v4920
    %v4941 = vunpack.c.l.b16 %v4921
    %v4942 = vpack.c.b16 %v4935, %v4934
    %v4943 = vpack.c.b16 %v4937, %v4936
    %v4944 = vpack.c.b16 %v4939, %v4938
    %v4945 = vpack.c.b16 %v4941, %v4940
    %v4951 = vsel %vm70, %v4922, 0
    %v4954 = vsel %vm70, %v4923, 0
    %4956 = vmatpush.bf16.msra.mxu0 0
    %4957 = vmatpush.bf16.msra.mxu0 0
    %4958 = vmatpush.bf16.msra.mxu0 0
    %4959 = vmatpush.bf16.msra.mxu0 0
    %4960 = vmatpush.bf16.msra.mxu0 %v4945
    %4961 = vmatpush.bf16.msra.mxu0 %v4944
    %4962 = vmatpush.bf16.msra.mxu0 %v4943
    %4963 = vmatpush.bf16.msra.mxu0 %v4942
    %4964 = vmatmul.bf16.gmra.mxu0 %v4951
    %v4965 = vpop.f32.mrf.mxu0
    %v4966 = vadd.f32 %v4925, %v4965
    %v4967 = vpop.f32.mrf.mxu0
    %v4968 = vadd.f32 %v4925, %v4967
    %4969 = vmatmul.bf16.gmra.mxu0 %v4954
    %v4970 = vpop.f32.mrf.mxu0
    %v4971 = vadd.f32 %v4925, %v4970
    %v4972 = vpop.f32.mrf.mxu0
    %4973 = vdwg.mxu0
    %v4974 = vadd.f32 %v4864, %v4966
    %v4975 = vadd.f32 %v4865, %v4968
    %v4976 = vadd.f32 %v4866, %v4971
    %v4977 = vld [vmem:[%s6 + $0x100] sm:$0x1]
    %v4978 = vld [vmem:[%s6 + $0x108] sm:$0x1]
    %v4979 = vsel %vm200, %v4974, 0.0
    %4980 = vadd.xlane.f32.xlu0 %v4979
    %v4981 = vpop.xlane.xlu0 %4980
    %v4982 = vsel %vm200, %v4975, 0.0
    %4983 = vadd.xlane.f32.xlu0 %v4982
    %v4984 = vpop.xlane.xlu0 %4983
    %v4985 = vsel %vm280, %v4976, 0.0
    %4986 = vadd.xlane.f32.xlu0 %v4985
    %v4987 = vpop.xlane.xlu0 %4986
    %v4988 = vmul.f32 %v4981, %v213
    %v4989 = vmul.f32 %v4984, %v213
    %v4990 = vmul.f32 %v4987, %v213
    %v4991 = vsub.f32 %v4974, %v4988
    %v4992 = vsub.f32 %v4975, %v4989
    %v4993 = vsub.f32 %v4976, %v4990
    %v4994 = vmul.f32 %v4991, %v4991
    %v4995 = vmul.f32 %v4992, %v4992
    %v4996 = vmul.f32 %v4993, %v4993
    %v4997 = vsel %vm200, %v4994, 0.0
    %4998 = vadd.xlane.f32.xlu0 %v4997
    %v4999 = vpop.xlane.xlu0 %4998
    %v5000 = vsel %vm200, %v4995, 0.0
    %5001 = vadd.xlane.f32.xlu0 %v5000
    %v5002 = vpop.xlane.xlu0 %5001
    %v5003 = vsel %vm280, %v4996, 0.0
    %5004 = vadd.xlane.f32.xlu0 %v5003
    %v5005 = vpop.xlane.xlu0 %5004
    %v5006 = vmul.f32 %v4999, %v213
    %v5007 = vmul.f32 %v5002, %v213
    %v5008 = vmul.f32 %v5005, %v213
    %v5009 = vadd.f32 %v5006, 1e-05
    %v5010 = vadd.f32 %v5007, 1e-05
    %v5011 = vadd.f32 %v5008, 1e-05
    %v5012 = vrsqrt.pop %v5009
    %v5013 = vmul.f32 %v5012, %v5009
    %v5014 = vmul.f32 %v5013, %v5012
    %v5015 = vmul.f32 0.5, %v5014
    %v5016 = vsub.f32 1.5, %v5015
    %v5017 = vmul.f32 %v5012, %v5016
    %vm5018 = vweird.f32 %v5009
    %vm5019 = vweird.f32 %v5012
    %vm5020 = vmor %vm5018, %vm5019
    %v5021 = vsel %vm5020, %v5012, %v5017
    %v5022 = vrsqrt.pop %v5010
    %v5023 = vmul.f32 %v5022, %v5010
    %v5024 = vmul.f32 %v5023, %v5022
    %v5025 = vmul.f32 0.5, %v5024
    %v5026 = vsub.f32 1.5, %v5025
    %v5027 = vmul.f32 %v5022, %v5026
    %vm5028 = vweird.f32 %v5010
    %vm5029 = vweird.f32 %v5022
    %vm5030 = vmor %vm5028, %vm5029
    %v5031 = vsel %vm5030, %v5022, %v5027
    %v5032 = vrsqrt.pop %v5011
    %v5033 = vmul.f32 %v5032, %v5011
    %v5034 = vmul.f32 %v5033, %v5032
    %v5035 = vmul.f32 0.5, %v5034
    %v5036 = vsub.f32 1.5, %v5035
    %v5037 = vmul.f32 %v5032, %v5036
    %vm5038 = vweird.f32 %v5011
    %vm5039 = vweird.f32 %v5032
    %vm5040 = vmor %vm5038, %vm5039
    %v5041 = vsel %vm5040, %v5032, %v5037
    %v5042 = vmul.f32 %v4991, %v5021
    %v5043 = vmul.f32 %v4992, %v5031
    %v5044 = vmul.f32 %v4993, %v5041
    %v5045 = vperm.slane %v4977, 0
    %v5046 = vmul.f32 %v5042, %v5045
    %v5047 = vmul.f32 %v5043, %v5045
    %v5048 = vmul.f32 %v5044, %v5045
    %v5049 = vperm.slane %v4978, 0
    %v5050 = vadd.f32 %v5046, %v5049
    %v5051 = vadd.f32 %v5047, %v5049
    %v5052 = vadd.f32 %v5048, %v5049
    %v5053 = vsel %vm200, %v5050, 0.0
    %v5054 = vsel %vm200, %v5051, 0.0
    %v5055 = vadd.f32 %v5053, %v5054
    %v5056 = vsel %vm280, %v5052, 0.0
    %v5057 = vadd.f32 %v5055, %v5056
    %v5058 = vrot.slane %v5057, 4
    %v5059 = vadd.f32 %v5057, %v5058
    %v5060 = vrot.slane %v5059, 2
    %v5061 = vadd.f32 %v5059, %v5060
    %v5062 = vrot.slane %v5061, 1
    %v5063 = vadd.f32 %v5061, %v5062
    %v5064 = vmul.f32 %v5063, %v2507
    %s5065 = scalar_lea.vmem %s1, 8
    %v5066 = vld [vmem:[%s5065] sm:$0xff]
    %s5067 = scalar_lea.vmem %s2, 8
    %v5068 = vld [vmem:[%s5067] sm:$0xff]
    %5070 = vset.pattern.permute.xlu0 0
    %5071 = vperm.xlu0 %5070, %v5068
    %v5072 = vpop.permute.xlu0 %5071
    %v5074 = vmul.f32 %v5066, %v5072
    %v5075 = vsel %vm200, %v5074, 0.0
    %v5076 = vrot.slane %v5075, 4
    %v5077 = vadd.f32 %v5075, %v5076
    %v5078 = vrot.slane %v5077, 2
    %v5079 = vadd.f32 %v5077, %v5078
    %v5080 = vrot.slane %v5079, 1
    %v5081 = vadd.f32 %v5079, %v5080
    %v5082 = vsel %vm2524, %v5068, 0.0
    %v5083 = vrot.slane %v5082, 4
    %v5084 = vadd.f32 %v5082, %v5083
    %v5085 = vrot.slane %v5084, 2
    %v5086 = vadd.f32 %v5084, %v5085
    %v5087 = vrot.slane %v5086, 1
    %v5088 = vadd.f32 %v5086, %v5087
    %v5089 = vmax.f32 %v5088, 1e-09
    %5091 = vset.pattern.permute.xlu0 0
    %5092 = vperm.xlu0 %5091, %v5089
    %v5093 = vpop.permute.xlu0 %5092
    %v5095 = vrcp.pop %v5093
    %v5096 = vmul.f32 %v5093, %v5095
    %v5097 = vsub.f32 1.0, %v5096
    %v5098 = vmul.f32 %v5095, %v5097
    %v5099 = vadd.f32 %v5095, %v5098
    %vm5100 = vweird.f32 %v5093
    %vm5101 = vweird.f32 %v5095
    %vm5102 = vmor %vm5100, %vm5101
    %v5103 = vsel %vm5102, %v5095, %v5099
    %v5104 = vand.u32 2147483647, %v5093
    %vm5105 = vcmp.eq.f32.partialorder %v5104, 8.507059e+37
    %v5106 = vand.u32 %v5093, 2147483648
    %v5107 = vor.u32 1.1754944e-38, %v5106
    %v5108 = vsel %vm5105, %v5107, %v5103
    %v5109 = vmul.f32 %v5081, %v5108
    %v5110 = vld [vmem:[%s5] sm:$0xf]
    %v5111 = vld [vmem:[%s5 + $0x4] sm:$0xf]
    %v5112 = vld [vmem:[%s5 + $0x8] sm:$0xf]
    %v5113 = vld [vmem:[%s5 + $0xc] sm:$0xf]
    %v5114 = vpack.c.bf16 %v5064, %v5064
    %v5115 = vld [vmem:[%s5 + $0x10] sm:$0xf]
    %v5116 = vld [vmem:[%s5 + $0x14] sm:$0xf]
    %v5117 = vld [vmem:[%s5 + $0x18] sm:$0xf]
    %v5118 = vld [vmem:[%s5 + $0x1c] sm:$0xf]
    %v5119 = vpack.c.bf16 %v5109, %v5109
    %v5124 = vunpack.c.l.b16 %v5115
    %v5125 = vunpack.c.l.b16 %v5116
    %v5126 = vunpack.c.l.b16 %v5117
    %v5127 = vunpack.c.l.b16 %v5118
    %v5128 = vpack.c.b16 %v5125, %v5124
    %v5129 = vpack.c.b16 %v5127, %v5126
    %v5133 = vsel %vm200, %v5119, 0
    %5135 = vmatpush.bf16.msra.mxu0 0
    %5136 = vmatpush.bf16.msra.mxu0 0
    %5137 = vmatpush.bf16.msra.mxu0 0
    %5138 = vmatpush.bf16.msra.mxu0 0
    %5139 = vmatpush.bf16.msra.mxu0 0
    %5140 = vmatpush.bf16.msra.mxu0 0
    %5141 = vmatpush.bf16.msra.mxu0 %v5129
    %5142 = vmatpush.bf16.msra.mxu0 %v5128
    %5143 = vmatmul.bf16.gmra.mxu0 %v5133
    %v5144 = vpop.f32.mrf.mxu0
    %v5145 = vadd.f32 0.0, %v5144
    %v5146 = vpop.f32.mrf.mxu0
    %5147 = vdwg.mxu0
    %v5152 = vunpack.c.l.b16 %v5110
    %v5153 = vunpack.c.l.b16 %v5111
    %v5154 = vunpack.c.l.b16 %v5112
    %v5155 = vunpack.c.l.b16 %v5113
    %v5156 = vpack.c.b16 %v5153, %v5152
    %v5157 = vpack.c.b16 %v5155, %v5154
    %v5161 = vsel %vm200, %v5114, 0
    %5163 = vmatpush.bf16.msra.mxu0 0
    %5164 = vmatpush.bf16.msra.mxu0 0
    %5165 = vmatpush.bf16.msra.mxu0 0
    %5166 = vmatpush.bf16.msra.mxu0 0
    %5167 = vmatpush.bf16.msra.mxu0 0
    %5168 = vmatpush.bf16.msra.mxu0 0
    %5169 = vmatpush.bf16.msra.mxu0 %v5157
    %5170 = vmatpush.bf16.msra.mxu0 %v5156
    %5171 = vmatmul.bf16.gmra.mxu0 %v5161
    %v5172 = vpop.f32.mrf.mxu0
    %v5173 = vadd.f32 %v5145, %v5172
    %v5174 = vpop.f32.mrf.mxu0
    %5175 = vdwg.mxu0
    %v5176 = vld [vmem:[%s8] sm:$0x1]
    %v5177 = vadd.f32 %v5173, %v5176
    %s5178 = scalar_lea.vmem [#allocation3], 1
    %5179 = vst [vmem:[%s5178] sm:$0x1] %v5177
    // Predicated region
    $region38: #{forward.1} parent=1 // pred_check
      _
    $region39: #{forward.1} parent=1 // pred_check_branch
      %5181 = sbr.rel (0) target = $region41
    $region40: #{forward.1} parent=1 // pred_region
      %5183 = vsyncadd [#allocation4], 0
      %s5184 = sshll.u32 [#allocation3], 4
      %s5185 = int_to_ptr.vmem [resolvable:$true] %s5184
      %s5186 = sshll.u32 %s9, 4
      %s5187 = int_to_ptr.hbm [resolvable:$true] %s5186
      %5192 = dma.vmem_to_hbm [thread:$0]  %s5185, 32, %s5187, [#allocation4], 16, 16, 1
    $region41: #{forward.1} parent=1 // pred_fallthru
      _
    // Predicated region
    $region42: #{forward.1} parent=1 // pred_check
      _
    $region43: #{forward.1} parent=1 // pred_check_branch
      %5194 = sbr.rel (0) target = $region45
    $region44: #{forward.1} parent=1 // pred_region
      %5196 = dma.done [#allocation4], 32
    $region45: #{forward.1} parent=1 // pred_fallthru
      _
    %5197 = vsyncpa [#allocation4], 1

</llo_original>
